<compile_context>
chip_gen: v5e
topology: v5e:2x2
jax: 0.10.0
libtpu: 0.0.40
codegen_flags: <defaults>
</compile_context>

<pallas_src>
import functools

import jax
import jax.numpy as jnp
from jax.experimental import pallas as pl
from jax.experimental.pallas import tpu as pltpu


# ----------------------------------------------------------------------------
# Kernel
# ----------------------------------------------------------------------------
def _make_decoder_kernel(T, Bp, H, loc_num):
    HI = jax.lax.Precision.HIGHEST

    def row_off(t):
        off = t * Bp
        return off if isinstance(off, int) else pl.multiple_of(off, Bp)

    def kernel(xi_ref, lat_ref, emb_ref, w1il_ref, w1ie_ref, b1a_ref,
               w1h_ref, b1hn_ref, w2p_ref, b2p_ref, wout_ref, bout_ref,
               out_ref, gi_scr, h2_scr):
        f32 = jnp.float32

        def mm(a, b):
            return jnp.dot(a, b, preferred_element_type=f32, precision=HI)

        # -------- prologue: in-kernel embedding gather (one-hot matmul over the
        # tiny table) + hoisted layer-0 input projection for ALL timesteps ------
        idx = xi_ref[...]                                            # (T*Bp, 1) i32
        lanes = jax.lax.broadcasted_iota(jnp.int32, (T * Bp, loc_num), 1)
        onehot = (idx == lanes).astype(f32)                          # (T*Bp, loc)
        emb_proj = mm(emb_ref[...], w1ie_ref[...])                   # (loc, 3H)
        gi_scr[...] = mm(onehot, emb_proj)                           # (T*Bp, 3H)

        # time-invariant latent contribution + fused layer-0 input biases
        lat_bias = mm(lat_ref[...], w1il_ref[...]) + b1a_ref[...]    # (Bp, 3H)

        # -------- hoist every loop-invariant ref read out of the recurrence ----
        w1h = w1h_ref[...]       # (H, 3H)   layer-0 recurrent weights, fused gates
        b1hn = b1hn_ref[...]     # (1, H)    layer-0 hidden bias of the n-gate
        w2p = w2p_ref[...]       # (2H, 4H)  layer-1 packed [r | z | n_in | n_hid]
        b2p = b2p_ref[...]       # (1, 4H)

        def gate_in(t):
            return gi_scr[pl.ds(row_off(t), Bp), :] + lat_bias       # (Bp, 3H)

        def cell0(gi_full, h1):                  # one fused 96-lane matmul
            gh = mm(h1, w1h)
            s = gi_full + gh
            r = jax.nn.sigmoid(s[:, :H])
            z = jax.nn.sigmoid(s[:, H:2 * H])
            n = jnp.tanh(gi_full[:, 2 * H:] + r * (gh[:, 2 * H:] + b1hn))
            return n + z * (h1 - n)

        def cell1(h1, h2):                       # one packed 128-lane matmul
            g = mm(jnp.concatenate([h1, h2], axis=1), w2p) + b2p
            r = jax.nn.sigmoid(g[:, :H])
            z = jax.nn.sigmoid(g[:, H:2 * H])
            n = jnp.tanh(g[:, 2 * H:3 * H] + r * g[:, 3 * H:])
            return n + z * (h2 - n)

        def skew_step(t, carry):
            # carry = (h1[t-1], h2[t-2]); the two cell updates are independent,
            # giving the scheduler two MXU/EUP streams to interleave.
            h1p, h2p = carry
            h1n = cell0(gate_in(t), h1p)                             # h1[t]
            h2n = cell1(h1p, h2p)                                    # h2[t-1]
            h2_scr[pl.ds(row_off(t - 1), Bp), :] = h2n
            return (h1n, h2n)

        zero_h = jnp.zeros((Bp, H), f32)
        carry = (cell0(gate_in(0), zero_h), zero_h)                  # (h1[0], 0)

        # peel one step if needed so the main loop is an exact 2x unroll
        t0 = 1
        if (T - t0) % 2:
            carry = skew_step(t0, carry)
            t0 += 1

        def pair(i, c):                          # manual unroll-by-2
            t = t0 + 2 * i
            return skew_step(t + 1, skew_step(t, c))

        carry = jax.lax.fori_loop(0, (T - t0) // 2, pair, carry)

        # skew epilogue: final layer-1 step
        h1_last, h2_prev = carry
        h2_scr[pl.ds(row_off(T - 1), Bp), :] = cell1(h1_last, h2_prev)

        # -------- batched, lane-dense output Linear (Op is a multiple of 128) --
        out_ref[...] = (mm(h2_scr[...], wout_ref[...])
                        + bout_ref[...]).astype(out_ref.dtype)

    return kernel


# ----------------------------------------------------------------------------
# Wrapper
# ----------------------------------------------------------------------------
def decoder_forward(latent_code, x_idx, params, length=54):
    """latent_code: (B, latent_dim) f32; x_idx: (B, T) int32 -> (B, T, loc_num-2)."""
    B, T = x_idx.shape
    assert T == length
    emb = params["embedding"].astype(jnp.float32)
    loc_num, E = emb.shape
    L = latent_code.shape[1]
    H = params["whh_l0"].shape[0]
    O = params["w_out"].shape[1]
    Bp = max(8, ((B + 7) // 8) * 8)            # pad batch to a full sublane tile
    Op = ((O + 127) // 128) * 128              # lane-dense output width

    # ---- minimal XLA glue: pad/transpose the tiny indices & latent ----
    xi = x_idx.T.astype(jnp.int32)                         # (T, B), time-major
    if Bp != B:
        xi = jnp.pad(xi, ((0, 0), (0, Bp - B)))
    xi = xi.reshape(T * Bp, 1)
    lat = latent_code.astype(jnp.float32)
    if Bp != B:
        lat = jnp.pad(lat, ((0, Bp - B), (0, 0)))          # (Bp, L)

    # ---- weight packing: keep fused-gate lane layouts (no per-gate split) ----
    wih0, whh0 = params["wih_l0"], params["whh_l0"]
    wih1, whh1 = params["wih_l1"], params["whh_l1"]
    bih0, bhh0 = params["bih_l0"], params["bhh_l0"]
    bih1, bhh1 = params["bih_l1"], params["bhh_l1"]

    w1i_lat, w1i_emb = wih0[:L], wih0[L:]                  # input order [latent, emb]
    # layer-0 added biases: r/z get b_ih+b_hh, n gets only b_ih (b_hh_n stays
    # inside the r-gated term).
    b1a = jnp.concatenate([bih0[:, :2 * H] + bhh0[:, :2 * H], bih0[:, 2 * H:]], axis=1)
    b1hn = bhh0[:, 2 * H:]

    # layer-1 packed RHS (2H, 4H): lane blocks [r(in+hid) | z(in+hid) | n_in | n_hid]
    zhh = jnp.zeros((H, H), jnp.float32)
    w2pack = jnp.concatenate([
        jnp.concatenate([wih1[:, :H], whh1[:, :H]], axis=0),
        jnp.concatenate([wih1[:, H:2 * H], whh1[:, H:2 * H]], axis=0),
        jnp.concatenate([wih1[:, 2 * H:], zhh], axis=0),
        jnp.concatenate([zhh, whh1[:, 2 * H:]], axis=0),
    ], axis=1)
    b2pack = jnp.concatenate([bih1[:, :2 * H] + bhh1[:, :2 * H],
                              bih1[:, 2 * H:], bhh1[:, 2 * H:]], axis=1)   # (1, 4H)

    wout = jnp.pad(params["w_out"], ((0, 0), (0, Op - O)))
    bout = jnp.pad(params["b_out"], ((0, 0), (0, Op - O)))

    def full(shape):
        return pl.BlockSpec(shape, lambda i: (0,) * len(shape))

    out2d = pl.pallas_call(
        _make_decoder_kernel(T, Bp, H, loc_num),
        out_shape=jax.ShapeDtypeStruct((T * Bp, Op), jnp.float32),
        grid=(1,),                              # single invocation; T-loop inside
        in_specs=[
            full((T * Bp, 1)),                                  # location indices
            full((Bp, L)), full((loc_num, E)),                  # latent, emb table
            full((L, 3 * H)), full((E, 3 * H)), full((1, 3 * H)),
            full((H, 3 * H)), full((1, H)),
            full((2 * H, 4 * H)), full((1, 4 * H)),
            full((H, Op)), full((1, Op)),
        ],
        out_specs=full((T * Bp, Op)),
        scratch_shapes=[
            pltpu.VMEM((T * Bp, 3 * H), jnp.float32),   # hoisted layer-0 gate inputs
            pltpu.VMEM((T * Bp, H), jnp.float32),       # h2 history for batched Linear
        ],
        compiler_params=pltpu.CompilerParams(dimension_semantics=("arbitrary",)),
    )(xi, lat, emb, w1i_lat, w1i_emb, b1a, whh0, b1hn, w2pack, b2pack, wout, bout)

    out = out2d.reshape(T, Bp, Op)[:, :B, :O]              # drop batch/lane padding
    return jnp.transpose(out, (1, 0, 2))                   # (B, T, O), batch-first


# ----------------------------------------------------------------------------
# Pure-JAX reference (same parameterization, HIGHEST precision = "truth")
# ----------------------------------------------------------------------------
def reference_forward(latent_code, x_idx, params, length):
    B, T = x_idx.shape
    emb_table = params["embedding"]
    L = latent_code.shape[1]
    H = params["whh_l0"].shape[0]
    hi = jax.lax.Precision.HIGHEST

    embedded = emb_table[x_idx]
    lat = jnp.broadcast_to(latent_code[:, None, :], (B, T, L))
    gru_in = jnp.concatenate([lat, embedded], axis=-1).astype(jnp.float32)
    gru_in_tm = jnp.transpose(gru_in, (1, 0, 2))                    # (T, B, D)

    def cell(x, h, wih, whh, bih, bhh):
        gi = jnp.dot(x, wih, precision=hi) + bih
        gh = jnp.dot(h, whh, precision=hi) + bhh
        r = jax.nn.sigmoid(gi[:, :H] + gh[:, :H])
        z = jax.nn.sigmoid(gi[:, H:2 * H] + gh[:, H:2 * H])
        n = jnp.tanh(gi[:, 2 * H:] + r * gh[:, 2 * H:])
        return (1.0 - z) * n + z * h

    def step(carry, x_t):
        h1, h2 = carry
        h1 = cell(x_t, h1, params["wih_l0"], params["whh_l0"],
                  params["bih_l0"], params["bhh_l0"])
        h2 = cell(h1, h2, params["wih_l1"], params["whh_l1"],
                  params["bih_l1"], params["bhh_l1"])
        y = jnp.dot(h2, params["w_out"], precision=hi) + params["b_out"]
        return (h1, h2), y

    h0 = (jnp.zeros((B, H), jnp.float32), jnp.zeros((B, H), jnp.float32))
    _, ys = jax.lax.scan(step, h0, gru_in_tm)
    return jnp.transpose(ys, (1, 0, 2))


# ----------------------------------------------------------------------------
# Deterministic parameter init (PyTorch-equivalent shapes, transposed so the
# kernel can do x @ W directly; fused 3H gate layout repacked in the wrapper).
# ----------------------------------------------------------------------------
def init_params(key, loc_num, embedding_dim, hidden_dim, latent_dim):
    ks = jax.random.split(key, 11)
    D0 = embedding_dim + latent_dim
    scale = 1.0 / jnp.sqrt(jnp.float32(hidden_dim))

    def u(k, shape):
        return jax.random.uniform(k, shape, jnp.float32, -1.0, 1.0) * scale

    return {
        "embedding": jax.random.normal(ks[0], (loc_num, embedding_dim), jnp.float32),
        "wih_l0": u(ks[1], (D0, 3 * hidden_dim)),
        "whh_l0": u(ks[2], (hidden_dim, 3 * hidden_dim)),
        "bih_l0": u(ks[3], (1, 3 * hidden_dim)),
        "bhh_l0": u(ks[4], (1, 3 * hidden_dim)),
        "wih_l1": u(ks[5], (hidden_dim, 3 * hidden_dim)),
        "whh_l1": u(ks[6], (hidden_dim, 3 * hidden_dim)),
        "bih_l1": u(ks[7], (1, 3 * hidden_dim)),
        "bhh_l1": u(ks[8], (1, 3 * hidden_dim)),
        "w_out": u(ks[9], (hidden_dim, loc_num - 2)),
        "b_out": u(ks[10], (1, loc_num - 2)),
    }


if __name__ == "__main__":
    # small shapes consistent with the module (length=54 is the module default)
    loc_num, embedding_dim, hidden_dim, latent_dim = 20, 16, 32, 8
    B, T = 2, 54

    key = jax.random.PRNGKey(0)
    kp, kl, kx = jax.random.split(key, 3)
    params = init_params(kp, loc_num, embedding_dim, hidden_dim, latent_dim)
    latent_code = jax.random.normal(kl, (B, latent_dim), jnp.float32)
    x_idx = jax.random.randint(kx, (B, T), 0, loc_num, dtype=jnp.int32)

    fwd = jax.jit(functools.partial(decoder_forward, length=T))
    out = jax.block_until_ready(fwd(latent_code, x_idx, params))

    ref = reference_forward(latent_code, x_idx, params, T)
    assert out.shape == (B, T, loc_num - 2), out.shape
    # Kernel matmuls run at HIGHEST precision (per review) so the only
    # divergence from the reference is op reordering / EUP approximations,
    # amplified through the 54-step recurrence: expected ~1e-4, bound at 1e-2.
    err = float(jnp.max(jnp.abs(out - ref)))
    assert err < 1e-2, err

    print("KERNEL_OK")
</pallas_src>

<mosaic_0001>
module attributes {stable_mosaic.version = 11 : i64} {
  func.func @kernel(%arg0: i32, %arg1: memref<432x1xi32, #tpu.memory_space<vmem>>, %arg2: memref<8x8xf32, #tpu.memory_space<vmem>>, %arg3: memref<20x16xf32, #tpu.memory_space<vmem>>, %arg4: memref<8x96xf32, #tpu.memory_space<vmem>>, %arg5: memref<16x96xf32, #tpu.memory_space<vmem>>, %arg6: memref<1x96xf32, #tpu.memory_space<vmem>>, %arg7: memref<32x96xf32, #tpu.memory_space<vmem>>, %arg8: memref<1x32xf32, #tpu.memory_space<vmem>>, %arg9: memref<64x128xf32, #tpu.memory_space<vmem>>, %arg10: memref<1x128xf32, #tpu.memory_space<vmem>>, %arg11: memref<32x128xf32, #tpu.memory_space<vmem>>, %arg12: memref<1x128xf32, #tpu.memory_space<vmem>>, %arg13: memref<432x128xf32, #tpu.memory_space<vmem>>, %arg14: memref<432x96xf32, #tpu.memory_space<vmem>>, %arg15: memref<432x32xf32, #tpu.memory_space<vmem>>) attributes {dimension_semantics = [#tpu.dimension_semantics<arbitrary>], iteration_bounds = array<i64: 1>, scalar_prefetch = 0 : i64, scratch_operands = 2 : i64, tpu.core_type = #tpu.core_type<tc>, window_params = [{pipeline_mode = #tpu.pipeline_mode<synchronous>, transform_indices = @transform_0, window_bounds = array<i64: 432, 1>}, {pipeline_mode = #tpu.pipeline_mode<synchronous>, transform_indices = @transform_1, window_bounds = array<i64: 8, 8>}, {pipeline_mode = #tpu.pipeline_mode<synchronous>, transform_indices = @transform_2, window_bounds = array<i64: 20, 16>}, {pipeline_mode = #tpu.pipeline_mode<synchronous>, transform_indices = @transform_3, window_bounds = array<i64: 8, 96>}, {pipeline_mode = #tpu.pipeline_mode<synchronous>, transform_indices = @transform_4, window_bounds = array<i64: 16, 96>}, {pipeline_mode = #tpu.pipeline_mode<synchronous>, transform_indices = @transform_5, window_bounds = array<i64: 1, 96>}, {pipeline_mode = #tpu.pipeline_mode<synchronous>, transform_indices = @transform_6, window_bounds = array<i64: 32, 96>}, {pipeline_mode = #tpu.pipeline_mode<synchronous>, transform_indices = @transform_7, window_bounds = array<i64: 1, 32>}, {pipeline_mode = #tpu.pipeline_mode<synchronous>, transform_indices = @transform_8, window_bounds = array<i64: 64, 128>}, {pipeline_mode = #tpu.pipeline_mode<synchronous>, transform_indices = @transform_9, window_bounds = array<i64: 1, 128>}, {pipeline_mode = #tpu.pipeline_mode<synchronous>, transform_indices = @transform_10, window_bounds = array<i64: 32, 128>}, {pipeline_mode = #tpu.pipeline_mode<synchronous>, transform_indices = @transform_11, window_bounds = array<i64: 1, 128>}, {pipeline_mode = #tpu.pipeline_mode<synchronous>, transform_indices = @transform_12, window_bounds = array<i64: 432, 128>}]} {
    %c0 = arith.constant 0 : index
    %c0_0 = arith.constant 0 : index
    %0 = vector.load %arg1[%c0, %c0_0] : memref<432x1xi32, #tpu.memory_space<vmem>>, vector<432x1xi32>
    %1 = tpu.iota {dimensions = array<i32: 1>} : vector<432x20xi32>
    %2 = vector.broadcast %0 : vector<432x1xi32> to vector<432x20xi32>
    %3 = arith.cmpi eq, %2, %1 : vector<432x20xi32>
    %4 = arith.extui %3 : vector<432x20xi1> to vector<432x20xi32>
    %5 = arith.sitofp %4 : vector<432x20xi32> to vector<432x20xf32>
    %c0_1 = arith.constant 0 : index
    %c0_2 = arith.constant 0 : index
    %6 = vector.load %arg3[%c0_1, %c0_2] : memref<20x16xf32, #tpu.memory_space<vmem>>, vector<20x16xf32>
    %c0_3 = arith.constant 0 : index
    %c0_4 = arith.constant 0 : index
    %7 = vector.load %arg5[%c0_3, %c0_4] : memref<16x96xf32, #tpu.memory_space<vmem>>, vector<16x96xf32>
    %cst = arith.constant dense<0.000000e+00> : vector<20x96xf32>
    %8 = tpu.matmul %6, %7, %cst {dimension_numbers = #tpu.dot_dimension_numbers<[1], [0], [0], [1], [0, 0, 1, 1], [], []>, precision = #tpu.contract_precision<fp32>} : vector<20x16xf32>, vector<16x96xf32>, vector<20x96xf32> -> vector<20x96xf32>
    %cst_5 = arith.constant dense<0.000000e+00> : vector<432x96xf32>
    %9 = tpu.matmul %5, %8, %cst_5 {dimension_numbers = #tpu.dot_dimension_numbers<[1], [0], [0], [1], [0, 0, 1, 1], [], []>, precision = #tpu.contract_precision<fp32>} : vector<432x20xf32>, vector<20x96xf32>, vector<432x96xf32> -> vector<432x96xf32>
    %c0_6 = arith.constant 0 : index
    %c0_7 = arith.constant 0 : index
    %10 = vector.load %arg14[%c0_6, %c0_7] : memref<432x96xf32, #tpu.memory_space<vmem>>, vector<432x96xf32>
    tpu.vector_store %arg14[%c0_6, %c0_7], %9 {strides = array<i32>} : memref<432x96xf32, #tpu.memory_space<vmem>>, vector<432x96xf32>,
    %c0_8 = arith.constant 0 : index
    %c0_9 = arith.constant 0 : index
    %11 = vector.load %arg2[%c0_8, %c0_9] : memref<8x8xf32, #tpu.memory_space<vmem>>, vector<8x8xf32>
    %c0_10 = arith.constant 0 : index
    %c0_11 = arith.constant 0 : index
    %12 = vector.load %arg4[%c0_10, %c0_11] : memref<8x96xf32, #tpu.memory_space<vmem>>, vector<8x96xf32>
    %cst_12 = arith.constant dense<0.000000e+00> : vector<8x96xf32>
    %13 = tpu.matmul %11, %12, %cst_12 {dimension_numbers = #tpu.dot_dimension_numbers<[1], [0], [0], [1], [0, 0, 1, 1], [], []>, precision = #tpu.contract_precision<fp32>} : vector<8x8xf32>, vector<8x96xf32>, vector<8x96xf32> -> vector<8x96xf32>
    %c0_13 = arith.constant 0 : index
    %c0_14 = arith.constant 0 : index
    %14 = vector.load %arg6[%c0_13, %c0_14] : memref<1x96xf32, #tpu.memory_space<vmem>>, vector<1x96xf32>
    %15 = vector.broadcast %14 : vector<1x96xf32> to vector<8x96xf32>
    %16 = arith.addf %13, %15 : vector<8x96xf32>
    %c0_15 = arith.constant 0 : index
    %c0_16 = arith.constant 0 : index
    %17 = vector.load %arg7[%c0_15, %c0_16] : memref<32x96xf32, #tpu.memory_space<vmem>>, vector<32x96xf32>
    %c0_17 = arith.constant 0 : index
    %c0_18 = arith.constant 0 : index
    %18 = vector.load %arg8[%c0_17, %c0_18] : memref<1x32xf32, #tpu.memory_space<vmem>>, vector<1x32xf32>
    %c0_19 = arith.constant 0 : index
    %c0_20 = arith.constant 0 : index
    %19 = vector.load %arg9[%c0_19, %c0_20] : memref<64x128xf32, #tpu.memory_space<vmem>>, vector<64x128xf32>
    %c0_21 = arith.constant 0 : index
    %c0_22 = arith.constant 0 : index
    %20 = vector.load %arg10[%c0_21, %c0_22] : memref<1x128xf32, #tpu.memory_space<vmem>>, vector<1x128xf32>
    %cst_23 = arith.constant 0.000000e+00 : f32
    %21 = vector.broadcast %cst_23 : f32 to vector<8x32xf32>
    %c0_24 = arith.constant 0 : index
    %c0_25 = arith.constant 0 : index
    %22 = vector.load %arg14[%c0_24, %c0_25] : memref<432x96xf32, #tpu.memory_space<vmem>>, vector<8x96xf32>
    %23 = arith.addf %22, %16 : vector<8x96xf32>
    %cst_26 = arith.constant dense<0.000000e+00> : vector<8x96xf32>
    %24 = tpu.matmul %21, %17, %cst_26 {dimension_numbers = #tpu.dot_dimension_numbers<[1], [0], [0], [1], [0, 0, 1, 1], [], []>, precision = #tpu.contract_precision<fp32>} : vector<8x32xf32>, vector<32x96xf32>, vector<8x96xf32> -> vector<8x96xf32>
    %25 = arith.addf %23, %24 : vector<8x96xf32>
    %26 = vector.extract_strided_slice %25 {offsets = [0, 0], sizes = [8, 32], strides = [1, 1]} : vector<8x96xf32> to vector<8x32xf32>
    %27 = arith.negf %26 : vector<8x32xf32>
    %28 = math.exp %27 : vector<8x32xf32>
    %cst_27 = arith.constant 1.000000e+00 : f32
    %29 = vector.broadcast %cst_27 : f32 to vector<8x32xf32>
    %30 = arith.addf %29, %28 : vector<8x32xf32>
    %31 = arith.divf %29, %30 : vector<8x32xf32>
    %32 = vector.extract_strided_slice %25 {offsets = [0, 32], sizes = [8, 32], strides = [1, 1]} : vector<8x96xf32> to vector<8x32xf32>
    %33 = arith.negf %32 : vector<8x32xf32>
    %34 = math.exp %33 : vector<8x32xf32>
    %cst_28 = arith.constant 1.000000e+00 : f32
    %35 = vector.broadcast %cst_28 : f32 to vector<8x32xf32>
    %36 = arith.addf %35, %34 : vector<8x32xf32>
    %37 = arith.divf %35, %36 : vector<8x32xf32>
    %38 = vector.extract_strided_slice %23 {offsets = [0, 64], sizes = [8, 32], strides = [1, 1]} : vector<8x96xf32> to vector<8x32xf32>
    %39 = vector.extract_strided_slice %24 {offsets = [0, 64], sizes = [8, 32], strides = [1, 1]} : vector<8x96xf32> to vector<8x32xf32>
    %40 = vector.broadcast %18 : vector<1x32xf32> to vector<8x32xf32>
    %41 = arith.addf %39, %40 : vector<8x32xf32>
    %42 = arith.mulf %31, %41 : vector<8x32xf32>
    %43 = arith.addf %38, %42 : vector<8x32xf32>
    %44 = math.tanh %43 : vector<8x32xf32>
    %45 = arith.subf %21, %44 : vector<8x32xf32>
    %46 = arith.mulf %37, %45 : vector<8x32xf32>
    %47 = arith.addf %44, %46 : vector<8x32xf32>
    %c8 = arith.constant 8 : index
    %c0_29 = arith.constant 0 : index
    %48 = vector.load %arg14[%c8, %c0_29] : memref<432x96xf32, #tpu.memory_space<vmem>>, vector<8x96xf32>
    %49 = arith.addf %48, %16 : vector<8x96xf32>
    %cst_30 = arith.constant dense<0.000000e+00> : vector<8x96xf32>
    %50 = tpu.matmul %47, %17, %cst_30 {dimension_numbers = #tpu.dot_dimension_numbers<[1], [0], [0], [1], [0, 0, 1, 1], [], []>, precision = #tpu.contract_precision<fp32>} : vector<8x32xf32>, vector<32x96xf32>, vector<8x96xf32> -> vector<8x96xf32>
    %51 = arith.addf %49, %50 : vector<8x96xf32>
    %52 = vector.extract_strided_slice %51 {offsets = [0, 0], sizes = [8, 32], strides = [1, 1]} : vector<8x96xf32> to vector<8x32xf32>
    %53 = arith.negf %52 : vector<8x32xf32>
    %54 = math.exp %53 : vector<8x32xf32>
    %cst_31 = arith.constant 1.000000e+00 : f32
    %55 = vector.broadcast %cst_31 : f32 to vector<8x32xf32>
    %56 = arith.addf %55, %54 : vector<8x32xf32>
    %57 = arith.divf %55, %56 : vector<8x32xf32>
    %58 = vector.extract_strided_slice %51 {offsets = [0, 32], sizes = [8, 32], strides = [1, 1]} : vector<8x96xf32> to vector<8x32xf32>
    %59 = arith.negf %58 : vector<8x32xf32>
    %60 = math.exp %59 : vector<8x32xf32>
    %cst_32 = arith.constant 1.000000e+00 : f32
    %61 = vector.broadcast %cst_32 : f32 to vector<8x32xf32>
    %62 = arith.addf %61, %60 : vector<8x32xf32>
    %63 = arith.divf %61, %62 : vector<8x32xf32>
    %64 = vector.extract_strided_slice %49 {offsets = [0, 64], sizes = [8, 32], strides = [1, 1]} : vector<8x96xf32> to vector<8x32xf32>
    %65 = vector.extract_strided_slice %50 {offsets = [0, 64], sizes = [8, 32], strides = [1, 1]} : vector<8x96xf32> to vector<8x32xf32>
    %66 = vector.broadcast %18 : vector<1x32xf32> to vector<8x32xf32>
    %67 = arith.addf %65, %66 : vector<8x32xf32>
    %68 = arith.mulf %57, %67 : vector<8x32xf32>
    %69 = arith.addf %64, %68 : vector<8x32xf32>
    %70 = math.tanh %69 : vector<8x32xf32>
    %71 = arith.subf %47, %70 : vector<8x32xf32>
    %72 = arith.mulf %63, %71 : vector<8x32xf32>
    %73 = arith.addf %70, %72 : vector<8x32xf32>
    %74 = tpu.concatenate %47, %21 in 1 : vector<8x32xf32>, vector<8x32xf32> -> vector<8x64xf32>
    %cst_33 = arith.constant dense<0.000000e+00> : vector<8x128xf32>
    %75 = tpu.matmul %74, %19, %cst_33 {dimension_numbers = #tpu.dot_dimension_numbers<[1], [0], [0], [1], [0, 0, 1, 1], [], []>, precision = #tpu.contract_precision<fp32>} : vector<8x64xf32>, vector<64x128xf32>, vector<8x128xf32> -> vector<8x128xf32>
    %76 = vector.broadcast %20 : vector<1x128xf32> to vector<8x128xf32>
    %77 = arith.addf %75, %76 : vector<8x128xf32>
    %78 = vector.extract_strided_slice %77 {offsets = [0, 0], sizes = [8, 32], strides = [1, 1]} : vector<8x128xf32> to vector<8x32xf32>
    %79 = arith.negf %78 : vector<8x32xf32>
    %80 = math.exp %79 : vector<8x32xf32>
    %cst_34 = arith.constant 1.000000e+00 : f32
    %81 = vector.broadcast %cst_34 : f32 to vector<8x32xf32>
    %82 = arith.addf %81, %80 : vector<8x32xf32>
    %83 = arith.divf %81, %82 : vector<8x32xf32>
    %84 = vector.extract_strided_slice %77 {offsets = [0, 32], sizes = [8, 32], strides = [1, 1]} : vector<8x128xf32> to vector<8x32xf32>
    %85 = arith.negf %84 : vector<8x32xf32>
    %86 = math.exp %85 : vector<8x32xf32>
    %cst_35 = arith.constant 1.000000e+00 : f32
    %87 = vector.broadcast %cst_35 : f32 to vector<8x32xf32>
    %88 = arith.addf %87, %86 : vector<8x32xf32>
    %89 = arith.divf %87, %88 : vector<8x32xf32>
    %90 = vector.extract_strided_slice %77 {offsets = [0, 64], sizes = [8, 32], strides = [1, 1]} : vector<8x128xf32> to vector<8x32xf32>
    %91 = vector.extract_strided_slice %77 {offsets = [0, 96], sizes = [8, 32], strides = [1, 1]} : vector<8x128xf32> to vector<8x32xf32>
    %92 = arith.mulf %83, %91 : vector<8x32xf32>
    %93 = arith.addf %90, %92 : vector<8x32xf32>
    %94 = math.tanh %93 : vector<8x32xf32>
    %95 = arith.subf %21, %94 : vector<8x32xf32>
    %96 = arith.mulf %89, %95 : vector<8x32xf32>
    %97 = arith.addf %94, %96 : vector<8x32xf32>
    %c0_36 = arith.constant 0 : index
    %c0_37 = arith.constant 0 : index
    %98 = vector.load %arg15[%c0_36, %c0_37] : memref<432x32xf32, #tpu.memory_space<vmem>>, vector<8x32xf32>
    tpu.vector_store %arg15[%c0_36, %c0_37], %97 {strides = array<i32>} : memref<432x32xf32, #tpu.memory_space<vmem>>, vector<8x32xf32>,
    %c0_i32 = arith.constant 0 : i32
    %c26_i32 = arith.constant 26 : i32
    %99 = arith.addi %c0_i32, %c26_i32 : i32
    %c1_i32 = arith.constant 1 : i32
    %100:2 = scf.for %arg16 = %c0_i32 to %99 step %c1_i32 iter_args(%arg17 = %73, %arg18 = %97) -> (vector<8x32xf32>, vector<8x32xf32>)  : i32 {
      %c2_i32 = arith.constant 2 : i32
      %133 = arith.muli %c2_i32, %arg16 : i32
      %c2_i32_52 = arith.constant 2 : i32
      %134 = arith.addi %c2_i32_52, %133 : i32
      %c1_i32_53 = arith.constant 1 : i32
      %135 = arith.addi %134, %c1_i32_53 : i32
      %c8_i32 = arith.constant 8 : i32
      %136 = arith.muli %134, %c8_i32 : i32
      %137 = tpu.assume_multiple %136, 8 : i32
      %138 = arith.index_cast %137 : i32 to index
      %c0_54 = arith.constant 0 : index
      %139 = vector.load %arg14[%138, %c0_54] : memref<432x96xf32, #tpu.memory_space<vmem>>, vector<8x96xf32>
      %140 = arith.addf %139, %16 : vector<8x96xf32>
      %cst_55 = arith.constant dense<0.000000e+00> : vector<8x96xf32>
      %141 = tpu.matmul %arg17, %17, %cst_55 {dimension_numbers = #tpu.dot_dimension_numbers<[1], [0], [0], [1], [0, 0, 1, 1], [], []>, precision = #tpu.contract_precision<fp32>} : vector<8x32xf32>, vector<32x96xf32>, vector<8x96xf32> -> vector<8x96xf32>
      %142 = arith.addf %140, %141 : vector<8x96xf32>
      %143 = vector.extract_strided_slice %142 {offsets = [0, 0], sizes = [8, 32], strides = [1, 1]} : vector<8x96xf32> to vector<8x32xf32>
      %144 = arith.negf %143 : vector<8x32xf32>
      %145 = math.exp %144 : vector<8x32xf32>
      %cst_56 = arith.constant 1.000000e+00 : f32
      %146 = vector.broadcast %cst_56 : f32 to vector<8x32xf32>
      %147 = arith.addf %146, %145 : vector<8x32xf32>
      %148 = arith.divf %146, %147 : vector<8x32xf32>
      %149 = vector.extract_strided_slice %142 {offsets = [0, 32], sizes = [8, 32], strides = [1, 1]} : vector<8x96xf32> to vector<8x32xf32>
      %150 = arith.negf %149 : vector<8x32xf32>
      %151 = math.exp %150 : vector<8x32xf32>
      %cst_57 = arith.constant 1.000000e+00 : f32
      %152 = vector.broadcast %cst_57 : f32 to vector<8x32xf32>
      %153 = arith.addf %152, %151 : vector<8x32xf32>
      %154 = arith.divf %152, %153 : vector<8x32xf32>
      %155 = vector.extract_strided_slice %140 {offsets = [0, 64], sizes = [8, 32], strides = [1, 1]} : vector<8x96xf32> to vector<8x32xf32>
      %156 = vector.extract_strided_slice %141 {offsets = [0, 64], sizes = [8, 32], strides = [1, 1]} : vector<8x96xf32> to vector<8x32xf32>
      %157 = vector.broadcast %18 : vector<1x32xf32> to vector<8x32xf32>
      %158 = arith.addf %156, %157 : vector<8x32xf32>
      %159 = arith.mulf %148, %158 : vector<8x32xf32>
      %160 = arith.addf %155, %159 : vector<8x32xf32>
      %161 = math.tanh %160 : vector<8x32xf32>
      %162 = arith.subf %arg17, %161 : vector<8x32xf32>
      %163 = arith.mulf %154, %162 : vector<8x32xf32>
      %164 = arith.addf %161, %163 : vector<8x32xf32>
      %165 = tpu.concatenate %arg17, %arg18 in 1 : vector<8x32xf32>, vector<8x32xf32> -> vector<8x64xf32>
      %cst_58 = arith.constant dense<0.000000e+00> : vector<8x128xf32>
      %166 = tpu.matmul %165, %19, %cst_58 {dimension_numbers = #tpu.dot_dimension_numbers<[1], [0], [0], [1], [0, 0, 1, 1], [], []>, precision = #tpu.contract_precision<fp32>} : vector<8x64xf32>, vector<64x128xf32>, vector<8x128xf32> -> vector<8x128xf32>
      %167 = vector.broadcast %20 : vector<1x128xf32> to vector<8x128xf32>
      %168 = arith.addf %166, %167 : vector<8x128xf32>
      %169 = vector.extract_strided_slice %168 {offsets = [0, 0], sizes = [8, 32], strides = [1, 1]} : vector<8x128xf32> to vector<8x32xf32>
      %170 = arith.negf %169 : vector<8x32xf32>
      %171 = math.exp %170 : vector<8x32xf32>
      %cst_59 = arith.constant 1.000000e+00 : f32
      %172 = vector.broadcast %cst_59 : f32 to vector<8x32xf32>
      %173 = arith.addf %172, %171 : vector<8x32xf32>
      %174 = arith.divf %172, %173 : vector<8x32xf32>
      %175 = vector.extract_strided_slice %168 {offsets = [0, 32], sizes = [8, 32], strides = [1, 1]} : vector<8x128xf32> to vector<8x32xf32>
      %176 = arith.negf %175 : vector<8x32xf32>
      %177 = math.exp %176 : vector<8x32xf32>
      %cst_60 = arith.constant 1.000000e+00 : f32
      %178 = vector.broadcast %cst_60 : f32 to vector<8x32xf32>
      %179 = arith.addf %178, %177 : vector<8x32xf32>
      %180 = arith.divf %178, %179 : vector<8x32xf32>
      %181 = vector.extract_strided_slice %168 {offsets = [0, 64], sizes = [8, 32], strides = [1, 1]} : vector<8x128xf32> to vector<8x32xf32>
      %182 = vector.extract_strided_slice %168 {offsets = [0, 96], sizes = [8, 32], strides = [1, 1]} : vector<8x128xf32> to vector<8x32xf32>
      %183 = arith.mulf %174, %182 : vector<8x32xf32>
      %184 = arith.addf %181, %183 : vector<8x32xf32>
      %185 = math.tanh %184 : vector<8x32xf32>
      %186 = arith.subf %arg18, %185 : vector<8x32xf32>
      %187 = arith.mulf %180, %186 : vector<8x32xf32>
      %188 = arith.addf %185, %187 : vector<8x32xf32>
      %c1_i32_61 = arith.constant 1 : i32
      %189 = arith.subi %134, %c1_i32_61 : i32
      %c8_i32_62 = arith.constant 8 : i32
      %190 = arith.muli %189, %c8_i32_62 : i32
      %191 = tpu.assume_multiple %190, 8 : i32
      %192 = arith.index_cast %191 : i32 to index
      %c0_63 = arith.constant 0 : index
      %193 = vector.load %arg15[%192, %c0_63] : memref<432x32xf32, #tpu.memory_space<vmem>>, vector<8x32xf32>
      tpu.vector_store %arg15[%192, %c0_63], %188 {strides = array<i32>} : memref<432x32xf32, #tpu.memory_space<vmem>>, vector<8x32xf32>,
      %c8_i32_64 = arith.constant 8 : i32
      %194 = arith.muli %135, %c8_i32_64 : i32
      %195 = tpu.assume_multiple %194, 8 : i32
      %196 = arith.index_cast %195 : i32 to index
      %c0_65 = arith.constant 0 : index
      %197 = vector.load %arg14[%196, %c0_65] : memref<432x96xf32, #tpu.memory_space<vmem>>, vector<8x96xf32>
      %198 = arith.addf %197, %16 : vector<8x96xf32>
      %cst_66 = arith.constant dense<0.000000e+00> : vector<8x96xf32>
      %199 = tpu.matmul %164, %17, %cst_66 {dimension_numbers = #tpu.dot_dimension_numbers<[1], [0], [0], [1], [0, 0, 1, 1], [], []>, precision = #tpu.contract_precision<fp32>} : vector<8x32xf32>, vector<32x96xf32>, vector<8x96xf32> -> vector<8x96xf32>
      %200 = arith.addf %198, %199 : vector<8x96xf32>
      %201 = vector.extract_strided_slice %200 {offsets = [0, 0], sizes = [8, 32], strides = [1, 1]} : vector<8x96xf32> to vector<8x32xf32>
      %202 = arith.negf %201 : vector<8x32xf32>
      %203 = math.exp %202 : vector<8x32xf32>
      %cst_67 = arith.constant 1.000000e+00 : f32
      %204 = vector.broadcast %cst_67 : f32 to vector<8x32xf32>
      %205 = arith.addf %204, %203 : vector<8x32xf32>
      %206 = arith.divf %204, %205 : vector<8x32xf32>
      %207 = vector.extract_strided_slice %200 {offsets = [0, 32], sizes = [8, 32], strides = [1, 1]} : vector<8x96xf32> to vector<8x32xf32>
      %208 = arith.negf %207 : vector<8x32xf32>
      %209 = math.exp %208 : vector<8x32xf32>
      %cst_68 = arith.constant 1.000000e+00 : f32
      %210 = vector.broadcast %cst_68 : f32 to vector<8x32xf32>
      %211 = arith.addf %210, %209 : vector<8x32xf32>
      %212 = arith.divf %210, %211 : vector<8x32xf32>
      %213 = vector.extract_strided_slice %198 {offsets = [0, 64], sizes = [8, 32], strides = [1, 1]} : vector<8x96xf32> to vector<8x32xf32>
      %214 = vector.extract_strided_slice %199 {offsets = [0, 64], sizes = [8, 32], strides = [1, 1]} : vector<8x96xf32> to vector<8x32xf32>
      %215 = vector.broadcast %18 : vector<1x32xf32> to vector<8x32xf32>
      %216 = arith.addf %214, %215 : vector<8x32xf32>
      %217 = arith.mulf %206, %216 : vector<8x32xf32>
      %218 = arith.addf %213, %217 : vector<8x32xf32>
      %219 = math.tanh %218 : vector<8x32xf32>
      %220 = arith.subf %164, %219 : vector<8x32xf32>
      %221 = arith.mulf %212, %220 : vector<8x32xf32>
      %222 = arith.addf %219, %221 : vector<8x32xf32>
      %223 = tpu.concatenate %164, %188 in 1 : vector<8x32xf32>, vector<8x32xf32> -> vector<8x64xf32>
      %cst_69 = arith.constant dense<0.000000e+00> : vector<8x128xf32>
      %224 = tpu.matmul %223, %19, %cst_69 {dimension_numbers = #tpu.dot_dimension_numbers<[1], [0], [0], [1], [0, 0, 1, 1], [], []>, precision = #tpu.contract_precision<fp32>} : vector<8x64xf32>, vector<64x128xf32>, vector<8x128xf32> -> vector<8x128xf32>
      %225 = vector.broadcast %20 : vector<1x128xf32> to vector<8x128xf32>
      %226 = arith.addf %224, %225 : vector<8x128xf32>
      %227 = vector.extract_strided_slice %226 {offsets = [0, 0], sizes = [8, 32], strides = [1, 1]} : vector<8x128xf32> to vector<8x32xf32>
      %228 = arith.negf %227 : vector<8x32xf32>
      %229 = math.exp %228 : vector<8x32xf32>
      %cst_70 = arith.constant 1.000000e+00 : f32
      %230 = vector.broadcast %cst_70 : f32 to vector<8x32xf32>
      %231 = arith.addf %230, %229 : vector<8x32xf32>
      %232 = arith.divf %230, %231 : vector<8x32xf32>
      %233 = vector.extract_strided_slice %226 {offsets = [0, 32], sizes = [8, 32], strides = [1, 1]} : vector<8x128xf32> to vector<8x32xf32>
      %234 = arith.negf %233 : vector<8x32xf32>
      %235 = math.exp %234 : vector<8x32xf32>
      %cst_71 = arith.constant 1.000000e+00 : f32
      %236 = vector.broadcast %cst_71 : f32 to vector<8x32xf32>
      %237 = arith.addf %236, %235 : vector<8x32xf32>
      %238 = arith.divf %236, %237 : vector<8x32xf32>
      %239 = vector.extract_strided_slice %226 {offsets = [0, 64], sizes = [8, 32], strides = [1, 1]} : vector<8x128xf32> to vector<8x32xf32>
      %240 = vector.extract_strided_slice %226 {offsets = [0, 96], sizes = [8, 32], strides = [1, 1]} : vector<8x128xf32> to vector<8x32xf32>
      %241 = arith.mulf %232, %240 : vector<8x32xf32>
      %242 = arith.addf %239, %241 : vector<8x32xf32>
      %243 = math.tanh %242 : vector<8x32xf32>
      %244 = arith.subf %188, %243 : vector<8x32xf32>
      %245 = arith.mulf %238, %244 : vector<8x32xf32>
      %246 = arith.addf %243, %245 : vector<8x32xf32>
      %c1_i32_72 = arith.constant 1 : i32
      %247 = arith.subi %135, %c1_i32_72 : i32
      %c8_i32_73 = arith.constant 8 : i32
      %248 = arith.muli %247, %c8_i32_73 : i32
      %249 = tpu.assume_multiple %248, 8 : i32
      %250 = arith.index_cast %249 : i32 to index
      %c0_74 = arith.constant 0 : index
      %251 = vector.load %arg15[%250, %c0_74] : memref<432x32xf32, #tpu.memory_space<vmem>>, vector<8x32xf32>
      tpu.vector_store %arg15[%250, %c0_74], %246 {strides = array<i32>} : memref<432x32xf32, #tpu.memory_space<vmem>>, vector<8x32xf32>,
      scf.yield %222, %246 : vector<8x32xf32>, vector<8x32xf32>
    }
    %c26_i32_38 = arith.constant 26 : i32
    %101 = tpu.concatenate %100#0, %100#1 in 1 : vector<8x32xf32>, vector<8x32xf32> -> vector<8x64xf32>
    %cst_39 = arith.constant dense<0.000000e+00> : vector<8x128xf32>
    %102 = tpu.matmul %101, %19, %cst_39 {dimension_numbers = #tpu.dot_dimension_numbers<[1], [0], [0], [1], [0, 0, 1, 1], [], []>, precision = #tpu.contract_precision<fp32>} : vector<8x64xf32>, vector<64x128xf32>, vector<8x128xf32> -> vector<8x128xf32>
    %103 = vector.broadcast %20 : vector<1x128xf32> to vector<8x128xf32>
    %104 = arith.addf %102, %103 : vector<8x128xf32>
    %105 = vector.extract_strided_slice %104 {offsets = [0, 0], sizes = [8, 32], strides = [1, 1]} : vector<8x128xf32> to vector<8x32xf32>
    %106 = arith.negf %105 : vector<8x32xf32>
    %107 = math.exp %106 : vector<8x32xf32>
    %cst_40 = arith.constant 1.000000e+00 : f32
    %108 = vector.broadcast %cst_40 : f32 to vector<8x32xf32>
    %109 = arith.addf %108, %107 : vector<8x32xf32>
    %110 = arith.divf %108, %109 : vector<8x32xf32>
    %111 = vector.extract_strided_slice %104 {offsets = [0, 32], sizes = [8, 32], strides = [1, 1]} : vector<8x128xf32> to vector<8x32xf32>
    %112 = arith.negf %111 : vector<8x32xf32>
    %113 = math.exp %112 : vector<8x32xf32>
    %cst_41 = arith.constant 1.000000e+00 : f32
    %114 = vector.broadcast %cst_41 : f32 to vector<8x32xf32>
    %115 = arith.addf %114, %113 : vector<8x32xf32>
    %116 = arith.divf %114, %115 : vector<8x32xf32>
    %117 = vector.extract_strided_slice %104 {offsets = [0, 64], sizes = [8, 32], strides = [1, 1]} : vector<8x128xf32> to vector<8x32xf32>
    %118 = vector.extract_strided_slice %104 {offsets = [0, 96], sizes = [8, 32], strides = [1, 1]} : vector<8x128xf32> to vector<8x32xf32>
    %119 = arith.mulf %110, %118 : vector<8x32xf32>
    %120 = arith.addf %117, %119 : vector<8x32xf32>
    %121 = math.tanh %120 : vector<8x32xf32>
    %122 = arith.subf %100#1, %121 : vector<8x32xf32>
    %123 = arith.mulf %116, %122 : vector<8x32xf32>
    %124 = arith.addf %121, %123 : vector<8x32xf32>
    %c424 = arith.constant 424 : index
    %c0_42 = arith.constant 0 : index
    %125 = vector.load %arg15[%c424, %c0_42] : memref<432x32xf32, #tpu.memory_space<vmem>>, vector<8x32xf32>
    tpu.vector_store %arg15[%c424, %c0_42], %124 {strides = array<i32>} : memref<432x32xf32, #tpu.memory_space<vmem>>, vector<8x32xf32>,
    %c0_43 = arith.constant 0 : index
    %c0_44 = arith.constant 0 : index
    %126 = vector.load %arg15[%c0_43, %c0_44] : memref<432x32xf32, #tpu.memory_space<vmem>>, vector<432x32xf32>
    %c0_45 = arith.constant 0 : index
    %c0_46 = arith.constant 0 : index
    %127 = vector.load %arg11[%c0_45, %c0_46] : memref<32x128xf32, #tpu.memory_space<vmem>>, vector<32x128xf32>
    %cst_47 = arith.constant dense<0.000000e+00> : vector<432x128xf32>
    %128 = tpu.matmul %126, %127, %cst_47 {dimension_numbers = #tpu.dot_dimension_numbers<[1], [0], [0], [1], [0, 0, 1, 1], [], []>, precision = #tpu.contract_precision<fp32>} : vector<432x32xf32>, vector<32x128xf32>, vector<432x128xf32> -> vector<432x128xf32>
    %c0_48 = arith.constant 0 : index
    %c0_49 = arith.constant 0 : index
    %129 = vector.load %arg12[%c0_48, %c0_49] : memref<1x128xf32, #tpu.memory_space<vmem>>, vector<1x128xf32>
    %130 = vector.broadcast %129 : vector<1x128xf32> to vector<432x128xf32>
    %131 = arith.addf %128, %130 : vector<432x128xf32>
    %c0_50 = arith.constant 0 : index
    %c0_51 = arith.constant 0 : index
    %132 = vector.load %arg13[%c0_50, %c0_51] : memref<432x128xf32, #tpu.memory_space<vmem>>, vector<432x128xf32>
    tpu.vector_store %arg13[%c0_50, %c0_51], %131 {strides = array<i32>} : memref<432x128xf32, #tpu.memory_space<vmem>>, vector<432x128xf32>,
    return
  }
  func.func @transform_0(%arg0: i32) -> (i32, i32) {
    %c0_i32 = arith.constant 0 : i32
    %c0_i32_0 = arith.constant 0 : i32
    %c0_i32_1 = arith.constant 0 : i32
    return %c0_i32, %c0_i32_0 : i32, i32
  }
  func.func @transform_1(%arg0: i32) -> (i32, i32) {
    %c0_i32 = arith.constant 0 : i32
    %c0_i32_0 = arith.constant 0 : i32
    %c0_i32_1 = arith.constant 0 : i32
    return %c0_i32, %c0_i32_0 : i32, i32
  }
  func.func @transform_2(%arg0: i32) -> (i32, i32) {
    %c0_i32 = arith.constant 0 : i32
    %c0_i32_0 = arith.constant 0 : i32
    %c0_i32_1 = arith.constant 0 : i32
    return %c0_i32, %c0_i32_0 : i32, i32
  }
  func.func @transform_3(%arg0: i32) -> (i32, i32) {
    %c0_i32 = arith.constant 0 : i32
    %c0_i32_0 = arith.constant 0 : i32
    %c0_i32_1 = arith.constant 0 : i32
    return %c0_i32, %c0_i32_0 : i32, i32
  }
  func.func @transform_4(%arg0: i32) -> (i32, i32) {
    %c0_i32 = arith.constant 0 : i32
    %c0_i32_0 = arith.constant 0 : i32
    %c0_i32_1 = arith.constant 0 : i32
    return %c0_i32, %c0_i32_0 : i32, i32
  }
  func.func @transform_5(%arg0: i32) -> (i32, i32) {
    %c0_i32 = arith.constant 0 : i32
    %c0_i32_0 = arith.constant 0 : i32
    %c0_i32_1 = arith.constant 0 : i32
    return %c0_i32, %c0_i32_0 : i32, i32
  }
  func.func @transform_6(%arg0: i32) -> (i32, i32) {
    %c0_i32 = arith.constant 0 : i32
    %c0_i32_0 = arith.constant 0 : i32
    %c0_i32_1 = arith.constant 0 : i32
    return %c0_i32, %c0_i32_0 : i32, i32
  }
  func.func @transform_7(%arg0: i32) -> (i32, i32) {
    %c0_i32 = arith.constant 0 : i32
    %c0_i32_0 = arith.constant 0 : i32
    %c0_i32_1 = arith.constant 0 : i32
    return %c0_i32, %c0_i32_0 : i32, i32
  }
  func.func @transform_8(%arg0: i32) -> (i32, i32) {
    %c0_i32 = arith.constant 0 : i32
    %c0_i32_0 = arith.constant 0 : i32
    %c0_i32_1 = arith.constant 0 : i32
    return %c0_i32, %c0_i32_0 : i32, i32
  }
  func.func @transform_9(%arg0: i32) -> (i32, i32) {
    %c0_i32 = arith.constant 0 : i32
    %c0_i32_0 = arith.constant 0 : i32
    %c0_i32_1 = arith.constant 0 : i32
    return %c0_i32, %c0_i32_0 : i32, i32
  }
  func.func @transform_10(%arg0: i32) -> (i32, i32) {
    %c0_i32 = arith.constant 0 : i32
    %c0_i32_0 = arith.constant 0 : i32
    %c0_i32_1 = arith.constant 0 : i32
    return %c0_i32, %c0_i32_0 : i32, i32
  }
  func.func @transform_11(%arg0: i32) -> (i32, i32) {
    %c0_i32 = arith.constant 0 : i32
    %c0_i32_0 = arith.constant 0 : i32
    %c0_i32_1 = arith.constant 0 : i32
    return %c0_i32, %c0_i32_0 : i32, i32
  }
  func.func @transform_12(%arg0: i32) -> (i32, i32) {
    %c0_i32 = arith.constant 0 : i32
    %c0_i32_0 = arith.constant 0 : i32
    %c0_i32_1 = arith.constant 0 : i32
    return %c0_i32, %c0_i32_0 : i32, i32
  }
}

</mosaic_0001>

<llo_original>
// kernel: decoder_forward.1
$region0: #{decoder_forward.1}
  #allocation0 [shape = 'u32[]', space=smem, size = 0x4, offset = 0x4, fixed_abs, tag = 'smem constant byte address 0x4 - core index']
  #allocation1 [shape = 'u32[72,128]{1,0:T(1,128)}', space=vmem, size = 0x9000, scoped, tag = 'internal scratch']
  #allocation2 [shape = 'f32[432,96]{1,0:T(8,128)}', space=vmem, size = 0x36000, scoped, tag = 'scratch operand']
  #allocation3 [shape = 'f32[432,32]{1,0:T(8,128)}', space=vmem, size = 0x36000, scoped, tag = 'scratch operand']
  %s0 = inlined_call_operand.vmem [shape: s32[432,1], index: 0, kind: input, shape index: {}]
  %s1 = inlined_call_operand.vmem [shape: f32[8,8], index: 1, kind: input, shape index: {}]
  %s2 = inlined_call_operand.vmem [shape: f32[20,16], index: 2, kind: input, shape index: {}]
  %s3 = inlined_call_operand.vmem [shape: f32[8,96], index: 3, kind: input, shape index: {}]
  %s4 = inlined_call_operand.vmem [shape: f32[16,96], index: 4, kind: input, shape index: {}]
  %s5 = inlined_call_operand.vmem [shape: f32[1,96], index: 5, kind: input, shape index: {}]
  %s6 = inlined_call_operand.vmem [shape: f32[32,96], index: 6, kind: input, shape index: {}]
  %s7 = inlined_call_operand.vmem [shape: f32[1,32], index: 7, kind: input, shape index: {}]
  %s8 = inlined_call_operand.vmem [shape: f32[64,128], index: 8, kind: input, shape index: {}]
  %s9 = inlined_call_operand.vmem [shape: f32[1,128], index: 9, kind: input, shape index: {}]
  %s10 = inlined_call_operand.vmem [shape: f32[32,128], index: 10, kind: input, shape index: {}]
  %s11 = inlined_call_operand.vmem [shape: f32[1,128], index: 11, kind: input, shape index: {}]
  %s12 = inlined_call_operand.vmem [shape: f32[432,128], index: 12, kind: output, shape index: {}]
  %s13 = sld [smem:[#allocation0]]
  $region65: #{decoder_forward.1} parent=0
    _
  %s15 = ssub.s32 1, %s13
  %s16 = scalar_select 0, %s15, %s13
  // Predicated region
  $region2: #{decoder_forward.1} parent=0 // pred_check
    _
  $region3: #{decoder_forward.1} parent=0 // pred_check_branch
    %18 = sbr.rel (0) target = $region5
  $region4: #{decoder_forward.1} parent=0 // pred_region
    _
  $region5: #{decoder_forward.1} parent=0 // pred_fallthru
    _
  // Predicated region
  $region6: #{decoder_forward.1} parent=0 // pred_check
    _
  $region7: #{decoder_forward.1} parent=0 // pred_check_branch
    %20 = sbr.rel (0) target = $region9
  $region8: #{decoder_forward.1} parent=0 // pred_region
    _
  $region9: #{decoder_forward.1} parent=0 // pred_fallthru
    _
  // Predicated region
  $region10: #{decoder_forward.1} parent=0 // pred_check
    _
  $region11: #{decoder_forward.1} parent=0 // pred_check_branch
    %22 = sbr.rel (0) target = $region13
  $region12: #{decoder_forward.1} parent=0 // pred_region
    _
  $region13: #{decoder_forward.1} parent=0 // pred_fallthru
    _
  // Predicated region
  $region14: #{decoder_forward.1} parent=0 // pred_check
    _
  $region15: #{decoder_forward.1} parent=0 // pred_check_branch
    %24 = sbr.rel (0) target = $region17
  $region16: #{decoder_forward.1} parent=0 // pred_region
    _
  $region17: #{decoder_forward.1} parent=0 // pred_fallthru
    _
  // Predicated region
  $region18: #{decoder_forward.1} parent=0 // pred_check
    _
  $region19: #{decoder_forward.1} parent=0 // pred_check_branch
    %26 = sbr.rel (0) target = $region21
  $region20: #{decoder_forward.1} parent=0 // pred_region
    _
  $region21: #{decoder_forward.1} parent=0 // pred_fallthru
    _
  // Predicated region
  $region22: #{decoder_forward.1} parent=0 // pred_check
    _
  $region23: #{decoder_forward.1} parent=0 // pred_check_branch
    %28 = sbr.rel (0) target = $region25
  $region24: #{decoder_forward.1} parent=0 // pred_region
    _
  $region25: #{decoder_forward.1} parent=0 // pred_fallthru
    _
  // Predicated region
  $region26: #{decoder_forward.1} parent=0 // pred_check
    _
  $region27: #{decoder_forward.1} parent=0 // pred_check_branch
    %30 = sbr.rel (0) target = $region29
  $region28: #{decoder_forward.1} parent=0 // pred_region
    _
  $region29: #{decoder_forward.1} parent=0 // pred_fallthru
    _
  // Predicated region
  $region30: #{decoder_forward.1} parent=0 // pred_check
    _
  $region31: #{decoder_forward.1} parent=0 // pred_check_branch
    %32 = sbr.rel (0) target = $region33
  $region32: #{decoder_forward.1} parent=0 // pred_region
    _
  $region33: #{decoder_forward.1} parent=0 // pred_fallthru
    _
  // Predicated region
  $region34: #{decoder_forward.1} parent=0 // pred_check
    _
  $region35: #{decoder_forward.1} parent=0 // pred_check_branch
    %34 = sbr.rel (0) target = $region37
  $region36: #{decoder_forward.1} parent=0 // pred_region
    _
  $region37: #{decoder_forward.1} parent=0 // pred_fallthru
    _
  // Predicated region
  $region38: #{decoder_forward.1} parent=0 // pred_check
    _
  $region39: #{decoder_forward.1} parent=0 // pred_check_branch
    %36 = sbr.rel (0) target = $region41
  $region40: #{decoder_forward.1} parent=0 // pred_region
    _
  $region41: #{decoder_forward.1} parent=0 // pred_fallthru
    _
  // Predicated region
  $region42: #{decoder_forward.1} parent=0 // pred_check
    _
  $region43: #{decoder_forward.1} parent=0 // pred_check_branch
    %38 = sbr.rel (0) target = $region45
  $region44: #{decoder_forward.1} parent=0 // pred_region
    _
  $region45: #{decoder_forward.1} parent=0 // pred_fallthru
    _
  // Predicated region
  $region46: #{decoder_forward.1} parent=0 // pred_check
    _
  $region47: #{decoder_forward.1} parent=0 // pred_check_branch
    %40 = sbr.rel (0) target = $region49
  $region48: #{decoder_forward.1} parent=0 // pred_region
    _
  $region49: #{decoder_forward.1} parent=0 // pred_fallthru
    _
  %v41 = vld [vmem:[%s0] sm:$0xff]
  %v42 = vld [vmem:[%s0 + $0x8] sm:$0xff]
  %v43 = vld [vmem:[%s0 + $0x10] sm:$0xff]
  %v44 = vld [vmem:[%s0 + $0x18] sm:$0xff]
  %v45 = vld [vmem:[%s0 + $0x20] sm:$0xff]
  %v46 = vld [vmem:[%s0 + $0x28] sm:$0xff]
  %v47 = vld [vmem:[%s0 + $0x30] sm:$0xff]
  %v48 = vld [vmem:[%s0 + $0x38] sm:$0xff]
  %v49 = vld [vmem:[%s0 + $0x40] sm:$0xff]
  %v50 = vld [vmem:[%s0 + $0x48] sm:$0xff]
  %v51 = vld [vmem:[%s0 + $0x50] sm:$0xff]
  %v52 = vld [vmem:[%s0 + $0x58] sm:$0xff]
  %v53 = vld [vmem:[%s0 + $0x60] sm:$0xff]
  %v54 = vld [vmem:[%s0 + $0x68] sm:$0xff]
  %v55 = vld [vmem:[%s0 + $0x70] sm:$0xff]
  %v56 = vld [vmem:[%s0 + $0x78] sm:$0xff]
  %v57 = vld [vmem:[%s0 + $0x80] sm:$0xff]
  %v58 = vld [vmem:[%s0 + $0x88] sm:$0xff]
  %v59 = vld [vmem:[%s0 + $0x90] sm:$0xff]
  %v60 = vld [vmem:[%s0 + $0x98] sm:$0xff]
  %v61 = vld [vmem:[%s0 + $0xa0] sm:$0xff]
  %v62 = vld [vmem:[%s0 + $0xa8] sm:$0xff]
  %v63 = vld [vmem:[%s0 + $0xb0] sm:$0xff]
  %v64 = vld [vmem:[%s0 + $0xb8] sm:$0xff]
  %v65 = vld [vmem:[%s0 + $0xc0] sm:$0xff]
  %v66 = vld [vmem:[%s0 + $0xc8] sm:$0xff]
  %v67 = vld [vmem:[%s0 + $0xd0] sm:$0xff]
  %v68 = vld [vmem:[%s0 + $0xd8] sm:$0xff]
  %v69 = vld [vmem:[%s0 + $0xe0] sm:$0xff]
  %v70 = vld [vmem:[%s0 + $0xe8] sm:$0xff]
  %v71 = vld [vmem:[%s0 + $0xf0] sm:$0xff]
  %v72 = vld [vmem:[%s0 + $0xf8] sm:$0xff]
  %v73 = vld [vmem:[%s0 + $0x100] sm:$0xff]
  %v74 = vld [vmem:[%s0 + $0x108] sm:$0xff]
  %v75 = vld [vmem:[%s0 + $0x110] sm:$0xff]
  %v76 = vld [vmem:[%s0 + $0x118] sm:$0xff]
  %v77 = vld [vmem:[%s0 + $0x120] sm:$0xff]
  %v78 = vld [vmem:[%s0 + $0x128] sm:$0xff]
  %v79 = vld [vmem:[%s0 + $0x130] sm:$0xff]
  %v80 = vld [vmem:[%s0 + $0x138] sm:$0xff]
  %v81 = vld [vmem:[%s0 + $0x140] sm:$0xff]
  %v82 = vld [vmem:[%s0 + $0x148] sm:$0xff]
  %v83 = vld [vmem:[%s0 + $0x150] sm:$0xff]
  %v84 = vld [vmem:[%s0 + $0x158] sm:$0xff]
  %v85 = vld [vmem:[%s0 + $0x160] sm:$0xff]
  %v86 = vld [vmem:[%s0 + $0x168] sm:$0xff]
  %v87 = vld [vmem:[%s0 + $0x170] sm:$0xff]
  %v88 = vld [vmem:[%s0 + $0x178] sm:$0xff]
  %v89 = vld [vmem:[%s0 + $0x180] sm:$0xff]
  %v90 = vld [vmem:[%s0 + $0x188] sm:$0xff]
  %v91 = vld [vmem:[%s0 + $0x190] sm:$0xff]
  %v92 = vld [vmem:[%s0 + $0x198] sm:$0xff]
  %v93 = vld [vmem:[%s0 + $0x1a0] sm:$0xff]
  %v94 = vld [vmem:[%s0 + $0x1a8] sm:$0xff]
  %v95 = vlaneseq
  %v96 = vand.u32 %v95, 127
  %97 = vset.pattern.permute.xlu0 0
  %98 = vperm.xlu0 %97, %v41
  %v99 = vpop.permute.xlu0 %98
  %100 = vset.pattern.permute.xlu0 0
  %101 = vperm.xlu0 %100, %v42
  %v102 = vpop.permute.xlu0 %101
  %103 = vset.pattern.permute.xlu0 0
  %104 = vperm.xlu0 %103, %v43
  %v105 = vpop.permute.xlu0 %104
  %106 = vset.pattern.permute.xlu0 0
  %107 = vperm.xlu0 %106, %v44
  %v108 = vpop.permute.xlu0 %107
  %109 = vset.pattern.permute.xlu0 0
  %110 = vperm.xlu0 %109, %v45
  %v111 = vpop.permute.xlu0 %110
  %112 = vset.pattern.permute.xlu0 0
  %113 = vperm.xlu0 %112, %v46
  %v114 = vpop.permute.xlu0 %113
  %115 = vset.pattern.permute.xlu0 0
  %116 = vperm.xlu0 %115, %v47
  %v117 = vpop.permute.xlu0 %116
  %118 = vset.pattern.permute.xlu0 0
  %119 = vperm.xlu0 %118, %v48
  %v120 = vpop.permute.xlu0 %119
  %121 = vset.pattern.permute.xlu0 0
  %122 = vperm.xlu0 %121, %v49
  %v123 = vpop.permute.xlu0 %122
  %124 = vset.pattern.permute.xlu0 0
  %125 = vperm.xlu0 %124, %v50
  %v126 = vpop.permute.xlu0 %125
  %127 = vset.pattern.permute.xlu0 0
  %128 = vperm.xlu0 %127, %v51
  %v129 = vpop.permute.xlu0 %128
  %130 = vset.pattern.permute.xlu0 0
  %131 = vperm.xlu0 %130, %v52
  %v132 = vpop.permute.xlu0 %131
  %133 = vset.pattern.permute.xlu0 0
  %134 = vperm.xlu0 %133, %v53
  %v135 = vpop.permute.xlu0 %134
  %136 = vset.pattern.permute.xlu0 0
  %137 = vperm.xlu0 %136, %v54
  %v138 = vpop.permute.xlu0 %137
  %139 = vset.pattern.permute.xlu0 0
  %140 = vperm.xlu0 %139, %v55
  %v141 = vpop.permute.xlu0 %140
  %142 = vset.pattern.permute.xlu0 0
  %143 = vperm.xlu0 %142, %v56
  %v144 = vpop.permute.xlu0 %143
  %145 = vset.pattern.permute.xlu0 0
  %146 = vperm.xlu0 %145, %v57
  %v147 = vpop.permute.xlu0 %146
  %148 = vset.pattern.permute.xlu0 0
  %149 = vperm.xlu0 %148, %v58
  %v150 = vpop.permute.xlu0 %149
  %151 = vset.pattern.permute.xlu0 0
  %152 = vperm.xlu0 %151, %v59
  %v153 = vpop.permute.xlu0 %152
  %154 = vset.pattern.permute.xlu0 0
  %155 = vperm.xlu0 %154, %v60
  %v156 = vpop.permute.xlu0 %155
  %157 = vset.pattern.permute.xlu0 0
  %158 = vperm.xlu0 %157, %v61
  %v159 = vpop.permute.xlu0 %158
  %160 = vset.pattern.permute.xlu0 0
  %161 = vperm.xlu0 %160, %v62
  %v162 = vpop.permute.xlu0 %161
  %163 = vset.pattern.permute.xlu0 0
  %164 = vperm.xlu0 %163, %v63
  %v165 = vpop.permute.xlu0 %164
  %166 = vset.pattern.permute.xlu0 0
  %167 = vperm.xlu0 %166, %v64
  %v168 = vpop.permute.xlu0 %167
  %169 = vset.pattern.permute.xlu0 0
  %170 = vperm.xlu0 %169, %v65
  %v171 = vpop.permute.xlu0 %170
  %172 = vset.pattern.permute.xlu0 0
  %173 = vperm.xlu0 %172, %v66
  %v174 = vpop.permute.xlu0 %173
  %175 = vset.pattern.permute.xlu0 0
  %176 = vperm.xlu0 %175, %v67
  %v177 = vpop.permute.xlu0 %176
  %178 = vset.pattern.permute.xlu0 0
  %179 = vperm.xlu0 %178, %v68
  %v180 = vpop.permute.xlu0 %179
  %181 = vset.pattern.permute.xlu0 0
  %182 = vperm.xlu0 %181, %v69
  %v183 = vpop.permute.xlu0 %182
  %184 = vset.pattern.permute.xlu0 0
  %185 = vperm.xlu0 %184, %v70
  %v186 = vpop.permute.xlu0 %185
  %187 = vset.pattern.permute.xlu0 0
  %188 = vperm.xlu0 %187, %v71
  %v189 = vpop.permute.xlu0 %188
  %190 = vset.pattern.permute.xlu0 0
  %191 = vperm.xlu0 %190, %v72
  %v192 = vpop.permute.xlu0 %191
  %193 = vset.pattern.permute.xlu0 0
  %194 = vperm.xlu0 %193, %v73
  %v195 = vpop.permute.xlu0 %194
  %196 = vset.pattern.permute.xlu0 0
  %197 = vperm.xlu0 %196, %v74
  %v198 = vpop.permute.xlu0 %197
  %199 = vset.pattern.permute.xlu0 0
  %200 = vperm.xlu0 %199, %v75
  %v201 = vpop.permute.xlu0 %200
  %202 = vset.pattern.permute.xlu0 0
  %203 = vperm.xlu0 %202, %v76
  %v204 = vpop.permute.xlu0 %203
  %205 = vset.pattern.permute.xlu0 0
  %206 = vperm.xlu0 %205, %v77
  %v207 = vpop.permute.xlu0 %206
  %208 = vset.pattern.permute.xlu0 0
  %209 = vperm.xlu0 %208, %v78
  %v210 = vpop.permute.xlu0 %209
  %211 = vset.pattern.permute.xlu0 0
  %212 = vperm.xlu0 %211, %v79
  %v213 = vpop.permute.xlu0 %212
  %214 = vset.pattern.permute.xlu0 0
  %215 = vperm.xlu0 %214, %v80
  %v216 = vpop.permute.xlu0 %215
  %217 = vset.pattern.permute.xlu0 0
  %218 = vperm.xlu0 %217, %v81
  %v219 = vpop.permute.xlu0 %218
  %220 = vset.pattern.permute.xlu0 0
  %221 = vperm.xlu0 %220, %v82
  %v222 = vpop.permute.xlu0 %221
  %223 = vset.pattern.permute.xlu0 0
  %224 = vperm.xlu0 %223, %v83
  %v225 = vpop.permute.xlu0 %224
  %226 = vset.pattern.permute.xlu0 0
  %227 = vperm.xlu0 %226, %v84
  %v228 = vpop.permute.xlu0 %227
  %229 = vset.pattern.permute.xlu0 0
  %230 = vperm.xlu0 %229, %v85
  %v231 = vpop.permute.xlu0 %230
  %232 = vset.pattern.permute.xlu0 0
  %233 = vperm.xlu0 %232, %v86
  %v234 = vpop.permute.xlu0 %233
  %235 = vset.pattern.permute.xlu0 0
  %236 = vperm.xlu0 %235, %v87
  %v237 = vpop.permute.xlu0 %236
  %238 = vset.pattern.permute.xlu0 0
  %239 = vperm.xlu0 %238, %v88
  %v240 = vpop.permute.xlu0 %239
  %241 = vset.pattern.permute.xlu0 0
  %242 = vperm.xlu0 %241, %v89
  %v243 = vpop.permute.xlu0 %242
  %244 = vset.pattern.permute.xlu0 0
  %245 = vperm.xlu0 %244, %v90
  %v246 = vpop.permute.xlu0 %245
  %247 = vset.pattern.permute.xlu0 0
  %248 = vperm.xlu0 %247, %v91
  %v249 = vpop.permute.xlu0 %248
  %250 = vset.pattern.permute.xlu0 0
  %251 = vperm.xlu0 %250, %v92
  %v252 = vpop.permute.xlu0 %251
  %253 = vset.pattern.permute.xlu0 0
  %254 = vperm.xlu0 %253, %v93
  %v255 = vpop.permute.xlu0 %254
  %256 = vset.pattern.permute.xlu0 0
  %257 = vperm.xlu0 %256, %v94
  %v258 = vpop.permute.xlu0 %257
  %vm259 = vcmp.eq.s32.totalorder %v99, %v96
  %vm260 = vcmp.eq.s32.totalorder %v102, %v96
  %vm261 = vcmp.eq.s32.totalorder %v105, %v96
  %vm262 = vcmp.eq.s32.totalorder %v108, %v96
  %vm263 = vcmp.eq.s32.totalorder %v111, %v96
  %vm264 = vcmp.eq.s32.totalorder %v114, %v96
  %vm265 = vcmp.eq.s32.totalorder %v117, %v96
  %vm266 = vcmp.eq.s32.totalorder %v120, %v96
  %vm267 = vcmp.eq.s32.totalorder %v123, %v96
  %vm268 = vcmp.eq.s32.totalorder %v126, %v96
  %vm269 = vcmp.eq.s32.totalorder %v129, %v96
  %vm270 = vcmp.eq.s32.totalorder %v132, %v96
  %vm271 = vcmp.eq.s32.totalorder %v135, %v96
  %vm272 = vcmp.eq.s32.totalorder %v138, %v96
  %vm273 = vcmp.eq.s32.totalorder %v141, %v96
  %vm274 = vcmp.eq.s32.totalorder %v144, %v96
  %vm275 = vcmp.eq.s32.totalorder %v147, %v96
  %vm276 = vcmp.eq.s32.totalorder %v150, %v96
  %vm277 = vcmp.eq.s32.totalorder %v153, %v96
  %vm278 = vcmp.eq.s32.totalorder %v156, %v96
  %vm279 = vcmp.eq.s32.totalorder %v159, %v96
  %vm280 = vcmp.eq.s32.totalorder %v162, %v96
  %vm281 = vcmp.eq.s32.totalorder %v165, %v96
  %vm282 = vcmp.eq.s32.totalorder %v168, %v96
  %vm283 = vcmp.eq.s32.totalorder %v171, %v96
  %vm284 = vcmp.eq.s32.totalorder %v174, %v96
  %vm285 = vcmp.eq.s32.totalorder %v177, %v96
  %vm286 = vcmp.eq.s32.totalorder %v180, %v96
  %vm287 = vcmp.eq.s32.totalorder %v183, %v96
  %vm288 = vcmp.eq.s32.totalorder %v186, %v96
  %vm289 = vcmp.eq.s32.totalorder %v189, %v96
  %vm290 = vcmp.eq.s32.totalorder %v192, %v96
  %vm291 = vcmp.eq.s32.totalorder %v195, %v96
  %vm292 = vcmp.eq.s32.totalorder %v198, %v96
  %vm293 = vcmp.eq.s32.totalorder %v201, %v96
  %vm294 = vcmp.eq.s32.totalorder %v204, %v96
  %vm295 = vcmp.eq.s32.totalorder %v207, %v96
  %vm296 = vcmp.eq.s32.totalorder %v210, %v96
  %vm297 = vcmp.eq.s32.totalorder %v213, %v96
  %vm298 = vcmp.eq.s32.totalorder %v216, %v96
  %vm299 = vcmp.eq.s32.totalorder %v219, %v96
  %vm300 = vcmp.eq.s32.totalorder %v222, %v96
  %vm301 = vcmp.eq.s32.totalorder %v225, %v96
  %vm302 = vcmp.eq.s32.totalorder %v228, %v96
  %vm303 = vcmp.eq.s32.totalorder %v231, %v96
  %vm304 = vcmp.eq.s32.totalorder %v234, %v96
  %vm305 = vcmp.eq.s32.totalorder %v237, %v96
  %vm306 = vcmp.eq.s32.totalorder %v240, %v96
  %vm307 = vcmp.eq.s32.totalorder %v243, %v96
  %vm308 = vcmp.eq.s32.totalorder %v246, %v96
  %vm309 = vcmp.eq.s32.totalorder %v249, %v96
  %vm310 = vcmp.eq.s32.totalorder %v252, %v96
  %vm311 = vcmp.eq.s32.totalorder %v255, %v96
  %vm312 = vcmp.eq.s32.totalorder %v258, %v96
  %v313 = vsel %vm259, 1, 0
  %v314 = vsel %vm260, 1, 0
  %v315 = vsel %vm261, 1, 0
  %v316 = vsel %vm262, 1, 0
  %v317 = vsel %vm263, 1, 0
  %v318 = vsel %vm264, 1, 0
  %v319 = vsel %vm265, 1, 0
  %v320 = vsel %vm266, 1, 0
  %v321 = vsel %vm267, 1, 0
  %v322 = vsel %vm268, 1, 0
  %v323 = vsel %vm269, 1, 0
  %v324 = vsel %vm270, 1, 0
  %v325 = vsel %vm271, 1, 0
  %v326 = vsel %vm272, 1, 0
  %v327 = vsel %vm273, 1, 0
  %v328 = vsel %vm274, 1, 0
  %v329 = vsel %vm275, 1, 0
  %v330 = vsel %vm276, 1, 0
  %v331 = vsel %vm277, 1, 0
  %v332 = vsel %vm278, 1, 0
  %v333 = vsel %vm279, 1, 0
  %v334 = vsel %vm280, 1, 0
  %v335 = vsel %vm281, 1, 0
  %v336 = vsel %vm282, 1, 0
  %v337 = vsel %vm283, 1, 0
  %v338 = vsel %vm284, 1, 0
  %v339 = vsel %vm285, 1, 0
  %v340 = vsel %vm286, 1, 0
  %v341 = vsel %vm287, 1, 0
  %v342 = vsel %vm288, 1, 0
  %v343 = vsel %vm289, 1, 0
  %v344 = vsel %vm290, 1, 0
  %v345 = vsel %vm291, 1, 0
  %v346 = vsel %vm292, 1, 0
  %v347 = vsel %vm293, 1, 0
  %v348 = vsel %vm294, 1, 0
  %v349 = vsel %vm295, 1, 0
  %v350 = vsel %vm296, 1, 0
  %v351 = vsel %vm297, 1, 0
  %v352 = vsel %vm298, 1, 0
  %v353 = vsel %vm299, 1, 0
  %v354 = vsel %vm300, 1, 0
  %v355 = vsel %vm301, 1, 0
  %v356 = vsel %vm302, 1, 0
  %v357 = vsel %vm303, 1, 0
  %v358 = vsel %vm304, 1, 0
  %v359 = vsel %vm305, 1, 0
  %v360 = vsel %vm306, 1, 0
  %v361 = vsel %vm307, 1, 0
  %v362 = vsel %vm308, 1, 0
  %v363 = vsel %vm309, 1, 0
  %v364 = vsel %vm310, 1, 0
  %v365 = vsel %vm311, 1, 0
  %v366 = vsel %vm312, 1, 0
  %v367 = vcvt.s32.f32 %v313
  %v368 = vcvt.s32.f32 %v314
  %v369 = vcvt.s32.f32 %v315
  %v370 = vcvt.s32.f32 %v316
  %v371 = vcvt.s32.f32 %v317
  %v372 = vcvt.s32.f32 %v318
  %v373 = vcvt.s32.f32 %v319
  %v374 = vcvt.s32.f32 %v320
  %v375 = vcvt.s32.f32 %v321
  %v376 = vcvt.s32.f32 %v322
  %v377 = vcvt.s32.f32 %v323
  %v378 = vcvt.s32.f32 %v324
  %v379 = vcvt.s32.f32 %v325
  %v380 = vcvt.s32.f32 %v326
  %v381 = vcvt.s32.f32 %v327
  %v382 = vcvt.s32.f32 %v328
  %v383 = vcvt.s32.f32 %v329
  %v384 = vcvt.s32.f32 %v330
  %v385 = vcvt.s32.f32 %v331
  %v386 = vcvt.s32.f32 %v332
  %v387 = vcvt.s32.f32 %v333
  %v388 = vcvt.s32.f32 %v334
  %v389 = vcvt.s32.f32 %v335
  %v390 = vcvt.s32.f32 %v336
  %v391 = vcvt.s32.f32 %v337
  %v392 = vcvt.s32.f32 %v338
  %v393 = vcvt.s32.f32 %v339
  %v394 = vcvt.s32.f32 %v340
  %v395 = vcvt.s32.f32 %v341
  %v396 = vcvt.s32.f32 %v342
  %v397 = vcvt.s32.f32 %v343
  %v398 = vcvt.s32.f32 %v344
  %v399 = vcvt.s32.f32 %v345
  %v400 = vcvt.s32.f32 %v346
  %v401 = vcvt.s32.f32 %v347
  %v402 = vcvt.s32.f32 %v348
  %v403 = vcvt.s32.f32 %v349
  %v404 = vcvt.s32.f32 %v350
  %v405 = vcvt.s32.f32 %v351
  %v406 = vcvt.s32.f32 %v352
  %v407 = vcvt.s32.f32 %v353
  %v408 = vcvt.s32.f32 %v354
  %v409 = vcvt.s32.f32 %v355
  %v410 = vcvt.s32.f32 %v356
  %v411 = vcvt.s32.f32 %v357
  %v412 = vcvt.s32.f32 %v358
  %v413 = vcvt.s32.f32 %v359
  %v414 = vcvt.s32.f32 %v360
  %v415 = vcvt.s32.f32 %v361
  %v416 = vcvt.s32.f32 %v362
  %v417 = vcvt.s32.f32 %v363
  %v418 = vcvt.s32.f32 %v364
  %v419 = vcvt.s32.f32 %v365
  %v420 = vcvt.s32.f32 %v366
  %v421 = vld [vmem:[%s2] sm:$0xff]
  %v422 = vld [vmem:[%s2 + $0x8] sm:$0xff]
  %v423 = vld [vmem:[%s2 + $0x10] sm:$0xf]
  %v424 = vld [vmem:[%s4] sm:$0xff]
  %v425 = vld [vmem:[%s4 + $0x8] sm:$0xff]
  %vm426 = vcmask 130048
  %v428 = vsel %vm426, %v421, 0
  %v431 = vsel %vm426, %v422, 0
  %v434 = vsel %vm426, %v423, 0
  %436 = vmatpush.msra.mxu0 0.0
  %437 = vmatpush.msra.mxu0 0.0
  %438 = vmatpush.msra.mxu0 0.0
  %439 = vmatpush.msra.mxu0 0.0
  %440 = vmatpush.msra.mxu0 0.0
  %441 = vmatpush.msra.mxu0 0.0
  %442 = vmatpush.msra.mxu0 0.0
  %443 = vmatpush.msra.mxu0 0.0
  %444 = vmatpush.msra.mxu0 0.0
  %445 = vmatpush.msra.mxu0 0.0
  %446 = vmatpush.msra.mxu0 0.0
  %447 = vmatpush.msra.mxu0 0.0
  %448 = vmatpush.msra.mxu0 0.0
  %449 = vmatpush.msra.mxu0 0.0
  %v450 = vand.u32 %v425, 4294901760
  %451 = vmatpush.msra.mxu0 %v450
  %v452 = vand.u32 %v424, 4294901760
  %453 = vmatpush.msra.mxu0 %v452
  %v454 = vand.u32 %v428, 4294901760
  %v455 = vsub.f32 %v428, %v454
  %v456 = vand.u32 %v455, 4294901760
  %v457 = vsub.f32 %v455, %v456
  %v458 = vand.u32 %v457, 4294901760
  %459 = vmatmul.f32.gmra.mxu0 %v458
  %v460 = vpop.f32.mrf.mxu0
  %v461 = vadd.f32 0.0, %v460
  %v462 = vand.u32 %v431, 4294901760
  %v463 = vsub.f32 %v431, %v462
  %v464 = vand.u32 %v463, 4294901760
  %v465 = vsub.f32 %v463, %v464
  %v466 = vand.u32 %v465, 4294901760
  %467 = vmatmul.f32.gmra.mxu0 %v466
  %v468 = vpop.f32.mrf.mxu0
  %v469 = vadd.f32 0.0, %v468
  %v470 = vand.u32 %v434, 4294901760
  %v471 = vsub.f32 %v434, %v470
  %v472 = vand.u32 %v471, 4294901760
  %v473 = vsub.f32 %v471, %v472
  %v474 = vand.u32 %v473, 4294901760
  %475 = vmatmul.f32.gmra.mxu0 %v474
  %v476 = vpop.f32.mrf.mxu0
  %v477 = vadd.f32 0.0, %v476
  %478 = vdwg.mxu0
  %479 = vmatpush.msra.mxu0 0.0
  %480 = vmatpush.msra.mxu0 0.0
  %481 = vmatpush.msra.mxu0 0.0
  %482 = vmatpush.msra.mxu0 0.0
  %483 = vmatpush.msra.mxu0 0.0
  %484 = vmatpush.msra.mxu0 0.0
  %485 = vmatpush.msra.mxu0 0.0
  %486 = vmatpush.msra.mxu0 0.0
  %487 = vmatpush.msra.mxu0 0.0
  %488 = vmatpush.msra.mxu0 0.0
  %489 = vmatpush.msra.mxu0 0.0
  %490 = vmatpush.msra.mxu0 0.0
  %491 = vmatpush.msra.mxu0 0.0
  %492 = vmatpush.msra.mxu0 0.0
  %v493 = vand.u32 %v425, 4294901760
  %v494 = vsub.f32 %v425, %v493
  %v495 = vand.u32 %v494, 4294901760
  %v496 = vsub.f32 %v494, %v495
  %v497 = vand.u32 %v496, 4294901760
  %498 = vmatpush.msra.mxu0 %v497
  %v499 = vand.u32 %v424, 4294901760
  %v500 = vsub.f32 %v424, %v499
  %v501 = vand.u32 %v500, 4294901760
  %v502 = vsub.f32 %v500, %v501
  %v503 = vand.u32 %v502, 4294901760
  %504 = vmatpush.msra.mxu0 %v503
  %v505 = vand.u32 %v428, 4294901760
  %506 = vmatmul.f32.gmra.mxu0 %v505
  %v507 = vpop.f32.mrf.mxu0
  %v508 = vadd.f32 %v461, %v507
  %v509 = vand.u32 %v431, 4294901760
  %510 = vmatmul.f32.gmra.mxu0 %v509
  %v511 = vpop.f32.mrf.mxu0
  %v512 = vadd.f32 %v469, %v511
  %v513 = vand.u32 %v434, 4294901760
  %514 = vmatmul.f32.gmra.mxu0 %v513
  %v515 = vpop.f32.mrf.mxu0
  %v516 = vadd.f32 %v477, %v515
  %517 = vdwg.mxu0
  %518 = vmatpush.msra.mxu0 0.0
  %519 = vmatpush.msra.mxu0 0.0
  %520 = vmatpush.msra.mxu0 0.0
  %521 = vmatpush.msra.mxu0 0.0
  %522 = vmatpush.msra.mxu0 0.0
  %523 = vmatpush.msra.mxu0 0.0
  %524 = vmatpush.msra.mxu0 0.0
  %525 = vmatpush.msra.mxu0 0.0
  %526 = vmatpush.msra.mxu0 0.0
  %527 = vmatpush.msra.mxu0 0.0
  %528 = vmatpush.msra.mxu0 0.0
  %529 = vmatpush.msra.mxu0 0.0
  %530 = vmatpush.msra.mxu0 0.0
  %531 = vmatpush.msra.mxu0 0.0
  %v532 = vand.u32 %v425, 4294901760
  %v533 = vsub.f32 %v425, %v532
  %534 = vmatpush.msra.mxu0 %v533
  %v535 = vand.u32 %v424, 4294901760
  %v536 = vsub.f32 %v424, %v535
  %537 = vmatpush.msra.mxu0 %v536
  %v538 = vand.u32 %v428, 4294901760
  %v539 = vsub.f32 %v428, %v538
  %540 = vmatmul.f32.gmra.mxu0 %v539
  %v541 = vpop.f32.mrf.mxu0
  %v542 = vadd.f32 %v508, %v541
  %v543 = vand.u32 %v431, 4294901760
  %v544 = vsub.f32 %v431, %v543
  %545 = vmatmul.f32.gmra.mxu0 %v544
  %v546 = vpop.f32.mrf.mxu0
  %v547 = vadd.f32 %v512, %v546
  %v548 = vand.u32 %v434, 4294901760
  %v549 = vsub.f32 %v434, %v548
  %550 = vmatmul.f32.gmra.mxu0 %v549
  %v551 = vpop.f32.mrf.mxu0
  %v552 = vadd.f32 %v516, %v551
  %553 = vdwg.mxu0
  %554 = vmatpush.msra.mxu0 0.0
  %555 = vmatpush.msra.mxu0 0.0
  %556 = vmatpush.msra.mxu0 0.0
  %557 = vmatpush.msra.mxu0 0.0
  %558 = vmatpush.msra.mxu0 0.0
  %559 = vmatpush.msra.mxu0 0.0
  %560 = vmatpush.msra.mxu0 0.0
  %561 = vmatpush.msra.mxu0 0.0
  %562 = vmatpush.msra.mxu0 0.0
  %563 = vmatpush.msra.mxu0 0.0
  %564 = vmatpush.msra.mxu0 0.0
  %565 = vmatpush.msra.mxu0 0.0
  %566 = vmatpush.msra.mxu0 0.0
  %567 = vmatpush.msra.mxu0 0.0
  %v568 = vand.u32 %v425, 4294901760
  %569 = vmatpush.msra.mxu0 %v568
  %v570 = vand.u32 %v424, 4294901760
  %571 = vmatpush.msra.mxu0 %v570
  %v572 = vand.u32 %v428, 4294901760
  %v573 = vsub.f32 %v428, %v572
  %v574 = vand.u32 %v573, 4294901760
  %575 = vmatmul.f32.gmra.mxu0 %v574
  %v576 = vpop.f32.mrf.mxu0
  %v577 = vadd.f32 %v542, %v576
  %v578 = vand.u32 %v431, 4294901760
  %v579 = vsub.f32 %v431, %v578
  %v580 = vand.u32 %v579, 4294901760
  %581 = vmatmul.f32.gmra.mxu0 %v580
  %v582 = vpop.f32.mrf.mxu0
  %v583 = vadd.f32 %v547, %v582
  %v584 = vand.u32 %v434, 4294901760
  %v585 = vsub.f32 %v434, %v584
  %v586 = vand.u32 %v585, 4294901760
  %587 = vmatmul.f32.gmra.mxu0 %v586
  %v588 = vpop.f32.mrf.mxu0
  %v589 = vadd.f32 %v552, %v588
  %590 = vdwg.mxu0
  %591 = vmatpush.msra.mxu0 0.0
  %592 = vmatpush.msra.mxu0 0.0
  %593 = vmatpush.msra.mxu0 0.0
  %594 = vmatpush.msra.mxu0 0.0
  %595 = vmatpush.msra.mxu0 0.0
  %596 = vmatpush.msra.mxu0 0.0
  %597 = vmatpush.msra.mxu0 0.0
  %598 = vmatpush.msra.mxu0 0.0
  %599 = vmatpush.msra.mxu0 0.0
  %600 = vmatpush.msra.mxu0 0.0
  %601 = vmatpush.msra.mxu0 0.0
  %602 = vmatpush.msra.mxu0 0.0
  %603 = vmatpush.msra.mxu0 0.0
  %604 = vmatpush.msra.mxu0 0.0
  %v605 = vand.u32 %v425, 4294901760
  %v606 = vsub.f32 %v425, %v605
  %v607 = vand.u32 %v606, 4294901760
  %608 = vmatpush.msra.mxu0 %v607
  %v609 = vand.u32 %v424, 4294901760
  %v610 = vsub.f32 %v424, %v609
  %v611 = vand.u32 %v610, 4294901760
  %612 = vmatpush.msra.mxu0 %v611
  %v613 = vand.u32 %v428, 4294901760
  %614 = vmatmul.f32.gmra.mxu0 %v613
  %v615 = vpop.f32.mrf.mxu0
  %v616 = vadd.f32 %v577, %v615
  %v617 = vand.u32 %v431, 4294901760
  %618 = vmatmul.f32.gmra.mxu0 %v617
  %v619 = vpop.f32.mrf.mxu0
  %v620 = vadd.f32 %v583, %v619
  %v621 = vand.u32 %v434, 4294901760
  %622 = vmatmul.f32.gmra.mxu0 %v621
  %v623 = vpop.f32.mrf.mxu0
  %v624 = vadd.f32 %v589, %v623
  %625 = vdwg.mxu0
  %626 = vmatpush.msra.mxu0 0.0
  %627 = vmatpush.msra.mxu0 0.0
  %628 = vmatpush.msra.mxu0 0.0
  %629 = vmatpush.msra.mxu0 0.0
  %630 = vmatpush.msra.mxu0 0.0
  %631 = vmatpush.msra.mxu0 0.0
  %632 = vmatpush.msra.mxu0 0.0
  %633 = vmatpush.msra.mxu0 0.0
  %634 = vmatpush.msra.mxu0 0.0
  %635 = vmatpush.msra.mxu0 0.0
  %636 = vmatpush.msra.mxu0 0.0
  %637 = vmatpush.msra.mxu0 0.0
  %638 = vmatpush.msra.mxu0 0.0
  %639 = vmatpush.msra.mxu0 0.0
  %v640 = vand.u32 %v425, 4294901760
  %641 = vmatpush.msra.mxu0 %v640
  %v642 = vand.u32 %v424, 4294901760
  %643 = vmatpush.msra.mxu0 %v642
  %v644 = vand.u32 %v428, 4294901760
  %645 = vmatmul.f32.gmra.mxu0 %v644
  %v646 = vpop.f32.mrf.mxu0
  %v647 = vadd.f32 %v616, %v646
  %v648 = vand.u32 %v431, 4294901760
  %649 = vmatmul.f32.gmra.mxu0 %v648
  %v650 = vpop.f32.mrf.mxu0
  %v651 = vadd.f32 %v620, %v650
  %v652 = vand.u32 %v434, 4294901760
  %653 = vmatmul.f32.gmra.mxu0 %v652
  %v654 = vpop.f32.mrf.mxu0
  %v655 = vadd.f32 %v624, %v654
  %656 = vdwg.mxu0
  %vm657 = vcmask 162816
  %v659 = vsel %vm657, %v367, 0
  %v662 = vsel %vm657, %v368, 0
  %v665 = vsel %vm657, %v369, 0
  %v668 = vsel %vm657, %v370, 0
  %v671 = vsel %vm657, %v371, 0
  %v674 = vsel %vm657, %v372, 0
  %v677 = vsel %vm657, %v373, 0
  %v680 = vsel %vm657, %v374, 0
  %v683 = vsel %vm657, %v375, 0
  %v686 = vsel %vm657, %v376, 0
  %v689 = vsel %vm657, %v377, 0
  %v692 = vsel %vm657, %v378, 0
  %v695 = vsel %vm657, %v379, 0
  %v698 = vsel %vm657, %v380, 0
  %v701 = vsel %vm657, %v381, 0
  %v704 = vsel %vm657, %v382, 0
  %v707 = vsel %vm657, %v383, 0
  %v710 = vsel %vm657, %v384, 0
  %v713 = vsel %vm657, %v385, 0
  %v716 = vsel %vm657, %v386, 0
  %v719 = vsel %vm657, %v387, 0
  %v722 = vsel %vm657, %v388, 0
  %v725 = vsel %vm657, %v389, 0
  %v728 = vsel %vm657, %v390, 0
  %v731 = vsel %vm657, %v391, 0
  %v734 = vsel %vm657, %v392, 0
  %v737 = vsel %vm657, %v393, 0
  %v740 = vsel %vm657, %v394, 0
  %v743 = vsel %vm657, %v395, 0
  %v746 = vsel %vm657, %v396, 0
  %v749 = vsel %vm657, %v397, 0
  %v752 = vsel %vm657, %v398, 0
  %v755 = vsel %vm657, %v399, 0
  %v758 = vsel %vm657, %v400, 0
  %v761 = vsel %vm657, %v401, 0
  %v764 = vsel %vm657, %v402, 0
  %v767 = vsel %vm657, %v403, 0
  %v770 = vsel %vm657, %v404, 0
  %v773 = vsel %vm657, %v405, 0
  %v776 = vsel %vm657, %v406, 0
  %v779 = vsel %vm657, %v407, 0
  %v782 = vsel %vm657, %v408, 0
  %v785 = vsel %vm657, %v409, 0
  %v788 = vsel %vm657, %v410, 0
  %v791 = vsel %vm657, %v411, 0
  %v794 = vsel %vm657, %v412, 0
  %v797 = vsel %vm657, %v413, 0
  %v800 = vsel %vm657, %v414, 0
  %v803 = vsel %vm657, %v415, 0
  %v806 = vsel %vm657, %v416, 0
  %v809 = vsel %vm657, %v417, 0
  %v812 = vsel %vm657, %v418, 0
  %v815 = vsel %vm657, %v419, 0
  %v818 = vsel %vm657, %v420, 0
  %vm820 = vcmask 1043456
  %v822 = vsel %vm820, %v655, 0
  %824 = vmatpush.msra.mxu0 0.0
  %825 = vmatpush.msra.mxu0 0.0
  %826 = vmatpush.msra.mxu0 0.0
  %827 = vmatpush.msra.mxu0 0.0
  %828 = vmatpush.msra.mxu0 0.0
  %829 = vmatpush.msra.mxu0 0.0
  %830 = vmatpush.msra.mxu0 0.0
  %831 = vmatpush.msra.mxu0 0.0
  %832 = vmatpush.msra.mxu0 0.0
  %833 = vmatpush.msra.mxu0 0.0
  %834 = vmatpush.msra.mxu0 0.0
  %835 = vmatpush.msra.mxu0 0.0
  %836 = vmatpush.msra.mxu0 0.0
  %v837 = vand.u32 %v822, 4294901760
  %838 = vmatpush.msra.mxu0 %v837
  %v839 = vand.u32 %v651, 4294901760
  %840 = vmatpush.msra.mxu0 %v839
  %v841 = vand.u32 %v647, 4294901760
  %842 = vmatpush.msra.mxu0 %v841
  %v843 = vand.u32 %v659, 4294901760
  %v844 = vsub.f32 %v659, %v843
  %v845 = vand.u32 %v844, 4294901760
  %v846 = vsub.f32 %v844, %v845
  %v847 = vand.u32 %v846, 4294901760
  %848 = vmatmul.f32.gmra.mxu0 %v847
  %v849 = vpop.f32.mrf.mxu0
  %v850 = vadd.f32 0.0, %v849
  %v851 = vand.u32 %v662, 4294901760
  %v852 = vsub.f32 %v662, %v851
  %v853 = vand.u32 %v852, 4294901760
  %v854 = vsub.f32 %v852, %v853
  %v855 = vand.u32 %v854, 4294901760
  %856 = vmatmul.f32.gmra.mxu0 %v855
  %v857 = vpop.f32.mrf.mxu0
  %v858 = vadd.f32 0.0, %v857
  %v859 = vand.u32 %v665, 4294901760
  %v860 = vsub.f32 %v665, %v859
  %v861 = vand.u32 %v860, 4294901760
  %v862 = vsub.f32 %v860, %v861
  %v863 = vand.u32 %v862, 4294901760
  %864 = vmatmul.f32.gmra.mxu0 %v863
  %v865 = vpop.f32.mrf.mxu0
  %v866 = vadd.f32 0.0, %v865
  %v867 = vand.u32 %v668, 4294901760
  %v868 = vsub.f32 %v668, %v867
  %v869 = vand.u32 %v868, 4294901760
  %v870 = vsub.f32 %v868, %v869
  %v871 = vand.u32 %v870, 4294901760
  %872 = vmatmul.f32.gmra.mxu0 %v871
  %v873 = vpop.f32.mrf.mxu0
  %v874 = vadd.f32 0.0, %v873
  %v875 = vand.u32 %v671, 4294901760
  %v876 = vsub.f32 %v671, %v875
  %v877 = vand.u32 %v876, 4294901760
  %v878 = vsub.f32 %v876, %v877
  %v879 = vand.u32 %v878, 4294901760
  %880 = vmatmul.f32.gmra.mxu0 %v879
  %v881 = vpop.f32.mrf.mxu0
  %v882 = vadd.f32 0.0, %v881
  %v883 = vand.u32 %v674, 4294901760
  %v884 = vsub.f32 %v674, %v883
  %v885 = vand.u32 %v884, 4294901760
  %v886 = vsub.f32 %v884, %v885
  %v887 = vand.u32 %v886, 4294901760
  %888 = vmatmul.f32.gmra.mxu0 %v887
  %v889 = vpop.f32.mrf.mxu0
  %v890 = vadd.f32 0.0, %v889
  %v891 = vand.u32 %v677, 4294901760
  %v892 = vsub.f32 %v677, %v891
  %v893 = vand.u32 %v892, 4294901760
  %v894 = vsub.f32 %v892, %v893
  %v895 = vand.u32 %v894, 4294901760
  %896 = vmatmul.f32.gmra.mxu0 %v895
  %v897 = vpop.f32.mrf.mxu0
  %v898 = vadd.f32 0.0, %v897
  %v899 = vand.u32 %v680, 4294901760
  %v900 = vsub.f32 %v680, %v899
  %v901 = vand.u32 %v900, 4294901760
  %v902 = vsub.f32 %v900, %v901
  %v903 = vand.u32 %v902, 4294901760
  %904 = vmatmul.f32.gmra.mxu0 %v903
  %v905 = vpop.f32.mrf.mxu0
  %v906 = vadd.f32 0.0, %v905
  %v907 = vand.u32 %v683, 4294901760
  %v908 = vsub.f32 %v683, %v907
  %v909 = vand.u32 %v908, 4294901760
  %v910 = vsub.f32 %v908, %v909
  %v911 = vand.u32 %v910, 4294901760
  %912 = vmatmul.f32.gmra.mxu0 %v911
  %v913 = vpop.f32.mrf.mxu0
  %v914 = vadd.f32 0.0, %v913
  %v915 = vand.u32 %v686, 4294901760
  %v916 = vsub.f32 %v686, %v915
  %v917 = vand.u32 %v916, 4294901760
  %v918 = vsub.f32 %v916, %v917
  %v919 = vand.u32 %v918, 4294901760
  %920 = vmatmul.f32.gmra.mxu0 %v919
  %v921 = vpop.f32.mrf.mxu0
  %v922 = vadd.f32 0.0, %v921
  %v923 = vand.u32 %v689, 4294901760
  %v924 = vsub.f32 %v689, %v923
  %v925 = vand.u32 %v924, 4294901760
  %v926 = vsub.f32 %v924, %v925
  %v927 = vand.u32 %v926, 4294901760
  %928 = vmatmul.f32.gmra.mxu0 %v927
  %v929 = vpop.f32.mrf.mxu0
  %v930 = vadd.f32 0.0, %v929
  %v931 = vand.u32 %v692, 4294901760
  %v932 = vsub.f32 %v692, %v931
  %v933 = vand.u32 %v932, 4294901760
  %v934 = vsub.f32 %v932, %v933
  %v935 = vand.u32 %v934, 4294901760
  %936 = vmatmul.f32.gmra.mxu0 %v935
  %v937 = vpop.f32.mrf.mxu0
  %v938 = vadd.f32 0.0, %v937
  %v939 = vand.u32 %v695, 4294901760
  %v940 = vsub.f32 %v695, %v939
  %v941 = vand.u32 %v940, 4294901760
  %v942 = vsub.f32 %v940, %v941
  %v943 = vand.u32 %v942, 4294901760
  %944 = vmatmul.f32.gmra.mxu0 %v943
  %v945 = vpop.f32.mrf.mxu0
  %v946 = vadd.f32 0.0, %v945
  %v947 = vand.u32 %v698, 4294901760
  %v948 = vsub.f32 %v698, %v947
  %v949 = vand.u32 %v948, 4294901760
  %v950 = vsub.f32 %v948, %v949
  %v951 = vand.u32 %v950, 4294901760
  %952 = vmatmul.f32.gmra.mxu0 %v951
  %v953 = vpop.f32.mrf.mxu0
  %v954 = vadd.f32 0.0, %v953
  %v955 = vand.u32 %v701, 4294901760
  %v956 = vsub.f32 %v701, %v955
  %v957 = vand.u32 %v956, 4294901760
  %v958 = vsub.f32 %v956, %v957
  %v959 = vand.u32 %v958, 4294901760
  %960 = vmatmul.f32.gmra.mxu0 %v959
  %v961 = vpop.f32.mrf.mxu0
  %v962 = vadd.f32 0.0, %v961
  %v963 = vand.u32 %v704, 4294901760
  %v964 = vsub.f32 %v704, %v963
  %v965 = vand.u32 %v964, 4294901760
  %v966 = vsub.f32 %v964, %v965
  %v967 = vand.u32 %v966, 4294901760
  %968 = vmatmul.f32.gmra.mxu0 %v967
  %v969 = vpop.f32.mrf.mxu0
  %v970 = vadd.f32 0.0, %v969
  %v971 = vand.u32 %v707, 4294901760
  %v972 = vsub.f32 %v707, %v971
  %v973 = vand.u32 %v972, 4294901760
  %v974 = vsub.f32 %v972, %v973
  %v975 = vand.u32 %v974, 4294901760
  %976 = vmatmul.f32.gmra.mxu0 %v975
  %v977 = vpop.f32.mrf.mxu0
  %v978 = vadd.f32 0.0, %v977
  %v979 = vand.u32 %v710, 4294901760
  %v980 = vsub.f32 %v710, %v979
  %v981 = vand.u32 %v980, 4294901760
  %v982 = vsub.f32 %v980, %v981
  %v983 = vand.u32 %v982, 4294901760
  %984 = vmatmul.f32.gmra.mxu0 %v983
  %v985 = vpop.f32.mrf.mxu0
  %v986 = vadd.f32 0.0, %v985
  %v987 = vand.u32 %v713, 4294901760
  %v988 = vsub.f32 %v713, %v987
  %v989 = vand.u32 %v988, 4294901760
  %v990 = vsub.f32 %v988, %v989
  %v991 = vand.u32 %v990, 4294901760
  %992 = vmatmul.f32.gmra.mxu0 %v991
  %v993 = vpop.f32.mrf.mxu0
  %v994 = vadd.f32 0.0, %v993
  %v995 = vand.u32 %v716, 4294901760
  %v996 = vsub.f32 %v716, %v995
  %v997 = vand.u32 %v996, 4294901760
  %v998 = vsub.f32 %v996, %v997
  %v999 = vand.u32 %v998, 4294901760
  %1000 = vmatmul.f32.gmra.mxu0 %v999
  %v1001 = vpop.f32.mrf.mxu0
  %v1002 = vadd.f32 0.0, %v1001
  %v1003 = vand.u32 %v719, 4294901760
  %v1004 = vsub.f32 %v719, %v1003
  %v1005 = vand.u32 %v1004, 4294901760
  %v1006 = vsub.f32 %v1004, %v1005
  %v1007 = vand.u32 %v1006, 4294901760
  %1008 = vmatmul.f32.gmra.mxu0 %v1007
  %v1009 = vpop.f32.mrf.mxu0
  %v1010 = vadd.f32 0.0, %v1009
  %v1011 = vand.u32 %v722, 4294901760
  %v1012 = vsub.f32 %v722, %v1011
  %v1013 = vand.u32 %v1012, 4294901760
  %v1014 = vsub.f32 %v1012, %v1013
  %v1015 = vand.u32 %v1014, 4294901760
  %1016 = vmatmul.f32.gmra.mxu0 %v1015
  %v1017 = vpop.f32.mrf.mxu0
  %v1018 = vadd.f32 0.0, %v1017
  %v1019 = vand.u32 %v725, 4294901760
  %v1020 = vsub.f32 %v725, %v1019
  %v1021 = vand.u32 %v1020, 4294901760
  %v1022 = vsub.f32 %v1020, %v1021
  %v1023 = vand.u32 %v1022, 4294901760
  %1024 = vmatmul.f32.gmra.mxu0 %v1023
  %v1025 = vpop.f32.mrf.mxu0
  %v1026 = vadd.f32 0.0, %v1025
  %v1027 = vand.u32 %v728, 4294901760
  %v1028 = vsub.f32 %v728, %v1027
  %v1029 = vand.u32 %v1028, 4294901760
  %v1030 = vsub.f32 %v1028, %v1029
  %v1031 = vand.u32 %v1030, 4294901760
  %1032 = vmatmul.f32.gmra.mxu0 %v1031
  %v1033 = vpop.f32.mrf.mxu0
  %v1034 = vadd.f32 0.0, %v1033
  %v1035 = vand.u32 %v731, 4294901760
  %v1036 = vsub.f32 %v731, %v1035
  %v1037 = vand.u32 %v1036, 4294901760
  %v1038 = vsub.f32 %v1036, %v1037
  %v1039 = vand.u32 %v1038, 4294901760
  %1040 = vmatmul.f32.gmra.mxu0 %v1039
  %v1041 = vpop.f32.mrf.mxu0
  %v1042 = vadd.f32 0.0, %v1041
  %v1043 = vand.u32 %v734, 4294901760
  %v1044 = vsub.f32 %v734, %v1043
  %v1045 = vand.u32 %v1044, 4294901760
  %v1046 = vsub.f32 %v1044, %v1045
  %v1047 = vand.u32 %v1046, 4294901760
  %1048 = vmatmul.f32.gmra.mxu0 %v1047
  %v1049 = vpop.f32.mrf.mxu0
  %v1050 = vadd.f32 0.0, %v1049
  %v1051 = vand.u32 %v737, 4294901760
  %v1052 = vsub.f32 %v737, %v1051
  %v1053 = vand.u32 %v1052, 4294901760
  %v1054 = vsub.f32 %v1052, %v1053
  %v1055 = vand.u32 %v1054, 4294901760
  %1056 = vmatmul.f32.gmra.mxu0 %v1055
  %v1057 = vpop.f32.mrf.mxu0
  %v1058 = vadd.f32 0.0, %v1057
  %v1059 = vand.u32 %v740, 4294901760
  %v1060 = vsub.f32 %v740, %v1059
  %v1061 = vand.u32 %v1060, 4294901760
  %v1062 = vsub.f32 %v1060, %v1061
  %v1063 = vand.u32 %v1062, 4294901760
  %1064 = vmatmul.f32.gmra.mxu0 %v1063
  %v1065 = vpop.f32.mrf.mxu0
  %v1066 = vadd.f32 0.0, %v1065
  %v1067 = vand.u32 %v743, 4294901760
  %v1068 = vsub.f32 %v743, %v1067
  %v1069 = vand.u32 %v1068, 4294901760
  %v1070 = vsub.f32 %v1068, %v1069
  %v1071 = vand.u32 %v1070, 4294901760
  %1072 = vmatmul.f32.gmra.mxu0 %v1071
  %v1073 = vpop.f32.mrf.mxu0
  %v1074 = vadd.f32 0.0, %v1073
  %v1075 = vand.u32 %v746, 4294901760
  %v1076 = vsub.f32 %v746, %v1075
  %v1077 = vand.u32 %v1076, 4294901760
  %v1078 = vsub.f32 %v1076, %v1077
  %v1079 = vand.u32 %v1078, 4294901760
  %1080 = vmatmul.f32.gmra.mxu0 %v1079
  %v1081 = vpop.f32.mrf.mxu0
  %v1082 = vadd.f32 0.0, %v1081
  %v1083 = vand.u32 %v749, 4294901760
  %v1084 = vsub.f32 %v749, %v1083
  %v1085 = vand.u32 %v1084, 4294901760
  %v1086 = vsub.f32 %v1084, %v1085
  %v1087 = vand.u32 %v1086, 4294901760
  %1088 = vmatmul.f32.gmra.mxu0 %v1087
  %v1089 = vpop.f32.mrf.mxu0
  %v1090 = vadd.f32 0.0, %v1089
  %v1091 = vand.u32 %v752, 4294901760
  %v1092 = vsub.f32 %v752, %v1091
  %v1093 = vand.u32 %v1092, 4294901760
  %v1094 = vsub.f32 %v1092, %v1093
  %v1095 = vand.u32 %v1094, 4294901760
  %1096 = vmatmul.f32.gmra.mxu0 %v1095
  %v1097 = vpop.f32.mrf.mxu0
  %v1098 = vadd.f32 0.0, %v1097
  %v1099 = vand.u32 %v755, 4294901760
  %v1100 = vsub.f32 %v755, %v1099
  %v1101 = vand.u32 %v1100, 4294901760
  %v1102 = vsub.f32 %v1100, %v1101
  %v1103 = vand.u32 %v1102, 4294901760
  %1104 = vmatmul.f32.gmra.mxu0 %v1103
  %v1105 = vpop.f32.mrf.mxu0
  %v1106 = vadd.f32 0.0, %v1105
  %v1107 = vand.u32 %v758, 4294901760
  %v1108 = vsub.f32 %v758, %v1107
  %v1109 = vand.u32 %v1108, 4294901760
  %v1110 = vsub.f32 %v1108, %v1109
  %v1111 = vand.u32 %v1110, 4294901760
  %1112 = vmatmul.f32.gmra.mxu0 %v1111
  %v1113 = vpop.f32.mrf.mxu0
  %v1114 = vadd.f32 0.0, %v1113
  %v1115 = vand.u32 %v761, 4294901760
  %v1116 = vsub.f32 %v761, %v1115
  %v1117 = vand.u32 %v1116, 4294901760
  %v1118 = vsub.f32 %v1116, %v1117
  %v1119 = vand.u32 %v1118, 4294901760
  %1120 = vmatmul.f32.gmra.mxu0 %v1119
  %v1121 = vpop.f32.mrf.mxu0
  %v1122 = vadd.f32 0.0, %v1121
  %v1123 = vand.u32 %v764, 4294901760
  %v1124 = vsub.f32 %v764, %v1123
  %v1125 = vand.u32 %v1124, 4294901760
  %v1126 = vsub.f32 %v1124, %v1125
  %v1127 = vand.u32 %v1126, 4294901760
  %1128 = vmatmul.f32.gmra.mxu0 %v1127
  %v1129 = vpop.f32.mrf.mxu0
  %v1130 = vadd.f32 0.0, %v1129
  %v1131 = vand.u32 %v767, 4294901760
  %v1132 = vsub.f32 %v767, %v1131
  %v1133 = vand.u32 %v1132, 4294901760
  %v1134 = vsub.f32 %v1132, %v1133
  %v1135 = vand.u32 %v1134, 4294901760
  %1136 = vmatmul.f32.gmra.mxu0 %v1135
  %v1137 = vpop.f32.mrf.mxu0
  %v1138 = vadd.f32 0.0, %v1137
  %v1139 = vand.u32 %v770, 4294901760
  %v1140 = vsub.f32 %v770, %v1139
  %v1141 = vand.u32 %v1140, 4294901760
  %v1142 = vsub.f32 %v1140, %v1141
  %v1143 = vand.u32 %v1142, 4294901760
  %1144 = vmatmul.f32.gmra.mxu0 %v1143
  %v1145 = vpop.f32.mrf.mxu0
  %v1146 = vadd.f32 0.0, %v1145
  %v1147 = vand.u32 %v773, 4294901760
  %v1148 = vsub.f32 %v773, %v1147
  %v1149 = vand.u32 %v1148, 4294901760
  %v1150 = vsub.f32 %v1148, %v1149
  %v1151 = vand.u32 %v1150, 4294901760
  %1152 = vmatmul.f32.gmra.mxu0 %v1151
  %v1153 = vpop.f32.mrf.mxu0
  %v1154 = vadd.f32 0.0, %v1153
  %v1155 = vand.u32 %v776, 4294901760
  %v1156 = vsub.f32 %v776, %v1155
  %v1157 = vand.u32 %v1156, 4294901760
  %v1158 = vsub.f32 %v1156, %v1157
  %v1159 = vand.u32 %v1158, 4294901760
  %1160 = vmatmul.f32.gmra.mxu0 %v1159
  %v1161 = vpop.f32.mrf.mxu0
  %v1162 = vadd.f32 0.0, %v1161
  %v1163 = vand.u32 %v779, 4294901760
  %v1164 = vsub.f32 %v779, %v1163
  %v1165 = vand.u32 %v1164, 4294901760
  %v1166 = vsub.f32 %v1164, %v1165
  %v1167 = vand.u32 %v1166, 4294901760
  %1168 = vmatmul.f32.gmra.mxu0 %v1167
  %v1169 = vpop.f32.mrf.mxu0
  %v1170 = vadd.f32 0.0, %v1169
  %v1171 = vand.u32 %v782, 4294901760
  %v1172 = vsub.f32 %v782, %v1171
  %v1173 = vand.u32 %v1172, 4294901760
  %v1174 = vsub.f32 %v1172, %v1173
  %v1175 = vand.u32 %v1174, 4294901760
  %1176 = vmatmul.f32.gmra.mxu0 %v1175
  %v1177 = vpop.f32.mrf.mxu0
  %v1178 = vadd.f32 0.0, %v1177
  %v1179 = vand.u32 %v785, 4294901760
  %v1180 = vsub.f32 %v785, %v1179
  %v1181 = vand.u32 %v1180, 4294901760
  %v1182 = vsub.f32 %v1180, %v1181
  %v1183 = vand.u32 %v1182, 4294901760
  %1184 = vmatmul.f32.gmra.mxu0 %v1183
  %v1185 = vpop.f32.mrf.mxu0
  %v1186 = vadd.f32 0.0, %v1185
  %v1187 = vand.u32 %v788, 4294901760
  %v1188 = vsub.f32 %v788, %v1187
  %v1189 = vand.u32 %v1188, 4294901760
  %v1190 = vsub.f32 %v1188, %v1189
  %v1191 = vand.u32 %v1190, 4294901760
  %1192 = vmatmul.f32.gmra.mxu0 %v1191
  %v1193 = vpop.f32.mrf.mxu0
  %v1194 = vadd.f32 0.0, %v1193
  %v1195 = vand.u32 %v791, 4294901760
  %v1196 = vsub.f32 %v791, %v1195
  %v1197 = vand.u32 %v1196, 4294901760
  %v1198 = vsub.f32 %v1196, %v1197
  %v1199 = vand.u32 %v1198, 4294901760
  %1200 = vmatmul.f32.gmra.mxu0 %v1199
  %v1201 = vpop.f32.mrf.mxu0
  %v1202 = vadd.f32 0.0, %v1201
  %v1203 = vand.u32 %v794, 4294901760
  %v1204 = vsub.f32 %v794, %v1203
  %v1205 = vand.u32 %v1204, 4294901760
  %v1206 = vsub.f32 %v1204, %v1205
  %v1207 = vand.u32 %v1206, 4294901760
  %1208 = vmatmul.f32.gmra.mxu0 %v1207
  %v1209 = vpop.f32.mrf.mxu0
  %v1210 = vadd.f32 0.0, %v1209
  %v1211 = vand.u32 %v797, 4294901760
  %v1212 = vsub.f32 %v797, %v1211
  %v1213 = vand.u32 %v1212, 4294901760
  %v1214 = vsub.f32 %v1212, %v1213
  %v1215 = vand.u32 %v1214, 4294901760
  %1216 = vmatmul.f32.gmra.mxu0 %v1215
  %v1217 = vpop.f32.mrf.mxu0
  %v1218 = vadd.f32 0.0, %v1217
  %v1219 = vand.u32 %v800, 4294901760
  %v1220 = vsub.f32 %v800, %v1219
  %v1221 = vand.u32 %v1220, 4294901760
  %v1222 = vsub.f32 %v1220, %v1221
  %v1223 = vand.u32 %v1222, 4294901760
  %1224 = vmatmul.f32.gmra.mxu0 %v1223
  %v1225 = vpop.f32.mrf.mxu0
  %v1226 = vadd.f32 0.0, %v1225
  %v1227 = vand.u32 %v803, 4294901760
  %v1228 = vsub.f32 %v803, %v1227
  %v1229 = vand.u32 %v1228, 4294901760
  %v1230 = vsub.f32 %v1228, %v1229
  %v1231 = vand.u32 %v1230, 4294901760
  %1232 = vmatmul.f32.gmra.mxu0 %v1231
  %v1233 = vpop.f32.mrf.mxu0
  %v1234 = vadd.f32 0.0, %v1233
  %v1235 = vand.u32 %v806, 4294901760
  %v1236 = vsub.f32 %v806, %v1235
  %v1237 = vand.u32 %v1236, 4294901760
  %v1238 = vsub.f32 %v1236, %v1237
  %v1239 = vand.u32 %v1238, 4294901760
  %1240 = vmatmul.f32.gmra.mxu0 %v1239
  %v1241 = vpop.f32.mrf.mxu0
  %v1242 = vadd.f32 0.0, %v1241
  %v1243 = vand.u32 %v809, 4294901760
  %v1244 = vsub.f32 %v809, %v1243
  %v1245 = vand.u32 %v1244, 4294901760
  %v1246 = vsub.f32 %v1244, %v1245
  %v1247 = vand.u32 %v1246, 4294901760
  %1248 = vmatmul.f32.gmra.mxu0 %v1247
  %v1249 = vpop.f32.mrf.mxu0
  %v1250 = vadd.f32 0.0, %v1249
  %v1251 = vand.u32 %v812, 4294901760
  %v1252 = vsub.f32 %v812, %v1251
  %v1253 = vand.u32 %v1252, 4294901760
  %v1254 = vsub.f32 %v1252, %v1253
  %v1255 = vand.u32 %v1254, 4294901760
  %1256 = vmatmul.f32.gmra.mxu0 %v1255
  %v1257 = vpop.f32.mrf.mxu0
  %v1258 = vadd.f32 0.0, %v1257
  %v1259 = vand.u32 %v815, 4294901760
  %v1260 = vsub.f32 %v815, %v1259
  %v1261 = vand.u32 %v1260, 4294901760
  %v1262 = vsub.f32 %v1260, %v1261
  %v1263 = vand.u32 %v1262, 4294901760
  %1264 = vmatmul.f32.gmra.mxu0 %v1263
  %v1265 = vpop.f32.mrf.mxu0
  %v1266 = vadd.f32 0.0, %v1265
  %v1267 = vand.u32 %v818, 4294901760
  %v1268 = vsub.f32 %v818, %v1267
  %v1269 = vand.u32 %v1268, 4294901760
  %v1270 = vsub.f32 %v1268, %v1269
  %v1271 = vand.u32 %v1270, 4294901760
  %1272 = vmatmul.f32.gmra.mxu0 %v1271
  %v1273 = vpop.f32.mrf.mxu0
  %v1274 = vadd.f32 0.0, %v1273
  %1275 = vdwg.mxu0
  %1276 = vmatpush.msra.mxu0 0.0
  %1277 = vmatpush.msra.mxu0 0.0
  %1278 = vmatpush.msra.mxu0 0.0
  %1279 = vmatpush.msra.mxu0 0.0
  %1280 = vmatpush.msra.mxu0 0.0
  %1281 = vmatpush.msra.mxu0 0.0
  %1282 = vmatpush.msra.mxu0 0.0
  %1283 = vmatpush.msra.mxu0 0.0
  %1284 = vmatpush.msra.mxu0 0.0
  %1285 = vmatpush.msra.mxu0 0.0
  %1286 = vmatpush.msra.mxu0 0.0
  %1287 = vmatpush.msra.mxu0 0.0
  %1288 = vmatpush.msra.mxu0 0.0
  %v1289 = vand.u32 %v822, 4294901760
  %v1290 = vsub.f32 %v822, %v1289
  %v1291 = vand.u32 %v1290, 4294901760
  %v1292 = vsub.f32 %v1290, %v1291
  %v1293 = vand.u32 %v1292, 4294901760
  %1294 = vmatpush.msra.mxu0 %v1293
  %v1295 = vand.u32 %v651, 4294901760
  %v1296 = vsub.f32 %v651, %v1295
  %v1297 = vand.u32 %v1296, 4294901760
  %v1298 = vsub.f32 %v1296, %v1297
  %v1299 = vand.u32 %v1298, 4294901760
  %1300 = vmatpush.msra.mxu0 %v1299
  %v1301 = vand.u32 %v647, 4294901760
  %v1302 = vsub.f32 %v647, %v1301
  %v1303 = vand.u32 %v1302, 4294901760
  %v1304 = vsub.f32 %v1302, %v1303
  %v1305 = vand.u32 %v1304, 4294901760
  %1306 = vmatpush.msra.mxu0 %v1305
  %v1307 = vand.u32 %v659, 4294901760
  %1308 = vmatmul.f32.gmra.mxu0 %v1307
  %v1309 = vpop.f32.mrf.mxu0
  %v1310 = vadd.f32 %v850, %v1309
  %v1311 = vand.u32 %v662, 4294901760
  %1312 = vmatmul.f32.gmra.mxu0 %v1311
  %v1313 = vpop.f32.mrf.mxu0
  %v1314 = vadd.f32 %v858, %v1313
  %v1315 = vand.u32 %v665, 4294901760
  %1316 = vmatmul.f32.gmra.mxu0 %v1315
  %v1317 = vpop.f32.mrf.mxu0
  %v1318 = vadd.f32 %v866, %v1317
  %v1319 = vand.u32 %v668, 4294901760
  %1320 = vmatmul.f32.gmra.mxu0 %v1319
  %v1321 = vpop.f32.mrf.mxu0
  %v1322 = vadd.f32 %v874, %v1321
  %v1323 = vand.u32 %v671, 4294901760
  %1324 = vmatmul.f32.gmra.mxu0 %v1323
  %v1325 = vpop.f32.mrf.mxu0
  %v1326 = vadd.f32 %v882, %v1325
  %v1327 = vand.u32 %v674, 4294901760
  %1328 = vmatmul.f32.gmra.mxu0 %v1327
  %v1329 = vpop.f32.mrf.mxu0
  %v1330 = vadd.f32 %v890, %v1329
  %v1331 = vand.u32 %v677, 4294901760
  %1332 = vmatmul.f32.gmra.mxu0 %v1331
  %v1333 = vpop.f32.mrf.mxu0
  %v1334 = vadd.f32 %v898, %v1333
  %v1335 = vand.u32 %v680, 4294901760
  %1336 = vmatmul.f32.gmra.mxu0 %v1335
  %v1337 = vpop.f32.mrf.mxu0
  %v1338 = vadd.f32 %v906, %v1337
  %v1339 = vand.u32 %v683, 4294901760
  %1340 = vmatmul.f32.gmra.mxu0 %v1339
  %v1341 = vpop.f32.mrf.mxu0
  %v1342 = vadd.f32 %v914, %v1341
  %v1343 = vand.u32 %v686, 4294901760
  %1344 = vmatmul.f32.gmra.mxu0 %v1343
  %v1345 = vpop.f32.mrf.mxu0
  %v1346 = vadd.f32 %v922, %v1345
  %v1347 = vand.u32 %v689, 4294901760
  %1348 = vmatmul.f32.gmra.mxu0 %v1347
  %v1349 = vpop.f32.mrf.mxu0
  %v1350 = vadd.f32 %v930, %v1349
  %v1351 = vand.u32 %v692, 4294901760
  %1352 = vmatmul.f32.gmra.mxu0 %v1351
  %v1353 = vpop.f32.mrf.mxu0
  %v1354 = vadd.f32 %v938, %v1353
  %v1355 = vand.u32 %v695, 4294901760
  %1356 = vmatmul.f32.gmra.mxu0 %v1355
  %v1357 = vpop.f32.mrf.mxu0
  %v1358 = vadd.f32 %v946, %v1357
  %v1359 = vand.u32 %v698, 4294901760
  %1360 = vmatmul.f32.gmra.mxu0 %v1359
  %v1361 = vpop.f32.mrf.mxu0
  %v1362 = vadd.f32 %v954, %v1361
  %v1363 = vand.u32 %v701, 4294901760
  %1364 = vmatmul.f32.gmra.mxu0 %v1363
  %v1365 = vpop.f32.mrf.mxu0
  %v1366 = vadd.f32 %v962, %v1365
  %v1367 = vand.u32 %v704, 4294901760
  %1368 = vmatmul.f32.gmra.mxu0 %v1367
  %v1369 = vpop.f32.mrf.mxu0
  %v1370 = vadd.f32 %v970, %v1369
  %v1371 = vand.u32 %v707, 4294901760
  %1372 = vmatmul.f32.gmra.mxu0 %v1371
  %v1373 = vpop.f32.mrf.mxu0
  %v1374 = vadd.f32 %v978, %v1373
  %v1375 = vand.u32 %v710, 4294901760
  %1376 = vmatmul.f32.gmra.mxu0 %v1375
  %v1377 = vpop.f32.mrf.mxu0
  %v1378 = vadd.f32 %v986, %v1377
  %v1379 = vand.u32 %v713, 4294901760
  %1380 = vmatmul.f32.gmra.mxu0 %v1379
  %v1381 = vpop.f32.mrf.mxu0
  %v1382 = vadd.f32 %v994, %v1381
  %v1383 = vand.u32 %v716, 4294901760
  %1384 = vmatmul.f32.gmra.mxu0 %v1383
  %v1385 = vpop.f32.mrf.mxu0
  %v1386 = vadd.f32 %v1002, %v1385
  %v1387 = vand.u32 %v719, 4294901760
  %1388 = vmatmul.f32.gmra.mxu0 %v1387
  %v1389 = vpop.f32.mrf.mxu0
  %v1390 = vadd.f32 %v1010, %v1389
  %v1391 = vand.u32 %v722, 4294901760
  %1392 = vmatmul.f32.gmra.mxu0 %v1391
  %v1393 = vpop.f32.mrf.mxu0
  %v1394 = vadd.f32 %v1018, %v1393
  %v1395 = vand.u32 %v725, 4294901760
  %1396 = vmatmul.f32.gmra.mxu0 %v1395
  %v1397 = vpop.f32.mrf.mxu0
  %v1398 = vadd.f32 %v1026, %v1397
  %v1399 = vand.u32 %v728, 4294901760
  %1400 = vmatmul.f32.gmra.mxu0 %v1399
  %v1401 = vpop.f32.mrf.mxu0
  %v1402 = vadd.f32 %v1034, %v1401
  %v1403 = vand.u32 %v731, 4294901760
  %1404 = vmatmul.f32.gmra.mxu0 %v1403
  %v1405 = vpop.f32.mrf.mxu0
  %v1406 = vadd.f32 %v1042, %v1405
  %v1407 = vand.u32 %v734, 4294901760
  %1408 = vmatmul.f32.gmra.mxu0 %v1407
  %v1409 = vpop.f32.mrf.mxu0
  %v1410 = vadd.f32 %v1050, %v1409
  %v1411 = vand.u32 %v737, 4294901760
  %1412 = vmatmul.f32.gmra.mxu0 %v1411
  %v1413 = vpop.f32.mrf.mxu0
  %v1414 = vadd.f32 %v1058, %v1413
  %v1415 = vand.u32 %v740, 4294901760
  %1416 = vmatmul.f32.gmra.mxu0 %v1415
  %v1417 = vpop.f32.mrf.mxu0
  %v1418 = vadd.f32 %v1066, %v1417
  %v1419 = vand.u32 %v743, 4294901760
  %1420 = vmatmul.f32.gmra.mxu0 %v1419
  %v1421 = vpop.f32.mrf.mxu0
  %v1422 = vadd.f32 %v1074, %v1421
  %v1423 = vand.u32 %v746, 4294901760
  %1424 = vmatmul.f32.gmra.mxu0 %v1423
  %v1425 = vpop.f32.mrf.mxu0
  %v1426 = vadd.f32 %v1082, %v1425
  %v1427 = vand.u32 %v749, 4294901760
  %1428 = vmatmul.f32.gmra.mxu0 %v1427
  %v1429 = vpop.f32.mrf.mxu0
  %v1430 = vadd.f32 %v1090, %v1429
  %v1431 = vand.u32 %v752, 4294901760
  %1432 = vmatmul.f32.gmra.mxu0 %v1431
  %v1433 = vpop.f32.mrf.mxu0
  %v1434 = vadd.f32 %v1098, %v1433
  %v1435 = vand.u32 %v755, 4294901760
  %1436 = vmatmul.f32.gmra.mxu0 %v1435
  %v1437 = vpop.f32.mrf.mxu0
  %v1438 = vadd.f32 %v1106, %v1437
  %v1439 = vand.u32 %v758, 4294901760
  %1440 = vmatmul.f32.gmra.mxu0 %v1439
  %v1441 = vpop.f32.mrf.mxu0
  %v1442 = vadd.f32 %v1114, %v1441
  %v1443 = vand.u32 %v761, 4294901760
  %1444 = vmatmul.f32.gmra.mxu0 %v1443
  %v1445 = vpop.f32.mrf.mxu0
  %v1446 = vadd.f32 %v1122, %v1445
  %v1447 = vand.u32 %v764, 4294901760
  %1448 = vmatmul.f32.gmra.mxu0 %v1447
  %v1449 = vpop.f32.mrf.mxu0
  %v1450 = vadd.f32 %v1130, %v1449
  %v1451 = vand.u32 %v767, 4294901760
  %1452 = vmatmul.f32.gmra.mxu0 %v1451
  %v1453 = vpop.f32.mrf.mxu0
  %v1454 = vadd.f32 %v1138, %v1453
  %v1455 = vand.u32 %v770, 4294901760
  %1456 = vmatmul.f32.gmra.mxu0 %v1455
  %v1457 = vpop.f32.mrf.mxu0
  %v1458 = vadd.f32 %v1146, %v1457
  %v1459 = vand.u32 %v773, 4294901760
  %1460 = vmatmul.f32.gmra.mxu0 %v1459
  %v1461 = vpop.f32.mrf.mxu0
  %v1462 = vadd.f32 %v1154, %v1461
  %v1463 = vand.u32 %v776, 4294901760
  %1464 = vmatmul.f32.gmra.mxu0 %v1463
  %v1465 = vpop.f32.mrf.mxu0
  %v1466 = vadd.f32 %v1162, %v1465
  %v1467 = vand.u32 %v779, 4294901760
  %1468 = vmatmul.f32.gmra.mxu0 %v1467
  %v1469 = vpop.f32.mrf.mxu0
  %v1470 = vadd.f32 %v1170, %v1469
  %v1471 = vand.u32 %v782, 4294901760
  %1472 = vmatmul.f32.gmra.mxu0 %v1471
  %v1473 = vpop.f32.mrf.mxu0
  %v1474 = vadd.f32 %v1178, %v1473
  %v1475 = vand.u32 %v785, 4294901760
  %1476 = vmatmul.f32.gmra.mxu0 %v1475
  %v1477 = vpop.f32.mrf.mxu0
  %v1478 = vadd.f32 %v1186, %v1477
  %v1479 = vand.u32 %v788, 4294901760
  %1480 = vmatmul.f32.gmra.mxu0 %v1479
  %v1481 = vpop.f32.mrf.mxu0
  %v1482 = vadd.f32 %v1194, %v1481
  %v1483 = vand.u32 %v791, 4294901760
  %1484 = vmatmul.f32.gmra.mxu0 %v1483
  %v1485 = vpop.f32.mrf.mxu0
  %v1486 = vadd.f32 %v1202, %v1485
  %v1487 = vand.u32 %v794, 4294901760
  %1488 = vmatmul.f32.gmra.mxu0 %v1487
  %v1489 = vpop.f32.mrf.mxu0
  %v1490 = vadd.f32 %v1210, %v1489
  %v1491 = vand.u32 %v797, 4294901760
  %1492 = vmatmul.f32.gmra.mxu0 %v1491
  %v1493 = vpop.f32.mrf.mxu0
  %v1494 = vadd.f32 %v1218, %v1493
  %v1495 = vand.u32 %v800, 4294901760
  %1496 = vmatmul.f32.gmra.mxu0 %v1495
  %v1497 = vpop.f32.mrf.mxu0
  %v1498 = vadd.f32 %v1226, %v1497
  %v1499 = vand.u32 %v803, 4294901760
  %1500 = vmatmul.f32.gmra.mxu0 %v1499
  %v1501 = vpop.f32.mrf.mxu0
  %v1502 = vadd.f32 %v1234, %v1501
  %v1503 = vand.u32 %v806, 4294901760
  %1504 = vmatmul.f32.gmra.mxu0 %v1503
  %v1505 = vpop.f32.mrf.mxu0
  %v1506 = vadd.f32 %v1242, %v1505
  %v1507 = vand.u32 %v809, 4294901760
  %1508 = vmatmul.f32.gmra.mxu0 %v1507
  %v1509 = vpop.f32.mrf.mxu0
  %v1510 = vadd.f32 %v1250, %v1509
  %v1511 = vand.u32 %v812, 4294901760
  %1512 = vmatmul.f32.gmra.mxu0 %v1511
  %v1513 = vpop.f32.mrf.mxu0
  %v1514 = vadd.f32 %v1258, %v1513
  %v1515 = vand.u32 %v815, 4294901760
  %1516 = vmatmul.f32.gmra.mxu0 %v1515
  %v1517 = vpop.f32.mrf.mxu0
  %v1518 = vadd.f32 %v1266, %v1517
  %v1519 = vand.u32 %v818, 4294901760
  %1520 = vmatmul.f32.gmra.mxu0 %v1519
  %v1521 = vpop.f32.mrf.mxu0
  %v1522 = vadd.f32 %v1274, %v1521
  %1523 = vdwg.mxu0
  %1524 = vmatpush.msra.mxu0 0.0
  %1525 = vmatpush.msra.mxu0 0.0
  %1526 = vmatpush.msra.mxu0 0.0
  %1527 = vmatpush.msra.mxu0 0.0
  %1528 = vmatpush.msra.mxu0 0.0
  %1529 = vmatpush.msra.mxu0 0.0
  %1530 = vmatpush.msra.mxu0 0.0
  %1531 = vmatpush.msra.mxu0 0.0
  %1532 = vmatpush.msra.mxu0 0.0
  %1533 = vmatpush.msra.mxu0 0.0
  %1534 = vmatpush.msra.mxu0 0.0
  %1535 = vmatpush.msra.mxu0 0.0
  %1536 = vmatpush.msra.mxu0 0.0
  %v1537 = vand.u32 %v822, 4294901760
  %v1538 = vsub.f32 %v822, %v1537
  %1539 = vmatpush.msra.mxu0 %v1538
  %v1540 = vand.u32 %v651, 4294901760
  %v1541 = vsub.f32 %v651, %v1540
  %1542 = vmatpush.msra.mxu0 %v1541
  %v1543 = vand.u32 %v647, 4294901760
  %v1544 = vsub.f32 %v647, %v1543
  %1545 = vmatpush.msra.mxu0 %v1544
  %v1546 = vand.u32 %v659, 4294901760
  %v1547 = vsub.f32 %v659, %v1546
  %1548 = vmatmul.f32.gmra.mxu0 %v1547
  %v1549 = vpop.f32.mrf.mxu0
  %v1550 = vadd.f32 %v1310, %v1549
  %v1551 = vand.u32 %v662, 4294901760
  %v1552 = vsub.f32 %v662, %v1551
  %1553 = vmatmul.f32.gmra.mxu0 %v1552
  %v1554 = vpop.f32.mrf.mxu0
  %v1555 = vadd.f32 %v1314, %v1554
  %v1556 = vand.u32 %v665, 4294901760
  %v1557 = vsub.f32 %v665, %v1556
  %1558 = vmatmul.f32.gmra.mxu0 %v1557
  %v1559 = vpop.f32.mrf.mxu0
  %v1560 = vadd.f32 %v1318, %v1559
  %v1561 = vand.u32 %v668, 4294901760
  %v1562 = vsub.f32 %v668, %v1561
  %1563 = vmatmul.f32.gmra.mxu0 %v1562
  %v1564 = vpop.f32.mrf.mxu0
  %v1565 = vadd.f32 %v1322, %v1564
  %v1566 = vand.u32 %v671, 4294901760
  %v1567 = vsub.f32 %v671, %v1566
  %1568 = vmatmul.f32.gmra.mxu0 %v1567
  %v1569 = vpop.f32.mrf.mxu0
  %v1570 = vadd.f32 %v1326, %v1569
  %v1571 = vand.u32 %v674, 4294901760
  %v1572 = vsub.f32 %v674, %v1571
  %1573 = vmatmul.f32.gmra.mxu0 %v1572
  %v1574 = vpop.f32.mrf.mxu0
  %v1575 = vadd.f32 %v1330, %v1574
  %v1576 = vand.u32 %v677, 4294901760
  %v1577 = vsub.f32 %v677, %v1576
  %1578 = vmatmul.f32.gmra.mxu0 %v1577
  %v1579 = vpop.f32.mrf.mxu0
  %v1580 = vadd.f32 %v1334, %v1579
  %v1581 = vand.u32 %v680, 4294901760
  %v1582 = vsub.f32 %v680, %v1581
  %1583 = vmatmul.f32.gmra.mxu0 %v1582
  %v1584 = vpop.f32.mrf.mxu0
  %v1585 = vadd.f32 %v1338, %v1584
  %v1586 = vand.u32 %v683, 4294901760
  %v1587 = vsub.f32 %v683, %v1586
  %1588 = vmatmul.f32.gmra.mxu0 %v1587
  %v1589 = vpop.f32.mrf.mxu0
  %v1590 = vadd.f32 %v1342, %v1589
  %v1591 = vand.u32 %v686, 4294901760
  %v1592 = vsub.f32 %v686, %v1591
  %1593 = vmatmul.f32.gmra.mxu0 %v1592
  %v1594 = vpop.f32.mrf.mxu0
  %v1595 = vadd.f32 %v1346, %v1594
  %v1596 = vand.u32 %v689, 4294901760
  %v1597 = vsub.f32 %v689, %v1596
  %1598 = vmatmul.f32.gmra.mxu0 %v1597
  %v1599 = vpop.f32.mrf.mxu0
  %v1600 = vadd.f32 %v1350, %v1599
  %v1601 = vand.u32 %v692, 4294901760
  %v1602 = vsub.f32 %v692, %v1601
  %1603 = vmatmul.f32.gmra.mxu0 %v1602
  %v1604 = vpop.f32.mrf.mxu0
  %v1605 = vadd.f32 %v1354, %v1604
  %v1606 = vand.u32 %v695, 4294901760
  %v1607 = vsub.f32 %v695, %v1606
  %1608 = vmatmul.f32.gmra.mxu0 %v1607
  %v1609 = vpop.f32.mrf.mxu0
  %v1610 = vadd.f32 %v1358, %v1609
  %v1611 = vand.u32 %v698, 4294901760
  %v1612 = vsub.f32 %v698, %v1611
  %1613 = vmatmul.f32.gmra.mxu0 %v1612
  %v1614 = vpop.f32.mrf.mxu0
  %v1615 = vadd.f32 %v1362, %v1614
  %v1616 = vand.u32 %v701, 4294901760
  %v1617 = vsub.f32 %v701, %v1616
  %1618 = vmatmul.f32.gmra.mxu0 %v1617
  %v1619 = vpop.f32.mrf.mxu0
  %v1620 = vadd.f32 %v1366, %v1619
  %v1621 = vand.u32 %v704, 4294901760
  %v1622 = vsub.f32 %v704, %v1621
  %1623 = vmatmul.f32.gmra.mxu0 %v1622
  %v1624 = vpop.f32.mrf.mxu0
  %v1625 = vadd.f32 %v1370, %v1624
  %v1626 = vand.u32 %v707, 4294901760
  %v1627 = vsub.f32 %v707, %v1626
  %1628 = vmatmul.f32.gmra.mxu0 %v1627
  %v1629 = vpop.f32.mrf.mxu0
  %v1630 = vadd.f32 %v1374, %v1629
  %v1631 = vand.u32 %v710, 4294901760
  %v1632 = vsub.f32 %v710, %v1631
  %1633 = vmatmul.f32.gmra.mxu0 %v1632
  %v1634 = vpop.f32.mrf.mxu0
  %v1635 = vadd.f32 %v1378, %v1634
  %v1636 = vand.u32 %v713, 4294901760
  %v1637 = vsub.f32 %v713, %v1636
  %1638 = vmatmul.f32.gmra.mxu0 %v1637
  %v1639 = vpop.f32.mrf.mxu0
  %v1640 = vadd.f32 %v1382, %v1639
  %v1641 = vand.u32 %v716, 4294901760
  %v1642 = vsub.f32 %v716, %v1641
  %1643 = vmatmul.f32.gmra.mxu0 %v1642
  %v1644 = vpop.f32.mrf.mxu0
  %v1645 = vadd.f32 %v1386, %v1644
  %v1646 = vand.u32 %v719, 4294901760
  %v1647 = vsub.f32 %v719, %v1646
  %1648 = vmatmul.f32.gmra.mxu0 %v1647
  %v1649 = vpop.f32.mrf.mxu0
  %v1650 = vadd.f32 %v1390, %v1649
  %v1651 = vand.u32 %v722, 4294901760
  %v1652 = vsub.f32 %v722, %v1651
  %1653 = vmatmul.f32.gmra.mxu0 %v1652
  %v1654 = vpop.f32.mrf.mxu0
  %v1655 = vadd.f32 %v1394, %v1654
  %v1656 = vand.u32 %v725, 4294901760
  %v1657 = vsub.f32 %v725, %v1656
  %1658 = vmatmul.f32.gmra.mxu0 %v1657
  %v1659 = vpop.f32.mrf.mxu0
  %v1660 = vadd.f32 %v1398, %v1659
  %v1661 = vand.u32 %v728, 4294901760
  %v1662 = vsub.f32 %v728, %v1661
  %1663 = vmatmul.f32.gmra.mxu0 %v1662
  %v1664 = vpop.f32.mrf.mxu0
  %v1665 = vadd.f32 %v1402, %v1664
  %v1666 = vand.u32 %v731, 4294901760
  %v1667 = vsub.f32 %v731, %v1666
  %1668 = vmatmul.f32.gmra.mxu0 %v1667
  %v1669 = vpop.f32.mrf.mxu0
  %v1670 = vadd.f32 %v1406, %v1669
  %v1671 = vand.u32 %v734, 4294901760
  %v1672 = vsub.f32 %v734, %v1671
  %1673 = vmatmul.f32.gmra.mxu0 %v1672
  %v1674 = vpop.f32.mrf.mxu0
  %v1675 = vadd.f32 %v1410, %v1674
  %v1676 = vand.u32 %v737, 4294901760
  %v1677 = vsub.f32 %v737, %v1676
  %1678 = vmatmul.f32.gmra.mxu0 %v1677
  %v1679 = vpop.f32.mrf.mxu0
  %v1680 = vadd.f32 %v1414, %v1679
  %v1681 = vand.u32 %v740, 4294901760
  %v1682 = vsub.f32 %v740, %v1681
  %1683 = vmatmul.f32.gmra.mxu0 %v1682
  %v1684 = vpop.f32.mrf.mxu0
  %v1685 = vadd.f32 %v1418, %v1684
  %v1686 = vand.u32 %v743, 4294901760
  %v1687 = vsub.f32 %v743, %v1686
  %1688 = vmatmul.f32.gmra.mxu0 %v1687
  %v1689 = vpop.f32.mrf.mxu0
  %v1690 = vadd.f32 %v1422, %v1689
  %v1691 = vand.u32 %v746, 4294901760
  %v1692 = vsub.f32 %v746, %v1691
  %1693 = vmatmul.f32.gmra.mxu0 %v1692
  %v1694 = vpop.f32.mrf.mxu0
  %v1695 = vadd.f32 %v1426, %v1694
  %v1696 = vand.u32 %v749, 4294901760
  %v1697 = vsub.f32 %v749, %v1696
  %1698 = vmatmul.f32.gmra.mxu0 %v1697
  %v1699 = vpop.f32.mrf.mxu0
  %v1700 = vadd.f32 %v1430, %v1699
  %v1701 = vand.u32 %v752, 4294901760
  %v1702 = vsub.f32 %v752, %v1701
  %1703 = vmatmul.f32.gmra.mxu0 %v1702
  %v1704 = vpop.f32.mrf.mxu0
  %v1705 = vadd.f32 %v1434, %v1704
  %v1706 = vand.u32 %v755, 4294901760
  %v1707 = vsub.f32 %v755, %v1706
  %1708 = vmatmul.f32.gmra.mxu0 %v1707
  %v1709 = vpop.f32.mrf.mxu0
  %v1710 = vadd.f32 %v1438, %v1709
  %v1711 = vand.u32 %v758, 4294901760
  %v1712 = vsub.f32 %v758, %v1711
  %1713 = vmatmul.f32.gmra.mxu0 %v1712
  %v1714 = vpop.f32.mrf.mxu0
  %v1715 = vadd.f32 %v1442, %v1714
  %v1716 = vand.u32 %v761, 4294901760
  %v1717 = vsub.f32 %v761, %v1716
  %1718 = vmatmul.f32.gmra.mxu0 %v1717
  %v1719 = vpop.f32.mrf.mxu0
  %v1720 = vadd.f32 %v1446, %v1719
  %v1721 = vand.u32 %v764, 4294901760
  %v1722 = vsub.f32 %v764, %v1721
  %1723 = vmatmul.f32.gmra.mxu0 %v1722
  %v1724 = vpop.f32.mrf.mxu0
  %v1725 = vadd.f32 %v1450, %v1724
  %v1726 = vand.u32 %v767, 4294901760
  %v1727 = vsub.f32 %v767, %v1726
  %1728 = vmatmul.f32.gmra.mxu0 %v1727
  %v1729 = vpop.f32.mrf.mxu0
  %v1730 = vadd.f32 %v1454, %v1729
  %v1731 = vand.u32 %v770, 4294901760
  %v1732 = vsub.f32 %v770, %v1731
  %1733 = vmatmul.f32.gmra.mxu0 %v1732
  %v1734 = vpop.f32.mrf.mxu0
  %v1735 = vadd.f32 %v1458, %v1734
  %v1736 = vand.u32 %v773, 4294901760
  %v1737 = vsub.f32 %v773, %v1736
  %1738 = vmatmul.f32.gmra.mxu0 %v1737
  %v1739 = vpop.f32.mrf.mxu0
  %v1740 = vadd.f32 %v1462, %v1739
  %v1741 = vand.u32 %v776, 4294901760
  %v1742 = vsub.f32 %v776, %v1741
  %1743 = vmatmul.f32.gmra.mxu0 %v1742
  %v1744 = vpop.f32.mrf.mxu0
  %v1745 = vadd.f32 %v1466, %v1744
  %v1746 = vand.u32 %v779, 4294901760
  %v1747 = vsub.f32 %v779, %v1746
  %1748 = vmatmul.f32.gmra.mxu0 %v1747
  %v1749 = vpop.f32.mrf.mxu0
  %v1750 = vadd.f32 %v1470, %v1749
  %v1751 = vand.u32 %v782, 4294901760
  %v1752 = vsub.f32 %v782, %v1751
  %1753 = vmatmul.f32.gmra.mxu0 %v1752
  %v1754 = vpop.f32.mrf.mxu0
  %v1755 = vadd.f32 %v1474, %v1754
  %v1756 = vand.u32 %v785, 4294901760
  %v1757 = vsub.f32 %v785, %v1756
  %1758 = vmatmul.f32.gmra.mxu0 %v1757
  %v1759 = vpop.f32.mrf.mxu0
  %v1760 = vadd.f32 %v1478, %v1759
  %v1761 = vand.u32 %v788, 4294901760
  %v1762 = vsub.f32 %v788, %v1761
  %1763 = vmatmul.f32.gmra.mxu0 %v1762
  %v1764 = vpop.f32.mrf.mxu0
  %v1765 = vadd.f32 %v1482, %v1764
  %v1766 = vand.u32 %v791, 4294901760
  %v1767 = vsub.f32 %v791, %v1766
  %1768 = vmatmul.f32.gmra.mxu0 %v1767
  %v1769 = vpop.f32.mrf.mxu0
  %v1770 = vadd.f32 %v1486, %v1769
  %v1771 = vand.u32 %v794, 4294901760
  %v1772 = vsub.f32 %v794, %v1771
  %1773 = vmatmul.f32.gmra.mxu0 %v1772
  %v1774 = vpop.f32.mrf.mxu0
  %v1775 = vadd.f32 %v1490, %v1774
  %v1776 = vand.u32 %v797, 4294901760
  %v1777 = vsub.f32 %v797, %v1776
  %1778 = vmatmul.f32.gmra.mxu0 %v1777
  %v1779 = vpop.f32.mrf.mxu0
  %v1780 = vadd.f32 %v1494, %v1779
  %v1781 = vand.u32 %v800, 4294901760
  %v1782 = vsub.f32 %v800, %v1781
  %1783 = vmatmul.f32.gmra.mxu0 %v1782
  %v1784 = vpop.f32.mrf.mxu0
  %v1785 = vadd.f32 %v1498, %v1784
  %v1786 = vand.u32 %v803, 4294901760
  %v1787 = vsub.f32 %v803, %v1786
  %1788 = vmatmul.f32.gmra.mxu0 %v1787
  %v1789 = vpop.f32.mrf.mxu0
  %v1790 = vadd.f32 %v1502, %v1789
  %v1791 = vand.u32 %v806, 4294901760
  %v1792 = vsub.f32 %v806, %v1791
  %1793 = vmatmul.f32.gmra.mxu0 %v1792
  %v1794 = vpop.f32.mrf.mxu0
  %v1795 = vadd.f32 %v1506, %v1794
  %v1796 = vand.u32 %v809, 4294901760
  %v1797 = vsub.f32 %v809, %v1796
  %1798 = vmatmul.f32.gmra.mxu0 %v1797
  %v1799 = vpop.f32.mrf.mxu0
  %v1800 = vadd.f32 %v1510, %v1799
  %v1801 = vand.u32 %v812, 4294901760
  %v1802 = vsub.f32 %v812, %v1801
  %1803 = vmatmul.f32.gmra.mxu0 %v1802
  %v1804 = vpop.f32.mrf.mxu0
  %v1805 = vadd.f32 %v1514, %v1804
  %v1806 = vand.u32 %v815, 4294901760
  %v1807 = vsub.f32 %v815, %v1806
  %1808 = vmatmul.f32.gmra.mxu0 %v1807
  %v1809 = vpop.f32.mrf.mxu0
  %v1810 = vadd.f32 %v1518, %v1809
  %v1811 = vand.u32 %v818, 4294901760
  %v1812 = vsub.f32 %v818, %v1811
  %1813 = vmatmul.f32.gmra.mxu0 %v1812
  %v1814 = vpop.f32.mrf.mxu0
  %v1815 = vadd.f32 %v1522, %v1814
  %1816 = vdwg.mxu0
  %1817 = vmatpush.msra.mxu0 0.0
  %1818 = vmatpush.msra.mxu0 0.0
  %1819 = vmatpush.msra.mxu0 0.0
  %1820 = vmatpush.msra.mxu0 0.0
  %1821 = vmatpush.msra.mxu0 0.0
  %1822 = vmatpush.msra.mxu0 0.0
  %1823 = vmatpush.msra.mxu0 0.0
  %1824 = vmatpush.msra.mxu0 0.0
  %1825 = vmatpush.msra.mxu0 0.0
  %1826 = vmatpush.msra.mxu0 0.0
  %1827 = vmatpush.msra.mxu0 0.0
  %1828 = vmatpush.msra.mxu0 0.0
  %1829 = vmatpush.msra.mxu0 0.0
  %v1830 = vand.u32 %v822, 4294901760
  %1831 = vmatpush.msra.mxu0 %v1830
  %v1832 = vand.u32 %v651, 4294901760
  %1833 = vmatpush.msra.mxu0 %v1832
  %v1834 = vand.u32 %v647, 4294901760
  %1835 = vmatpush.msra.mxu0 %v1834
  %v1836 = vand.u32 %v659, 4294901760
  %v1837 = vsub.f32 %v659, %v1836
  %v1838 = vand.u32 %v1837, 4294901760
  %1839 = vmatmul.f32.gmra.mxu0 %v1838
  %v1840 = vpop.f32.mrf.mxu0
  %v1841 = vadd.f32 %v1550, %v1840
  %v1842 = vand.u32 %v662, 4294901760
  %v1843 = vsub.f32 %v662, %v1842
  %v1844 = vand.u32 %v1843, 4294901760
  %1845 = vmatmul.f32.gmra.mxu0 %v1844
  %v1846 = vpop.f32.mrf.mxu0
  %v1847 = vadd.f32 %v1555, %v1846
  %v1848 = vand.u32 %v665, 4294901760
  %v1849 = vsub.f32 %v665, %v1848
  %v1850 = vand.u32 %v1849, 4294901760
  %1851 = vmatmul.f32.gmra.mxu0 %v1850
  %v1852 = vpop.f32.mrf.mxu0
  %v1853 = vadd.f32 %v1560, %v1852
  %v1854 = vand.u32 %v668, 4294901760
  %v1855 = vsub.f32 %v668, %v1854
  %v1856 = vand.u32 %v1855, 4294901760
  %1857 = vmatmul.f32.gmra.mxu0 %v1856
  %v1858 = vpop.f32.mrf.mxu0
  %v1859 = vadd.f32 %v1565, %v1858
  %v1860 = vand.u32 %v671, 4294901760
  %v1861 = vsub.f32 %v671, %v1860
  %v1862 = vand.u32 %v1861, 4294901760
  %1863 = vmatmul.f32.gmra.mxu0 %v1862
  %v1864 = vpop.f32.mrf.mxu0
  %v1865 = vadd.f32 %v1570, %v1864
  %v1866 = vand.u32 %v674, 4294901760
  %v1867 = vsub.f32 %v674, %v1866
  %v1868 = vand.u32 %v1867, 4294901760
  %1869 = vmatmul.f32.gmra.mxu0 %v1868
  %v1870 = vpop.f32.mrf.mxu0
  %v1871 = vadd.f32 %v1575, %v1870
  %v1872 = vand.u32 %v677, 4294901760
  %v1873 = vsub.f32 %v677, %v1872
  %v1874 = vand.u32 %v1873, 4294901760
  %1875 = vmatmul.f32.gmra.mxu0 %v1874
  %v1876 = vpop.f32.mrf.mxu0
  %v1877 = vadd.f32 %v1580, %v1876
  %v1878 = vand.u32 %v680, 4294901760
  %v1879 = vsub.f32 %v680, %v1878
  %v1880 = vand.u32 %v1879, 4294901760
  %1881 = vmatmul.f32.gmra.mxu0 %v1880
  %v1882 = vpop.f32.mrf.mxu0
  %v1883 = vadd.f32 %v1585, %v1882
  %v1884 = vand.u32 %v683, 4294901760
  %v1885 = vsub.f32 %v683, %v1884
  %v1886 = vand.u32 %v1885, 4294901760
  %1887 = vmatmul.f32.gmra.mxu0 %v1886
  %v1888 = vpop.f32.mrf.mxu0
  %v1889 = vadd.f32 %v1590, %v1888
  %v1890 = vand.u32 %v686, 4294901760
  %v1891 = vsub.f32 %v686, %v1890
  %v1892 = vand.u32 %v1891, 4294901760
  %1893 = vmatmul.f32.gmra.mxu0 %v1892
  %v1894 = vpop.f32.mrf.mxu0
  %v1895 = vadd.f32 %v1595, %v1894
  %v1896 = vand.u32 %v689, 4294901760
  %v1897 = vsub.f32 %v689, %v1896
  %v1898 = vand.u32 %v1897, 4294901760
  %1899 = vmatmul.f32.gmra.mxu0 %v1898
  %v1900 = vpop.f32.mrf.mxu0
  %v1901 = vadd.f32 %v1600, %v1900
  %v1902 = vand.u32 %v692, 4294901760
  %v1903 = vsub.f32 %v692, %v1902
  %v1904 = vand.u32 %v1903, 4294901760
  %1905 = vmatmul.f32.gmra.mxu0 %v1904
  %v1906 = vpop.f32.mrf.mxu0
  %v1907 = vadd.f32 %v1605, %v1906
  %v1908 = vand.u32 %v695, 4294901760
  %v1909 = vsub.f32 %v695, %v1908
  %v1910 = vand.u32 %v1909, 4294901760
  %1911 = vmatmul.f32.gmra.mxu0 %v1910
  %v1912 = vpop.f32.mrf.mxu0
  %v1913 = vadd.f32 %v1610, %v1912
  %v1914 = vand.u32 %v698, 4294901760
  %v1915 = vsub.f32 %v698, %v1914
  %v1916 = vand.u32 %v1915, 4294901760
  %1917 = vmatmul.f32.gmra.mxu0 %v1916
  %v1918 = vpop.f32.mrf.mxu0
  %v1919 = vadd.f32 %v1615, %v1918
  %v1920 = vand.u32 %v701, 4294901760
  %v1921 = vsub.f32 %v701, %v1920
  %v1922 = vand.u32 %v1921, 4294901760
  %1923 = vmatmul.f32.gmra.mxu0 %v1922
  %v1924 = vpop.f32.mrf.mxu0
  %v1925 = vadd.f32 %v1620, %v1924
  %v1926 = vand.u32 %v704, 4294901760
  %v1927 = vsub.f32 %v704, %v1926
  %v1928 = vand.u32 %v1927, 4294901760
  %1929 = vmatmul.f32.gmra.mxu0 %v1928
  %v1930 = vpop.f32.mrf.mxu0
  %v1931 = vadd.f32 %v1625, %v1930
  %v1932 = vand.u32 %v707, 4294901760
  %v1933 = vsub.f32 %v707, %v1932
  %v1934 = vand.u32 %v1933, 4294901760
  %1935 = vmatmul.f32.gmra.mxu0 %v1934
  %v1936 = vpop.f32.mrf.mxu0
  %v1937 = vadd.f32 %v1630, %v1936
  %v1938 = vand.u32 %v710, 4294901760
  %v1939 = vsub.f32 %v710, %v1938
  %v1940 = vand.u32 %v1939, 4294901760
  %1941 = vmatmul.f32.gmra.mxu0 %v1940
  %v1942 = vpop.f32.mrf.mxu0
  %v1943 = vadd.f32 %v1635, %v1942
  %v1944 = vand.u32 %v713, 4294901760
  %v1945 = vsub.f32 %v713, %v1944
  %v1946 = vand.u32 %v1945, 4294901760
  %1947 = vmatmul.f32.gmra.mxu0 %v1946
  %v1948 = vpop.f32.mrf.mxu0
  %v1949 = vadd.f32 %v1640, %v1948
  %v1950 = vand.u32 %v716, 4294901760
  %v1951 = vsub.f32 %v716, %v1950
  %v1952 = vand.u32 %v1951, 4294901760
  %1953 = vmatmul.f32.gmra.mxu0 %v1952
  %v1954 = vpop.f32.mrf.mxu0
  %v1955 = vadd.f32 %v1645, %v1954
  %v1956 = vand.u32 %v719, 4294901760
  %v1957 = vsub.f32 %v719, %v1956
  %v1958 = vand.u32 %v1957, 4294901760
  %1959 = vmatmul.f32.gmra.mxu0 %v1958
  %v1960 = vpop.f32.mrf.mxu0
  %v1961 = vadd.f32 %v1650, %v1960
  %v1962 = vand.u32 %v722, 4294901760
  %v1963 = vsub.f32 %v722, %v1962
  %v1964 = vand.u32 %v1963, 4294901760
  %1965 = vmatmul.f32.gmra.mxu0 %v1964
  %v1966 = vpop.f32.mrf.mxu0
  %v1967 = vadd.f32 %v1655, %v1966
  %v1968 = vand.u32 %v725, 4294901760
  %v1969 = vsub.f32 %v725, %v1968
  %v1970 = vand.u32 %v1969, 4294901760
  %1971 = vmatmul.f32.gmra.mxu0 %v1970
  %v1972 = vpop.f32.mrf.mxu0
  %v1973 = vadd.f32 %v1660, %v1972
  %v1974 = vand.u32 %v728, 4294901760
  %v1975 = vsub.f32 %v728, %v1974
  %v1976 = vand.u32 %v1975, 4294901760
  %1977 = vmatmul.f32.gmra.mxu0 %v1976
  %v1978 = vpop.f32.mrf.mxu0
  %v1979 = vadd.f32 %v1665, %v1978
  %v1980 = vand.u32 %v731, 4294901760
  %v1981 = vsub.f32 %v731, %v1980
  %v1982 = vand.u32 %v1981, 4294901760
  %1983 = vmatmul.f32.gmra.mxu0 %v1982
  %v1984 = vpop.f32.mrf.mxu0
  %v1985 = vadd.f32 %v1670, %v1984
  %v1986 = vand.u32 %v734, 4294901760
  %v1987 = vsub.f32 %v734, %v1986
  %v1988 = vand.u32 %v1987, 4294901760
  %1989 = vmatmul.f32.gmra.mxu0 %v1988
  %v1990 = vpop.f32.mrf.mxu0
  %v1991 = vadd.f32 %v1675, %v1990
  %v1992 = vand.u32 %v737, 4294901760
  %v1993 = vsub.f32 %v737, %v1992
  %v1994 = vand.u32 %v1993, 4294901760
  %1995 = vmatmul.f32.gmra.mxu0 %v1994
  %v1996 = vpop.f32.mrf.mxu0
  %v1997 = vadd.f32 %v1680, %v1996
  %v1998 = vand.u32 %v740, 4294901760
  %v1999 = vsub.f32 %v740, %v1998
  %v2000 = vand.u32 %v1999, 4294901760
  %2001 = vmatmul.f32.gmra.mxu0 %v2000
  %v2002 = vpop.f32.mrf.mxu0
  %v2003 = vadd.f32 %v1685, %v2002
  %v2004 = vand.u32 %v743, 4294901760
  %v2005 = vsub.f32 %v743, %v2004
  %v2006 = vand.u32 %v2005, 4294901760
  %2007 = vmatmul.f32.gmra.mxu0 %v2006
  %v2008 = vpop.f32.mrf.mxu0
  %v2009 = vadd.f32 %v1690, %v2008
  %v2010 = vand.u32 %v746, 4294901760
  %v2011 = vsub.f32 %v746, %v2010
  %v2012 = vand.u32 %v2011, 4294901760
  %2013 = vmatmul.f32.gmra.mxu0 %v2012
  %v2014 = vpop.f32.mrf.mxu0
  %v2015 = vadd.f32 %v1695, %v2014
  %v2016 = vand.u32 %v749, 4294901760
  %v2017 = vsub.f32 %v749, %v2016
  %v2018 = vand.u32 %v2017, 4294901760
  %2019 = vmatmul.f32.gmra.mxu0 %v2018
  %v2020 = vpop.f32.mrf.mxu0
  %v2021 = vadd.f32 %v1700, %v2020
  %v2022 = vand.u32 %v752, 4294901760
  %v2023 = vsub.f32 %v752, %v2022
  %v2024 = vand.u32 %v2023, 4294901760
  %2025 = vmatmul.f32.gmra.mxu0 %v2024
  %v2026 = vpop.f32.mrf.mxu0
  %v2027 = vadd.f32 %v1705, %v2026
  %v2028 = vand.u32 %v755, 4294901760
  %v2029 = vsub.f32 %v755, %v2028
  %v2030 = vand.u32 %v2029, 4294901760
  %2031 = vmatmul.f32.gmra.mxu0 %v2030
  %v2032 = vpop.f32.mrf.mxu0
  %v2033 = vadd.f32 %v1710, %v2032
  %v2034 = vand.u32 %v758, 4294901760
  %v2035 = vsub.f32 %v758, %v2034
  %v2036 = vand.u32 %v2035, 4294901760
  %2037 = vmatmul.f32.gmra.mxu0 %v2036
  %v2038 = vpop.f32.mrf.mxu0
  %v2039 = vadd.f32 %v1715, %v2038
  %v2040 = vand.u32 %v761, 4294901760
  %v2041 = vsub.f32 %v761, %v2040
  %v2042 = vand.u32 %v2041, 4294901760
  %2043 = vmatmul.f32.gmra.mxu0 %v2042
  %v2044 = vpop.f32.mrf.mxu0
  %v2045 = vadd.f32 %v1720, %v2044
  %v2046 = vand.u32 %v764, 4294901760
  %v2047 = vsub.f32 %v764, %v2046
  %v2048 = vand.u32 %v2047, 4294901760
  %2049 = vmatmul.f32.gmra.mxu0 %v2048
  %v2050 = vpop.f32.mrf.mxu0
  %v2051 = vadd.f32 %v1725, %v2050
  %v2052 = vand.u32 %v767, 4294901760
  %v2053 = vsub.f32 %v767, %v2052
  %v2054 = vand.u32 %v2053, 4294901760
  %2055 = vmatmul.f32.gmra.mxu0 %v2054
  %v2056 = vpop.f32.mrf.mxu0
  %v2057 = vadd.f32 %v1730, %v2056
  %v2058 = vand.u32 %v770, 4294901760
  %v2059 = vsub.f32 %v770, %v2058
  %v2060 = vand.u32 %v2059, 4294901760
  %2061 = vmatmul.f32.gmra.mxu0 %v2060
  %v2062 = vpop.f32.mrf.mxu0
  %v2063 = vadd.f32 %v1735, %v2062
  %v2064 = vand.u32 %v773, 4294901760
  %v2065 = vsub.f32 %v773, %v2064
  %v2066 = vand.u32 %v2065, 4294901760
  %2067 = vmatmul.f32.gmra.mxu0 %v2066
  %v2068 = vpop.f32.mrf.mxu0
  %v2069 = vadd.f32 %v1740, %v2068
  %v2070 = vand.u32 %v776, 4294901760
  %v2071 = vsub.f32 %v776, %v2070
  %v2072 = vand.u32 %v2071, 4294901760
  %2073 = vmatmul.f32.gmra.mxu0 %v2072
  %v2074 = vpop.f32.mrf.mxu0
  %v2075 = vadd.f32 %v1745, %v2074
  %v2076 = vand.u32 %v779, 4294901760
  %v2077 = vsub.f32 %v779, %v2076
  %v2078 = vand.u32 %v2077, 4294901760
  %2079 = vmatmul.f32.gmra.mxu0 %v2078
  %v2080 = vpop.f32.mrf.mxu0
  %v2081 = vadd.f32 %v1750, %v2080
  %v2082 = vand.u32 %v782, 4294901760
  %v2083 = vsub.f32 %v782, %v2082
  %v2084 = vand.u32 %v2083, 4294901760
  %2085 = vmatmul.f32.gmra.mxu0 %v2084
  %v2086 = vpop.f32.mrf.mxu0
  %v2087 = vadd.f32 %v1755, %v2086
  %v2088 = vand.u32 %v785, 4294901760
  %v2089 = vsub.f32 %v785, %v2088
  %v2090 = vand.u32 %v2089, 4294901760
  %2091 = vmatmul.f32.gmra.mxu0 %v2090
  %v2092 = vpop.f32.mrf.mxu0
  %v2093 = vadd.f32 %v1760, %v2092
  %v2094 = vand.u32 %v788, 4294901760
  %v2095 = vsub.f32 %v788, %v2094
  %v2096 = vand.u32 %v2095, 4294901760
  %2097 = vmatmul.f32.gmra.mxu0 %v2096
  %v2098 = vpop.f32.mrf.mxu0
  %v2099 = vadd.f32 %v1765, %v2098
  %v2100 = vand.u32 %v791, 4294901760
  %v2101 = vsub.f32 %v791, %v2100
  %v2102 = vand.u32 %v2101, 4294901760
  %2103 = vmatmul.f32.gmra.mxu0 %v2102
  %v2104 = vpop.f32.mrf.mxu0
  %v2105 = vadd.f32 %v1770, %v2104
  %v2106 = vand.u32 %v794, 4294901760
  %v2107 = vsub.f32 %v794, %v2106
  %v2108 = vand.u32 %v2107, 4294901760
  %2109 = vmatmul.f32.gmra.mxu0 %v2108
  %v2110 = vpop.f32.mrf.mxu0
  %v2111 = vadd.f32 %v1775, %v2110
  %v2112 = vand.u32 %v797, 4294901760
  %v2113 = vsub.f32 %v797, %v2112
  %v2114 = vand.u32 %v2113, 4294901760
  %2115 = vmatmul.f32.gmra.mxu0 %v2114
  %v2116 = vpop.f32.mrf.mxu0
  %v2117 = vadd.f32 %v1780, %v2116
  %v2118 = vand.u32 %v800, 4294901760
  %v2119 = vsub.f32 %v800, %v2118
  %v2120 = vand.u32 %v2119, 4294901760
  %2121 = vmatmul.f32.gmra.mxu0 %v2120
  %v2122 = vpop.f32.mrf.mxu0
  %v2123 = vadd.f32 %v1785, %v2122
  %v2124 = vand.u32 %v803, 4294901760
  %v2125 = vsub.f32 %v803, %v2124
  %v2126 = vand.u32 %v2125, 4294901760
  %2127 = vmatmul.f32.gmra.mxu0 %v2126
  %v2128 = vpop.f32.mrf.mxu0
  %v2129 = vadd.f32 %v1790, %v2128
  %v2130 = vand.u32 %v806, 4294901760
  %v2131 = vsub.f32 %v806, %v2130
  %v2132 = vand.u32 %v2131, 4294901760
  %2133 = vmatmul.f32.gmra.mxu0 %v2132
  %v2134 = vpop.f32.mrf.mxu0
  %v2135 = vadd.f32 %v1795, %v2134
  %v2136 = vand.u32 %v809, 4294901760
  %v2137 = vsub.f32 %v809, %v2136
  %v2138 = vand.u32 %v2137, 4294901760
  %2139 = vmatmul.f32.gmra.mxu0 %v2138
  %v2140 = vpop.f32.mrf.mxu0
  %v2141 = vadd.f32 %v1800, %v2140
  %v2142 = vand.u32 %v812, 4294901760
  %v2143 = vsub.f32 %v812, %v2142
  %v2144 = vand.u32 %v2143, 4294901760
  %2145 = vmatmul.f32.gmra.mxu0 %v2144
  %v2146 = vpop.f32.mrf.mxu0
  %v2147 = vadd.f32 %v1805, %v2146
  %v2148 = vand.u32 %v815, 4294901760
  %v2149 = vsub.f32 %v815, %v2148
  %v2150 = vand.u32 %v2149, 4294901760
  %2151 = vmatmul.f32.gmra.mxu0 %v2150
  %v2152 = vpop.f32.mrf.mxu0
  %v2153 = vadd.f32 %v1810, %v2152
  %v2154 = vand.u32 %v818, 4294901760
  %v2155 = vsub.f32 %v818, %v2154
  %v2156 = vand.u32 %v2155, 4294901760
  %2157 = vmatmul.f32.gmra.mxu0 %v2156
  %v2158 = vpop.f32.mrf.mxu0
  %v2159 = vadd.f32 %v1815, %v2158
  %2160 = vdwg.mxu0
  %2161 = vmatpush.msra.mxu0 0.0
  %2162 = vmatpush.msra.mxu0 0.0
  %2163 = vmatpush.msra.mxu0 0.0
  %2164 = vmatpush.msra.mxu0 0.0
  %2165 = vmatpush.msra.mxu0 0.0
  %2166 = vmatpush.msra.mxu0 0.0
  %2167 = vmatpush.msra.mxu0 0.0
  %2168 = vmatpush.msra.mxu0 0.0
  %2169 = vmatpush.msra.mxu0 0.0
  %2170 = vmatpush.msra.mxu0 0.0
  %2171 = vmatpush.msra.mxu0 0.0
  %2172 = vmatpush.msra.mxu0 0.0
  %2173 = vmatpush.msra.mxu0 0.0
  %v2174 = vand.u32 %v822, 4294901760
  %v2175 = vsub.f32 %v822, %v2174
  %v2176 = vand.u32 %v2175, 4294901760
  %2177 = vmatpush.msra.mxu0 %v2176
  %v2178 = vand.u32 %v651, 4294901760
  %v2179 = vsub.f32 %v651, %v2178
  %v2180 = vand.u32 %v2179, 4294901760
  %2181 = vmatpush.msra.mxu0 %v2180
  %v2182 = vand.u32 %v647, 4294901760
  %v2183 = vsub.f32 %v647, %v2182
  %v2184 = vand.u32 %v2183, 4294901760
  %2185 = vmatpush.msra.mxu0 %v2184
  %v2186 = vand.u32 %v659, 4294901760
  %2187 = vmatmul.f32.gmra.mxu0 %v2186
  %v2188 = vpop.f32.mrf.mxu0
  %v2189 = vadd.f32 %v1841, %v2188
  %v2190 = vand.u32 %v662, 4294901760
  %2191 = vmatmul.f32.gmra.mxu0 %v2190
  %v2192 = vpop.f32.mrf.mxu0
  %v2193 = vadd.f32 %v1847, %v2192
  %v2194 = vand.u32 %v665, 4294901760
  %2195 = vmatmul.f32.gmra.mxu0 %v2194
  %v2196 = vpop.f32.mrf.mxu0
  %v2197 = vadd.f32 %v1853, %v2196
  %v2198 = vand.u32 %v668, 4294901760
  %2199 = vmatmul.f32.gmra.mxu0 %v2198
  %v2200 = vpop.f32.mrf.mxu0
  %v2201 = vadd.f32 %v1859, %v2200
  %v2202 = vand.u32 %v671, 4294901760
  %2203 = vmatmul.f32.gmra.mxu0 %v2202
  %v2204 = vpop.f32.mrf.mxu0
  %v2205 = vadd.f32 %v1865, %v2204
  %v2206 = vand.u32 %v674, 4294901760
  %2207 = vmatmul.f32.gmra.mxu0 %v2206
  %v2208 = vpop.f32.mrf.mxu0
  %v2209 = vadd.f32 %v1871, %v2208
  %v2210 = vand.u32 %v677, 4294901760
  %2211 = vmatmul.f32.gmra.mxu0 %v2210
  %v2212 = vpop.f32.mrf.mxu0
  %v2213 = vadd.f32 %v1877, %v2212
  %v2214 = vand.u32 %v680, 4294901760
  %2215 = vmatmul.f32.gmra.mxu0 %v2214
  %v2216 = vpop.f32.mrf.mxu0
  %v2217 = vadd.f32 %v1883, %v2216
  %v2218 = vand.u32 %v683, 4294901760
  %2219 = vmatmul.f32.gmra.mxu0 %v2218
  %v2220 = vpop.f32.mrf.mxu0
  %v2221 = vadd.f32 %v1889, %v2220
  %v2222 = vand.u32 %v686, 4294901760
  %2223 = vmatmul.f32.gmra.mxu0 %v2222
  %v2224 = vpop.f32.mrf.mxu0
  %v2225 = vadd.f32 %v1895, %v2224
  %v2226 = vand.u32 %v689, 4294901760
  %2227 = vmatmul.f32.gmra.mxu0 %v2226
  %v2228 = vpop.f32.mrf.mxu0
  %v2229 = vadd.f32 %v1901, %v2228
  %v2230 = vand.u32 %v692, 4294901760
  %2231 = vmatmul.f32.gmra.mxu0 %v2230
  %v2232 = vpop.f32.mrf.mxu0
  %v2233 = vadd.f32 %v1907, %v2232
  %v2234 = vand.u32 %v695, 4294901760
  %2235 = vmatmul.f32.gmra.mxu0 %v2234
  %v2236 = vpop.f32.mrf.mxu0
  %v2237 = vadd.f32 %v1913, %v2236
  %v2238 = vand.u32 %v698, 4294901760
  %2239 = vmatmul.f32.gmra.mxu0 %v2238
  %v2240 = vpop.f32.mrf.mxu0
  %v2241 = vadd.f32 %v1919, %v2240
  %v2242 = vand.u32 %v701, 4294901760
  %2243 = vmatmul.f32.gmra.mxu0 %v2242
  %v2244 = vpop.f32.mrf.mxu0
  %v2245 = vadd.f32 %v1925, %v2244
  %v2246 = vand.u32 %v704, 4294901760
  %2247 = vmatmul.f32.gmra.mxu0 %v2246
  %v2248 = vpop.f32.mrf.mxu0
  %v2249 = vadd.f32 %v1931, %v2248
  %v2250 = vand.u32 %v707, 4294901760
  %2251 = vmatmul.f32.gmra.mxu0 %v2250
  %v2252 = vpop.f32.mrf.mxu0
  %v2253 = vadd.f32 %v1937, %v2252
  %v2254 = vand.u32 %v710, 4294901760
  %2255 = vmatmul.f32.gmra.mxu0 %v2254
  %v2256 = vpop.f32.mrf.mxu0
  %v2257 = vadd.f32 %v1943, %v2256
  %v2258 = vand.u32 %v713, 4294901760
  %2259 = vmatmul.f32.gmra.mxu0 %v2258
  %v2260 = vpop.f32.mrf.mxu0
  %v2261 = vadd.f32 %v1949, %v2260
  %v2262 = vand.u32 %v716, 4294901760
  %2263 = vmatmul.f32.gmra.mxu0 %v2262
  %v2264 = vpop.f32.mrf.mxu0
  %v2265 = vadd.f32 %v1955, %v2264
  %v2266 = vand.u32 %v719, 4294901760
  %2267 = vmatmul.f32.gmra.mxu0 %v2266
  %v2268 = vpop.f32.mrf.mxu0
  %v2269 = vadd.f32 %v1961, %v2268
  %v2270 = vand.u32 %v722, 4294901760
  %2271 = vmatmul.f32.gmra.mxu0 %v2270
  %v2272 = vpop.f32.mrf.mxu0
  %v2273 = vadd.f32 %v1967, %v2272
  %v2274 = vand.u32 %v725, 4294901760
  %2275 = vmatmul.f32.gmra.mxu0 %v2274
  %v2276 = vpop.f32.mrf.mxu0
  %v2277 = vadd.f32 %v1973, %v2276
  %v2278 = vand.u32 %v728, 4294901760
  %2279 = vmatmul.f32.gmra.mxu0 %v2278
  %v2280 = vpop.f32.mrf.mxu0
  %v2281 = vadd.f32 %v1979, %v2280
  %v2282 = vand.u32 %v731, 4294901760
  %2283 = vmatmul.f32.gmra.mxu0 %v2282
  %v2284 = vpop.f32.mrf.mxu0
  %v2285 = vadd.f32 %v1985, %v2284
  %v2286 = vand.u32 %v734, 4294901760
  %2287 = vmatmul.f32.gmra.mxu0 %v2286
  %v2288 = vpop.f32.mrf.mxu0
  %v2289 = vadd.f32 %v1991, %v2288
  %v2290 = vand.u32 %v737, 4294901760
  %2291 = vmatmul.f32.gmra.mxu0 %v2290
  %v2292 = vpop.f32.mrf.mxu0
  %v2293 = vadd.f32 %v1997, %v2292
  %v2294 = vand.u32 %v740, 4294901760
  %2295 = vmatmul.f32.gmra.mxu0 %v2294
  %v2296 = vpop.f32.mrf.mxu0
  %v2297 = vadd.f32 %v2003, %v2296
  %v2298 = vand.u32 %v743, 4294901760
  %2299 = vmatmul.f32.gmra.mxu0 %v2298
  %v2300 = vpop.f32.mrf.mxu0
  %v2301 = vadd.f32 %v2009, %v2300
  %v2302 = vand.u32 %v746, 4294901760
  %2303 = vmatmul.f32.gmra.mxu0 %v2302
  %v2304 = vpop.f32.mrf.mxu0
  %v2305 = vadd.f32 %v2015, %v2304
  %v2306 = vand.u32 %v749, 4294901760
  %2307 = vmatmul.f32.gmra.mxu0 %v2306
  %v2308 = vpop.f32.mrf.mxu0
  %v2309 = vadd.f32 %v2021, %v2308
  %v2310 = vand.u32 %v752, 4294901760
  %2311 = vmatmul.f32.gmra.mxu0 %v2310
  %v2312 = vpop.f32.mrf.mxu0
  %v2313 = vadd.f32 %v2027, %v2312
  %v2314 = vand.u32 %v755, 4294901760
  %2315 = vmatmul.f32.gmra.mxu0 %v2314
  %v2316 = vpop.f32.mrf.mxu0
  %v2317 = vadd.f32 %v2033, %v2316
  %v2318 = vand.u32 %v758, 4294901760
  %2319 = vmatmul.f32.gmra.mxu0 %v2318
  %v2320 = vpop.f32.mrf.mxu0
  %v2321 = vadd.f32 %v2039, %v2320
  %v2322 = vand.u32 %v761, 4294901760
  %2323 = vmatmul.f32.gmra.mxu0 %v2322
  %v2324 = vpop.f32.mrf.mxu0
  %v2325 = vadd.f32 %v2045, %v2324
  %v2326 = vand.u32 %v764, 4294901760
  %2327 = vmatmul.f32.gmra.mxu0 %v2326
  %v2328 = vpop.f32.mrf.mxu0
  %v2329 = vadd.f32 %v2051, %v2328
  %v2330 = vand.u32 %v767, 4294901760
  %2331 = vmatmul.f32.gmra.mxu0 %v2330
  %v2332 = vpop.f32.mrf.mxu0
  %v2333 = vadd.f32 %v2057, %v2332
  %v2334 = vand.u32 %v770, 4294901760
  %2335 = vmatmul.f32.gmra.mxu0 %v2334
  %v2336 = vpop.f32.mrf.mxu0
  %v2337 = vadd.f32 %v2063, %v2336
  %v2338 = vand.u32 %v773, 4294901760
  %2339 = vmatmul.f32.gmra.mxu0 %v2338
  %v2340 = vpop.f32.mrf.mxu0
  %v2341 = vadd.f32 %v2069, %v2340
  %v2342 = vand.u32 %v776, 4294901760
  %2343 = vmatmul.f32.gmra.mxu0 %v2342
  %v2344 = vpop.f32.mrf.mxu0
  %v2345 = vadd.f32 %v2075, %v2344
  %v2346 = vand.u32 %v779, 4294901760
  %2347 = vmatmul.f32.gmra.mxu0 %v2346
  %v2348 = vpop.f32.mrf.mxu0
  %v2349 = vadd.f32 %v2081, %v2348
  %v2350 = vand.u32 %v782, 4294901760
  %2351 = vmatmul.f32.gmra.mxu0 %v2350
  %v2352 = vpop.f32.mrf.mxu0
  %v2353 = vadd.f32 %v2087, %v2352
  %v2354 = vand.u32 %v785, 4294901760
  %2355 = vmatmul.f32.gmra.mxu0 %v2354
  %v2356 = vpop.f32.mrf.mxu0
  %v2357 = vadd.f32 %v2093, %v2356
  %v2358 = vand.u32 %v788, 4294901760
  %2359 = vmatmul.f32.gmra.mxu0 %v2358
  %v2360 = vpop.f32.mrf.mxu0
  %v2361 = vadd.f32 %v2099, %v2360
  %v2362 = vand.u32 %v791, 4294901760
  %2363 = vmatmul.f32.gmra.mxu0 %v2362
  %v2364 = vpop.f32.mrf.mxu0
  %v2365 = vadd.f32 %v2105, %v2364
  %v2366 = vand.u32 %v794, 4294901760
  %2367 = vmatmul.f32.gmra.mxu0 %v2366
  %v2368 = vpop.f32.mrf.mxu0
  %v2369 = vadd.f32 %v2111, %v2368
  %v2370 = vand.u32 %v797, 4294901760
  %2371 = vmatmul.f32.gmra.mxu0 %v2370
  %v2372 = vpop.f32.mrf.mxu0
  %v2373 = vadd.f32 %v2117, %v2372
  %v2374 = vand.u32 %v800, 4294901760
  %2375 = vmatmul.f32.gmra.mxu0 %v2374
  %v2376 = vpop.f32.mrf.mxu0
  %v2377 = vadd.f32 %v2123, %v2376
  %v2378 = vand.u32 %v803, 4294901760
  %2379 = vmatmul.f32.gmra.mxu0 %v2378
  %v2380 = vpop.f32.mrf.mxu0
  %v2381 = vadd.f32 %v2129, %v2380
  %v2382 = vand.u32 %v806, 4294901760
  %2383 = vmatmul.f32.gmra.mxu0 %v2382
  %v2384 = vpop.f32.mrf.mxu0
  %v2385 = vadd.f32 %v2135, %v2384
  %v2386 = vand.u32 %v809, 4294901760
  %2387 = vmatmul.f32.gmra.mxu0 %v2386
  %v2388 = vpop.f32.mrf.mxu0
  %v2389 = vadd.f32 %v2141, %v2388
  %v2390 = vand.u32 %v812, 4294901760
  %2391 = vmatmul.f32.gmra.mxu0 %v2390
  %v2392 = vpop.f32.mrf.mxu0
  %v2393 = vadd.f32 %v2147, %v2392
  %v2394 = vand.u32 %v815, 4294901760
  %2395 = vmatmul.f32.gmra.mxu0 %v2394
  %v2396 = vpop.f32.mrf.mxu0
  %v2397 = vadd.f32 %v2153, %v2396
  %v2398 = vand.u32 %v818, 4294901760
  %2399 = vmatmul.f32.gmra.mxu0 %v2398
  %v2400 = vpop.f32.mrf.mxu0
  %v2401 = vadd.f32 %v2159, %v2400
  %2402 = vdwg.mxu0
  %2403 = vmatpush.msra.mxu0 0.0
  %2404 = vmatpush.msra.mxu0 0.0
  %2405 = vmatpush.msra.mxu0 0.0
  %2406 = vmatpush.msra.mxu0 0.0
  %2407 = vmatpush.msra.mxu0 0.0
  %2408 = vmatpush.msra.mxu0 0.0
  %2409 = vmatpush.msra.mxu0 0.0
  %2410 = vmatpush.msra.mxu0 0.0
  %2411 = vmatpush.msra.mxu0 0.0
  %2412 = vmatpush.msra.mxu0 0.0
  %2413 = vmatpush.msra.mxu0 0.0
  %2414 = vmatpush.msra.mxu0 0.0
  %2415 = vmatpush.msra.mxu0 0.0
  %v2416 = vand.u32 %v822, 4294901760
  %2417 = vmatpush.msra.mxu0 %v2416
  %v2418 = vand.u32 %v651, 4294901760
  %2419 = vmatpush.msra.mxu0 %v2418
  %v2420 = vand.u32 %v647, 4294901760
  %2421 = vmatpush.msra.mxu0 %v2420
  %v2422 = vand.u32 %v659, 4294901760
  %2423 = vmatmul.f32.gmra.mxu0 %v2422
  %v2424 = vpop.f32.mrf.mxu0
  %v2425 = vadd.f32 %v2189, %v2424
  %v2426 = vand.u32 %v662, 4294901760
  %2427 = vmatmul.f32.gmra.mxu0 %v2426
  %v2428 = vpop.f32.mrf.mxu0
  %v2429 = vadd.f32 %v2193, %v2428
  %v2430 = vand.u32 %v665, 4294901760
  %2431 = vmatmul.f32.gmra.mxu0 %v2430
  %v2432 = vpop.f32.mrf.mxu0
  %v2433 = vadd.f32 %v2197, %v2432
  %v2434 = vand.u32 %v668, 4294901760
  %2435 = vmatmul.f32.gmra.mxu0 %v2434
  %v2436 = vpop.f32.mrf.mxu0
  %v2437 = vadd.f32 %v2201, %v2436
  %v2438 = vand.u32 %v671, 4294901760
  %2439 = vmatmul.f32.gmra.mxu0 %v2438
  %v2440 = vpop.f32.mrf.mxu0
  %v2441 = vadd.f32 %v2205, %v2440
  %v2442 = vand.u32 %v674, 4294901760
  %2443 = vmatmul.f32.gmra.mxu0 %v2442
  %v2444 = vpop.f32.mrf.mxu0
  %v2445 = vadd.f32 %v2209, %v2444
  %v2446 = vand.u32 %v677, 4294901760
  %2447 = vmatmul.f32.gmra.mxu0 %v2446
  %v2448 = vpop.f32.mrf.mxu0
  %v2449 = vadd.f32 %v2213, %v2448
  %v2450 = vand.u32 %v680, 4294901760
  %2451 = vmatmul.f32.gmra.mxu0 %v2450
  %v2452 = vpop.f32.mrf.mxu0
  %v2453 = vadd.f32 %v2217, %v2452
  %v2454 = vand.u32 %v683, 4294901760
  %2455 = vmatmul.f32.gmra.mxu0 %v2454
  %v2456 = vpop.f32.mrf.mxu0
  %v2457 = vadd.f32 %v2221, %v2456
  %v2458 = vand.u32 %v686, 4294901760
  %2459 = vmatmul.f32.gmra.mxu0 %v2458
  %v2460 = vpop.f32.mrf.mxu0
  %v2461 = vadd.f32 %v2225, %v2460
  %v2462 = vand.u32 %v689, 4294901760
  %2463 = vmatmul.f32.gmra.mxu0 %v2462
  %v2464 = vpop.f32.mrf.mxu0
  %v2465 = vadd.f32 %v2229, %v2464
  %v2466 = vand.u32 %v692, 4294901760
  %2467 = vmatmul.f32.gmra.mxu0 %v2466
  %v2468 = vpop.f32.mrf.mxu0
  %v2469 = vadd.f32 %v2233, %v2468
  %v2470 = vand.u32 %v695, 4294901760
  %2471 = vmatmul.f32.gmra.mxu0 %v2470
  %v2472 = vpop.f32.mrf.mxu0
  %v2473 = vadd.f32 %v2237, %v2472
  %v2474 = vand.u32 %v698, 4294901760
  %2475 = vmatmul.f32.gmra.mxu0 %v2474
  %v2476 = vpop.f32.mrf.mxu0
  %v2477 = vadd.f32 %v2241, %v2476
  %v2478 = vand.u32 %v701, 4294901760
  %2479 = vmatmul.f32.gmra.mxu0 %v2478
  %v2480 = vpop.f32.mrf.mxu0
  %v2481 = vadd.f32 %v2245, %v2480
  %v2482 = vand.u32 %v704, 4294901760
  %2483 = vmatmul.f32.gmra.mxu0 %v2482
  %v2484 = vpop.f32.mrf.mxu0
  %v2485 = vadd.f32 %v2249, %v2484
  %v2486 = vand.u32 %v707, 4294901760
  %2487 = vmatmul.f32.gmra.mxu0 %v2486
  %v2488 = vpop.f32.mrf.mxu0
  %v2489 = vadd.f32 %v2253, %v2488
  %v2490 = vand.u32 %v710, 4294901760
  %2491 = vmatmul.f32.gmra.mxu0 %v2490
  %v2492 = vpop.f32.mrf.mxu0
  %v2493 = vadd.f32 %v2257, %v2492
  %v2494 = vand.u32 %v713, 4294901760
  %2495 = vmatmul.f32.gmra.mxu0 %v2494
  %v2496 = vpop.f32.mrf.mxu0
  %v2497 = vadd.f32 %v2261, %v2496
  %v2498 = vand.u32 %v716, 4294901760
  %2499 = vmatmul.f32.gmra.mxu0 %v2498
  %v2500 = vpop.f32.mrf.mxu0
  %v2501 = vadd.f32 %v2265, %v2500
  %v2502 = vand.u32 %v719, 4294901760
  %2503 = vmatmul.f32.gmra.mxu0 %v2502
  %v2504 = vpop.f32.mrf.mxu0
  %v2505 = vadd.f32 %v2269, %v2504
  %v2506 = vand.u32 %v722, 4294901760
  %2507 = vmatmul.f32.gmra.mxu0 %v2506
  %v2508 = vpop.f32.mrf.mxu0
  %v2509 = vadd.f32 %v2273, %v2508
  %v2510 = vand.u32 %v725, 4294901760
  %2511 = vmatmul.f32.gmra.mxu0 %v2510
  %v2512 = vpop.f32.mrf.mxu0
  %v2513 = vadd.f32 %v2277, %v2512
  %v2514 = vand.u32 %v728, 4294901760
  %2515 = vmatmul.f32.gmra.mxu0 %v2514
  %v2516 = vpop.f32.mrf.mxu0
  %v2517 = vadd.f32 %v2281, %v2516
  %v2518 = vand.u32 %v731, 4294901760
  %2519 = vmatmul.f32.gmra.mxu0 %v2518
  %v2520 = vpop.f32.mrf.mxu0
  %v2521 = vadd.f32 %v2285, %v2520
  %v2522 = vand.u32 %v734, 4294901760
  %2523 = vmatmul.f32.gmra.mxu0 %v2522
  %v2524 = vpop.f32.mrf.mxu0
  %v2525 = vadd.f32 %v2289, %v2524
  %v2526 = vand.u32 %v737, 4294901760
  %2527 = vmatmul.f32.gmra.mxu0 %v2526
  %v2528 = vpop.f32.mrf.mxu0
  %v2529 = vadd.f32 %v2293, %v2528
  %v2530 = vand.u32 %v740, 4294901760
  %2531 = vmatmul.f32.gmra.mxu0 %v2530
  %v2532 = vpop.f32.mrf.mxu0
  %v2533 = vadd.f32 %v2297, %v2532
  %v2534 = vand.u32 %v743, 4294901760
  %2535 = vmatmul.f32.gmra.mxu0 %v2534
  %v2536 = vpop.f32.mrf.mxu0
  %v2537 = vadd.f32 %v2301, %v2536
  %v2538 = vand.u32 %v746, 4294901760
  %2539 = vmatmul.f32.gmra.mxu0 %v2538
  %v2540 = vpop.f32.mrf.mxu0
  %v2541 = vadd.f32 %v2305, %v2540
  %v2542 = vand.u32 %v749, 4294901760
  %2543 = vmatmul.f32.gmra.mxu0 %v2542
  %v2544 = vpop.f32.mrf.mxu0
  %v2545 = vadd.f32 %v2309, %v2544
  %v2546 = vand.u32 %v752, 4294901760
  %2547 = vmatmul.f32.gmra.mxu0 %v2546
  %v2548 = vpop.f32.mrf.mxu0
  %v2549 = vadd.f32 %v2313, %v2548
  %v2550 = vand.u32 %v755, 4294901760
  %2551 = vmatmul.f32.gmra.mxu0 %v2550
  %v2552 = vpop.f32.mrf.mxu0
  %v2553 = vadd.f32 %v2317, %v2552
  %v2554 = vand.u32 %v758, 4294901760
  %2555 = vmatmul.f32.gmra.mxu0 %v2554
  %v2556 = vpop.f32.mrf.mxu0
  %v2557 = vadd.f32 %v2321, %v2556
  %v2558 = vand.u32 %v761, 4294901760
  %2559 = vmatmul.f32.gmra.mxu0 %v2558
  %v2560 = vpop.f32.mrf.mxu0
  %v2561 = vadd.f32 %v2325, %v2560
  %v2562 = vand.u32 %v764, 4294901760
  %2563 = vmatmul.f32.gmra.mxu0 %v2562
  %v2564 = vpop.f32.mrf.mxu0
  %v2565 = vadd.f32 %v2329, %v2564
  %v2566 = vand.u32 %v767, 4294901760
  %2567 = vmatmul.f32.gmra.mxu0 %v2566
  %v2568 = vpop.f32.mrf.mxu0
  %v2569 = vadd.f32 %v2333, %v2568
  %v2570 = vand.u32 %v770, 4294901760
  %2571 = vmatmul.f32.gmra.mxu0 %v2570
  %v2572 = vpop.f32.mrf.mxu0
  %v2573 = vadd.f32 %v2337, %v2572
  %v2574 = vand.u32 %v773, 4294901760
  %2575 = vmatmul.f32.gmra.mxu0 %v2574
  %v2576 = vpop.f32.mrf.mxu0
  %v2577 = vadd.f32 %v2341, %v2576
  %v2578 = vand.u32 %v776, 4294901760
  %2579 = vmatmul.f32.gmra.mxu0 %v2578
  %v2580 = vpop.f32.mrf.mxu0
  %v2581 = vadd.f32 %v2345, %v2580
  %v2582 = vand.u32 %v779, 4294901760
  %2583 = vmatmul.f32.gmra.mxu0 %v2582
  %v2584 = vpop.f32.mrf.mxu0
  %v2585 = vadd.f32 %v2349, %v2584
  %v2586 = vand.u32 %v782, 4294901760
  %2587 = vmatmul.f32.gmra.mxu0 %v2586
  %v2588 = vpop.f32.mrf.mxu0
  %v2589 = vadd.f32 %v2353, %v2588
  %v2590 = vand.u32 %v785, 4294901760
  %2591 = vmatmul.f32.gmra.mxu0 %v2590
  %v2592 = vpop.f32.mrf.mxu0
  %v2593 = vadd.f32 %v2357, %v2592
  %v2594 = vand.u32 %v788, 4294901760
  %2595 = vmatmul.f32.gmra.mxu0 %v2594
  %v2596 = vpop.f32.mrf.mxu0
  %v2597 = vadd.f32 %v2361, %v2596
  %v2598 = vand.u32 %v791, 4294901760
  %2599 = vmatmul.f32.gmra.mxu0 %v2598
  %v2600 = vpop.f32.mrf.mxu0
  %v2601 = vadd.f32 %v2365, %v2600
  %v2602 = vand.u32 %v794, 4294901760
  %2603 = vmatmul.f32.gmra.mxu0 %v2602
  %v2604 = vpop.f32.mrf.mxu0
  %v2605 = vadd.f32 %v2369, %v2604
  %v2606 = vand.u32 %v797, 4294901760
  %2607 = vmatmul.f32.gmra.mxu0 %v2606
  %v2608 = vpop.f32.mrf.mxu0
  %v2609 = vadd.f32 %v2373, %v2608
  %v2610 = vand.u32 %v800, 4294901760
  %2611 = vmatmul.f32.gmra.mxu0 %v2610
  %v2612 = vpop.f32.mrf.mxu0
  %v2613 = vadd.f32 %v2377, %v2612
  %v2614 = vand.u32 %v803, 4294901760
  %2615 = vmatmul.f32.gmra.mxu0 %v2614
  %v2616 = vpop.f32.mrf.mxu0
  %v2617 = vadd.f32 %v2381, %v2616
  %v2618 = vand.u32 %v806, 4294901760
  %2619 = vmatmul.f32.gmra.mxu0 %v2618
  %v2620 = vpop.f32.mrf.mxu0
  %v2621 = vadd.f32 %v2385, %v2620
  %v2622 = vand.u32 %v809, 4294901760
  %2623 = vmatmul.f32.gmra.mxu0 %v2622
  %v2624 = vpop.f32.mrf.mxu0
  %v2625 = vadd.f32 %v2389, %v2624
  %v2626 = vand.u32 %v812, 4294901760
  %2627 = vmatmul.f32.gmra.mxu0 %v2626
  %v2628 = vpop.f32.mrf.mxu0
  %v2629 = vadd.f32 %v2393, %v2628
  %v2630 = vand.u32 %v815, 4294901760
  %2631 = vmatmul.f32.gmra.mxu0 %v2630
  %v2632 = vpop.f32.mrf.mxu0
  %v2633 = vadd.f32 %v2397, %v2632
  %v2634 = vand.u32 %v818, 4294901760
  %2635 = vmatmul.f32.gmra.mxu0 %v2634
  %v2636 = vpop.f32.mrf.mxu0
  %v2637 = vadd.f32 %v2401, %v2636
  %2638 = vdwg.mxu0
  %vm2639 = vcmask 785408
  %2640 = vst.msk [vmem:[#allocation2] sm:$0xff] %vm2639, %v2425
  %2641 = vst.msk [vmem:[#allocation2 + $0x8] sm:$0xff] %vm2639, %v2429
  %2642 = vst.msk [vmem:[#allocation2 + $0x10] sm:$0xff] %vm2639, %v2433
  %2643 = vst.msk [vmem:[#allocation2 + $0x18] sm:$0xff] %vm2639, %v2437
  %2644 = vst.msk [vmem:[#allocation2 + $0x20] sm:$0xff] %vm2639, %v2441
  %2645 = vst.msk [vmem:[#allocation2 + $0x28] sm:$0xff] %vm2639, %v2445
  %2646 = vst.msk [vmem:[#allocation2 + $0x30] sm:$0xff] %vm2639, %v2449
  %2647 = vst.msk [vmem:[#allocation2 + $0x38] sm:$0xff] %vm2639, %v2453
  %2648 = vst.msk [vmem:[#allocation2 + $0x40] sm:$0xff] %vm2639, %v2457
  %2649 = vst.msk [vmem:[#allocation2 + $0x48] sm:$0xff] %vm2639, %v2461
  %2650 = vst.msk [vmem:[#allocation2 + $0x50] sm:$0xff] %vm2639, %v2465
  %2651 = vst.msk [vmem:[#allocation2 + $0x58] sm:$0xff] %vm2639, %v2469
  %2652 = vst.msk [vmem:[#allocation2 + $0x60] sm:$0xff] %vm2639, %v2473
  %2653 = vst.msk [vmem:[#allocation2 + $0x68] sm:$0xff] %vm2639, %v2477
  %2654 = vst.msk [vmem:[#allocation2 + $0x70] sm:$0xff] %vm2639, %v2481
  %2655 = vst.msk [vmem:[#allocation2 + $0x78] sm:$0xff] %vm2639, %v2485
  %2656 = vst.msk [vmem:[#allocation2 + $0x80] sm:$0xff] %vm2639, %v2489
  %2657 = vst.msk [vmem:[#allocation2 + $0x88] sm:$0xff] %vm2639, %v2493
  %2658 = vst.msk [vmem:[#allocation2 + $0x90] sm:$0xff] %vm2639, %v2497
  %2659 = vst.msk [vmem:[#allocation2 + $0x98] sm:$0xff] %vm2639, %v2501
  %2660 = vst.msk [vmem:[#allocation2 + $0xa0] sm:$0xff] %vm2639, %v2505
  %2661 = vst.msk [vmem:[#allocation2 + $0xa8] sm:$0xff] %vm2639, %v2509
  %2662 = vst.msk [vmem:[#allocation2 + $0xb0] sm:$0xff] %vm2639, %v2513
  %2663 = vst.msk [vmem:[#allocation2 + $0xb8] sm:$0xff] %vm2639, %v2517
  %2664 = vst.msk [vmem:[#allocation2 + $0xc0] sm:$0xff] %vm2639, %v2521
  %2665 = vst.msk [vmem:[#allocation2 + $0xc8] sm:$0xff] %vm2639, %v2525
  %2666 = vst.msk [vmem:[#allocation2 + $0xd0] sm:$0xff] %vm2639, %v2529
  %2667 = vst.msk [vmem:[#allocation2 + $0xd8] sm:$0xff] %vm2639, %v2533
  %2668 = vst.msk [vmem:[#allocation2 + $0xe0] sm:$0xff] %vm2639, %v2537
  %2669 = vst.msk [vmem:[#allocation2 + $0xe8] sm:$0xff] %vm2639, %v2541
  %2670 = vst.msk [vmem:[#allocation2 + $0xf0] sm:$0xff] %vm2639, %v2545
  %2671 = vst.msk [vmem:[#allocation2 + $0xf8] sm:$0xff] %vm2639, %v2549
  %2672 = vst.msk [vmem:[#allocation2 + $0x100] sm:$0xff] %vm2639, %v2553
  %2673 = vst.msk [vmem:[#allocation2 + $0x108] sm:$0xff] %vm2639, %v2557
  %2674 = vst.msk [vmem:[#allocation2 + $0x110] sm:$0xff] %vm2639, %v2561
  %2675 = vst.msk [vmem:[#allocation2 + $0x118] sm:$0xff] %vm2639, %v2565
  %2676 = vst.msk [vmem:[#allocation2 + $0x120] sm:$0xff] %vm2639, %v2569
  %2677 = vst.msk [vmem:[#allocation2 + $0x128] sm:$0xff] %vm2639, %v2573
  %2678 = vst.msk [vmem:[#allocation2 + $0x130] sm:$0xff] %vm2639, %v2577
  %2679 = vst.msk [vmem:[#allocation2 + $0x138] sm:$0xff] %vm2639, %v2581
  %2680 = vst.msk [vmem:[#allocation2 + $0x140] sm:$0xff] %vm2639, %v2585
  %2681 = vst.msk [vmem:[#allocation2 + $0x148] sm:$0xff] %vm2639, %v2589
  %2682 = vst.msk [vmem:[#allocation2 + $0x150] sm:$0xff] %vm2639, %v2593
  %2683 = vst.msk [vmem:[#allocation2 + $0x158] sm:$0xff] %vm2639, %v2597
  %2684 = vst.msk [vmem:[#allocation2 + $0x160] sm:$0xff] %vm2639, %v2601
  %2685 = vst.msk [vmem:[#allocation2 + $0x168] sm:$0xff] %vm2639, %v2605
  %2686 = vst.msk [vmem:[#allocation2 + $0x170] sm:$0xff] %vm2639, %v2609
  %2687 = vst.msk [vmem:[#allocation2 + $0x178] sm:$0xff] %vm2639, %v2613
  %2688 = vst.msk [vmem:[#allocation2 + $0x180] sm:$0xff] %vm2639, %v2617
  %2689 = vst.msk [vmem:[#allocation2 + $0x188] sm:$0xff] %vm2639, %v2621
  %2690 = vst.msk [vmem:[#allocation2 + $0x190] sm:$0xff] %vm2639, %v2625
  %2691 = vst.msk [vmem:[#allocation2 + $0x198] sm:$0xff] %vm2639, %v2629
  %2692 = vst.msk [vmem:[#allocation2 + $0x1a0] sm:$0xff] %vm2639, %v2633
  %2693 = vst.msk [vmem:[#allocation2 + $0x1a8] sm:$0xff] %vm2639, %v2637
  %v2694 = vld [vmem:[%s1] sm:$0xff]
  %v2695 = vld [vmem:[%s3] sm:$0xff]
  %v2696 = vld [vmem:[%s5] sm:$0x1]
  %v2698 = vperm.slane %v2696, 0
  %vm2700 = vcmask 64512
  %v2702 = vsel %vm2700, %v2694, 0
  %2704 = vmatpush.msra.mxu0 0.0
  %2705 = vmatpush.msra.mxu0 0.0
  %2706 = vmatpush.msra.mxu0 0.0
  %2707 = vmatpush.msra.mxu0 0.0
  %2708 = vmatpush.msra.mxu0 0.0
  %2709 = vmatpush.msra.mxu0 0.0
  %2710 = vmatpush.msra.mxu0 0.0
  %2711 = vmatpush.msra.mxu0 0.0
  %2712 = vmatpush.msra.mxu0 0.0
  %2713 = vmatpush.msra.mxu0 0.0
  %2714 = vmatpush.msra.mxu0 0.0
  %2715 = vmatpush.msra.mxu0 0.0
  %2716 = vmatpush.msra.mxu0 0.0
  %2717 = vmatpush.msra.mxu0 0.0
  %2718 = vmatpush.msra.mxu0 0.0
  %v2719 = vand.u32 %v2695, 4294901760
  %2720 = vmatpush.msra.mxu0 %v2719
  %v2721 = vand.u32 %v2702, 4294901760
  %v2722 = vsub.f32 %v2702, %v2721
  %v2723 = vand.u32 %v2722, 4294901760
  %v2724 = vsub.f32 %v2722, %v2723
  %v2725 = vand.u32 %v2724, 4294901760
  %2726 = vmatmul.f32.gmra.mxu0 %v2725
  %v2727 = vpop.f32.mrf.mxu0
  %v2728 = vadd.f32 %v2698, %v2727
  %2729 = vdwg.mxu0
  %2730 = vmatpush.msra.mxu0 0.0
  %2731 = vmatpush.msra.mxu0 0.0
  %2732 = vmatpush.msra.mxu0 0.0
  %2733 = vmatpush.msra.mxu0 0.0
  %2734 = vmatpush.msra.mxu0 0.0
  %2735 = vmatpush.msra.mxu0 0.0
  %2736 = vmatpush.msra.mxu0 0.0
  %2737 = vmatpush.msra.mxu0 0.0
  %2738 = vmatpush.msra.mxu0 0.0
  %2739 = vmatpush.msra.mxu0 0.0
  %2740 = vmatpush.msra.mxu0 0.0
  %2741 = vmatpush.msra.mxu0 0.0
  %2742 = vmatpush.msra.mxu0 0.0
  %2743 = vmatpush.msra.mxu0 0.0
  %2744 = vmatpush.msra.mxu0 0.0
  %v2745 = vand.u32 %v2695, 4294901760
  %v2746 = vsub.f32 %v2695, %v2745
  %v2747 = vand.u32 %v2746, 4294901760
  %v2748 = vsub.f32 %v2746, %v2747
  %v2749 = vand.u32 %v2748, 4294901760
  %2750 = vmatpush.msra.mxu0 %v2749
  %v2751 = vand.u32 %v2702, 4294901760
  %2752 = vmatmul.f32.gmra.mxu0 %v2751
  %v2753 = vpop.f32.mrf.mxu0
  %v2754 = vadd.f32 %v2728, %v2753
  %2755 = vdwg.mxu0
  %2756 = vmatpush.msra.mxu0 0.0
  %2757 = vmatpush.msra.mxu0 0.0
  %2758 = vmatpush.msra.mxu0 0.0
  %2759 = vmatpush.msra.mxu0 0.0
  %2760 = vmatpush.msra.mxu0 0.0
  %2761 = vmatpush.msra.mxu0 0.0
  %2762 = vmatpush.msra.mxu0 0.0
  %2763 = vmatpush.msra.mxu0 0.0
  %2764 = vmatpush.msra.mxu0 0.0
  %2765 = vmatpush.msra.mxu0 0.0
  %2766 = vmatpush.msra.mxu0 0.0
  %2767 = vmatpush.msra.mxu0 0.0
  %2768 = vmatpush.msra.mxu0 0.0
  %2769 = vmatpush.msra.mxu0 0.0
  %2770 = vmatpush.msra.mxu0 0.0
  %v2771 = vand.u32 %v2695, 4294901760
  %v2772 = vsub.f32 %v2695, %v2771
  %2773 = vmatpush.msra.mxu0 %v2772
  %v2774 = vand.u32 %v2702, 4294901760
  %v2775 = vsub.f32 %v2702, %v2774
  %2776 = vmatmul.f32.gmra.mxu0 %v2775
  %v2777 = vpop.f32.mrf.mxu0
  %v2778 = vadd.f32 %v2754, %v2777
  %2779 = vdwg.mxu0
  %2780 = vmatpush.msra.mxu0 0.0
  %2781 = vmatpush.msra.mxu0 0.0
  %2782 = vmatpush.msra.mxu0 0.0
  %2783 = vmatpush.msra.mxu0 0.0
  %2784 = vmatpush.msra.mxu0 0.0
  %2785 = vmatpush.msra.mxu0 0.0
  %2786 = vmatpush.msra.mxu0 0.0
  %2787 = vmatpush.msra.mxu0 0.0
  %2788 = vmatpush.msra.mxu0 0.0
  %2789 = vmatpush.msra.mxu0 0.0
  %2790 = vmatpush.msra.mxu0 0.0
  %2791 = vmatpush.msra.mxu0 0.0
  %2792 = vmatpush.msra.mxu0 0.0
  %2793 = vmatpush.msra.mxu0 0.0
  %2794 = vmatpush.msra.mxu0 0.0
  %v2795 = vand.u32 %v2695, 4294901760
  %2796 = vmatpush.msra.mxu0 %v2795
  %v2797 = vand.u32 %v2702, 4294901760
  %v2798 = vsub.f32 %v2702, %v2797
  %v2799 = vand.u32 %v2798, 4294901760
  %2800 = vmatmul.f32.gmra.mxu0 %v2799
  %v2801 = vpop.f32.mrf.mxu0
  %v2802 = vadd.f32 %v2778, %v2801
  %2803 = vdwg.mxu0
  %2804 = vmatpush.msra.mxu0 0.0
  %2805 = vmatpush.msra.mxu0 0.0
  %2806 = vmatpush.msra.mxu0 0.0
  %2807 = vmatpush.msra.mxu0 0.0
  %2808 = vmatpush.msra.mxu0 0.0
  %2809 = vmatpush.msra.mxu0 0.0
  %2810 = vmatpush.msra.mxu0 0.0
  %2811 = vmatpush.msra.mxu0 0.0
  %2812 = vmatpush.msra.mxu0 0.0
  %2813 = vmatpush.msra.mxu0 0.0
  %2814 = vmatpush.msra.mxu0 0.0
  %2815 = vmatpush.msra.mxu0 0.0
  %2816 = vmatpush.msra.mxu0 0.0
  %2817 = vmatpush.msra.mxu0 0.0
  %2818 = vmatpush.msra.mxu0 0.0
  %v2819 = vand.u32 %v2695, 4294901760
  %v2820 = vsub.f32 %v2695, %v2819
  %v2821 = vand.u32 %v2820, 4294901760
  %2822 = vmatpush.msra.mxu0 %v2821
  %v2823 = vand.u32 %v2702, 4294901760
  %2824 = vmatmul.f32.gmra.mxu0 %v2823
  %v2825 = vpop.f32.mrf.mxu0
  %v2826 = vadd.f32 %v2802, %v2825
  %2827 = vdwg.mxu0
  %2828 = vmatpush.msra.mxu0 0.0
  %2829 = vmatpush.msra.mxu0 0.0
  %2830 = vmatpush.msra.mxu0 0.0
  %2831 = vmatpush.msra.mxu0 0.0
  %2832 = vmatpush.msra.mxu0 0.0
  %2833 = vmatpush.msra.mxu0 0.0
  %2834 = vmatpush.msra.mxu0 0.0
  %2835 = vmatpush.msra.mxu0 0.0
  %2836 = vmatpush.msra.mxu0 0.0
  %2837 = vmatpush.msra.mxu0 0.0
  %2838 = vmatpush.msra.mxu0 0.0
  %2839 = vmatpush.msra.mxu0 0.0
  %2840 = vmatpush.msra.mxu0 0.0
  %2841 = vmatpush.msra.mxu0 0.0
  %2842 = vmatpush.msra.mxu0 0.0
  %v2843 = vand.u32 %v2695, 4294901760
  %2844 = vmatpush.msra.mxu0 %v2843
  %v2845 = vand.u32 %v2702, 4294901760
  %2846 = vmatmul.f32.gmra.mxu0 %v2845
  %v2847 = vpop.f32.mrf.mxu0
  %v2848 = vadd.f32 %v2826, %v2847
  %2849 = vdwg.mxu0
  %v2850 = vld [vmem:[%s6] sm:$0xff]
  %v2851 = vld [vmem:[%s6 + $0x8] sm:$0xff]
  %v2852 = vld [vmem:[%s6 + $0x10] sm:$0xff]
  %v2853 = vld [vmem:[%s6 + $0x18] sm:$0xff]
  %v2854 = vld [vmem:[%s7] sm:$0x1]
  %v2855 = vld [vmem:[%s8] sm:$0xff]
  %v2856 = vld [vmem:[%s8 + $0x8] sm:$0xff]
  %v2857 = vld [vmem:[%s8 + $0x10] sm:$0xff]
  %v2858 = vld [vmem:[%s8 + $0x18] sm:$0xff]
  %v2859 = vld [vmem:[%s8 + $0x20] sm:$0xff]
  %v2860 = vld [vmem:[%s8 + $0x28] sm:$0xff]
  %v2861 = vld [vmem:[%s8 + $0x30] sm:$0xff]
  %v2862 = vld [vmem:[%s8 + $0x38] sm:$0xff]
  %v2863 = vld [vmem:[%s9] sm:$0x1]
  %v2864 = vld [vmem:[#allocation2] sm:$0xff]
  %v2865 = vadd.f32 %v2864, %v2848
  %vm2866 = vcmask 261120
  %v2868 = vsel %vm2866, 0.0, 0
  %2870 = vmatpush.msra.mxu0 0.0
  %2871 = vmatpush.msra.mxu0 0.0
  %2872 = vmatpush.msra.mxu0 0.0
  %2873 = vmatpush.msra.mxu0 0.0
  %2874 = vmatpush.msra.mxu0 0.0
  %2875 = vmatpush.msra.mxu0 0.0
  %2876 = vmatpush.msra.mxu0 0.0
  %2877 = vmatpush.msra.mxu0 0.0
  %2878 = vmatpush.msra.mxu0 0.0
  %2879 = vmatpush.msra.mxu0 0.0
  %2880 = vmatpush.msra.mxu0 0.0
  %2881 = vmatpush.msra.mxu0 0.0
  %v2882 = vand.u32 %v2853, 4294901760
  %2883 = vmatpush.msra.mxu0 %v2882
  %v2884 = vand.u32 %v2852, 4294901760
  %2885 = vmatpush.msra.mxu0 %v2884
  %v2886 = vand.u32 %v2851, 4294901760
  %2887 = vmatpush.msra.mxu0 %v2886
  %v2888 = vand.u32 %v2850, 4294901760
  %2889 = vmatpush.msra.mxu0 %v2888
  %v2890 = vand.u32 %v2868, 4294901760
  %v2891 = vsub.f32 %v2868, %v2890
  %v2892 = vand.u32 %v2891, 4294901760
  %v2893 = vsub.f32 %v2891, %v2892
  %v2894 = vand.u32 %v2893, 4294901760
  %2895 = vmatmul.f32.gmra.mxu0 %v2894
  %v2896 = vpop.f32.mrf.mxu0
  %v2897 = vadd.f32 0.0, %v2896
  %2898 = vdwg.mxu0
  %2899 = vmatpush.msra.mxu0 0.0
  %2900 = vmatpush.msra.mxu0 0.0
  %2901 = vmatpush.msra.mxu0 0.0
  %2902 = vmatpush.msra.mxu0 0.0
  %2903 = vmatpush.msra.mxu0 0.0
  %2904 = vmatpush.msra.mxu0 0.0
  %2905 = vmatpush.msra.mxu0 0.0
  %2906 = vmatpush.msra.mxu0 0.0
  %2907 = vmatpush.msra.mxu0 0.0
  %2908 = vmatpush.msra.mxu0 0.0
  %2909 = vmatpush.msra.mxu0 0.0
  %2910 = vmatpush.msra.mxu0 0.0
  %v2911 = vand.u32 %v2853, 4294901760
  %v2912 = vsub.f32 %v2853, %v2911
  %v2913 = vand.u32 %v2912, 4294901760
  %v2914 = vsub.f32 %v2912, %v2913
  %v2915 = vand.u32 %v2914, 4294901760
  %2916 = vmatpush.msra.mxu0 %v2915
  %v2917 = vand.u32 %v2852, 4294901760
  %v2918 = vsub.f32 %v2852, %v2917
  %v2919 = vand.u32 %v2918, 4294901760
  %v2920 = vsub.f32 %v2918, %v2919
  %v2921 = vand.u32 %v2920, 4294901760
  %2922 = vmatpush.msra.mxu0 %v2921
  %v2923 = vand.u32 %v2851, 4294901760
  %v2924 = vsub.f32 %v2851, %v2923
  %v2925 = vand.u32 %v2924, 4294901760
  %v2926 = vsub.f32 %v2924, %v2925
  %v2927 = vand.u32 %v2926, 4294901760
  %2928 = vmatpush.msra.mxu0 %v2927
  %v2929 = vand.u32 %v2850, 4294901760
  %v2930 = vsub.f32 %v2850, %v2929
  %v2931 = vand.u32 %v2930, 4294901760
  %v2932 = vsub.f32 %v2930, %v2931
  %v2933 = vand.u32 %v2932, 4294901760
  %2934 = vmatpush.msra.mxu0 %v2933
  %v2935 = vand.u32 %v2868, 4294901760
  %2936 = vmatmul.f32.gmra.mxu0 %v2935
  %v2937 = vpop.f32.mrf.mxu0
  %v2938 = vadd.f32 %v2897, %v2937
  %2939 = vdwg.mxu0
  %2940 = vmatpush.msra.mxu0 0.0
  %2941 = vmatpush.msra.mxu0 0.0
  %2942 = vmatpush.msra.mxu0 0.0
  %2943 = vmatpush.msra.mxu0 0.0
  %2944 = vmatpush.msra.mxu0 0.0
  %2945 = vmatpush.msra.mxu0 0.0
  %2946 = vmatpush.msra.mxu0 0.0
  %2947 = vmatpush.msra.mxu0 0.0
  %2948 = vmatpush.msra.mxu0 0.0
  %2949 = vmatpush.msra.mxu0 0.0
  %2950 = vmatpush.msra.mxu0 0.0
  %2951 = vmatpush.msra.mxu0 0.0
  %v2952 = vand.u32 %v2853, 4294901760
  %v2953 = vsub.f32 %v2853, %v2952
  %2954 = vmatpush.msra.mxu0 %v2953
  %v2955 = vand.u32 %v2852, 4294901760
  %v2956 = vsub.f32 %v2852, %v2955
  %2957 = vmatpush.msra.mxu0 %v2956
  %v2958 = vand.u32 %v2851, 4294901760
  %v2959 = vsub.f32 %v2851, %v2958
  %2960 = vmatpush.msra.mxu0 %v2959
  %v2961 = vand.u32 %v2850, 4294901760
  %v2962 = vsub.f32 %v2850, %v2961
  %2963 = vmatpush.msra.mxu0 %v2962
  %v2964 = vand.u32 %v2868, 4294901760
  %v2965 = vsub.f32 %v2868, %v2964
  %2966 = vmatmul.f32.gmra.mxu0 %v2965
  %v2967 = vpop.f32.mrf.mxu0
  %v2968 = vadd.f32 %v2938, %v2967
  %2969 = vdwg.mxu0
  %2970 = vmatpush.msra.mxu0 0.0
  %2971 = vmatpush.msra.mxu0 0.0
  %2972 = vmatpush.msra.mxu0 0.0
  %2973 = vmatpush.msra.mxu0 0.0
  %2974 = vmatpush.msra.mxu0 0.0
  %2975 = vmatpush.msra.mxu0 0.0
  %2976 = vmatpush.msra.mxu0 0.0
  %2977 = vmatpush.msra.mxu0 0.0
  %2978 = vmatpush.msra.mxu0 0.0
  %2979 = vmatpush.msra.mxu0 0.0
  %2980 = vmatpush.msra.mxu0 0.0
  %2981 = vmatpush.msra.mxu0 0.0
  %v2982 = vand.u32 %v2853, 4294901760
  %2983 = vmatpush.msra.mxu0 %v2982
  %v2984 = vand.u32 %v2852, 4294901760
  %2985 = vmatpush.msra.mxu0 %v2984
  %v2986 = vand.u32 %v2851, 4294901760
  %2987 = vmatpush.msra.mxu0 %v2986
  %v2988 = vand.u32 %v2850, 4294901760
  %2989 = vmatpush.msra.mxu0 %v2988
  %v2990 = vand.u32 %v2868, 4294901760
  %v2991 = vsub.f32 %v2868, %v2990
  %v2992 = vand.u32 %v2991, 4294901760
  %2993 = vmatmul.f32.gmra.mxu0 %v2992
  %v2994 = vpop.f32.mrf.mxu0
  %v2995 = vadd.f32 %v2968, %v2994
  %2996 = vdwg.mxu0
  %2997 = vmatpush.msra.mxu0 0.0
  %2998 = vmatpush.msra.mxu0 0.0
  %2999 = vmatpush.msra.mxu0 0.0
  %3000 = vmatpush.msra.mxu0 0.0
  %3001 = vmatpush.msra.mxu0 0.0
  %3002 = vmatpush.msra.mxu0 0.0
  %3003 = vmatpush.msra.mxu0 0.0
  %3004 = vmatpush.msra.mxu0 0.0
  %3005 = vmatpush.msra.mxu0 0.0
  %3006 = vmatpush.msra.mxu0 0.0
  %3007 = vmatpush.msra.mxu0 0.0
  %3008 = vmatpush.msra.mxu0 0.0
  %v3009 = vand.u32 %v2853, 4294901760
  %v3010 = vsub.f32 %v2853, %v3009
  %v3011 = vand.u32 %v3010, 4294901760
  %3012 = vmatpush.msra.mxu0 %v3011
  %v3013 = vand.u32 %v2852, 4294901760
  %v3014 = vsub.f32 %v2852, %v3013
  %v3015 = vand.u32 %v3014, 4294901760
  %3016 = vmatpush.msra.mxu0 %v3015
  %v3017 = vand.u32 %v2851, 4294901760
  %v3018 = vsub.f32 %v2851, %v3017
  %v3019 = vand.u32 %v3018, 4294901760
  %3020 = vmatpush.msra.mxu0 %v3019
  %v3021 = vand.u32 %v2850, 4294901760
  %v3022 = vsub.f32 %v2850, %v3021
  %v3023 = vand.u32 %v3022, 4294901760
  %3024 = vmatpush.msra.mxu0 %v3023
  %v3025 = vand.u32 %v2868, 4294901760
  %3026 = vmatmul.f32.gmra.mxu0 %v3025
  %v3027 = vpop.f32.mrf.mxu0
  %v3028 = vadd.f32 %v2995, %v3027
  %3029 = vdwg.mxu0
  %3030 = vmatpush.msra.mxu0 0.0
  %3031 = vmatpush.msra.mxu0 0.0
  %3032 = vmatpush.msra.mxu0 0.0
  %3033 = vmatpush.msra.mxu0 0.0
  %3034 = vmatpush.msra.mxu0 0.0
  %3035 = vmatpush.msra.mxu0 0.0
  %3036 = vmatpush.msra.mxu0 0.0
  %3037 = vmatpush.msra.mxu0 0.0
  %3038 = vmatpush.msra.mxu0 0.0
  %3039 = vmatpush.msra.mxu0 0.0
  %3040 = vmatpush.msra.mxu0 0.0
  %3041 = vmatpush.msra.mxu0 0.0
  %v3042 = vand.u32 %v2853, 4294901760
  %3043 = vmatpush.msra.mxu0 %v3042
  %v3044 = vand.u32 %v2852, 4294901760
  %3045 = vmatpush.msra.mxu0 %v3044
  %v3046 = vand.u32 %v2851, 4294901760
  %3047 = vmatpush.msra.mxu0 %v3046
  %v3048 = vand.u32 %v2850, 4294901760
  %3049 = vmatpush.msra.mxu0 %v3048
  %v3050 = vand.u32 %v2868, 4294901760
  %3051 = vmatmul.f32.gmra.mxu0 %v3050
  %v3052 = vpop.f32.mrf.mxu0
  %v3053 = vadd.f32 %v3028, %v3052
  %3054 = vdwg.mxu0
  %v3055 = vadd.f32 %v2865, %v3053
  %v3056 = vxor.u32 %v3055, 2147483648
  %v3057 = vmul.f32 %v3056, 1.442695
  %v3058 = vpow.pop %v3057
  %v3059 = vadd.f32 %v3058, 1.0
  %v3060 = vrcp.pop %v3059
  %v3061 = vmul.f32 %v3059, %v3060
  %v3062 = vsub.f32 1.0, %v3061
  %v3063 = vmul.f32 %v3060, %v3062
  %v3064 = vadd.f32 %v3060, %v3063
  %vm3065 = vweird.f32 %v3059
  %vm3066 = vweird.f32 %v3060
  %vm3067 = vmor %vm3065, %vm3066
  %v3068 = vsel %vm3067, %v3060, %v3064
  %v3069 = vand.u32 2147483647, %v3059
  %vm3070 = vcmp.eq.f32.partialorder %v3069, 8.507059e+37
  %v3071 = vand.u32 %v3059, 2147483648
  %v3072 = vor.u32 1.1754944e-38, %v3071
  %v3073 = vsel %vm3070, %v3072, %v3068
  %v3074 = vmul.f32 1.0, %v3073
  %v3076 = vperm.slane %v2854, 0
  %3077 = vrot.lane.b32.xlu0 %v3076, 64
  %v3078 = vpop.permute.xlu0 %3077
  %v3080 = vadd.f32 %v3053, %v3078
  %3082 = vrot.lane.b32.xlu0 %v3080, 64
  %v3083 = vpop.permute.xlu0 %3082
  %v3085 = vmul.f32 %v3074, %v3083
  %3087 = vrot.lane.b32.xlu0 %v3085, 64
  %v3088 = vpop.permute.xlu0 %3087
  %v3090 = vadd.f32 %v2865, %v3088
  %v3091 = vtanh.pop %v3090
  %v3092 = vsub.f32 0.0, %v3091
  %3094 = vrot.lane.b32.xlu0 %v3092, 96
  %v3095 = vpop.permute.xlu0 %3094
  %v3097 = vmul.f32 %v3074, %v3095
  %3099 = vrot.lane.b32.xlu0 %v3097, 32
  %v3100 = vpop.permute.xlu0 %3099
  %v3102 = vadd.f32 %v3091, %v3100
  %v3103 = vld [vmem:[#allocation2 + $0x8] sm:$0xff]
  %v3104 = vadd.f32 %v3103, %v2848
  %3106 = vrot.lane.b32.xlu0 %v3102, 64
  %v3107 = vpop.permute.xlu0 %3106
  %v3108 = vsel %vm2866, %v3107, 0
  %3110 = vmatpush.msra.mxu0 0.0
  %3111 = vmatpush.msra.mxu0 0.0
  %3112 = vmatpush.msra.mxu0 0.0
  %3113 = vmatpush.msra.mxu0 0.0
  %3114 = vmatpush.msra.mxu0 0.0
  %3115 = vmatpush.msra.mxu0 0.0
  %3116 = vmatpush.msra.mxu0 0.0
  %3117 = vmatpush.msra.mxu0 0.0
  %3118 = vmatpush.msra.mxu0 0.0
  %3119 = vmatpush.msra.mxu0 0.0
  %3120 = vmatpush.msra.mxu0 0.0
  %3121 = vmatpush.msra.mxu0 0.0
  %v3122 = vand.u32 %v2853, 4294901760
  %3123 = vmatpush.msra.mxu0 %v3122
  %v3124 = vand.u32 %v2852, 4294901760
  %3125 = vmatpush.msra.mxu0 %v3124
  %v3126 = vand.u32 %v2851, 4294901760
  %3127 = vmatpush.msra.mxu0 %v3126
  %v3128 = vand.u32 %v2850, 4294901760
  %3129 = vmatpush.msra.mxu0 %v3128
  %v3130 = vand.u32 %v3108, 4294901760
  %v3131 = vsub.f32 %v3108, %v3130
  %v3132 = vand.u32 %v3131, 4294901760
  %v3133 = vsub.f32 %v3131, %v3132
  %v3134 = vand.u32 %v3133, 4294901760
  %3135 = vmatmul.f32.gmra.mxu0 %v3134
  %v3136 = vpop.f32.mrf.mxu0
  %v3137 = vadd.f32 0.0, %v3136
  %3138 = vdwg.mxu0
  %3139 = vmatpush.msra.mxu0 0.0
  %3140 = vmatpush.msra.mxu0 0.0
  %3141 = vmatpush.msra.mxu0 0.0
  %3142 = vmatpush.msra.mxu0 0.0
  %3143 = vmatpush.msra.mxu0 0.0
  %3144 = vmatpush.msra.mxu0 0.0
  %3145 = vmatpush.msra.mxu0 0.0
  %3146 = vmatpush.msra.mxu0 0.0
  %3147 = vmatpush.msra.mxu0 0.0
  %3148 = vmatpush.msra.mxu0 0.0
  %3149 = vmatpush.msra.mxu0 0.0
  %3150 = vmatpush.msra.mxu0 0.0
  %v3151 = vand.u32 %v2853, 4294901760
  %v3152 = vsub.f32 %v2853, %v3151
  %v3153 = vand.u32 %v3152, 4294901760
  %v3154 = vsub.f32 %v3152, %v3153
  %v3155 = vand.u32 %v3154, 4294901760
  %3156 = vmatpush.msra.mxu0 %v3155
  %v3157 = vand.u32 %v2852, 4294901760
  %v3158 = vsub.f32 %v2852, %v3157
  %v3159 = vand.u32 %v3158, 4294901760
  %v3160 = vsub.f32 %v3158, %v3159
  %v3161 = vand.u32 %v3160, 4294901760
  %3162 = vmatpush.msra.mxu0 %v3161
  %v3163 = vand.u32 %v2851, 4294901760
  %v3164 = vsub.f32 %v2851, %v3163
  %v3165 = vand.u32 %v3164, 4294901760
  %v3166 = vsub.f32 %v3164, %v3165
  %v3167 = vand.u32 %v3166, 4294901760
  %3168 = vmatpush.msra.mxu0 %v3167
  %v3169 = vand.u32 %v2850, 4294901760
  %v3170 = vsub.f32 %v2850, %v3169
  %v3171 = vand.u32 %v3170, 4294901760
  %v3172 = vsub.f32 %v3170, %v3171
  %v3173 = vand.u32 %v3172, 4294901760
  %3174 = vmatpush.msra.mxu0 %v3173
  %v3175 = vand.u32 %v3108, 4294901760
  %3176 = vmatmul.f32.gmra.mxu0 %v3175
  %v3177 = vpop.f32.mrf.mxu0
  %v3178 = vadd.f32 %v3137, %v3177
  %3179 = vdwg.mxu0
  %3180 = vmatpush.msra.mxu0 0.0
  %3181 = vmatpush.msra.mxu0 0.0
  %3182 = vmatpush.msra.mxu0 0.0
  %3183 = vmatpush.msra.mxu0 0.0
  %3184 = vmatpush.msra.mxu0 0.0
  %3185 = vmatpush.msra.mxu0 0.0
  %3186 = vmatpush.msra.mxu0 0.0
  %3187 = vmatpush.msra.mxu0 0.0
  %3188 = vmatpush.msra.mxu0 0.0
  %3189 = vmatpush.msra.mxu0 0.0
  %3190 = vmatpush.msra.mxu0 0.0
  %3191 = vmatpush.msra.mxu0 0.0
  %v3192 = vand.u32 %v2853, 4294901760
  %v3193 = vsub.f32 %v2853, %v3192
  %3194 = vmatpush.msra.mxu0 %v3193
  %v3195 = vand.u32 %v2852, 4294901760
  %v3196 = vsub.f32 %v2852, %v3195
  %3197 = vmatpush.msra.mxu0 %v3196
  %v3198 = vand.u32 %v2851, 4294901760
  %v3199 = vsub.f32 %v2851, %v3198
  %3200 = vmatpush.msra.mxu0 %v3199
  %v3201 = vand.u32 %v2850, 4294901760
  %v3202 = vsub.f32 %v2850, %v3201
  %3203 = vmatpush.msra.mxu0 %v3202
  %v3204 = vand.u32 %v3108, 4294901760
  %v3205 = vsub.f32 %v3108, %v3204
  %3206 = vmatmul.f32.gmra.mxu0 %v3205
  %v3207 = vpop.f32.mrf.mxu0
  %v3208 = vadd.f32 %v3178, %v3207
  %3209 = vdwg.mxu0
  %3210 = vmatpush.msra.mxu0 0.0
  %3211 = vmatpush.msra.mxu0 0.0
  %3212 = vmatpush.msra.mxu0 0.0
  %3213 = vmatpush.msra.mxu0 0.0
  %3214 = vmatpush.msra.mxu0 0.0
  %3215 = vmatpush.msra.mxu0 0.0
  %3216 = vmatpush.msra.mxu0 0.0
  %3217 = vmatpush.msra.mxu0 0.0
  %3218 = vmatpush.msra.mxu0 0.0
  %3219 = vmatpush.msra.mxu0 0.0
  %3220 = vmatpush.msra.mxu0 0.0
  %3221 = vmatpush.msra.mxu0 0.0
  %v3222 = vand.u32 %v2853, 4294901760
  %3223 = vmatpush.msra.mxu0 %v3222
  %v3224 = vand.u32 %v2852, 4294901760
  %3225 = vmatpush.msra.mxu0 %v3224
  %v3226 = vand.u32 %v2851, 4294901760
  %3227 = vmatpush.msra.mxu0 %v3226
  %v3228 = vand.u32 %v2850, 4294901760
  %3229 = vmatpush.msra.mxu0 %v3228
  %v3230 = vand.u32 %v3108, 4294901760
  %v3231 = vsub.f32 %v3108, %v3230
  %v3232 = vand.u32 %v3231, 4294901760
  %3233 = vmatmul.f32.gmra.mxu0 %v3232
  %v3234 = vpop.f32.mrf.mxu0
  %v3235 = vadd.f32 %v3208, %v3234
  %3236 = vdwg.mxu0
  %3237 = vmatpush.msra.mxu0 0.0
  %3238 = vmatpush.msra.mxu0 0.0
  %3239 = vmatpush.msra.mxu0 0.0
  %3240 = vmatpush.msra.mxu0 0.0
  %3241 = vmatpush.msra.mxu0 0.0
  %3242 = vmatpush.msra.mxu0 0.0
  %3243 = vmatpush.msra.mxu0 0.0
  %3244 = vmatpush.msra.mxu0 0.0
  %3245 = vmatpush.msra.mxu0 0.0
  %3246 = vmatpush.msra.mxu0 0.0
  %3247 = vmatpush.msra.mxu0 0.0
  %3248 = vmatpush.msra.mxu0 0.0
  %v3249 = vand.u32 %v2853, 4294901760
  %v3250 = vsub.f32 %v2853, %v3249
  %v3251 = vand.u32 %v3250, 4294901760
  %3252 = vmatpush.msra.mxu0 %v3251
  %v3253 = vand.u32 %v2852, 4294901760
  %v3254 = vsub.f32 %v2852, %v3253
  %v3255 = vand.u32 %v3254, 4294901760
  %3256 = vmatpush.msra.mxu0 %v3255
  %v3257 = vand.u32 %v2851, 4294901760
  %v3258 = vsub.f32 %v2851, %v3257
  %v3259 = vand.u32 %v3258, 4294901760
  %3260 = vmatpush.msra.mxu0 %v3259
  %v3261 = vand.u32 %v2850, 4294901760
  %v3262 = vsub.f32 %v2850, %v3261
  %v3263 = vand.u32 %v3262, 4294901760
  %3264 = vmatpush.msra.mxu0 %v3263
  %v3265 = vand.u32 %v3108, 4294901760
  %3266 = vmatmul.f32.gmra.mxu0 %v3265
  %v3267 = vpop.f32.mrf.mxu0
  %v3268 = vadd.f32 %v3235, %v3267
  %3269 = vdwg.mxu0
  %3270 = vmatpush.msra.mxu0 0.0
  %3271 = vmatpush.msra.mxu0 0.0
  %3272 = vmatpush.msra.mxu0 0.0
  %3273 = vmatpush.msra.mxu0 0.0
  %3274 = vmatpush.msra.mxu0 0.0
  %3275 = vmatpush.msra.mxu0 0.0
  %3276 = vmatpush.msra.mxu0 0.0
  %3277 = vmatpush.msra.mxu0 0.0
  %3278 = vmatpush.msra.mxu0 0.0
  %3279 = vmatpush.msra.mxu0 0.0
  %3280 = vmatpush.msra.mxu0 0.0
  %3281 = vmatpush.msra.mxu0 0.0
  %v3282 = vand.u32 %v2853, 4294901760
  %3283 = vmatpush.msra.mxu0 %v3282
  %v3284 = vand.u32 %v2852, 4294901760
  %3285 = vmatpush.msra.mxu0 %v3284
  %v3286 = vand.u32 %v2851, 4294901760
  %3287 = vmatpush.msra.mxu0 %v3286
  %v3288 = vand.u32 %v2850, 4294901760
  %3289 = vmatpush.msra.mxu0 %v3288
  %v3290 = vand.u32 %v3108, 4294901760
  %3291 = vmatmul.f32.gmra.mxu0 %v3290
  %v3292 = vpop.f32.mrf.mxu0
  %v3293 = vadd.f32 %v3268, %v3292
  %3294 = vdwg.mxu0
  %v3295 = vadd.f32 %v3104, %v3293
  %v3296 = vxor.u32 %v3295, 2147483648
  %v3297 = vmul.f32 %v3296, 1.442695
  %v3298 = vpow.pop %v3297
  %v3299 = vadd.f32 %v3298, 1.0
  %v3300 = vrcp.pop %v3299
  %v3301 = vmul.f32 %v3299, %v3300
  %v3302 = vsub.f32 1.0, %v3301
  %v3303 = vmul.f32 %v3300, %v3302
  %v3304 = vadd.f32 %v3300, %v3303
  %vm3305 = vweird.f32 %v3299
  %vm3306 = vweird.f32 %v3300
  %vm3307 = vmor %vm3305, %vm3306
  %v3308 = vsel %vm3307, %v3300, %v3304
  %v3309 = vand.u32 2147483647, %v3299
  %vm3310 = vcmp.eq.f32.partialorder %v3309, 8.507059e+37
  %v3311 = vand.u32 %v3299, 2147483648
  %v3312 = vor.u32 1.1754944e-38, %v3311
  %v3313 = vsel %vm3310, %v3312, %v3308
  %v3314 = vmul.f32 1.0, %v3313
  %v3315 = vadd.f32 %v3293, %v3078
  %3317 = vrot.lane.b32.xlu0 %v3315, 64
  %v3318 = vpop.permute.xlu0 %3317
  %v3320 = vmul.f32 %v3314, %v3318
  %3322 = vrot.lane.b32.xlu0 %v3320, 64
  %v3323 = vpop.permute.xlu0 %3322
  %v3325 = vadd.f32 %v3104, %v3323
  %v3326 = vtanh.pop %v3325
  %v3327 = vsub.f32 %v3102, %v3326
  %3329 = vrot.lane.b32.xlu0 %v3327, 96
  %v3330 = vpop.permute.xlu0 %3329
  %v3332 = vmul.f32 %v3314, %v3330
  %3334 = vrot.lane.b32.xlu0 %v3332, 32
  %v3335 = vpop.permute.xlu0 %3334
  %v3337 = vadd.f32 %v3326, %v3335
  %v3339 = vsel %vm2866, %v3107, 0.0
  %v3341 = vperm.slane %v2863, 0
  %vm3343 = vcmask 523264
  %v3345 = vsel %vm3343, %v3339, 0
  %3347 = vmatpush.msra.mxu0 0.0
  %3348 = vmatpush.msra.mxu0 0.0
  %3349 = vmatpush.msra.mxu0 0.0
  %3350 = vmatpush.msra.mxu0 0.0
  %3351 = vmatpush.msra.mxu0 0.0
  %3352 = vmatpush.msra.mxu0 0.0
  %3353 = vmatpush.msra.mxu0 0.0
  %3354 = vmatpush.msra.mxu0 0.0
  %v3355 = vand.u32 %v2862, 4294901760
  %3356 = vmatpush.msra.mxu0 %v3355
  %v3357 = vand.u32 %v2861, 4294901760
  %3358 = vmatpush.msra.mxu0 %v3357
  %v3359 = vand.u32 %v2860, 4294901760
  %3360 = vmatpush.msra.mxu0 %v3359
  %v3361 = vand.u32 %v2859, 4294901760
  %3362 = vmatpush.msra.mxu0 %v3361
  %v3363 = vand.u32 %v2858, 4294901760
  %3364 = vmatpush.msra.mxu0 %v3363
  %v3365 = vand.u32 %v2857, 4294901760
  %3366 = vmatpush.msra.mxu0 %v3365
  %v3367 = vand.u32 %v2856, 4294901760
  %3368 = vmatpush.msra.mxu0 %v3367
  %v3369 = vand.u32 %v2855, 4294901760
  %3370 = vmatpush.msra.mxu0 %v3369
  %v3371 = vand.u32 %v3345, 4294901760
  %v3372 = vsub.f32 %v3345, %v3371
  %v3373 = vand.u32 %v3372, 4294901760
  %v3374 = vsub.f32 %v3372, %v3373
  %v3375 = vand.u32 %v3374, 4294901760
  %3376 = vmatmul.f32.gmra.mxu0 %v3375
  %v3377 = vpop.f32.mrf.mxu0
  %v3378 = vadd.f32 %v3341, %v3377
  %3379 = vdwg.mxu0
  %3380 = vmatpush.msra.mxu0 0.0
  %3381 = vmatpush.msra.mxu0 0.0
  %3382 = vmatpush.msra.mxu0 0.0
  %3383 = vmatpush.msra.mxu0 0.0
  %3384 = vmatpush.msra.mxu0 0.0
  %3385 = vmatpush.msra.mxu0 0.0
  %3386 = vmatpush.msra.mxu0 0.0
  %3387 = vmatpush.msra.mxu0 0.0
  %v3388 = vand.u32 %v2862, 4294901760
  %v3389 = vsub.f32 %v2862, %v3388
  %v3390 = vand.u32 %v3389, 4294901760
  %v3391 = vsub.f32 %v3389, %v3390
  %v3392 = vand.u32 %v3391, 4294901760
  %3393 = vmatpush.msra.mxu0 %v3392
  %v3394 = vand.u32 %v2861, 4294901760
  %v3395 = vsub.f32 %v2861, %v3394
  %v3396 = vand.u32 %v3395, 4294901760
  %v3397 = vsub.f32 %v3395, %v3396
  %v3398 = vand.u32 %v3397, 4294901760
  %3399 = vmatpush.msra.mxu0 %v3398
  %v3400 = vand.u32 %v2860, 4294901760
  %v3401 = vsub.f32 %v2860, %v3400
  %v3402 = vand.u32 %v3401, 4294901760
  %v3403 = vsub.f32 %v3401, %v3402
  %v3404 = vand.u32 %v3403, 4294901760
  %3405 = vmatpush.msra.mxu0 %v3404
  %v3406 = vand.u32 %v2859, 4294901760
  %v3407 = vsub.f32 %v2859, %v3406
  %v3408 = vand.u32 %v3407, 4294901760
  %v3409 = vsub.f32 %v3407, %v3408
  %v3410 = vand.u32 %v3409, 4294901760
  %3411 = vmatpush.msra.mxu0 %v3410
  %v3412 = vand.u32 %v2858, 4294901760
  %v3413 = vsub.f32 %v2858, %v3412
  %v3414 = vand.u32 %v3413, 4294901760
  %v3415 = vsub.f32 %v3413, %v3414
  %v3416 = vand.u32 %v3415, 4294901760
  %3417 = vmatpush.msra.mxu0 %v3416
  %v3418 = vand.u32 %v2857, 4294901760
  %v3419 = vsub.f32 %v2857, %v3418
  %v3420 = vand.u32 %v3419, 4294901760
  %v3421 = vsub.f32 %v3419, %v3420
  %v3422 = vand.u32 %v3421, 4294901760
  %3423 = vmatpush.msra.mxu0 %v3422
  %v3424 = vand.u32 %v2856, 4294901760
  %v3425 = vsub.f32 %v2856, %v3424
  %v3426 = vand.u32 %v3425, 4294901760
  %v3427 = vsub.f32 %v3425, %v3426
  %v3428 = vand.u32 %v3427, 4294901760
  %3429 = vmatpush.msra.mxu0 %v3428
  %v3430 = vand.u32 %v2855, 4294901760
  %v3431 = vsub.f32 %v2855, %v3430
  %v3432 = vand.u32 %v3431, 4294901760
  %v3433 = vsub.f32 %v3431, %v3432
  %v3434 = vand.u32 %v3433, 4294901760
  %3435 = vmatpush.msra.mxu0 %v3434
  %v3436 = vand.u32 %v3345, 4294901760
  %3437 = vmatmul.f32.gmra.mxu0 %v3436
  %v3438 = vpop.f32.mrf.mxu0
  %v3439 = vadd.f32 %v3378, %v3438
  %3440 = vdwg.mxu0
  %3441 = vmatpush.msra.mxu0 0.0
  %3442 = vmatpush.msra.mxu0 0.0
  %3443 = vmatpush.msra.mxu0 0.0
  %3444 = vmatpush.msra.mxu0 0.0
  %3445 = vmatpush.msra.mxu0 0.0
  %3446 = vmatpush.msra.mxu0 0.0
  %3447 = vmatpush.msra.mxu0 0.0
  %3448 = vmatpush.msra.mxu0 0.0
  %v3449 = vand.u32 %v2862, 4294901760
  %v3450 = vsub.f32 %v2862, %v3449
  %3451 = vmatpush.msra.mxu0 %v3450
  %v3452 = vand.u32 %v2861, 4294901760
  %v3453 = vsub.f32 %v2861, %v3452
  %3454 = vmatpush.msra.mxu0 %v3453
  %v3455 = vand.u32 %v2860, 4294901760
  %v3456 = vsub.f32 %v2860, %v3455
  %3457 = vmatpush.msra.mxu0 %v3456
  %v3458 = vand.u32 %v2859, 4294901760
  %v3459 = vsub.f32 %v2859, %v3458
  %3460 = vmatpush.msra.mxu0 %v3459
  %v3461 = vand.u32 %v2858, 4294901760
  %v3462 = vsub.f32 %v2858, %v3461
  %3463 = vmatpush.msra.mxu0 %v3462
  %v3464 = vand.u32 %v2857, 4294901760
  %v3465 = vsub.f32 %v2857, %v3464
  %3466 = vmatpush.msra.mxu0 %v3465
  %v3467 = vand.u32 %v2856, 4294901760
  %v3468 = vsub.f32 %v2856, %v3467
  %3469 = vmatpush.msra.mxu0 %v3468
  %v3470 = vand.u32 %v2855, 4294901760
  %v3471 = vsub.f32 %v2855, %v3470
  %3472 = vmatpush.msra.mxu0 %v3471
  %v3473 = vand.u32 %v3345, 4294901760
  %v3474 = vsub.f32 %v3345, %v3473
  %3475 = vmatmul.f32.gmra.mxu0 %v3474
  %v3476 = vpop.f32.mrf.mxu0
  %v3477 = vadd.f32 %v3439, %v3476
  %3478 = vdwg.mxu0
  %3479 = vmatpush.msra.mxu0 0.0
  %3480 = vmatpush.msra.mxu0 0.0
  %3481 = vmatpush.msra.mxu0 0.0
  %3482 = vmatpush.msra.mxu0 0.0
  %3483 = vmatpush.msra.mxu0 0.0
  %3484 = vmatpush.msra.mxu0 0.0
  %3485 = vmatpush.msra.mxu0 0.0
  %3486 = vmatpush.msra.mxu0 0.0
  %v3487 = vand.u32 %v2862, 4294901760
  %3488 = vmatpush.msra.mxu0 %v3487
  %v3489 = vand.u32 %v2861, 4294901760
  %3490 = vmatpush.msra.mxu0 %v3489
  %v3491 = vand.u32 %v2860, 4294901760
  %3492 = vmatpush.msra.mxu0 %v3491
  %v3493 = vand.u32 %v2859, 4294901760
  %3494 = vmatpush.msra.mxu0 %v3493
  %v3495 = vand.u32 %v2858, 4294901760
  %3496 = vmatpush.msra.mxu0 %v3495
  %v3497 = vand.u32 %v2857, 4294901760
  %3498 = vmatpush.msra.mxu0 %v3497
  %v3499 = vand.u32 %v2856, 4294901760
  %3500 = vmatpush.msra.mxu0 %v3499
  %v3501 = vand.u32 %v2855, 4294901760
  %3502 = vmatpush.msra.mxu0 %v3501
  %v3503 = vand.u32 %v3345, 4294901760
  %v3504 = vsub.f32 %v3345, %v3503
  %v3505 = vand.u32 %v3504, 4294901760
  %3506 = vmatmul.f32.gmra.mxu0 %v3505
  %v3507 = vpop.f32.mrf.mxu0
  %v3508 = vadd.f32 %v3477, %v3507
  %3509 = vdwg.mxu0
  %3510 = vmatpush.msra.mxu0 0.0
  %3511 = vmatpush.msra.mxu0 0.0
  %3512 = vmatpush.msra.mxu0 0.0
  %3513 = vmatpush.msra.mxu0 0.0
  %3514 = vmatpush.msra.mxu0 0.0
  %3515 = vmatpush.msra.mxu0 0.0
  %3516 = vmatpush.msra.mxu0 0.0
  %3517 = vmatpush.msra.mxu0 0.0
  %v3518 = vand.u32 %v2862, 4294901760
  %v3519 = vsub.f32 %v2862, %v3518
  %v3520 = vand.u32 %v3519, 4294901760
  %3521 = vmatpush.msra.mxu0 %v3520
  %v3522 = vand.u32 %v2861, 4294901760
  %v3523 = vsub.f32 %v2861, %v3522
  %v3524 = vand.u32 %v3523, 4294901760
  %3525 = vmatpush.msra.mxu0 %v3524
  %v3526 = vand.u32 %v2860, 4294901760
  %v3527 = vsub.f32 %v2860, %v3526
  %v3528 = vand.u32 %v3527, 4294901760
  %3529 = vmatpush.msra.mxu0 %v3528
  %v3530 = vand.u32 %v2859, 4294901760
  %v3531 = vsub.f32 %v2859, %v3530
  %v3532 = vand.u32 %v3531, 4294901760
  %3533 = vmatpush.msra.mxu0 %v3532
  %v3534 = vand.u32 %v2858, 4294901760
  %v3535 = vsub.f32 %v2858, %v3534
  %v3536 = vand.u32 %v3535, 4294901760
  %3537 = vmatpush.msra.mxu0 %v3536
  %v3538 = vand.u32 %v2857, 4294901760
  %v3539 = vsub.f32 %v2857, %v3538
  %v3540 = vand.u32 %v3539, 4294901760
  %3541 = vmatpush.msra.mxu0 %v3540
  %v3542 = vand.u32 %v2856, 4294901760
  %v3543 = vsub.f32 %v2856, %v3542
  %v3544 = vand.u32 %v3543, 4294901760
  %3545 = vmatpush.msra.mxu0 %v3544
  %v3546 = vand.u32 %v2855, 4294901760
  %v3547 = vsub.f32 %v2855, %v3546
  %v3548 = vand.u32 %v3547, 4294901760
  %3549 = vmatpush.msra.mxu0 %v3548
  %v3550 = vand.u32 %v3345, 4294901760
  %3551 = vmatmul.f32.gmra.mxu0 %v3550
  %v3552 = vpop.f32.mrf.mxu0
  %v3553 = vadd.f32 %v3508, %v3552
  %3554 = vdwg.mxu0
  %3555 = vmatpush.msra.mxu0 0.0
  %3556 = vmatpush.msra.mxu0 0.0
  %3557 = vmatpush.msra.mxu0 0.0
  %3558 = vmatpush.msra.mxu0 0.0
  %3559 = vmatpush.msra.mxu0 0.0
  %3560 = vmatpush.msra.mxu0 0.0
  %3561 = vmatpush.msra.mxu0 0.0
  %3562 = vmatpush.msra.mxu0 0.0
  %v3563 = vand.u32 %v2862, 4294901760
  %3564 = vmatpush.msra.mxu0 %v3563
  %v3565 = vand.u32 %v2861, 4294901760
  %3566 = vmatpush.msra.mxu0 %v3565
  %v3567 = vand.u32 %v2860, 4294901760
  %3568 = vmatpush.msra.mxu0 %v3567
  %v3569 = vand.u32 %v2859, 4294901760
  %3570 = vmatpush.msra.mxu0 %v3569
  %v3571 = vand.u32 %v2858, 4294901760
  %3572 = vmatpush.msra.mxu0 %v3571
  %v3573 = vand.u32 %v2857, 4294901760
  %3574 = vmatpush.msra.mxu0 %v3573
  %v3575 = vand.u32 %v2856, 4294901760
  %3576 = vmatpush.msra.mxu0 %v3575
  %v3577 = vand.u32 %v2855, 4294901760
  %3578 = vmatpush.msra.mxu0 %v3577
  %v3579 = vand.u32 %v3345, 4294901760
  %3580 = vmatmul.f32.gmra.mxu0 %v3579
  %v3581 = vpop.f32.mrf.mxu0
  %v3582 = vadd.f32 %v3553, %v3581
  %3583 = vdwg.mxu0
  %v3584 = vxor.u32 %v3582, 2147483648
  %v3585 = vmul.f32 %v3584, 1.442695
  %v3586 = vpow.pop %v3585
  %v3587 = vadd.f32 %v3586, 1.0
  %v3588 = vrcp.pop %v3587
  %v3589 = vmul.f32 %v3587, %v3588
  %v3590 = vsub.f32 1.0, %v3589
  %v3591 = vmul.f32 %v3588, %v3590
  %v3592 = vadd.f32 %v3588, %v3591
  %vm3593 = vweird.f32 %v3587
  %vm3594 = vweird.f32 %v3588
  %vm3595 = vmor %vm3593, %vm3594
  %v3596 = vsel %vm3595, %v3588, %v3592
  %v3597 = vand.u32 2147483647, %v3587
  %vm3598 = vcmp.eq.f32.partialorder %v3597, 8.507059e+37
  %v3599 = vand.u32 %v3587, 2147483648
  %v3600 = vor.u32 1.1754944e-38, %v3599
  %v3601 = vsel %vm3598, %v3600, %v3596
  %v3602 = vmul.f32 1.0, %v3601
  %3604 = vrot.lane.b32.xlu0 %v3582, 32
  %v3605 = vpop.permute.xlu0 %3604
  %v3607 = vmul.f32 %v3602, %v3605
  %3609 = vrot.lane.b32.xlu0 %v3607, 64
  %v3610 = vpop.permute.xlu0 %3609
  %v3612 = vadd.f32 %v3582, %v3610
  %v3613 = vtanh.pop %v3612
  %v3614 = vsub.f32 0.0, %v3613
  %3616 = vrot.lane.b32.xlu0 %v3614, 96
  %v3617 = vpop.permute.xlu0 %3616
  %v3619 = vmul.f32 %v3602, %v3617
  %3621 = vrot.lane.b32.xlu0 %v3619, 32
  %v3622 = vpop.permute.xlu0 %3621
  %v3624 = vadd.f32 %v3613, %v3622
  %3626 = vrot.lane.b32.xlu0 %v3624, 64
  %v3627 = vpop.permute.xlu0 %3626
  %3629 = vst.msk [vmem:[#allocation3] sm:$0xff] %vm2866, %v3627
  loop: start=0, step=1, limit=26
  $region50: #{decoder_forward.1} parent=0 // loop_pre_header
    _
  $region51: #{decoder_forward.1} parent=0 // loop_header
    %s3631 = sphi 0, %s3635
    %p3632 = scmp.ge.s32.totalorder %s3631, 26
    %v3636 = vphi %v3337, %v4409
    %v3637 = vphi %v3624, %v4695
  $region52: #{decoder_forward.1} parent=0 // loop_header_branch
    %3634 = sbr.rel (%p3632) target = $region56
  $region53: #{decoder_forward.1} parent=0 // loop_body
    %s3638 = smul.u32 %s3631, 2
    %s3639 = sadd.s32 %s3638, 2
    %s3640 = sadd.s32 %s3638, 3
    %s3641 = smul.u32 %s3639, 8
    %s3642 = scalar_lea.vmem [#allocation2], %s3641
    %v3643 = vld [vmem:[%s3642] sm:$0xff]
    %v3644 = vadd.f32 %v3643, %v2848
    %3646 = vrot.lane.b32.xlu0 %v3636, 64
    %v3647 = vpop.permute.xlu0 %3646
    %v3648 = vsel %vm2866, %v3647, 0
    %3650 = vmatpush.msra.mxu0 0.0
    %3651 = vmatpush.msra.mxu0 0.0
    %3652 = vmatpush.msra.mxu0 0.0
    %3653 = vmatpush.msra.mxu0 0.0
    %3654 = vmatpush.msra.mxu0 0.0
    %3655 = vmatpush.msra.mxu0 0.0
    %3656 = vmatpush.msra.mxu0 0.0
    %3657 = vmatpush.msra.mxu0 0.0
    %3658 = vmatpush.msra.mxu0 0.0
    %3659 = vmatpush.msra.mxu0 0.0
    %3660 = vmatpush.msra.mxu0 0.0
    %3661 = vmatpush.msra.mxu0 0.0
    %v3662 = vand.u32 %v2853, 4294901760
    %3663 = vmatpush.msra.mxu0 %v3662
    %v3664 = vand.u32 %v2852, 4294901760
    %3665 = vmatpush.msra.mxu0 %v3664
    %v3666 = vand.u32 %v2851, 4294901760
    %3667 = vmatpush.msra.mxu0 %v3666
    %v3668 = vand.u32 %v2850, 4294901760
    %3669 = vmatpush.msra.mxu0 %v3668
    %v3670 = vand.u32 %v3648, 4294901760
    %v3671 = vsub.f32 %v3648, %v3670
    %v3672 = vand.u32 %v3671, 4294901760
    %v3673 = vsub.f32 %v3671, %v3672
    %v3674 = vand.u32 %v3673, 4294901760
    %3675 = vmatmul.f32.gmra.mxu0 %v3674
    %v3676 = vpop.f32.mrf.mxu0
    %v3677 = vadd.f32 0.0, %v3676
    %3678 = vdwg.mxu0
    %3679 = vmatpush.msra.mxu0 0.0
    %3680 = vmatpush.msra.mxu0 0.0
    %3681 = vmatpush.msra.mxu0 0.0
    %3682 = vmatpush.msra.mxu0 0.0
    %3683 = vmatpush.msra.mxu0 0.0
    %3684 = vmatpush.msra.mxu0 0.0
    %3685 = vmatpush.msra.mxu0 0.0
    %3686 = vmatpush.msra.mxu0 0.0
    %3687 = vmatpush.msra.mxu0 0.0
    %3688 = vmatpush.msra.mxu0 0.0
    %3689 = vmatpush.msra.mxu0 0.0
    %3690 = vmatpush.msra.mxu0 0.0
    %v3691 = vand.u32 %v2853, 4294901760
    %v3692 = vsub.f32 %v2853, %v3691
    %v3693 = vand.u32 %v3692, 4294901760
    %v3694 = vsub.f32 %v3692, %v3693
    %v3695 = vand.u32 %v3694, 4294901760
    %3696 = vmatpush.msra.mxu0 %v3695
    %v3697 = vand.u32 %v2852, 4294901760
    %v3698 = vsub.f32 %v2852, %v3697
    %v3699 = vand.u32 %v3698, 4294901760
    %v3700 = vsub.f32 %v3698, %v3699
    %v3701 = vand.u32 %v3700, 4294901760
    %3702 = vmatpush.msra.mxu0 %v3701
    %v3703 = vand.u32 %v2851, 4294901760
    %v3704 = vsub.f32 %v2851, %v3703
    %v3705 = vand.u32 %v3704, 4294901760
    %v3706 = vsub.f32 %v3704, %v3705
    %v3707 = vand.u32 %v3706, 4294901760
    %3708 = vmatpush.msra.mxu0 %v3707
    %v3709 = vand.u32 %v2850, 4294901760
    %v3710 = vsub.f32 %v2850, %v3709
    %v3711 = vand.u32 %v3710, 4294901760
    %v3712 = vsub.f32 %v3710, %v3711
    %v3713 = vand.u32 %v3712, 4294901760
    %3714 = vmatpush.msra.mxu0 %v3713
    %v3715 = vand.u32 %v3648, 4294901760
    %3716 = vmatmul.f32.gmra.mxu0 %v3715
    %v3717 = vpop.f32.mrf.mxu0
    %v3718 = vadd.f32 %v3677, %v3717
    %3719 = vdwg.mxu0
    %3720 = vmatpush.msra.mxu0 0.0
    %3721 = vmatpush.msra.mxu0 0.0
    %3722 = vmatpush.msra.mxu0 0.0
    %3723 = vmatpush.msra.mxu0 0.0
    %3724 = vmatpush.msra.mxu0 0.0
    %3725 = vmatpush.msra.mxu0 0.0
    %3726 = vmatpush.msra.mxu0 0.0
    %3727 = vmatpush.msra.mxu0 0.0
    %3728 = vmatpush.msra.mxu0 0.0
    %3729 = vmatpush.msra.mxu0 0.0
    %3730 = vmatpush.msra.mxu0 0.0
    %3731 = vmatpush.msra.mxu0 0.0
    %v3732 = vand.u32 %v2853, 4294901760
    %v3733 = vsub.f32 %v2853, %v3732
    %3734 = vmatpush.msra.mxu0 %v3733
    %v3735 = vand.u32 %v2852, 4294901760
    %v3736 = vsub.f32 %v2852, %v3735
    %3737 = vmatpush.msra.mxu0 %v3736
    %v3738 = vand.u32 %v2851, 4294901760
    %v3739 = vsub.f32 %v2851, %v3738
    %3740 = vmatpush.msra.mxu0 %v3739
    %v3741 = vand.u32 %v2850, 4294901760
    %v3742 = vsub.f32 %v2850, %v3741
    %3743 = vmatpush.msra.mxu0 %v3742
    %v3744 = vand.u32 %v3648, 4294901760
    %v3745 = vsub.f32 %v3648, %v3744
    %3746 = vmatmul.f32.gmra.mxu0 %v3745
    %v3747 = vpop.f32.mrf.mxu0
    %v3748 = vadd.f32 %v3718, %v3747
    %3749 = vdwg.mxu0
    %3750 = vmatpush.msra.mxu0 0.0
    %3751 = vmatpush.msra.mxu0 0.0
    %3752 = vmatpush.msra.mxu0 0.0
    %3753 = vmatpush.msra.mxu0 0.0
    %3754 = vmatpush.msra.mxu0 0.0
    %3755 = vmatpush.msra.mxu0 0.0
    %3756 = vmatpush.msra.mxu0 0.0
    %3757 = vmatpush.msra.mxu0 0.0
    %3758 = vmatpush.msra.mxu0 0.0
    %3759 = vmatpush.msra.mxu0 0.0
    %3760 = vmatpush.msra.mxu0 0.0
    %3761 = vmatpush.msra.mxu0 0.0
    %v3762 = vand.u32 %v2853, 4294901760
    %3763 = vmatpush.msra.mxu0 %v3762
    %v3764 = vand.u32 %v2852, 4294901760
    %3765 = vmatpush.msra.mxu0 %v3764
    %v3766 = vand.u32 %v2851, 4294901760
    %3767 = vmatpush.msra.mxu0 %v3766
    %v3768 = vand.u32 %v2850, 4294901760
    %3769 = vmatpush.msra.mxu0 %v3768
    %v3770 = vand.u32 %v3648, 4294901760
    %v3771 = vsub.f32 %v3648, %v3770
    %v3772 = vand.u32 %v3771, 4294901760
    %3773 = vmatmul.f32.gmra.mxu0 %v3772
    %v3774 = vpop.f32.mrf.mxu0
    %v3775 = vadd.f32 %v3748, %v3774
    %3776 = vdwg.mxu0
    %3777 = vmatpush.msra.mxu0 0.0
    %3778 = vmatpush.msra.mxu0 0.0
    %3779 = vmatpush.msra.mxu0 0.0
    %3780 = vmatpush.msra.mxu0 0.0
    %3781 = vmatpush.msra.mxu0 0.0
    %3782 = vmatpush.msra.mxu0 0.0
    %3783 = vmatpush.msra.mxu0 0.0
    %3784 = vmatpush.msra.mxu0 0.0
    %3785 = vmatpush.msra.mxu0 0.0
    %3786 = vmatpush.msra.mxu0 0.0
    %3787 = vmatpush.msra.mxu0 0.0
    %3788 = vmatpush.msra.mxu0 0.0
    %v3789 = vand.u32 %v2853, 4294901760
    %v3790 = vsub.f32 %v2853, %v3789
    %v3791 = vand.u32 %v3790, 4294901760
    %3792 = vmatpush.msra.mxu0 %v3791
    %v3793 = vand.u32 %v2852, 4294901760
    %v3794 = vsub.f32 %v2852, %v3793
    %v3795 = vand.u32 %v3794, 4294901760
    %3796 = vmatpush.msra.mxu0 %v3795
    %v3797 = vand.u32 %v2851, 4294901760
    %v3798 = vsub.f32 %v2851, %v3797
    %v3799 = vand.u32 %v3798, 4294901760
    %3800 = vmatpush.msra.mxu0 %v3799
    %v3801 = vand.u32 %v2850, 4294901760
    %v3802 = vsub.f32 %v2850, %v3801
    %v3803 = vand.u32 %v3802, 4294901760
    %3804 = vmatpush.msra.mxu0 %v3803
    %v3805 = vand.u32 %v3648, 4294901760
    %3806 = vmatmul.f32.gmra.mxu0 %v3805
    %v3807 = vpop.f32.mrf.mxu0
    %v3808 = vadd.f32 %v3775, %v3807
    %3809 = vdwg.mxu0
    %3810 = vmatpush.msra.mxu0 0.0
    %3811 = vmatpush.msra.mxu0 0.0
    %3812 = vmatpush.msra.mxu0 0.0
    %3813 = vmatpush.msra.mxu0 0.0
    %3814 = vmatpush.msra.mxu0 0.0
    %3815 = vmatpush.msra.mxu0 0.0
    %3816 = vmatpush.msra.mxu0 0.0
    %3817 = vmatpush.msra.mxu0 0.0
    %3818 = vmatpush.msra.mxu0 0.0
    %3819 = vmatpush.msra.mxu0 0.0
    %3820 = vmatpush.msra.mxu0 0.0
    %3821 = vmatpush.msra.mxu0 0.0
    %v3822 = vand.u32 %v2853, 4294901760
    %3823 = vmatpush.msra.mxu0 %v3822
    %v3824 = vand.u32 %v2852, 4294901760
    %3825 = vmatpush.msra.mxu0 %v3824
    %v3826 = vand.u32 %v2851, 4294901760
    %3827 = vmatpush.msra.mxu0 %v3826
    %v3828 = vand.u32 %v2850, 4294901760
    %3829 = vmatpush.msra.mxu0 %v3828
    %v3830 = vand.u32 %v3648, 4294901760
    %3831 = vmatmul.f32.gmra.mxu0 %v3830
    %v3832 = vpop.f32.mrf.mxu0
    %v3833 = vadd.f32 %v3808, %v3832
    %3834 = vdwg.mxu0
    %v3835 = vadd.f32 %v3644, %v3833
    %v3836 = vxor.u32 %v3835, 2147483648
    %v3837 = vmul.f32 %v3836, 1.442695
    %v3838 = vpow.pop %v3837
    %v3839 = vadd.f32 %v3838, 1.0
    %v3840 = vrcp.pop %v3839
    %v3841 = vmul.f32 %v3839, %v3840
    %v3842 = vsub.f32 1.0, %v3841
    %v3843 = vmul.f32 %v3840, %v3842
    %v3844 = vadd.f32 %v3840, %v3843
    %vm3845 = vweird.f32 %v3839
    %vm3846 = vweird.f32 %v3840
    %vm3847 = vmor %vm3845, %vm3846
    %v3848 = vsel %vm3847, %v3840, %v3844
    %v3849 = vand.u32 2147483647, %v3839
    %vm3850 = vcmp.eq.f32.partialorder %v3849, 8.507059e+37
    %v3851 = vand.u32 %v3839, 2147483648
    %v3852 = vor.u32 1.1754944e-38, %v3851
    %v3853 = vsel %vm3850, %v3852, %v3848
    %v3854 = vmul.f32 1.0, %v3853
    %v3855 = vadd.f32 %v3833, %v3078
    %3857 = vrot.lane.b32.xlu0 %v3855, 64
    %v3858 = vpop.permute.xlu0 %3857
    %v3860 = vmul.f32 %v3854, %v3858
    %3862 = vrot.lane.b32.xlu0 %v3860, 64
    %v3863 = vpop.permute.xlu0 %3862
    %v3865 = vadd.f32 %v3644, %v3863
    %v3866 = vtanh.pop %v3865
    %v3867 = vsub.f32 %v3636, %v3866
    %3869 = vrot.lane.b32.xlu0 %v3867, 96
    %v3870 = vpop.permute.xlu0 %3869
    %v3872 = vmul.f32 %v3854, %v3870
    %3874 = vrot.lane.b32.xlu0 %v3872, 32
    %v3875 = vpop.permute.xlu0 %3874
    %v3877 = vadd.f32 %v3866, %v3875
    %3880 = vrot.lane.b32.xlu0 %v3637, 96
    %v3881 = vpop.permute.xlu0 %3880
    %v3883 = vsel %vm2866, %v3647, %v3881
    %v3885 = vsel %vm3343, %v3883, 0
    %3887 = vmatpush.msra.mxu0 0.0
    %3888 = vmatpush.msra.mxu0 0.0
    %3889 = vmatpush.msra.mxu0 0.0
    %3890 = vmatpush.msra.mxu0 0.0
    %3891 = vmatpush.msra.mxu0 0.0
    %3892 = vmatpush.msra.mxu0 0.0
    %3893 = vmatpush.msra.mxu0 0.0
    %3894 = vmatpush.msra.mxu0 0.0
    %v3895 = vand.u32 %v2862, 4294901760
    %3896 = vmatpush.msra.mxu0 %v3895
    %v3897 = vand.u32 %v2861, 4294901760
    %3898 = vmatpush.msra.mxu0 %v3897
    %v3899 = vand.u32 %v2860, 4294901760
    %3900 = vmatpush.msra.mxu0 %v3899
    %v3901 = vand.u32 %v2859, 4294901760
    %3902 = vmatpush.msra.mxu0 %v3901
    %v3903 = vand.u32 %v2858, 4294901760
    %3904 = vmatpush.msra.mxu0 %v3903
    %v3905 = vand.u32 %v2857, 4294901760
    %3906 = vmatpush.msra.mxu0 %v3905
    %v3907 = vand.u32 %v2856, 4294901760
    %3908 = vmatpush.msra.mxu0 %v3907
    %v3909 = vand.u32 %v2855, 4294901760
    %3910 = vmatpush.msra.mxu0 %v3909
    %v3911 = vand.u32 %v3885, 4294901760
    %v3912 = vsub.f32 %v3885, %v3911
    %v3913 = vand.u32 %v3912, 4294901760
    %v3914 = vsub.f32 %v3912, %v3913
    %v3915 = vand.u32 %v3914, 4294901760
    %3916 = vmatmul.f32.gmra.mxu0 %v3915
    %v3917 = vpop.f32.mrf.mxu0
    %v3918 = vadd.f32 %v3341, %v3917
    %3919 = vdwg.mxu0
    %3920 = vmatpush.msra.mxu0 0.0
    %3921 = vmatpush.msra.mxu0 0.0
    %3922 = vmatpush.msra.mxu0 0.0
    %3923 = vmatpush.msra.mxu0 0.0
    %3924 = vmatpush.msra.mxu0 0.0
    %3925 = vmatpush.msra.mxu0 0.0
    %3926 = vmatpush.msra.mxu0 0.0
    %3927 = vmatpush.msra.mxu0 0.0
    %v3928 = vand.u32 %v2862, 4294901760
    %v3929 = vsub.f32 %v2862, %v3928
    %v3930 = vand.u32 %v3929, 4294901760
    %v3931 = vsub.f32 %v3929, %v3930
    %v3932 = vand.u32 %v3931, 4294901760
    %3933 = vmatpush.msra.mxu0 %v3932
    %v3934 = vand.u32 %v2861, 4294901760
    %v3935 = vsub.f32 %v2861, %v3934
    %v3936 = vand.u32 %v3935, 4294901760
    %v3937 = vsub.f32 %v3935, %v3936
    %v3938 = vand.u32 %v3937, 4294901760
    %3939 = vmatpush.msra.mxu0 %v3938
    %v3940 = vand.u32 %v2860, 4294901760
    %v3941 = vsub.f32 %v2860, %v3940
    %v3942 = vand.u32 %v3941, 4294901760
    %v3943 = vsub.f32 %v3941, %v3942
    %v3944 = vand.u32 %v3943, 4294901760
    %3945 = vmatpush.msra.mxu0 %v3944
    %v3946 = vand.u32 %v2859, 4294901760
    %v3947 = vsub.f32 %v2859, %v3946
    %v3948 = vand.u32 %v3947, 4294901760
    %v3949 = vsub.f32 %v3947, %v3948
    %v3950 = vand.u32 %v3949, 4294901760
    %3951 = vmatpush.msra.mxu0 %v3950
    %v3952 = vand.u32 %v2858, 4294901760
    %v3953 = vsub.f32 %v2858, %v3952
    %v3954 = vand.u32 %v3953, 4294901760
    %v3955 = vsub.f32 %v3953, %v3954
    %v3956 = vand.u32 %v3955, 4294901760
    %3957 = vmatpush.msra.mxu0 %v3956
    %v3958 = vand.u32 %v2857, 4294901760
    %v3959 = vsub.f32 %v2857, %v3958
    %v3960 = vand.u32 %v3959, 4294901760
    %v3961 = vsub.f32 %v3959, %v3960
    %v3962 = vand.u32 %v3961, 4294901760
    %3963 = vmatpush.msra.mxu0 %v3962
    %v3964 = vand.u32 %v2856, 4294901760
    %v3965 = vsub.f32 %v2856, %v3964
    %v3966 = vand.u32 %v3965, 4294901760
    %v3967 = vsub.f32 %v3965, %v3966
    %v3968 = vand.u32 %v3967, 4294901760
    %3969 = vmatpush.msra.mxu0 %v3968
    %v3970 = vand.u32 %v2855, 4294901760
    %v3971 = vsub.f32 %v2855, %v3970
    %v3972 = vand.u32 %v3971, 4294901760
    %v3973 = vsub.f32 %v3971, %v3972
    %v3974 = vand.u32 %v3973, 4294901760
    %3975 = vmatpush.msra.mxu0 %v3974
    %v3976 = vand.u32 %v3885, 4294901760
    %3977 = vmatmul.f32.gmra.mxu0 %v3976
    %v3978 = vpop.f32.mrf.mxu0
    %v3979 = vadd.f32 %v3918, %v3978
    %3980 = vdwg.mxu0
    %3981 = vmatpush.msra.mxu0 0.0
    %3982 = vmatpush.msra.mxu0 0.0
    %3983 = vmatpush.msra.mxu0 0.0
    %3984 = vmatpush.msra.mxu0 0.0
    %3985 = vmatpush.msra.mxu0 0.0
    %3986 = vmatpush.msra.mxu0 0.0
    %3987 = vmatpush.msra.mxu0 0.0
    %3988 = vmatpush.msra.mxu0 0.0
    %v3989 = vand.u32 %v2862, 4294901760
    %v3990 = vsub.f32 %v2862, %v3989
    %3991 = vmatpush.msra.mxu0 %v3990
    %v3992 = vand.u32 %v2861, 4294901760
    %v3993 = vsub.f32 %v2861, %v3992
    %3994 = vmatpush.msra.mxu0 %v3993
    %v3995 = vand.u32 %v2860, 4294901760
    %v3996 = vsub.f32 %v2860, %v3995
    %3997 = vmatpush.msra.mxu0 %v3996
    %v3998 = vand.u32 %v2859, 4294901760
    %v3999 = vsub.f32 %v2859, %v3998
    %4000 = vmatpush.msra.mxu0 %v3999
    %v4001 = vand.u32 %v2858, 4294901760
    %v4002 = vsub.f32 %v2858, %v4001
    %4003 = vmatpush.msra.mxu0 %v4002
    %v4004 = vand.u32 %v2857, 4294901760
    %v4005 = vsub.f32 %v2857, %v4004
    %4006 = vmatpush.msra.mxu0 %v4005
    %v4007 = vand.u32 %v2856, 4294901760
    %v4008 = vsub.f32 %v2856, %v4007
    %4009 = vmatpush.msra.mxu0 %v4008
    %v4010 = vand.u32 %v2855, 4294901760
    %v4011 = vsub.f32 %v2855, %v4010
    %4012 = vmatpush.msra.mxu0 %v4011
    %v4013 = vand.u32 %v3885, 4294901760
    %v4014 = vsub.f32 %v3885, %v4013
    %4015 = vmatmul.f32.gmra.mxu0 %v4014
    %v4016 = vpop.f32.mrf.mxu0
    %v4017 = vadd.f32 %v3979, %v4016
    %4018 = vdwg.mxu0
    %4019 = vmatpush.msra.mxu0 0.0
    %4020 = vmatpush.msra.mxu0 0.0
    %4021 = vmatpush.msra.mxu0 0.0
    %4022 = vmatpush.msra.mxu0 0.0
    %4023 = vmatpush.msra.mxu0 0.0
    %4024 = vmatpush.msra.mxu0 0.0
    %4025 = vmatpush.msra.mxu0 0.0
    %4026 = vmatpush.msra.mxu0 0.0
    %v4027 = vand.u32 %v2862, 4294901760
    %4028 = vmatpush.msra.mxu0 %v4027
    %v4029 = vand.u32 %v2861, 4294901760
    %4030 = vmatpush.msra.mxu0 %v4029
    %v4031 = vand.u32 %v2860, 4294901760
    %4032 = vmatpush.msra.mxu0 %v4031
    %v4033 = vand.u32 %v2859, 4294901760
    %4034 = vmatpush.msra.mxu0 %v4033
    %v4035 = vand.u32 %v2858, 4294901760
    %4036 = vmatpush.msra.mxu0 %v4035
    %v4037 = vand.u32 %v2857, 4294901760
    %4038 = vmatpush.msra.mxu0 %v4037
    %v4039 = vand.u32 %v2856, 4294901760
    %4040 = vmatpush.msra.mxu0 %v4039
    %v4041 = vand.u32 %v2855, 4294901760
    %4042 = vmatpush.msra.mxu0 %v4041
    %v4043 = vand.u32 %v3885, 4294901760
    %v4044 = vsub.f32 %v3885, %v4043
    %v4045 = vand.u32 %v4044, 4294901760
    %4046 = vmatmul.f32.gmra.mxu0 %v4045
    %v4047 = vpop.f32.mrf.mxu0
    %v4048 = vadd.f32 %v4017, %v4047
    %4049 = vdwg.mxu0
    %4050 = vmatpush.msra.mxu0 0.0
    %4051 = vmatpush.msra.mxu0 0.0
    %4052 = vmatpush.msra.mxu0 0.0
    %4053 = vmatpush.msra.mxu0 0.0
    %4054 = vmatpush.msra.mxu0 0.0
    %4055 = vmatpush.msra.mxu0 0.0
    %4056 = vmatpush.msra.mxu0 0.0
    %4057 = vmatpush.msra.mxu0 0.0
    %v4058 = vand.u32 %v2862, 4294901760
    %v4059 = vsub.f32 %v2862, %v4058
    %v4060 = vand.u32 %v4059, 4294901760
    %4061 = vmatpush.msra.mxu0 %v4060
    %v4062 = vand.u32 %v2861, 4294901760
    %v4063 = vsub.f32 %v2861, %v4062
    %v4064 = vand.u32 %v4063, 4294901760
    %4065 = vmatpush.msra.mxu0 %v4064
    %v4066 = vand.u32 %v2860, 4294901760
    %v4067 = vsub.f32 %v2860, %v4066
    %v4068 = vand.u32 %v4067, 4294901760
    %4069 = vmatpush.msra.mxu0 %v4068
    %v4070 = vand.u32 %v2859, 4294901760
    %v4071 = vsub.f32 %v2859, %v4070
    %v4072 = vand.u32 %v4071, 4294901760
    %4073 = vmatpush.msra.mxu0 %v4072
    %v4074 = vand.u32 %v2858, 4294901760
    %v4075 = vsub.f32 %v2858, %v4074
    %v4076 = vand.u32 %v4075, 4294901760
    %4077 = vmatpush.msra.mxu0 %v4076
    %v4078 = vand.u32 %v2857, 4294901760
    %v4079 = vsub.f32 %v2857, %v4078
    %v4080 = vand.u32 %v4079, 4294901760
    %4081 = vmatpush.msra.mxu0 %v4080
    %v4082 = vand.u32 %v2856, 4294901760
    %v4083 = vsub.f32 %v2856, %v4082
    %v4084 = vand.u32 %v4083, 4294901760
    %4085 = vmatpush.msra.mxu0 %v4084
    %v4086 = vand.u32 %v2855, 4294901760
    %v4087 = vsub.f32 %v2855, %v4086
    %v4088 = vand.u32 %v4087, 4294901760
    %4089 = vmatpush.msra.mxu0 %v4088
    %v4090 = vand.u32 %v3885, 4294901760
    %4091 = vmatmul.f32.gmra.mxu0 %v4090
    %v4092 = vpop.f32.mrf.mxu0
    %v4093 = vadd.f32 %v4048, %v4092
    %4094 = vdwg.mxu0
    %4095 = vmatpush.msra.mxu0 0.0
    %4096 = vmatpush.msra.mxu0 0.0
    %4097 = vmatpush.msra.mxu0 0.0
    %4098 = vmatpush.msra.mxu0 0.0
    %4099 = vmatpush.msra.mxu0 0.0
    %4100 = vmatpush.msra.mxu0 0.0
    %4101 = vmatpush.msra.mxu0 0.0
    %4102 = vmatpush.msra.mxu0 0.0
    %v4103 = vand.u32 %v2862, 4294901760
    %4104 = vmatpush.msra.mxu0 %v4103
    %v4105 = vand.u32 %v2861, 4294901760
    %4106 = vmatpush.msra.mxu0 %v4105
    %v4107 = vand.u32 %v2860, 4294901760
    %4108 = vmatpush.msra.mxu0 %v4107
    %v4109 = vand.u32 %v2859, 4294901760
    %4110 = vmatpush.msra.mxu0 %v4109
    %v4111 = vand.u32 %v2858, 4294901760
    %4112 = vmatpush.msra.mxu0 %v4111
    %v4113 = vand.u32 %v2857, 4294901760
    %4114 = vmatpush.msra.mxu0 %v4113
    %v4115 = vand.u32 %v2856, 4294901760
    %4116 = vmatpush.msra.mxu0 %v4115
    %v4117 = vand.u32 %v2855, 4294901760
    %4118 = vmatpush.msra.mxu0 %v4117
    %v4119 = vand.u32 %v3885, 4294901760
    %4120 = vmatmul.f32.gmra.mxu0 %v4119
    %v4121 = vpop.f32.mrf.mxu0
    %v4122 = vadd.f32 %v4093, %v4121
    %4123 = vdwg.mxu0
    %v4124 = vxor.u32 %v4122, 2147483648
    %v4125 = vmul.f32 %v4124, 1.442695
    %v4126 = vpow.pop %v4125
    %v4127 = vadd.f32 %v4126, 1.0
    %v4128 = vrcp.pop %v4127
    %v4129 = vmul.f32 %v4127, %v4128
    %v4130 = vsub.f32 1.0, %v4129
    %v4131 = vmul.f32 %v4128, %v4130
    %v4132 = vadd.f32 %v4128, %v4131
    %vm4133 = vweird.f32 %v4127
    %vm4134 = vweird.f32 %v4128
    %vm4135 = vmor %vm4133, %vm4134
    %v4136 = vsel %vm4135, %v4128, %v4132
    %v4137 = vand.u32 2147483647, %v4127
    %vm4138 = vcmp.eq.f32.partialorder %v4137, 8.507059e+37
    %v4139 = vand.u32 %v4127, 2147483648
    %v4140 = vor.u32 1.1754944e-38, %v4139
    %v4141 = vsel %vm4138, %v4140, %v4136
    %v4142 = vmul.f32 1.0, %v4141
    %4144 = vrot.lane.b32.xlu0 %v4122, 32
    %v4145 = vpop.permute.xlu0 %4144
    %v4147 = vmul.f32 %v4142, %v4145
    %4149 = vrot.lane.b32.xlu0 %v4147, 64
    %v4150 = vpop.permute.xlu0 %4149
    %v4152 = vadd.f32 %v4122, %v4150
    %v4153 = vtanh.pop %v4152
    %v4154 = vsub.f32 %v3637, %v4153
    %4156 = vrot.lane.b32.xlu0 %v4154, 96
    %v4157 = vpop.permute.xlu0 %4156
    %v4159 = vmul.f32 %v4142, %v4157
    %4161 = vrot.lane.b32.xlu0 %v4159, 32
    %v4162 = vpop.permute.xlu0 %4161
    %v4164 = vadd.f32 %v4153, %v4162
    %s4165 = sadd.s32 %s3638, 1
    %s4166 = smul.u32 %s4165, 8
    %4168 = vrot.lane.b32.xlu0 %v4164, 64
    %v4169 = vpop.permute.xlu0 %4168
    %s4171 = scalar_lea.vmem [#allocation3], %s4166
    %4172 = vst.msk [vmem:[%s4171] sm:$0xff] %vm2866, %v4169
    %s4173 = smul.u32 %s3640, 8
    %s4174 = scalar_lea.vmem [#allocation2], %s4173
    %v4175 = vld [vmem:[%s4174] sm:$0xff]
    %v4176 = vadd.f32 %v4175, %v2848
    %4178 = vrot.lane.b32.xlu0 %v3877, 64
    %v4179 = vpop.permute.xlu0 %4178
    %v4180 = vsel %vm2866, %v4179, 0
    %4182 = vmatpush.msra.mxu0 0.0
    %4183 = vmatpush.msra.mxu0 0.0
    %4184 = vmatpush.msra.mxu0 0.0
    %4185 = vmatpush.msra.mxu0 0.0
    %4186 = vmatpush.msra.mxu0 0.0
    %4187 = vmatpush.msra.mxu0 0.0
    %4188 = vmatpush.msra.mxu0 0.0
    %4189 = vmatpush.msra.mxu0 0.0
    %4190 = vmatpush.msra.mxu0 0.0
    %4191 = vmatpush.msra.mxu0 0.0
    %4192 = vmatpush.msra.mxu0 0.0
    %4193 = vmatpush.msra.mxu0 0.0
    %v4194 = vand.u32 %v2853, 4294901760
    %4195 = vmatpush.msra.mxu0 %v4194
    %v4196 = vand.u32 %v2852, 4294901760
    %4197 = vmatpush.msra.mxu0 %v4196
    %v4198 = vand.u32 %v2851, 4294901760
    %4199 = vmatpush.msra.mxu0 %v4198
    %v4200 = vand.u32 %v2850, 4294901760
    %4201 = vmatpush.msra.mxu0 %v4200
    %v4202 = vand.u32 %v4180, 4294901760
    %v4203 = vsub.f32 %v4180, %v4202
    %v4204 = vand.u32 %v4203, 4294901760
    %v4205 = vsub.f32 %v4203, %v4204
    %v4206 = vand.u32 %v4205, 4294901760
    %4207 = vmatmul.f32.gmra.mxu0 %v4206
    %v4208 = vpop.f32.mrf.mxu0
    %v4209 = vadd.f32 0.0, %v4208
    %4210 = vdwg.mxu0
    %4211 = vmatpush.msra.mxu0 0.0
    %4212 = vmatpush.msra.mxu0 0.0
    %4213 = vmatpush.msra.mxu0 0.0
    %4214 = vmatpush.msra.mxu0 0.0
    %4215 = vmatpush.msra.mxu0 0.0
    %4216 = vmatpush.msra.mxu0 0.0
    %4217 = vmatpush.msra.mxu0 0.0
    %4218 = vmatpush.msra.mxu0 0.0
    %4219 = vmatpush.msra.mxu0 0.0
    %4220 = vmatpush.msra.mxu0 0.0
    %4221 = vmatpush.msra.mxu0 0.0
    %4222 = vmatpush.msra.mxu0 0.0
    %v4223 = vand.u32 %v2853, 4294901760
    %v4224 = vsub.f32 %v2853, %v4223
    %v4225 = vand.u32 %v4224, 4294901760
    %v4226 = vsub.f32 %v4224, %v4225
    %v4227 = vand.u32 %v4226, 4294901760
    %4228 = vmatpush.msra.mxu0 %v4227
    %v4229 = vand.u32 %v2852, 4294901760
    %v4230 = vsub.f32 %v2852, %v4229
    %v4231 = vand.u32 %v4230, 4294901760
    %v4232 = vsub.f32 %v4230, %v4231
    %v4233 = vand.u32 %v4232, 4294901760
    %4234 = vmatpush.msra.mxu0 %v4233
    %v4235 = vand.u32 %v2851, 4294901760
    %v4236 = vsub.f32 %v2851, %v4235
    %v4237 = vand.u32 %v4236, 4294901760
    %v4238 = vsub.f32 %v4236, %v4237
    %v4239 = vand.u32 %v4238, 4294901760
    %4240 = vmatpush.msra.mxu0 %v4239
    %v4241 = vand.u32 %v2850, 4294901760
    %v4242 = vsub.f32 %v2850, %v4241
    %v4243 = vand.u32 %v4242, 4294901760
    %v4244 = vsub.f32 %v4242, %v4243
    %v4245 = vand.u32 %v4244, 4294901760
    %4246 = vmatpush.msra.mxu0 %v4245
    %v4247 = vand.u32 %v4180, 4294901760
    %4248 = vmatmul.f32.gmra.mxu0 %v4247
    %v4249 = vpop.f32.mrf.mxu0
    %v4250 = vadd.f32 %v4209, %v4249
    %4251 = vdwg.mxu0
    %4252 = vmatpush.msra.mxu0 0.0
    %4253 = vmatpush.msra.mxu0 0.0
    %4254 = vmatpush.msra.mxu0 0.0
    %4255 = vmatpush.msra.mxu0 0.0
    %4256 = vmatpush.msra.mxu0 0.0
    %4257 = vmatpush.msra.mxu0 0.0
    %4258 = vmatpush.msra.mxu0 0.0
    %4259 = vmatpush.msra.mxu0 0.0
    %4260 = vmatpush.msra.mxu0 0.0
    %4261 = vmatpush.msra.mxu0 0.0
    %4262 = vmatpush.msra.mxu0 0.0
    %4263 = vmatpush.msra.mxu0 0.0
    %v4264 = vand.u32 %v2853, 4294901760
    %v4265 = vsub.f32 %v2853, %v4264
    %4266 = vmatpush.msra.mxu0 %v4265
    %v4267 = vand.u32 %v2852, 4294901760
    %v4268 = vsub.f32 %v2852, %v4267
    %4269 = vmatpush.msra.mxu0 %v4268
    %v4270 = vand.u32 %v2851, 4294901760
    %v4271 = vsub.f32 %v2851, %v4270
    %4272 = vmatpush.msra.mxu0 %v4271
    %v4273 = vand.u32 %v2850, 4294901760
    %v4274 = vsub.f32 %v2850, %v4273
    %4275 = vmatpush.msra.mxu0 %v4274
    %v4276 = vand.u32 %v4180, 4294901760
    %v4277 = vsub.f32 %v4180, %v4276
    %4278 = vmatmul.f32.gmra.mxu0 %v4277
    %v4279 = vpop.f32.mrf.mxu0
    %v4280 = vadd.f32 %v4250, %v4279
    %4281 = vdwg.mxu0
    %4282 = vmatpush.msra.mxu0 0.0
    %4283 = vmatpush.msra.mxu0 0.0
    %4284 = vmatpush.msra.mxu0 0.0
    %4285 = vmatpush.msra.mxu0 0.0
    %4286 = vmatpush.msra.mxu0 0.0
    %4287 = vmatpush.msra.mxu0 0.0
    %4288 = vmatpush.msra.mxu0 0.0
    %4289 = vmatpush.msra.mxu0 0.0
    %4290 = vmatpush.msra.mxu0 0.0
    %4291 = vmatpush.msra.mxu0 0.0
    %4292 = vmatpush.msra.mxu0 0.0
    %4293 = vmatpush.msra.mxu0 0.0
    %v4294 = vand.u32 %v2853, 4294901760
    %4295 = vmatpush.msra.mxu0 %v4294
    %v4296 = vand.u32 %v2852, 4294901760
    %4297 = vmatpush.msra.mxu0 %v4296
    %v4298 = vand.u32 %v2851, 4294901760
    %4299 = vmatpush.msra.mxu0 %v4298
    %v4300 = vand.u32 %v2850, 4294901760
    %4301 = vmatpush.msra.mxu0 %v4300
    %v4302 = vand.u32 %v4180, 4294901760
    %v4303 = vsub.f32 %v4180, %v4302
    %v4304 = vand.u32 %v4303, 4294901760
    %4305 = vmatmul.f32.gmra.mxu0 %v4304
    %v4306 = vpop.f32.mrf.mxu0
    %v4307 = vadd.f32 %v4280, %v4306
    %4308 = vdwg.mxu0
    %4309 = vmatpush.msra.mxu0 0.0
    %4310 = vmatpush.msra.mxu0 0.0
    %4311 = vmatpush.msra.mxu0 0.0
    %4312 = vmatpush.msra.mxu0 0.0
    %4313 = vmatpush.msra.mxu0 0.0
    %4314 = vmatpush.msra.mxu0 0.0
    %4315 = vmatpush.msra.mxu0 0.0
    %4316 = vmatpush.msra.mxu0 0.0
    %4317 = vmatpush.msra.mxu0 0.0
    %4318 = vmatpush.msra.mxu0 0.0
    %4319 = vmatpush.msra.mxu0 0.0
    %4320 = vmatpush.msra.mxu0 0.0
    %v4321 = vand.u32 %v2853, 4294901760
    %v4322 = vsub.f32 %v2853, %v4321
    %v4323 = vand.u32 %v4322, 4294901760
    %4324 = vmatpush.msra.mxu0 %v4323
    %v4325 = vand.u32 %v2852, 4294901760
    %v4326 = vsub.f32 %v2852, %v4325
    %v4327 = vand.u32 %v4326, 4294901760
    %4328 = vmatpush.msra.mxu0 %v4327
    %v4329 = vand.u32 %v2851, 4294901760
    %v4330 = vsub.f32 %v2851, %v4329
    %v4331 = vand.u32 %v4330, 4294901760
    %4332 = vmatpush.msra.mxu0 %v4331
    %v4333 = vand.u32 %v2850, 4294901760
    %v4334 = vsub.f32 %v2850, %v4333
    %v4335 = vand.u32 %v4334, 4294901760
    %4336 = vmatpush.msra.mxu0 %v4335
    %v4337 = vand.u32 %v4180, 4294901760
    %4338 = vmatmul.f32.gmra.mxu0 %v4337
    %v4339 = vpop.f32.mrf.mxu0
    %v4340 = vadd.f32 %v4307, %v4339
    %4341 = vdwg.mxu0
    %4342 = vmatpush.msra.mxu0 0.0
    %4343 = vmatpush.msra.mxu0 0.0
    %4344 = vmatpush.msra.mxu0 0.0
    %4345 = vmatpush.msra.mxu0 0.0
    %4346 = vmatpush.msra.mxu0 0.0
    %4347 = vmatpush.msra.mxu0 0.0
    %4348 = vmatpush.msra.mxu0 0.0
    %4349 = vmatpush.msra.mxu0 0.0
    %4350 = vmatpush.msra.mxu0 0.0
    %4351 = vmatpush.msra.mxu0 0.0
    %4352 = vmatpush.msra.mxu0 0.0
    %4353 = vmatpush.msra.mxu0 0.0
    %v4354 = vand.u32 %v2853, 4294901760
    %4355 = vmatpush.msra.mxu0 %v4354
    %v4356 = vand.u32 %v2852, 4294901760
    %4357 = vmatpush.msra.mxu0 %v4356
    %v4358 = vand.u32 %v2851, 4294901760
    %4359 = vmatpush.msra.mxu0 %v4358
    %v4360 = vand.u32 %v2850, 4294901760
    %4361 = vmatpush.msra.mxu0 %v4360
    %v4362 = vand.u32 %v4180, 4294901760
    %4363 = vmatmul.f32.gmra.mxu0 %v4362
    %v4364 = vpop.f32.mrf.mxu0
    %v4365 = vadd.f32 %v4340, %v4364
    %4366 = vdwg.mxu0
    %v4367 = vadd.f32 %v4176, %v4365
    %v4368 = vxor.u32 %v4367, 2147483648
    %v4369 = vmul.f32 %v4368, 1.442695
    %v4370 = vpow.pop %v4369
    %v4371 = vadd.f32 %v4370, 1.0
    %v4372 = vrcp.pop %v4371
    %v4373 = vmul.f32 %v4371, %v4372
    %v4374 = vsub.f32 1.0, %v4373
    %v4375 = vmul.f32 %v4372, %v4374
    %v4376 = vadd.f32 %v4372, %v4375
    %vm4377 = vweird.f32 %v4371
    %vm4378 = vweird.f32 %v4372
    %vm4379 = vmor %vm4377, %vm4378
    %v4380 = vsel %vm4379, %v4372, %v4376
    %v4381 = vand.u32 2147483647, %v4371
    %vm4382 = vcmp.eq.f32.partialorder %v4381, 8.507059e+37
    %v4383 = vand.u32 %v4371, 2147483648
    %v4384 = vor.u32 1.1754944e-38, %v4383
    %v4385 = vsel %vm4382, %v4384, %v4380
    %v4386 = vmul.f32 1.0, %v4385
    %v4387 = vadd.f32 %v4365, %v3078
    %4389 = vrot.lane.b32.xlu0 %v4387, 64
    %v4390 = vpop.permute.xlu0 %4389
    %v4392 = vmul.f32 %v4386, %v4390
    %4394 = vrot.lane.b32.xlu0 %v4392, 64
    %v4395 = vpop.permute.xlu0 %4394
    %v4397 = vadd.f32 %v4176, %v4395
    %v4398 = vtanh.pop %v4397
    %v4399 = vsub.f32 %v3877, %v4398
    %4401 = vrot.lane.b32.xlu0 %v4399, 96
    %v4402 = vpop.permute.xlu0 %4401
    %v4404 = vmul.f32 %v4386, %v4402
    %4406 = vrot.lane.b32.xlu0 %v4404, 32
    %v4407 = vpop.permute.xlu0 %4406
    %v4409 = vadd.f32 %v4398, %v4407
    %4411 = vrot.lane.b32.xlu0 %v4164, 96
    %v4412 = vpop.permute.xlu0 %4411
    %v4414 = vsel %vm2866, %v4179, %v4412
    %v4416 = vsel %vm3343, %v4414, 0
    %4418 = vmatpush.msra.mxu0 0.0
    %4419 = vmatpush.msra.mxu0 0.0
    %4420 = vmatpush.msra.mxu0 0.0
    %4421 = vmatpush.msra.mxu0 0.0
    %4422 = vmatpush.msra.mxu0 0.0
    %4423 = vmatpush.msra.mxu0 0.0
    %4424 = vmatpush.msra.mxu0 0.0
    %4425 = vmatpush.msra.mxu0 0.0
    %v4426 = vand.u32 %v2862, 4294901760
    %4427 = vmatpush.msra.mxu0 %v4426
    %v4428 = vand.u32 %v2861, 4294901760
    %4429 = vmatpush.msra.mxu0 %v4428
    %v4430 = vand.u32 %v2860, 4294901760
    %4431 = vmatpush.msra.mxu0 %v4430
    %v4432 = vand.u32 %v2859, 4294901760
    %4433 = vmatpush.msra.mxu0 %v4432
    %v4434 = vand.u32 %v2858, 4294901760
    %4435 = vmatpush.msra.mxu0 %v4434
    %v4436 = vand.u32 %v2857, 4294901760
    %4437 = vmatpush.msra.mxu0 %v4436
    %v4438 = vand.u32 %v2856, 4294901760
    %4439 = vmatpush.msra.mxu0 %v4438
    %v4440 = vand.u32 %v2855, 4294901760
    %4441 = vmatpush.msra.mxu0 %v4440
    %v4442 = vand.u32 %v4416, 4294901760
    %v4443 = vsub.f32 %v4416, %v4442
    %v4444 = vand.u32 %v4443, 4294901760
    %v4445 = vsub.f32 %v4443, %v4444
    %v4446 = vand.u32 %v4445, 4294901760
    %4447 = vmatmul.f32.gmra.mxu0 %v4446
    %v4448 = vpop.f32.mrf.mxu0
    %v4449 = vadd.f32 %v3341, %v4448
    %4450 = vdwg.mxu0
    %4451 = vmatpush.msra.mxu0 0.0
    %4452 = vmatpush.msra.mxu0 0.0
    %4453 = vmatpush.msra.mxu0 0.0
    %4454 = vmatpush.msra.mxu0 0.0
    %4455 = vmatpush.msra.mxu0 0.0
    %4456 = vmatpush.msra.mxu0 0.0
    %4457 = vmatpush.msra.mxu0 0.0
    %4458 = vmatpush.msra.mxu0 0.0
    %v4459 = vand.u32 %v2862, 4294901760
    %v4460 = vsub.f32 %v2862, %v4459
    %v4461 = vand.u32 %v4460, 4294901760
    %v4462 = vsub.f32 %v4460, %v4461
    %v4463 = vand.u32 %v4462, 4294901760
    %4464 = vmatpush.msra.mxu0 %v4463
    %v4465 = vand.u32 %v2861, 4294901760
    %v4466 = vsub.f32 %v2861, %v4465
    %v4467 = vand.u32 %v4466, 4294901760
    %v4468 = vsub.f32 %v4466, %v4467
    %v4469 = vand.u32 %v4468, 4294901760
    %4470 = vmatpush.msra.mxu0 %v4469
    %v4471 = vand.u32 %v2860, 4294901760
    %v4472 = vsub.f32 %v2860, %v4471
    %v4473 = vand.u32 %v4472, 4294901760
    %v4474 = vsub.f32 %v4472, %v4473
    %v4475 = vand.u32 %v4474, 4294901760
    %4476 = vmatpush.msra.mxu0 %v4475
    %v4477 = vand.u32 %v2859, 4294901760
    %v4478 = vsub.f32 %v2859, %v4477
    %v4479 = vand.u32 %v4478, 4294901760
    %v4480 = vsub.f32 %v4478, %v4479
    %v4481 = vand.u32 %v4480, 4294901760
    %4482 = vmatpush.msra.mxu0 %v4481
    %v4483 = vand.u32 %v2858, 4294901760
    %v4484 = vsub.f32 %v2858, %v4483
    %v4485 = vand.u32 %v4484, 4294901760
    %v4486 = vsub.f32 %v4484, %v4485
    %v4487 = vand.u32 %v4486, 4294901760
    %4488 = vmatpush.msra.mxu0 %v4487
    %v4489 = vand.u32 %v2857, 4294901760
    %v4490 = vsub.f32 %v2857, %v4489
    %v4491 = vand.u32 %v4490, 4294901760
    %v4492 = vsub.f32 %v4490, %v4491
    %v4493 = vand.u32 %v4492, 4294901760
    %4494 = vmatpush.msra.mxu0 %v4493
    %v4495 = vand.u32 %v2856, 4294901760
    %v4496 = vsub.f32 %v2856, %v4495
    %v4497 = vand.u32 %v4496, 4294901760
    %v4498 = vsub.f32 %v4496, %v4497
    %v4499 = vand.u32 %v4498, 4294901760
    %4500 = vmatpush.msra.mxu0 %v4499
    %v4501 = vand.u32 %v2855, 4294901760
    %v4502 = vsub.f32 %v2855, %v4501
    %v4503 = vand.u32 %v4502, 4294901760
    %v4504 = vsub.f32 %v4502, %v4503
    %v4505 = vand.u32 %v4504, 4294901760
    %4506 = vmatpush.msra.mxu0 %v4505
    %v4507 = vand.u32 %v4416, 4294901760
    %4508 = vmatmul.f32.gmra.mxu0 %v4507
    %v4509 = vpop.f32.mrf.mxu0
    %v4510 = vadd.f32 %v4449, %v4509
    %4511 = vdwg.mxu0
    %4512 = vmatpush.msra.mxu0 0.0
    %4513 = vmatpush.msra.mxu0 0.0
    %4514 = vmatpush.msra.mxu0 0.0
    %4515 = vmatpush.msra.mxu0 0.0
    %4516 = vmatpush.msra.mxu0 0.0
    %4517 = vmatpush.msra.mxu0 0.0
    %4518 = vmatpush.msra.mxu0 0.0
    %4519 = vmatpush.msra.mxu0 0.0
    %v4520 = vand.u32 %v2862, 4294901760
    %v4521 = vsub.f32 %v2862, %v4520
    %4522 = vmatpush.msra.mxu0 %v4521
    %v4523 = vand.u32 %v2861, 4294901760
    %v4524 = vsub.f32 %v2861, %v4523
    %4525 = vmatpush.msra.mxu0 %v4524
    %v4526 = vand.u32 %v2860, 4294901760
    %v4527 = vsub.f32 %v2860, %v4526
    %4528 = vmatpush.msra.mxu0 %v4527
    %v4529 = vand.u32 %v2859, 4294901760
    %v4530 = vsub.f32 %v2859, %v4529
    %4531 = vmatpush.msra.mxu0 %v4530
    %v4532 = vand.u32 %v2858, 4294901760
    %v4533 = vsub.f32 %v2858, %v4532
    %4534 = vmatpush.msra.mxu0 %v4533
    %v4535 = vand.u32 %v2857, 4294901760
    %v4536 = vsub.f32 %v2857, %v4535
    %4537 = vmatpush.msra.mxu0 %v4536
    %v4538 = vand.u32 %v2856, 4294901760
    %v4539 = vsub.f32 %v2856, %v4538
    %4540 = vmatpush.msra.mxu0 %v4539
    %v4541 = vand.u32 %v2855, 4294901760
    %v4542 = vsub.f32 %v2855, %v4541
    %4543 = vmatpush.msra.mxu0 %v4542
    %v4544 = vand.u32 %v4416, 4294901760
    %v4545 = vsub.f32 %v4416, %v4544
    %4546 = vmatmul.f32.gmra.mxu0 %v4545
    %v4547 = vpop.f32.mrf.mxu0
    %v4548 = vadd.f32 %v4510, %v4547
    %4549 = vdwg.mxu0
    %4550 = vmatpush.msra.mxu0 0.0
    %4551 = vmatpush.msra.mxu0 0.0
    %4552 = vmatpush.msra.mxu0 0.0
    %4553 = vmatpush.msra.mxu0 0.0
    %4554 = vmatpush.msra.mxu0 0.0
    %4555 = vmatpush.msra.mxu0 0.0
    %4556 = vmatpush.msra.mxu0 0.0
    %4557 = vmatpush.msra.mxu0 0.0
    %v4558 = vand.u32 %v2862, 4294901760
    %4559 = vmatpush.msra.mxu0 %v4558
    %v4560 = vand.u32 %v2861, 4294901760
    %4561 = vmatpush.msra.mxu0 %v4560
    %v4562 = vand.u32 %v2860, 4294901760
    %4563 = vmatpush.msra.mxu0 %v4562
    %v4564 = vand.u32 %v2859, 4294901760
    %4565 = vmatpush.msra.mxu0 %v4564
    %v4566 = vand.u32 %v2858, 4294901760
    %4567 = vmatpush.msra.mxu0 %v4566
    %v4568 = vand.u32 %v2857, 4294901760
    %4569 = vmatpush.msra.mxu0 %v4568
    %v4570 = vand.u32 %v2856, 4294901760
    %4571 = vmatpush.msra.mxu0 %v4570
    %v4572 = vand.u32 %v2855, 4294901760
    %4573 = vmatpush.msra.mxu0 %v4572
    %v4574 = vand.u32 %v4416, 4294901760
    %v4575 = vsub.f32 %v4416, %v4574
    %v4576 = vand.u32 %v4575, 4294901760
    %4577 = vmatmul.f32.gmra.mxu0 %v4576
    %v4578 = vpop.f32.mrf.mxu0
    %v4579 = vadd.f32 %v4548, %v4578
    %4580 = vdwg.mxu0
    %4581 = vmatpush.msra.mxu0 0.0
    %4582 = vmatpush.msra.mxu0 0.0
    %4583 = vmatpush.msra.mxu0 0.0
    %4584 = vmatpush.msra.mxu0 0.0
    %4585 = vmatpush.msra.mxu0 0.0
    %4586 = vmatpush.msra.mxu0 0.0
    %4587 = vmatpush.msra.mxu0 0.0
    %4588 = vmatpush.msra.mxu0 0.0
    %v4589 = vand.u32 %v2862, 4294901760
    %v4590 = vsub.f32 %v2862, %v4589
    %v4591 = vand.u32 %v4590, 4294901760
    %4592 = vmatpush.msra.mxu0 %v4591
    %v4593 = vand.u32 %v2861, 4294901760
    %v4594 = vsub.f32 %v2861, %v4593
    %v4595 = vand.u32 %v4594, 4294901760
    %4596 = vmatpush.msra.mxu0 %v4595
    %v4597 = vand.u32 %v2860, 4294901760
    %v4598 = vsub.f32 %v2860, %v4597
    %v4599 = vand.u32 %v4598, 4294901760
    %4600 = vmatpush.msra.mxu0 %v4599
    %v4601 = vand.u32 %v2859, 4294901760
    %v4602 = vsub.f32 %v2859, %v4601
    %v4603 = vand.u32 %v4602, 4294901760
    %4604 = vmatpush.msra.mxu0 %v4603
    %v4605 = vand.u32 %v2858, 4294901760
    %v4606 = vsub.f32 %v2858, %v4605
    %v4607 = vand.u32 %v4606, 4294901760
    %4608 = vmatpush.msra.mxu0 %v4607
    %v4609 = vand.u32 %v2857, 4294901760
    %v4610 = vsub.f32 %v2857, %v4609
    %v4611 = vand.u32 %v4610, 4294901760
    %4612 = vmatpush.msra.mxu0 %v4611
    %v4613 = vand.u32 %v2856, 4294901760
    %v4614 = vsub.f32 %v2856, %v4613
    %v4615 = vand.u32 %v4614, 4294901760
    %4616 = vmatpush.msra.mxu0 %v4615
    %v4617 = vand.u32 %v2855, 4294901760
    %v4618 = vsub.f32 %v2855, %v4617
    %v4619 = vand.u32 %v4618, 4294901760
    %4620 = vmatpush.msra.mxu0 %v4619
    %v4621 = vand.u32 %v4416, 4294901760
    %4622 = vmatmul.f32.gmra.mxu0 %v4621
    %v4623 = vpop.f32.mrf.mxu0
    %v4624 = vadd.f32 %v4579, %v4623
    %4625 = vdwg.mxu0
    %4626 = vmatpush.msra.mxu0 0.0
    %4627 = vmatpush.msra.mxu0 0.0
    %4628 = vmatpush.msra.mxu0 0.0
    %4629 = vmatpush.msra.mxu0 0.0
    %4630 = vmatpush.msra.mxu0 0.0
    %4631 = vmatpush.msra.mxu0 0.0
    %4632 = vmatpush.msra.mxu0 0.0
    %4633 = vmatpush.msra.mxu0 0.0
    %v4634 = vand.u32 %v2862, 4294901760
    %4635 = vmatpush.msra.mxu0 %v4634
    %v4636 = vand.u32 %v2861, 4294901760
    %4637 = vmatpush.msra.mxu0 %v4636
    %v4638 = vand.u32 %v2860, 4294901760
    %4639 = vmatpush.msra.mxu0 %v4638
    %v4640 = vand.u32 %v2859, 4294901760
    %4641 = vmatpush.msra.mxu0 %v4640
    %v4642 = vand.u32 %v2858, 4294901760
    %4643 = vmatpush.msra.mxu0 %v4642
    %v4644 = vand.u32 %v2857, 4294901760
    %4645 = vmatpush.msra.mxu0 %v4644
    %v4646 = vand.u32 %v2856, 4294901760
    %4647 = vmatpush.msra.mxu0 %v4646
    %v4648 = vand.u32 %v2855, 4294901760
    %4649 = vmatpush.msra.mxu0 %v4648
    %v4650 = vand.u32 %v4416, 4294901760
    %4651 = vmatmul.f32.gmra.mxu0 %v4650
    %v4652 = vpop.f32.mrf.mxu0
    %v4653 = vadd.f32 %v4624, %v4652
    %4654 = vdwg.mxu0
    %v4655 = vxor.u32 %v4653, 2147483648
    %v4656 = vmul.f32 %v4655, 1.442695
    %v4657 = vpow.pop %v4656
    %v4658 = vadd.f32 %v4657, 1.0
    %v4659 = vrcp.pop %v4658
    %v4660 = vmul.f32 %v4658, %v4659
    %v4661 = vsub.f32 1.0, %v4660
    %v4662 = vmul.f32 %v4659, %v4661
    %v4663 = vadd.f32 %v4659, %v4662
    %vm4664 = vweird.f32 %v4658
    %vm4665 = vweird.f32 %v4659
    %vm4666 = vmor %vm4664, %vm4665
    %v4667 = vsel %vm4666, %v4659, %v4663
    %v4668 = vand.u32 2147483647, %v4658
    %vm4669 = vcmp.eq.f32.partialorder %v4668, 8.507059e+37
    %v4670 = vand.u32 %v4658, 2147483648
    %v4671 = vor.u32 1.1754944e-38, %v4670
    %v4672 = vsel %vm4669, %v4671, %v4667
    %v4673 = vmul.f32 1.0, %v4672
    %4675 = vrot.lane.b32.xlu0 %v4653, 32
    %v4676 = vpop.permute.xlu0 %4675
    %v4678 = vmul.f32 %v4673, %v4676
    %4680 = vrot.lane.b32.xlu0 %v4678, 64
    %v4681 = vpop.permute.xlu0 %4680
    %v4683 = vadd.f32 %v4653, %v4681
    %v4684 = vtanh.pop %v4683
    %v4685 = vsub.f32 %v4164, %v4684
    %4687 = vrot.lane.b32.xlu0 %v4685, 96
    %v4688 = vpop.permute.xlu0 %4687
    %v4690 = vmul.f32 %v4673, %v4688
    %4692 = vrot.lane.b32.xlu0 %v4690, 32
    %v4693 = vpop.permute.xlu0 %4692
    %v4695 = vadd.f32 %v4684, %v4693
    %4697 = vrot.lane.b32.xlu0 %v4695, 64
    %v4698 = vpop.permute.xlu0 %4697
    %s4700 = scalar_lea.vmem [#allocation3], %s3641
    %4701 = vst.msk [vmem:[%s4700] sm:$0xff] %vm2866, %v4698
  $region54: #{decoder_forward.1} parent=0 // loop_footer
    %s3635 = sadd.s32 1, %s3631
  $region55: #{decoder_forward.1} parent=0 // loop_footer_branch
    %3630 = sbr.rel target = $region51
  $region56: #{decoder_forward.1} parent=0 // loop_exit
    _
  %4703 = vrot.lane.b32.xlu0 %v3636, 64
  %v4704 = vpop.permute.xlu0 %4703
  %4707 = vrot.lane.b32.xlu0 %v3637, 96
  %v4708 = vpop.permute.xlu0 %4707
  %v4710 = vsel %vm2866, %v4704, %v4708
  %v4712 = vsel %vm3343, %v4710, 0
  %4714 = vmatpush.msra.mxu0 0.0
  %4715 = vmatpush.msra.mxu0 0.0
  %4716 = vmatpush.msra.mxu0 0.0
  %4717 = vmatpush.msra.mxu0 0.0
  %4718 = vmatpush.msra.mxu0 0.0
  %4719 = vmatpush.msra.mxu0 0.0
  %4720 = vmatpush.msra.mxu0 0.0
  %4721 = vmatpush.msra.mxu0 0.0
  %v4722 = vand.u32 %v2862, 4294901760
  %4723 = vmatpush.msra.mxu0 %v4722
  %v4724 = vand.u32 %v2861, 4294901760
  %4725 = vmatpush.msra.mxu0 %v4724
  %v4726 = vand.u32 %v2860, 4294901760
  %4727 = vmatpush.msra.mxu0 %v4726
  %v4728 = vand.u32 %v2859, 4294901760
  %4729 = vmatpush.msra.mxu0 %v4728
  %v4730 = vand.u32 %v2858, 4294901760
  %4731 = vmatpush.msra.mxu0 %v4730
  %v4732 = vand.u32 %v2857, 4294901760
  %4733 = vmatpush.msra.mxu0 %v4732
  %v4734 = vand.u32 %v2856, 4294901760
  %4735 = vmatpush.msra.mxu0 %v4734
  %v4736 = vand.u32 %v2855, 4294901760
  %4737 = vmatpush.msra.mxu0 %v4736
  %v4738 = vand.u32 %v4712, 4294901760
  %v4739 = vsub.f32 %v4712, %v4738
  %v4740 = vand.u32 %v4739, 4294901760
  %v4741 = vsub.f32 %v4739, %v4740
  %v4742 = vand.u32 %v4741, 4294901760
  %4743 = vmatmul.f32.gmra.mxu0 %v4742
  %v4744 = vpop.f32.mrf.mxu0
  %v4745 = vadd.f32 %v3341, %v4744
  %4746 = vdwg.mxu0
  %4747 = vmatpush.msra.mxu0 0.0
  %4748 = vmatpush.msra.mxu0 0.0
  %4749 = vmatpush.msra.mxu0 0.0
  %4750 = vmatpush.msra.mxu0 0.0
  %4751 = vmatpush.msra.mxu0 0.0
  %4752 = vmatpush.msra.mxu0 0.0
  %4753 = vmatpush.msra.mxu0 0.0
  %4754 = vmatpush.msra.mxu0 0.0
  %v4755 = vand.u32 %v2862, 4294901760
  %v4756 = vsub.f32 %v2862, %v4755
  %v4757 = vand.u32 %v4756, 4294901760
  %v4758 = vsub.f32 %v4756, %v4757
  %v4759 = vand.u32 %v4758, 4294901760
  %4760 = vmatpush.msra.mxu0 %v4759
  %v4761 = vand.u32 %v2861, 4294901760
  %v4762 = vsub.f32 %v2861, %v4761
  %v4763 = vand.u32 %v4762, 4294901760
  %v4764 = vsub.f32 %v4762, %v4763
  %v4765 = vand.u32 %v4764, 4294901760
  %4766 = vmatpush.msra.mxu0 %v4765
  %v4767 = vand.u32 %v2860, 4294901760
  %v4768 = vsub.f32 %v2860, %v4767
  %v4769 = vand.u32 %v4768, 4294901760
  %v4770 = vsub.f32 %v4768, %v4769
  %v4771 = vand.u32 %v4770, 4294901760
  %4772 = vmatpush.msra.mxu0 %v4771
  %v4773 = vand.u32 %v2859, 4294901760
  %v4774 = vsub.f32 %v2859, %v4773
  %v4775 = vand.u32 %v4774, 4294901760
  %v4776 = vsub.f32 %v4774, %v4775
  %v4777 = vand.u32 %v4776, 4294901760
  %4778 = vmatpush.msra.mxu0 %v4777
  %v4779 = vand.u32 %v2858, 4294901760
  %v4780 = vsub.f32 %v2858, %v4779
  %v4781 = vand.u32 %v4780, 4294901760
  %v4782 = vsub.f32 %v4780, %v4781
  %v4783 = vand.u32 %v4782, 4294901760
  %4784 = vmatpush.msra.mxu0 %v4783
  %v4785 = vand.u32 %v2857, 4294901760
  %v4786 = vsub.f32 %v2857, %v4785
  %v4787 = vand.u32 %v4786, 4294901760
  %v4788 = vsub.f32 %v4786, %v4787
  %v4789 = vand.u32 %v4788, 4294901760
  %4790 = vmatpush.msra.mxu0 %v4789
  %v4791 = vand.u32 %v2856, 4294901760
  %v4792 = vsub.f32 %v2856, %v4791
  %v4793 = vand.u32 %v4792, 4294901760
  %v4794 = vsub.f32 %v4792, %v4793
  %v4795 = vand.u32 %v4794, 4294901760
  %4796 = vmatpush.msra.mxu0 %v4795
  %v4797 = vand.u32 %v2855, 4294901760
  %v4798 = vsub.f32 %v2855, %v4797
  %v4799 = vand.u32 %v4798, 4294901760
  %v4800 = vsub.f32 %v4798, %v4799
  %v4801 = vand.u32 %v4800, 4294901760
  %4802 = vmatpush.msra.mxu0 %v4801
  %v4803 = vand.u32 %v4712, 4294901760
  %4804 = vmatmul.f32.gmra.mxu0 %v4803
  %v4805 = vpop.f32.mrf.mxu0
  %v4806 = vadd.f32 %v4745, %v4805
  %4807 = vdwg.mxu0
  %4808 = vmatpush.msra.mxu0 0.0
  %4809 = vmatpush.msra.mxu0 0.0
  %4810 = vmatpush.msra.mxu0 0.0
  %4811 = vmatpush.msra.mxu0 0.0
  %4812 = vmatpush.msra.mxu0 0.0
  %4813 = vmatpush.msra.mxu0 0.0
  %4814 = vmatpush.msra.mxu0 0.0
  %4815 = vmatpush.msra.mxu0 0.0
  %v4816 = vand.u32 %v2862, 4294901760
  %v4817 = vsub.f32 %v2862, %v4816
  %4818 = vmatpush.msra.mxu0 %v4817
  %v4819 = vand.u32 %v2861, 4294901760
  %v4820 = vsub.f32 %v2861, %v4819
  %4821 = vmatpush.msra.mxu0 %v4820
  %v4822 = vand.u32 %v2860, 4294901760
  %v4823 = vsub.f32 %v2860, %v4822
  %4824 = vmatpush.msra.mxu0 %v4823
  %v4825 = vand.u32 %v2859, 4294901760
  %v4826 = vsub.f32 %v2859, %v4825
  %4827 = vmatpush.msra.mxu0 %v4826
  %v4828 = vand.u32 %v2858, 4294901760
  %v4829 = vsub.f32 %v2858, %v4828
  %4830 = vmatpush.msra.mxu0 %v4829
  %v4831 = vand.u32 %v2857, 4294901760
  %v4832 = vsub.f32 %v2857, %v4831
  %4833 = vmatpush.msra.mxu0 %v4832
  %v4834 = vand.u32 %v2856, 4294901760
  %v4835 = vsub.f32 %v2856, %v4834
  %4836 = vmatpush.msra.mxu0 %v4835
  %v4837 = vand.u32 %v2855, 4294901760
  %v4838 = vsub.f32 %v2855, %v4837
  %4839 = vmatpush.msra.mxu0 %v4838
  %v4840 = vand.u32 %v4712, 4294901760
  %v4841 = vsub.f32 %v4712, %v4840
  %4842 = vmatmul.f32.gmra.mxu0 %v4841
  %v4843 = vpop.f32.mrf.mxu0
  %v4844 = vadd.f32 %v4806, %v4843
  %4845 = vdwg.mxu0
  %4846 = vmatpush.msra.mxu0 0.0
  %4847 = vmatpush.msra.mxu0 0.0
  %4848 = vmatpush.msra.mxu0 0.0
  %4849 = vmatpush.msra.mxu0 0.0
  %4850 = vmatpush.msra.mxu0 0.0
  %4851 = vmatpush.msra.mxu0 0.0
  %4852 = vmatpush.msra.mxu0 0.0
  %4853 = vmatpush.msra.mxu0 0.0
  %v4854 = vand.u32 %v2862, 4294901760
  %4855 = vmatpush.msra.mxu0 %v4854
  %v4856 = vand.u32 %v2861, 4294901760
  %4857 = vmatpush.msra.mxu0 %v4856
  %v4858 = vand.u32 %v2860, 4294901760
  %4859 = vmatpush.msra.mxu0 %v4858
  %v4860 = vand.u32 %v2859, 4294901760
  %4861 = vmatpush.msra.mxu0 %v4860
  %v4862 = vand.u32 %v2858, 4294901760
  %4863 = vmatpush.msra.mxu0 %v4862
  %v4864 = vand.u32 %v2857, 4294901760
  %4865 = vmatpush.msra.mxu0 %v4864
  %v4866 = vand.u32 %v2856, 4294901760
  %4867 = vmatpush.msra.mxu0 %v4866
  %v4868 = vand.u32 %v2855, 4294901760
  %4869 = vmatpush.msra.mxu0 %v4868
  %v4870 = vand.u32 %v4712, 4294901760
  %v4871 = vsub.f32 %v4712, %v4870
  %v4872 = vand.u32 %v4871, 4294901760
  %4873 = vmatmul.f32.gmra.mxu0 %v4872
  %v4874 = vpop.f32.mrf.mxu0
  %v4875 = vadd.f32 %v4844, %v4874
  %4876 = vdwg.mxu0
  %4877 = vmatpush.msra.mxu0 0.0
  %4878 = vmatpush.msra.mxu0 0.0
  %4879 = vmatpush.msra.mxu0 0.0
  %4880 = vmatpush.msra.mxu0 0.0
  %4881 = vmatpush.msra.mxu0 0.0
  %4882 = vmatpush.msra.mxu0 0.0
  %4883 = vmatpush.msra.mxu0 0.0
  %4884 = vmatpush.msra.mxu0 0.0
  %v4885 = vand.u32 %v2862, 4294901760
  %v4886 = vsub.f32 %v2862, %v4885
  %v4887 = vand.u32 %v4886, 4294901760
  %4888 = vmatpush.msra.mxu0 %v4887
  %v4889 = vand.u32 %v2861, 4294901760
  %v4890 = vsub.f32 %v2861, %v4889
  %v4891 = vand.u32 %v4890, 4294901760
  %4892 = vmatpush.msra.mxu0 %v4891
  %v4893 = vand.u32 %v2860, 4294901760
  %v4894 = vsub.f32 %v2860, %v4893
  %v4895 = vand.u32 %v4894, 4294901760
  %4896 = vmatpush.msra.mxu0 %v4895
  %v4897 = vand.u32 %v2859, 4294901760
  %v4898 = vsub.f32 %v2859, %v4897
  %v4899 = vand.u32 %v4898, 4294901760
  %4900 = vmatpush.msra.mxu0 %v4899
  %v4901 = vand.u32 %v2858, 4294901760
  %v4902 = vsub.f32 %v2858, %v4901
  %v4903 = vand.u32 %v4902, 4294901760
  %4904 = vmatpush.msra.mxu0 %v4903
  %v4905 = vand.u32 %v2857, 4294901760
  %v4906 = vsub.f32 %v2857, %v4905
  %v4907 = vand.u32 %v4906, 4294901760
  %4908 = vmatpush.msra.mxu0 %v4907
  %v4909 = vand.u32 %v2856, 4294901760
  %v4910 = vsub.f32 %v2856, %v4909
  %v4911 = vand.u32 %v4910, 4294901760
  %4912 = vmatpush.msra.mxu0 %v4911
  %v4913 = vand.u32 %v2855, 4294901760
  %v4914 = vsub.f32 %v2855, %v4913
  %v4915 = vand.u32 %v4914, 4294901760
  %4916 = vmatpush.msra.mxu0 %v4915
  %v4917 = vand.u32 %v4712, 4294901760
  %4918 = vmatmul.f32.gmra.mxu0 %v4917
  %v4919 = vpop.f32.mrf.mxu0
  %v4920 = vadd.f32 %v4875, %v4919
  %4921 = vdwg.mxu0
  %4922 = vmatpush.msra.mxu0 0.0
  %4923 = vmatpush.msra.mxu0 0.0
  %4924 = vmatpush.msra.mxu0 0.0
  %4925 = vmatpush.msra.mxu0 0.0
  %4926 = vmatpush.msra.mxu0 0.0
  %4927 = vmatpush.msra.mxu0 0.0
  %4928 = vmatpush.msra.mxu0 0.0
  %4929 = vmatpush.msra.mxu0 0.0
  %v4930 = vand.u32 %v2862, 4294901760
  %4931 = vmatpush.msra.mxu0 %v4930
  %v4932 = vand.u32 %v2861, 4294901760
  %4933 = vmatpush.msra.mxu0 %v4932
  %v4934 = vand.u32 %v2860, 4294901760
  %4935 = vmatpush.msra.mxu0 %v4934
  %v4936 = vand.u32 %v2859, 4294901760
  %4937 = vmatpush.msra.mxu0 %v4936
  %v4938 = vand.u32 %v2858, 4294901760
  %4939 = vmatpush.msra.mxu0 %v4938
  %v4940 = vand.u32 %v2857, 4294901760
  %4941 = vmatpush.msra.mxu0 %v4940
  %v4942 = vand.u32 %v2856, 4294901760
  %4943 = vmatpush.msra.mxu0 %v4942
  %v4944 = vand.u32 %v2855, 4294901760
  %4945 = vmatpush.msra.mxu0 %v4944
  %v4946 = vand.u32 %v4712, 4294901760
  %4947 = vmatmul.f32.gmra.mxu0 %v4946
  %v4948 = vpop.f32.mrf.mxu0
  %v4949 = vadd.f32 %v4920, %v4948
  %4950 = vdwg.mxu0
  %v4951 = vxor.u32 %v4949, 2147483648
  %v4952 = vmul.f32 %v4951, 1.442695
  %v4953 = vpow.pop %v4952
  %v4954 = vadd.f32 %v4953, 1.0
  %v4955 = vrcp.pop %v4954
  %v4956 = vmul.f32 %v4954, %v4955
  %v4957 = vsub.f32 1.0, %v4956
  %v4958 = vmul.f32 %v4955, %v4957
  %v4959 = vadd.f32 %v4955, %v4958
  %vm4960 = vweird.f32 %v4954
  %vm4961 = vweird.f32 %v4955
  %vm4962 = vmor %vm4960, %vm4961
  %v4963 = vsel %vm4962, %v4955, %v4959
  %v4964 = vand.u32 2147483647, %v4954
  %vm4965 = vcmp.eq.f32.partialorder %v4964, 8.507059e+37
  %v4966 = vand.u32 %v4954, 2147483648
  %v4967 = vor.u32 1.1754944e-38, %v4966
  %v4968 = vsel %vm4965, %v4967, %v4963
  %v4969 = vmul.f32 1.0, %v4968
  %4971 = vrot.lane.b32.xlu0 %v4949, 32
  %v4972 = vpop.permute.xlu0 %4971
  %v4974 = vmul.f32 %v4969, %v4972
  %4976 = vrot.lane.b32.xlu0 %v4974, 64
  %v4977 = vpop.permute.xlu0 %4976
  %v4979 = vadd.f32 %v4949, %v4977
  %v4980 = vtanh.pop %v4979
  %v4981 = vsub.f32 %v3637, %v4980
  %4983 = vrot.lane.b32.xlu0 %v4981, 96
  %v4984 = vpop.permute.xlu0 %4983
  %v4986 = vmul.f32 %v4969, %v4984
  %4988 = vrot.lane.b32.xlu0 %v4986, 32
  %v4989 = vpop.permute.xlu0 %4988
  %v4991 = vadd.f32 %v4980, %v4989
  %4993 = vrot.lane.b32.xlu0 %v4991, 64
  %v4994 = vpop.permute.xlu0 %4993
  %4996 = vst.msk [vmem:[#allocation3 + $0x1a8] sm:$0xff] %vm2866, %v4994
  %v4997 = vld [vmem:[#allocation3] sm:$0xff]
  %v4998 = vld [vmem:[#allocation3 + $0x8] sm:$0xff]
  %v4999 = vld [vmem:[#allocation3 + $0x10] sm:$0xff]
  %v5000 = vld [vmem:[#allocation3 + $0x18] sm:$0xff]
  %v5001 = vld [vmem:[#allocation3 + $0x20] sm:$0xff]
  %v5002 = vld [vmem:[#allocation3 + $0x28] sm:$0xff]
  %v5003 = vld [vmem:[#allocation3 + $0x30] sm:$0xff]
  %v5004 = vld [vmem:[#allocation3 + $0x38] sm:$0xff]
  %v5005 = vld [vmem:[#allocation3 + $0x40] sm:$0xff]
  %v5006 = vld [vmem:[#allocation3 + $0x48] sm:$0xff]
  %v5007 = vld [vmem:[#allocation3 + $0x50] sm:$0xff]
  %v5008 = vld [vmem:[#allocation3 + $0x58] sm:$0xff]
  %v5009 = vld [vmem:[#allocation3 + $0x60] sm:$0xff]
  %v5010 = vld [vmem:[#allocation3 + $0x68] sm:$0xff]
  %v5011 = vld [vmem:[#allocation3 + $0x70] sm:$0xff]
  %v5012 = vld [vmem:[#allocation3 + $0x78] sm:$0xff]
  %v5013 = vld [vmem:[#allocation3 + $0x80] sm:$0xff]
  %v5014 = vld [vmem:[#allocation3 + $0x88] sm:$0xff]
  %v5015 = vld [vmem:[#allocation3 + $0x90] sm:$0xff]
  %v5016 = vld [vmem:[#allocation3 + $0x98] sm:$0xff]
  %v5017 = vld [vmem:[#allocation3 + $0xa0] sm:$0xff]
  %v5018 = vld [vmem:[#allocation3 + $0xa8] sm:$0xff]
  %v5019 = vld [vmem:[#allocation3 + $0xb0] sm:$0xff]
  %v5020 = vld [vmem:[#allocation3 + $0xb8] sm:$0xff]
  %v5021 = vld [vmem:[#allocation3 + $0xc0] sm:$0xff]
  %v5022 = vld [vmem:[#allocation3 + $0xc8] sm:$0xff]
  %v5023 = vld [vmem:[#allocation3 + $0xd0] sm:$0xff]
  %v5024 = vld [vmem:[#allocation3 + $0xd8] sm:$0xff]
  %v5025 = vld [vmem:[#allocation3 + $0xe0] sm:$0xff]
  %v5026 = vld [vmem:[#allocation3 + $0xe8] sm:$0xff]
  %v5027 = vld [vmem:[#allocation3 + $0xf0] sm:$0xff]
  %v5028 = vld [vmem:[#allocation3 + $0xf8] sm:$0xff]
  %v5029 = vld [vmem:[#allocation3 + $0x100] sm:$0xff]
  %v5030 = vld [vmem:[#allocation3 + $0x108] sm:$0xff]
  %v5031 = vld [vmem:[#allocation3 + $0x110] sm:$0xff]
  %v5032 = vld [vmem:[#allocation3 + $0x118] sm:$0xff]
  %v5033 = vld [vmem:[#allocation3 + $0x120] sm:$0xff]
  %v5034 = vld [vmem:[#allocation3 + $0x128] sm:$0xff]
  %v5035 = vld [vmem:[#allocation3 + $0x130] sm:$0xff]
  %v5036 = vld [vmem:[#allocation3 + $0x138] sm:$0xff]
  %v5037 = vld [vmem:[#allocation3 + $0x140] sm:$0xff]
  %v5038 = vld [vmem:[#allocation3 + $0x148] sm:$0xff]
  %v5039 = vld [vmem:[#allocation3 + $0x150] sm:$0xff]
  %v5040 = vld [vmem:[#allocation3 + $0x158] sm:$0xff]
  %v5041 = vld [vmem:[#allocation3 + $0x160] sm:$0xff]
  %v5042 = vld [vmem:[#allocation3 + $0x168] sm:$0xff]
  %v5043 = vld [vmem:[#allocation3 + $0x170] sm:$0xff]
  %v5044 = vld [vmem:[#allocation3 + $0x178] sm:$0xff]
  %v5045 = vld [vmem:[#allocation3 + $0x180] sm:$0xff]
  %v5046 = vld [vmem:[#allocation3 + $0x188] sm:$0xff]
  %v5047 = vld [vmem:[#allocation3 + $0x190] sm:$0xff]
  %v5048 = vld [vmem:[#allocation3 + $0x198] sm:$0xff]
  %v5049 = vld [vmem:[#allocation3 + $0x1a0] sm:$0xff]
  %v5050 = vld [vmem:[#allocation3 + $0x1a8] sm:$0xff]
  %v5051 = vld [vmem:[%s10] sm:$0xff]
  %v5052 = vld [vmem:[%s10 + $0x8] sm:$0xff]
  %v5053 = vld [vmem:[%s10 + $0x10] sm:$0xff]
  %v5054 = vld [vmem:[%s10 + $0x18] sm:$0xff]
  %v5055 = vld [vmem:[%s11] sm:$0x1]
  %v5057 = vperm.slane %v5055, 0
  %v5060 = vsel %vm2866, %v4997, 0
  %v5063 = vsel %vm2866, %v4998, 0
  %v5066 = vsel %vm2866, %v4999, 0
  %v5069 = vsel %vm2866, %v5000, 0
  %v5072 = vsel %vm2866, %v5001, 0
  %v5075 = vsel %vm2866, %v5002, 0
  %v5078 = vsel %vm2866, %v5003, 0
  %v5081 = vsel %vm2866, %v5004, 0
  %v5084 = vsel %vm2866, %v5005, 0
  %v5087 = vsel %vm2866, %v5006, 0
  %v5090 = vsel %vm2866, %v5007, 0
  %v5093 = vsel %vm2866, %v5008, 0
  %v5096 = vsel %vm2866, %v5009, 0
  %v5099 = vsel %vm2866, %v5010, 0
  %v5102 = vsel %vm2866, %v5011, 0
  %v5105 = vsel %vm2866, %v5012, 0
  %v5108 = vsel %vm2866, %v5013, 0
  %v5111 = vsel %vm2866, %v5014, 0
  %v5114 = vsel %vm2866, %v5015, 0
  %v5117 = vsel %vm2866, %v5016, 0
  %v5120 = vsel %vm2866, %v5017, 0
  %v5123 = vsel %vm2866, %v5018, 0
  %v5126 = vsel %vm2866, %v5019, 0
  %v5129 = vsel %vm2866, %v5020, 0
  %v5132 = vsel %vm2866, %v5021, 0
  %v5135 = vsel %vm2866, %v5022, 0
  %v5138 = vsel %vm2866, %v5023, 0
  %v5141 = vsel %vm2866, %v5024, 0
  %v5144 = vsel %vm2866, %v5025, 0
  %v5147 = vsel %vm2866, %v5026, 0
  %v5150 = vsel %vm2866, %v5027, 0
  %v5153 = vsel %vm2866, %v5028, 0
  %v5156 = vsel %vm2866, %v5029, 0
  %v5159 = vsel %vm2866, %v5030, 0
  %v5162 = vsel %vm2866, %v5031, 0
  %v5165 = vsel %vm2866, %v5032, 0
  %v5168 = vsel %vm2866, %v5033, 0
  %v5171 = vsel %vm2866, %v5034, 0
  %v5174 = vsel %vm2866, %v5035, 0
  %v5177 = vsel %vm2866, %v5036, 0
  %v5180 = vsel %vm2866, %v5037, 0
  %v5183 = vsel %vm2866, %v5038, 0
  %v5186 = vsel %vm2866, %v5039, 0
  %v5189 = vsel %vm2866, %v5040, 0
  %v5192 = vsel %vm2866, %v5041, 0
  %v5195 = vsel %vm2866, %v5042, 0
  %v5198 = vsel %vm2866, %v5043, 0
  %v5201 = vsel %vm2866, %v5044, 0
  %v5204 = vsel %vm2866, %v5045, 0
  %v5207 = vsel %vm2866, %v5046, 0
  %v5210 = vsel %vm2866, %v5047, 0
  %v5213 = vsel %vm2866, %v5048, 0
  %v5216 = vsel %vm2866, %v5049, 0
  %v5219 = vsel %vm2866, %v5050, 0
  %5221 = vmatpush.msra.mxu0 0.0
  %5222 = vmatpush.msra.mxu0 0.0
  %5223 = vmatpush.msra.mxu0 0.0
  %5224 = vmatpush.msra.mxu0 0.0
  %5225 = vmatpush.msra.mxu0 0.0
  %5226 = vmatpush.msra.mxu0 0.0
  %5227 = vmatpush.msra.mxu0 0.0
  %5228 = vmatpush.msra.mxu0 0.0
  %5229 = vmatpush.msra.mxu0 0.0
  %5230 = vmatpush.msra.mxu0 0.0
  %5231 = vmatpush.msra.mxu0 0.0
  %5232 = vmatpush.msra.mxu0 0.0
  %v5233 = vand.u32 %v5054, 4294901760
  %5234 = vmatpush.msra.mxu0 %v5233
  %v5235 = vand.u32 %v5053, 4294901760
  %5236 = vmatpush.msra.mxu0 %v5235
  %v5237 = vand.u32 %v5052, 4294901760
  %5238 = vmatpush.msra.mxu0 %v5237
  %v5239 = vand.u32 %v5051, 4294901760
  %5240 = vmatpush.msra.mxu0 %v5239
  %v5241 = vand.u32 %v5060, 4294901760
  %v5242 = vsub.f32 %v5060, %v5241
  %v5243 = vand.u32 %v5242, 4294901760
  %v5244 = vsub.f32 %v5242, %v5243
  %v5245 = vand.u32 %v5244, 4294901760
  %5246 = vmatmul.f32.gmra.mxu0 %v5245
  %v5247 = vpop.f32.mrf.mxu0
  %v5248 = vadd.f32 %v5057, %v5247
  %v5249 = vand.u32 %v5063, 4294901760
  %v5250 = vsub.f32 %v5063, %v5249
  %v5251 = vand.u32 %v5250, 4294901760
  %v5252 = vsub.f32 %v5250, %v5251
  %v5253 = vand.u32 %v5252, 4294901760
  %5254 = vmatmul.f32.gmra.mxu0 %v5253
  %v5255 = vpop.f32.mrf.mxu0
  %v5256 = vadd.f32 %v5057, %v5255
  %v5257 = vand.u32 %v5066, 4294901760
  %v5258 = vsub.f32 %v5066, %v5257
  %v5259 = vand.u32 %v5258, 4294901760
  %v5260 = vsub.f32 %v5258, %v5259
  %v5261 = vand.u32 %v5260, 4294901760
  %5262 = vmatmul.f32.gmra.mxu0 %v5261
  %v5263 = vpop.f32.mrf.mxu0
  %v5264 = vadd.f32 %v5057, %v5263
  %v5265 = vand.u32 %v5069, 4294901760
  %v5266 = vsub.f32 %v5069, %v5265
  %v5267 = vand.u32 %v5266, 4294901760
  %v5268 = vsub.f32 %v5266, %v5267
  %v5269 = vand.u32 %v5268, 4294901760
  %5270 = vmatmul.f32.gmra.mxu0 %v5269
  %v5271 = vpop.f32.mrf.mxu0
  %v5272 = vadd.f32 %v5057, %v5271
  %v5273 = vand.u32 %v5072, 4294901760
  %v5274 = vsub.f32 %v5072, %v5273
  %v5275 = vand.u32 %v5274, 4294901760
  %v5276 = vsub.f32 %v5274, %v5275
  %v5277 = vand.u32 %v5276, 4294901760
  %5278 = vmatmul.f32.gmra.mxu0 %v5277
  %v5279 = vpop.f32.mrf.mxu0
  %v5280 = vadd.f32 %v5057, %v5279
  %v5281 = vand.u32 %v5075, 4294901760
  %v5282 = vsub.f32 %v5075, %v5281
  %v5283 = vand.u32 %v5282, 4294901760
  %v5284 = vsub.f32 %v5282, %v5283
  %v5285 = vand.u32 %v5284, 4294901760
  %5286 = vmatmul.f32.gmra.mxu0 %v5285
  %v5287 = vpop.f32.mrf.mxu0
  %v5288 = vadd.f32 %v5057, %v5287
  %v5289 = vand.u32 %v5078, 4294901760
  %v5290 = vsub.f32 %v5078, %v5289
  %v5291 = vand.u32 %v5290, 4294901760
  %v5292 = vsub.f32 %v5290, %v5291
  %v5293 = vand.u32 %v5292, 4294901760
  %5294 = vmatmul.f32.gmra.mxu0 %v5293
  %v5295 = vpop.f32.mrf.mxu0
  %v5296 = vadd.f32 %v5057, %v5295
  %v5297 = vand.u32 %v5081, 4294901760
  %v5298 = vsub.f32 %v5081, %v5297
  %v5299 = vand.u32 %v5298, 4294901760
  %v5300 = vsub.f32 %v5298, %v5299
  %v5301 = vand.u32 %v5300, 4294901760
  %5302 = vmatmul.f32.gmra.mxu0 %v5301
  %v5303 = vpop.f32.mrf.mxu0
  %v5304 = vadd.f32 %v5057, %v5303
  %v5305 = vand.u32 %v5084, 4294901760
  %v5306 = vsub.f32 %v5084, %v5305
  %v5307 = vand.u32 %v5306, 4294901760
  %v5308 = vsub.f32 %v5306, %v5307
  %v5309 = vand.u32 %v5308, 4294901760
  %5310 = vmatmul.f32.gmra.mxu0 %v5309
  %v5311 = vpop.f32.mrf.mxu0
  %v5312 = vadd.f32 %v5057, %v5311
  %v5313 = vand.u32 %v5087, 4294901760
  %v5314 = vsub.f32 %v5087, %v5313
  %v5315 = vand.u32 %v5314, 4294901760
  %v5316 = vsub.f32 %v5314, %v5315
  %v5317 = vand.u32 %v5316, 4294901760
  %5318 = vmatmul.f32.gmra.mxu0 %v5317
  %v5319 = vpop.f32.mrf.mxu0
  %v5320 = vadd.f32 %v5057, %v5319
  %v5321 = vand.u32 %v5090, 4294901760
  %v5322 = vsub.f32 %v5090, %v5321
  %v5323 = vand.u32 %v5322, 4294901760
  %v5324 = vsub.f32 %v5322, %v5323
  %v5325 = vand.u32 %v5324, 4294901760
  %5326 = vmatmul.f32.gmra.mxu0 %v5325
  %v5327 = vpop.f32.mrf.mxu0
  %v5328 = vadd.f32 %v5057, %v5327
  %v5329 = vand.u32 %v5093, 4294901760
  %v5330 = vsub.f32 %v5093, %v5329
  %v5331 = vand.u32 %v5330, 4294901760
  %v5332 = vsub.f32 %v5330, %v5331
  %v5333 = vand.u32 %v5332, 4294901760
  %5334 = vmatmul.f32.gmra.mxu0 %v5333
  %v5335 = vpop.f32.mrf.mxu0
  %v5336 = vadd.f32 %v5057, %v5335
  %v5337 = vand.u32 %v5096, 4294901760
  %v5338 = vsub.f32 %v5096, %v5337
  %v5339 = vand.u32 %v5338, 4294901760
  %v5340 = vsub.f32 %v5338, %v5339
  %v5341 = vand.u32 %v5340, 4294901760
  %5342 = vmatmul.f32.gmra.mxu0 %v5341
  %v5343 = vpop.f32.mrf.mxu0
  %v5344 = vadd.f32 %v5057, %v5343
  %v5345 = vand.u32 %v5099, 4294901760
  %v5346 = vsub.f32 %v5099, %v5345
  %v5347 = vand.u32 %v5346, 4294901760
  %v5348 = vsub.f32 %v5346, %v5347
  %v5349 = vand.u32 %v5348, 4294901760
  %5350 = vmatmul.f32.gmra.mxu0 %v5349
  %v5351 = vpop.f32.mrf.mxu0
  %v5352 = vadd.f32 %v5057, %v5351
  %v5353 = vand.u32 %v5102, 4294901760
  %v5354 = vsub.f32 %v5102, %v5353
  %v5355 = vand.u32 %v5354, 4294901760
  %v5356 = vsub.f32 %v5354, %v5355
  %v5357 = vand.u32 %v5356, 4294901760
  %5358 = vmatmul.f32.gmra.mxu0 %v5357
  %v5359 = vpop.f32.mrf.mxu0
  %v5360 = vadd.f32 %v5057, %v5359
  %v5361 = vand.u32 %v5105, 4294901760
  %v5362 = vsub.f32 %v5105, %v5361
  %v5363 = vand.u32 %v5362, 4294901760
  %v5364 = vsub.f32 %v5362, %v5363
  %v5365 = vand.u32 %v5364, 4294901760
  %5366 = vmatmul.f32.gmra.mxu0 %v5365
  %v5367 = vpop.f32.mrf.mxu0
  %v5368 = vadd.f32 %v5057, %v5367
  %v5369 = vand.u32 %v5108, 4294901760
  %v5370 = vsub.f32 %v5108, %v5369
  %v5371 = vand.u32 %v5370, 4294901760
  %v5372 = vsub.f32 %v5370, %v5371
  %v5373 = vand.u32 %v5372, 4294901760
  %5374 = vmatmul.f32.gmra.mxu0 %v5373
  %v5375 = vpop.f32.mrf.mxu0
  %v5376 = vadd.f32 %v5057, %v5375
  %v5377 = vand.u32 %v5111, 4294901760
  %v5378 = vsub.f32 %v5111, %v5377
  %v5379 = vand.u32 %v5378, 4294901760
  %v5380 = vsub.f32 %v5378, %v5379
  %v5381 = vand.u32 %v5380, 4294901760
  %5382 = vmatmul.f32.gmra.mxu0 %v5381
  %v5383 = vpop.f32.mrf.mxu0
  %v5384 = vadd.f32 %v5057, %v5383
  %v5385 = vand.u32 %v5114, 4294901760
  %v5386 = vsub.f32 %v5114, %v5385
  %v5387 = vand.u32 %v5386, 4294901760
  %v5388 = vsub.f32 %v5386, %v5387
  %v5389 = vand.u32 %v5388, 4294901760
  %5390 = vmatmul.f32.gmra.mxu0 %v5389
  %v5391 = vpop.f32.mrf.mxu0
  %v5392 = vadd.f32 %v5057, %v5391
  %v5393 = vand.u32 %v5117, 4294901760
  %v5394 = vsub.f32 %v5117, %v5393
  %v5395 = vand.u32 %v5394, 4294901760
  %v5396 = vsub.f32 %v5394, %v5395
  %v5397 = vand.u32 %v5396, 4294901760
  %5398 = vmatmul.f32.gmra.mxu0 %v5397
  %v5399 = vpop.f32.mrf.mxu0
  %v5400 = vadd.f32 %v5057, %v5399
  %v5401 = vand.u32 %v5120, 4294901760
  %v5402 = vsub.f32 %v5120, %v5401
  %v5403 = vand.u32 %v5402, 4294901760
  %v5404 = vsub.f32 %v5402, %v5403
  %v5405 = vand.u32 %v5404, 4294901760
  %5406 = vmatmul.f32.gmra.mxu0 %v5405
  %v5407 = vpop.f32.mrf.mxu0
  %v5408 = vadd.f32 %v5057, %v5407
  %v5409 = vand.u32 %v5123, 4294901760
  %v5410 = vsub.f32 %v5123, %v5409
  %v5411 = vand.u32 %v5410, 4294901760
  %v5412 = vsub.f32 %v5410, %v5411
  %v5413 = vand.u32 %v5412, 4294901760
  %5414 = vmatmul.f32.gmra.mxu0 %v5413
  %v5415 = vpop.f32.mrf.mxu0
  %v5416 = vadd.f32 %v5057, %v5415
  %v5417 = vand.u32 %v5126, 4294901760
  %v5418 = vsub.f32 %v5126, %v5417
  %v5419 = vand.u32 %v5418, 4294901760
  %v5420 = vsub.f32 %v5418, %v5419
  %v5421 = vand.u32 %v5420, 4294901760
  %5422 = vmatmul.f32.gmra.mxu0 %v5421
  %v5423 = vpop.f32.mrf.mxu0
  %v5424 = vadd.f32 %v5057, %v5423
  %v5425 = vand.u32 %v5129, 4294901760
  %v5426 = vsub.f32 %v5129, %v5425
  %v5427 = vand.u32 %v5426, 4294901760
  %v5428 = vsub.f32 %v5426, %v5427
  %v5429 = vand.u32 %v5428, 4294901760
  %5430 = vmatmul.f32.gmra.mxu0 %v5429
  %v5431 = vpop.f32.mrf.mxu0
  %v5432 = vadd.f32 %v5057, %v5431
  %v5433 = vand.u32 %v5132, 4294901760
  %v5434 = vsub.f32 %v5132, %v5433
  %v5435 = vand.u32 %v5434, 4294901760
  %v5436 = vsub.f32 %v5434, %v5435
  %v5437 = vand.u32 %v5436, 4294901760
  %5438 = vmatmul.f32.gmra.mxu0 %v5437
  %v5439 = vpop.f32.mrf.mxu0
  %v5440 = vadd.f32 %v5057, %v5439
  %v5441 = vand.u32 %v5135, 4294901760
  %v5442 = vsub.f32 %v5135, %v5441
  %v5443 = vand.u32 %v5442, 4294901760
  %v5444 = vsub.f32 %v5442, %v5443
  %v5445 = vand.u32 %v5444, 4294901760
  %5446 = vmatmul.f32.gmra.mxu0 %v5445
  %v5447 = vpop.f32.mrf.mxu0
  %v5448 = vadd.f32 %v5057, %v5447
  %v5449 = vand.u32 %v5138, 4294901760
  %v5450 = vsub.f32 %v5138, %v5449
  %v5451 = vand.u32 %v5450, 4294901760
  %v5452 = vsub.f32 %v5450, %v5451
  %v5453 = vand.u32 %v5452, 4294901760
  %5454 = vmatmul.f32.gmra.mxu0 %v5453
  %v5455 = vpop.f32.mrf.mxu0
  %v5456 = vadd.f32 %v5057, %v5455
  %v5457 = vand.u32 %v5141, 4294901760
  %v5458 = vsub.f32 %v5141, %v5457
  %v5459 = vand.u32 %v5458, 4294901760
  %v5460 = vsub.f32 %v5458, %v5459
  %v5461 = vand.u32 %v5460, 4294901760
  %5462 = vmatmul.f32.gmra.mxu0 %v5461
  %v5463 = vpop.f32.mrf.mxu0
  %v5464 = vadd.f32 %v5057, %v5463
  %v5465 = vand.u32 %v5144, 4294901760
  %v5466 = vsub.f32 %v5144, %v5465
  %v5467 = vand.u32 %v5466, 4294901760
  %v5468 = vsub.f32 %v5466, %v5467
  %v5469 = vand.u32 %v5468, 4294901760
  %5470 = vmatmul.f32.gmra.mxu0 %v5469
  %v5471 = vpop.f32.mrf.mxu0
  %v5472 = vadd.f32 %v5057, %v5471
  %v5473 = vand.u32 %v5147, 4294901760
  %v5474 = vsub.f32 %v5147, %v5473
  %v5475 = vand.u32 %v5474, 4294901760
  %v5476 = vsub.f32 %v5474, %v5475
  %v5477 = vand.u32 %v5476, 4294901760
  %5478 = vmatmul.f32.gmra.mxu0 %v5477
  %v5479 = vpop.f32.mrf.mxu0
  %v5480 = vadd.f32 %v5057, %v5479
  %v5481 = vand.u32 %v5150, 4294901760
  %v5482 = vsub.f32 %v5150, %v5481
  %v5483 = vand.u32 %v5482, 4294901760
  %v5484 = vsub.f32 %v5482, %v5483
  %v5485 = vand.u32 %v5484, 4294901760
  %5486 = vmatmul.f32.gmra.mxu0 %v5485
  %v5487 = vpop.f32.mrf.mxu0
  %v5488 = vadd.f32 %v5057, %v5487
  %v5489 = vand.u32 %v5153, 4294901760
  %v5490 = vsub.f32 %v5153, %v5489
  %v5491 = vand.u32 %v5490, 4294901760
  %v5492 = vsub.f32 %v5490, %v5491
  %v5493 = vand.u32 %v5492, 4294901760
  %5494 = vmatmul.f32.gmra.mxu0 %v5493
  %v5495 = vpop.f32.mrf.mxu0
  %v5496 = vadd.f32 %v5057, %v5495
  %v5497 = vand.u32 %v5156, 4294901760
  %v5498 = vsub.f32 %v5156, %v5497
  %v5499 = vand.u32 %v5498, 4294901760
  %v5500 = vsub.f32 %v5498, %v5499
  %v5501 = vand.u32 %v5500, 4294901760
  %5502 = vmatmul.f32.gmra.mxu0 %v5501
  %v5503 = vpop.f32.mrf.mxu0
  %v5504 = vadd.f32 %v5057, %v5503
  %v5505 = vand.u32 %v5159, 4294901760
  %v5506 = vsub.f32 %v5159, %v5505
  %v5507 = vand.u32 %v5506, 4294901760
  %v5508 = vsub.f32 %v5506, %v5507
  %v5509 = vand.u32 %v5508, 4294901760
  %5510 = vmatmul.f32.gmra.mxu0 %v5509
  %v5511 = vpop.f32.mrf.mxu0
  %v5512 = vadd.f32 %v5057, %v5511
  %v5513 = vand.u32 %v5162, 4294901760
  %v5514 = vsub.f32 %v5162, %v5513
  %v5515 = vand.u32 %v5514, 4294901760
  %v5516 = vsub.f32 %v5514, %v5515
  %v5517 = vand.u32 %v5516, 4294901760
  %5518 = vmatmul.f32.gmra.mxu0 %v5517
  %v5519 = vpop.f32.mrf.mxu0
  %v5520 = vadd.f32 %v5057, %v5519
  %v5521 = vand.u32 %v5165, 4294901760
  %v5522 = vsub.f32 %v5165, %v5521
  %v5523 = vand.u32 %v5522, 4294901760
  %v5524 = vsub.f32 %v5522, %v5523
  %v5525 = vand.u32 %v5524, 4294901760
  %5526 = vmatmul.f32.gmra.mxu0 %v5525
  %v5527 = vpop.f32.mrf.mxu0
  %v5528 = vadd.f32 %v5057, %v5527
  %v5529 = vand.u32 %v5168, 4294901760
  %v5530 = vsub.f32 %v5168, %v5529
  %v5531 = vand.u32 %v5530, 4294901760
  %v5532 = vsub.f32 %v5530, %v5531
  %v5533 = vand.u32 %v5532, 4294901760
  %5534 = vmatmul.f32.gmra.mxu0 %v5533
  %v5535 = vpop.f32.mrf.mxu0
  %v5536 = vadd.f32 %v5057, %v5535
  %v5537 = vand.u32 %v5171, 4294901760
  %v5538 = vsub.f32 %v5171, %v5537
  %v5539 = vand.u32 %v5538, 4294901760
  %v5540 = vsub.f32 %v5538, %v5539
  %v5541 = vand.u32 %v5540, 4294901760
  %5542 = vmatmul.f32.gmra.mxu0 %v5541
  %v5543 = vpop.f32.mrf.mxu0
  %v5544 = vadd.f32 %v5057, %v5543
  %v5545 = vand.u32 %v5174, 4294901760
  %v5546 = vsub.f32 %v5174, %v5545
  %v5547 = vand.u32 %v5546, 4294901760
  %v5548 = vsub.f32 %v5546, %v5547
  %v5549 = vand.u32 %v5548, 4294901760
  %5550 = vmatmul.f32.gmra.mxu0 %v5549
  %v5551 = vpop.f32.mrf.mxu0
  %v5552 = vadd.f32 %v5057, %v5551
  %v5553 = vand.u32 %v5177, 4294901760
  %v5554 = vsub.f32 %v5177, %v5553
  %v5555 = vand.u32 %v5554, 4294901760
  %v5556 = vsub.f32 %v5554, %v5555
  %v5557 = vand.u32 %v5556, 4294901760
  %5558 = vmatmul.f32.gmra.mxu0 %v5557
  %v5559 = vpop.f32.mrf.mxu0
  %v5560 = vadd.f32 %v5057, %v5559
  %v5561 = vand.u32 %v5180, 4294901760
  %v5562 = vsub.f32 %v5180, %v5561
  %v5563 = vand.u32 %v5562, 4294901760
  %v5564 = vsub.f32 %v5562, %v5563
  %v5565 = vand.u32 %v5564, 4294901760
  %5566 = vmatmul.f32.gmra.mxu0 %v5565
  %v5567 = vpop.f32.mrf.mxu0
  %v5568 = vadd.f32 %v5057, %v5567
  %v5569 = vand.u32 %v5183, 4294901760
  %v5570 = vsub.f32 %v5183, %v5569
  %v5571 = vand.u32 %v5570, 4294901760
  %v5572 = vsub.f32 %v5570, %v5571
  %v5573 = vand.u32 %v5572, 4294901760
  %5574 = vmatmul.f32.gmra.mxu0 %v5573
  %v5575 = vpop.f32.mrf.mxu0
  %v5576 = vadd.f32 %v5057, %v5575
  %v5577 = vand.u32 %v5186, 4294901760
  %v5578 = vsub.f32 %v5186, %v5577
  %v5579 = vand.u32 %v5578, 4294901760
  %v5580 = vsub.f32 %v5578, %v5579
  %v5581 = vand.u32 %v5580, 4294901760
  %5582 = vmatmul.f32.gmra.mxu0 %v5581
  %v5583 = vpop.f32.mrf.mxu0
  %v5584 = vadd.f32 %v5057, %v5583
  %v5585 = vand.u32 %v5189, 4294901760
  %v5586 = vsub.f32 %v5189, %v5585
  %v5587 = vand.u32 %v5586, 4294901760
  %v5588 = vsub.f32 %v5586, %v5587
  %v5589 = vand.u32 %v5588, 4294901760
  %5590 = vmatmul.f32.gmra.mxu0 %v5589
  %v5591 = vpop.f32.mrf.mxu0
  %v5592 = vadd.f32 %v5057, %v5591
  %v5593 = vand.u32 %v5192, 4294901760
  %v5594 = vsub.f32 %v5192, %v5593
  %v5595 = vand.u32 %v5594, 4294901760
  %v5596 = vsub.f32 %v5594, %v5595
  %v5597 = vand.u32 %v5596, 4294901760
  %5598 = vmatmul.f32.gmra.mxu0 %v5597
  %v5599 = vpop.f32.mrf.mxu0
  %v5600 = vadd.f32 %v5057, %v5599
  %v5601 = vand.u32 %v5195, 4294901760
  %v5602 = vsub.f32 %v5195, %v5601
  %v5603 = vand.u32 %v5602, 4294901760
  %v5604 = vsub.f32 %v5602, %v5603
  %v5605 = vand.u32 %v5604, 4294901760
  %5606 = vmatmul.f32.gmra.mxu0 %v5605
  %v5607 = vpop.f32.mrf.mxu0
  %v5608 = vadd.f32 %v5057, %v5607
  %v5609 = vand.u32 %v5198, 4294901760
  %v5610 = vsub.f32 %v5198, %v5609
  %v5611 = vand.u32 %v5610, 4294901760
  %v5612 = vsub.f32 %v5610, %v5611
  %v5613 = vand.u32 %v5612, 4294901760
  %5614 = vmatmul.f32.gmra.mxu0 %v5613
  %v5615 = vpop.f32.mrf.mxu0
  %v5616 = vadd.f32 %v5057, %v5615
  %v5617 = vand.u32 %v5201, 4294901760
  %v5618 = vsub.f32 %v5201, %v5617
  %v5619 = vand.u32 %v5618, 4294901760
  %v5620 = vsub.f32 %v5618, %v5619
  %v5621 = vand.u32 %v5620, 4294901760
  %5622 = vmatmul.f32.gmra.mxu0 %v5621
  %v5623 = vpop.f32.mrf.mxu0
  %v5624 = vadd.f32 %v5057, %v5623
  %v5625 = vand.u32 %v5204, 4294901760
  %v5626 = vsub.f32 %v5204, %v5625
  %v5627 = vand.u32 %v5626, 4294901760
  %v5628 = vsub.f32 %v5626, %v5627
  %v5629 = vand.u32 %v5628, 4294901760
  %5630 = vmatmul.f32.gmra.mxu0 %v5629
  %v5631 = vpop.f32.mrf.mxu0
  %v5632 = vadd.f32 %v5057, %v5631
  %v5633 = vand.u32 %v5207, 4294901760
  %v5634 = vsub.f32 %v5207, %v5633
  %v5635 = vand.u32 %v5634, 4294901760
  %v5636 = vsub.f32 %v5634, %v5635
  %v5637 = vand.u32 %v5636, 4294901760
  %5638 = vmatmul.f32.gmra.mxu0 %v5637
  %v5639 = vpop.f32.mrf.mxu0
  %v5640 = vadd.f32 %v5057, %v5639
  %v5641 = vand.u32 %v5210, 4294901760
  %v5642 = vsub.f32 %v5210, %v5641
  %v5643 = vand.u32 %v5642, 4294901760
  %v5644 = vsub.f32 %v5642, %v5643
  %v5645 = vand.u32 %v5644, 4294901760
  %5646 = vmatmul.f32.gmra.mxu0 %v5645
  %v5647 = vpop.f32.mrf.mxu0
  %v5648 = vadd.f32 %v5057, %v5647
  %v5649 = vand.u32 %v5213, 4294901760
  %v5650 = vsub.f32 %v5213, %v5649
  %v5651 = vand.u32 %v5650, 4294901760
  %v5652 = vsub.f32 %v5650, %v5651
  %v5653 = vand.u32 %v5652, 4294901760
  %5654 = vmatmul.f32.gmra.mxu0 %v5653
  %v5655 = vpop.f32.mrf.mxu0
  %v5656 = vadd.f32 %v5057, %v5655
  %v5657 = vand.u32 %v5216, 4294901760
  %v5658 = vsub.f32 %v5216, %v5657
  %v5659 = vand.u32 %v5658, 4294901760
  %v5660 = vsub.f32 %v5658, %v5659
  %v5661 = vand.u32 %v5660, 4294901760
  %5662 = vmatmul.f32.gmra.mxu0 %v5661
  %v5663 = vpop.f32.mrf.mxu0
  %v5664 = vadd.f32 %v5057, %v5663
  %v5665 = vand.u32 %v5219, 4294901760
  %v5666 = vsub.f32 %v5219, %v5665
  %v5667 = vand.u32 %v5666, 4294901760
  %v5668 = vsub.f32 %v5666, %v5667
  %v5669 = vand.u32 %v5668, 4294901760
  %5670 = vmatmul.f32.gmra.mxu0 %v5669
  %v5671 = vpop.f32.mrf.mxu0
  %v5672 = vadd.f32 %v5057, %v5671
  %5673 = vdwg.mxu0
  %5674 = vmatpush.msra.mxu0 0.0
  %5675 = vmatpush.msra.mxu0 0.0
  %5676 = vmatpush.msra.mxu0 0.0
  %5677 = vmatpush.msra.mxu0 0.0
  %5678 = vmatpush.msra.mxu0 0.0
  %5679 = vmatpush.msra.mxu0 0.0
  %5680 = vmatpush.msra.mxu0 0.0
  %5681 = vmatpush.msra.mxu0 0.0
  %5682 = vmatpush.msra.mxu0 0.0
  %5683 = vmatpush.msra.mxu0 0.0
  %5684 = vmatpush.msra.mxu0 0.0
  %5685 = vmatpush.msra.mxu0 0.0
  %v5686 = vand.u32 %v5054, 4294901760
  %v5687 = vsub.f32 %v5054, %v5686
  %v5688 = vand.u32 %v5687, 4294901760
  %v5689 = vsub.f32 %v5687, %v5688
  %v5690 = vand.u32 %v5689, 4294901760
  %5691 = vmatpush.msra.mxu0 %v5690
  %v5692 = vand.u32 %v5053, 4294901760
  %v5693 = vsub.f32 %v5053, %v5692
  %v5694 = vand.u32 %v5693, 4294901760
  %v5695 = vsub.f32 %v5693, %v5694
  %v5696 = vand.u32 %v5695, 4294901760
  %5697 = vmatpush.msra.mxu0 %v5696
  %v5698 = vand.u32 %v5052, 4294901760
  %v5699 = vsub.f32 %v5052, %v5698
  %v5700 = vand.u32 %v5699, 4294901760
  %v5701 = vsub.f32 %v5699, %v5700
  %v5702 = vand.u32 %v5701, 4294901760
  %5703 = vmatpush.msra.mxu0 %v5702
  %v5704 = vand.u32 %v5051, 4294901760
  %v5705 = vsub.f32 %v5051, %v5704
  %v5706 = vand.u32 %v5705, 4294901760
  %v5707 = vsub.f32 %v5705, %v5706
  %v5708 = vand.u32 %v5707, 4294901760
  %5709 = vmatpush.msra.mxu0 %v5708
  %v5710 = vand.u32 %v5060, 4294901760
  %5711 = vmatmul.f32.gmra.mxu0 %v5710
  %v5712 = vpop.f32.mrf.mxu0
  %v5713 = vadd.f32 %v5248, %v5712
  %v5714 = vand.u32 %v5063, 4294901760
  %5715 = vmatmul.f32.gmra.mxu0 %v5714
  %v5716 = vpop.f32.mrf.mxu0
  %v5717 = vadd.f32 %v5256, %v5716
  %v5718 = vand.u32 %v5066, 4294901760
  %5719 = vmatmul.f32.gmra.mxu0 %v5718
  %v5720 = vpop.f32.mrf.mxu0
  %v5721 = vadd.f32 %v5264, %v5720
  %v5722 = vand.u32 %v5069, 4294901760
  %5723 = vmatmul.f32.gmra.mxu0 %v5722
  %v5724 = vpop.f32.mrf.mxu0
  %v5725 = vadd.f32 %v5272, %v5724
  %v5726 = vand.u32 %v5072, 4294901760
  %5727 = vmatmul.f32.gmra.mxu0 %v5726
  %v5728 = vpop.f32.mrf.mxu0
  %v5729 = vadd.f32 %v5280, %v5728
  %v5730 = vand.u32 %v5075, 4294901760
  %5731 = vmatmul.f32.gmra.mxu0 %v5730
  %v5732 = vpop.f32.mrf.mxu0
  %v5733 = vadd.f32 %v5288, %v5732
  %v5734 = vand.u32 %v5078, 4294901760
  %5735 = vmatmul.f32.gmra.mxu0 %v5734
  %v5736 = vpop.f32.mrf.mxu0
  %v5737 = vadd.f32 %v5296, %v5736
  %v5738 = vand.u32 %v5081, 4294901760
  %5739 = vmatmul.f32.gmra.mxu0 %v5738
  %v5740 = vpop.f32.mrf.mxu0
  %v5741 = vadd.f32 %v5304, %v5740
  %v5742 = vand.u32 %v5084, 4294901760
  %5743 = vmatmul.f32.gmra.mxu0 %v5742
  %v5744 = vpop.f32.mrf.mxu0
  %v5745 = vadd.f32 %v5312, %v5744
  %v5746 = vand.u32 %v5087, 4294901760
  %5747 = vmatmul.f32.gmra.mxu0 %v5746
  %v5748 = vpop.f32.mrf.mxu0
  %v5749 = vadd.f32 %v5320, %v5748
  %v5750 = vand.u32 %v5090, 4294901760
  %5751 = vmatmul.f32.gmra.mxu0 %v5750
  %v5752 = vpop.f32.mrf.mxu0
  %v5753 = vadd.f32 %v5328, %v5752
  %v5754 = vand.u32 %v5093, 4294901760
  %5755 = vmatmul.f32.gmra.mxu0 %v5754
  %v5756 = vpop.f32.mrf.mxu0
  %v5757 = vadd.f32 %v5336, %v5756
  %v5758 = vand.u32 %v5096, 4294901760
  %5759 = vmatmul.f32.gmra.mxu0 %v5758
  %v5760 = vpop.f32.mrf.mxu0
  %v5761 = vadd.f32 %v5344, %v5760
  %v5762 = vand.u32 %v5099, 4294901760
  %5763 = vmatmul.f32.gmra.mxu0 %v5762
  %v5764 = vpop.f32.mrf.mxu0
  %v5765 = vadd.f32 %v5352, %v5764
  %v5766 = vand.u32 %v5102, 4294901760
  %5767 = vmatmul.f32.gmra.mxu0 %v5766
  %v5768 = vpop.f32.mrf.mxu0
  %v5769 = vadd.f32 %v5360, %v5768
  %v5770 = vand.u32 %v5105, 4294901760
  %5771 = vmatmul.f32.gmra.mxu0 %v5770
  %v5772 = vpop.f32.mrf.mxu0
  %v5773 = vadd.f32 %v5368, %v5772
  %v5774 = vand.u32 %v5108, 4294901760
  %5775 = vmatmul.f32.gmra.mxu0 %v5774
  %v5776 = vpop.f32.mrf.mxu0
  %v5777 = vadd.f32 %v5376, %v5776
  %v5778 = vand.u32 %v5111, 4294901760
  %5779 = vmatmul.f32.gmra.mxu0 %v5778
  %v5780 = vpop.f32.mrf.mxu0
  %v5781 = vadd.f32 %v5384, %v5780
  %v5782 = vand.u32 %v5114, 4294901760
  %5783 = vmatmul.f32.gmra.mxu0 %v5782
  %v5784 = vpop.f32.mrf.mxu0
  %v5785 = vadd.f32 %v5392, %v5784
  %v5786 = vand.u32 %v5117, 4294901760
  %5787 = vmatmul.f32.gmra.mxu0 %v5786
  %v5788 = vpop.f32.mrf.mxu0
  %v5789 = vadd.f32 %v5400, %v5788
  %v5790 = vand.u32 %v5120, 4294901760
  %5791 = vmatmul.f32.gmra.mxu0 %v5790
  %v5792 = vpop.f32.mrf.mxu0
  %v5793 = vadd.f32 %v5408, %v5792
  %v5794 = vand.u32 %v5123, 4294901760
  %5795 = vmatmul.f32.gmra.mxu0 %v5794
  %v5796 = vpop.f32.mrf.mxu0
  %v5797 = vadd.f32 %v5416, %v5796
  %v5798 = vand.u32 %v5126, 4294901760
  %5799 = vmatmul.f32.gmra.mxu0 %v5798
  %v5800 = vpop.f32.mrf.mxu0
  %v5801 = vadd.f32 %v5424, %v5800
  %v5802 = vand.u32 %v5129, 4294901760
  %5803 = vmatmul.f32.gmra.mxu0 %v5802
  %v5804 = vpop.f32.mrf.mxu0
  %v5805 = vadd.f32 %v5432, %v5804
  %v5806 = vand.u32 %v5132, 4294901760
  %5807 = vmatmul.f32.gmra.mxu0 %v5806
  %v5808 = vpop.f32.mrf.mxu0
  %v5809 = vadd.f32 %v5440, %v5808
  %v5810 = vand.u32 %v5135, 4294901760
  %5811 = vmatmul.f32.gmra.mxu0 %v5810
  %v5812 = vpop.f32.mrf.mxu0
  %v5813 = vadd.f32 %v5448, %v5812
  %v5814 = vand.u32 %v5138, 4294901760
  %5815 = vmatmul.f32.gmra.mxu0 %v5814
  %v5816 = vpop.f32.mrf.mxu0
  %v5817 = vadd.f32 %v5456, %v5816
  %v5818 = vand.u32 %v5141, 4294901760
  %5819 = vmatmul.f32.gmra.mxu0 %v5818
  %v5820 = vpop.f32.mrf.mxu0
  %v5821 = vadd.f32 %v5464, %v5820
  %v5822 = vand.u32 %v5144, 4294901760
  %5823 = vmatmul.f32.gmra.mxu0 %v5822
  %v5824 = vpop.f32.mrf.mxu0
  %v5825 = vadd.f32 %v5472, %v5824
  %v5826 = vand.u32 %v5147, 4294901760
  %5827 = vmatmul.f32.gmra.mxu0 %v5826
  %v5828 = vpop.f32.mrf.mxu0
  %v5829 = vadd.f32 %v5480, %v5828
  %v5830 = vand.u32 %v5150, 4294901760
  %5831 = vmatmul.f32.gmra.mxu0 %v5830
  %v5832 = vpop.f32.mrf.mxu0
  %v5833 = vadd.f32 %v5488, %v5832
  %v5834 = vand.u32 %v5153, 4294901760
  %5835 = vmatmul.f32.gmra.mxu0 %v5834
  %v5836 = vpop.f32.mrf.mxu0
  %v5837 = vadd.f32 %v5496, %v5836
  %v5838 = vand.u32 %v5156, 4294901760
  %5839 = vmatmul.f32.gmra.mxu0 %v5838
  %v5840 = vpop.f32.mrf.mxu0
  %v5841 = vadd.f32 %v5504, %v5840
  %v5842 = vand.u32 %v5159, 4294901760
  %5843 = vmatmul.f32.gmra.mxu0 %v5842
  %v5844 = vpop.f32.mrf.mxu0
  %v5845 = vadd.f32 %v5512, %v5844
  %v5846 = vand.u32 %v5162, 4294901760
  %5847 = vmatmul.f32.gmra.mxu0 %v5846
  %v5848 = vpop.f32.mrf.mxu0
  %v5849 = vadd.f32 %v5520, %v5848
  %v5850 = vand.u32 %v5165, 4294901760
  %5851 = vmatmul.f32.gmra.mxu0 %v5850
  %v5852 = vpop.f32.mrf.mxu0
  %v5853 = vadd.f32 %v5528, %v5852
  %v5854 = vand.u32 %v5168, 4294901760
  %5855 = vmatmul.f32.gmra.mxu0 %v5854
  %v5856 = vpop.f32.mrf.mxu0
  %v5857 = vadd.f32 %v5536, %v5856
  %v5858 = vand.u32 %v5171, 4294901760
  %5859 = vmatmul.f32.gmra.mxu0 %v5858
  %v5860 = vpop.f32.mrf.mxu0
  %v5861 = vadd.f32 %v5544, %v5860
  %v5862 = vand.u32 %v5174, 4294901760
  %5863 = vmatmul.f32.gmra.mxu0 %v5862
  %v5864 = vpop.f32.mrf.mxu0
  %v5865 = vadd.f32 %v5552, %v5864
  %v5866 = vand.u32 %v5177, 4294901760
  %5867 = vmatmul.f32.gmra.mxu0 %v5866
  %v5868 = vpop.f32.mrf.mxu0
  %v5869 = vadd.f32 %v5560, %v5868
  %v5870 = vand.u32 %v5180, 4294901760
  %5871 = vmatmul.f32.gmra.mxu0 %v5870
  %v5872 = vpop.f32.mrf.mxu0
  %v5873 = vadd.f32 %v5568, %v5872
  %v5874 = vand.u32 %v5183, 4294901760
  %5875 = vmatmul.f32.gmra.mxu0 %v5874
  %v5876 = vpop.f32.mrf.mxu0
  %v5877 = vadd.f32 %v5576, %v5876
  %v5878 = vand.u32 %v5186, 4294901760
  %5879 = vmatmul.f32.gmra.mxu0 %v5878
  %v5880 = vpop.f32.mrf.mxu0
  %v5881 = vadd.f32 %v5584, %v5880
  %v5882 = vand.u32 %v5189, 4294901760
  %5883 = vmatmul.f32.gmra.mxu0 %v5882
  %v5884 = vpop.f32.mrf.mxu0
  %v5885 = vadd.f32 %v5592, %v5884
  %v5886 = vand.u32 %v5192, 4294901760
  %5887 = vmatmul.f32.gmra.mxu0 %v5886
  %v5888 = vpop.f32.mrf.mxu0
  %v5889 = vadd.f32 %v5600, %v5888
  %v5890 = vand.u32 %v5195, 4294901760
  %5891 = vmatmul.f32.gmra.mxu0 %v5890
  %v5892 = vpop.f32.mrf.mxu0
  %v5893 = vadd.f32 %v5608, %v5892
  %v5894 = vand.u32 %v5198, 4294901760
  %5895 = vmatmul.f32.gmra.mxu0 %v5894
  %v5896 = vpop.f32.mrf.mxu0
  %v5897 = vadd.f32 %v5616, %v5896
  %v5898 = vand.u32 %v5201, 4294901760
  %5899 = vmatmul.f32.gmra.mxu0 %v5898
  %v5900 = vpop.f32.mrf.mxu0
  %v5901 = vadd.f32 %v5624, %v5900
  %v5902 = vand.u32 %v5204, 4294901760
  %5903 = vmatmul.f32.gmra.mxu0 %v5902
  %v5904 = vpop.f32.mrf.mxu0
  %v5905 = vadd.f32 %v5632, %v5904
  %v5906 = vand.u32 %v5207, 4294901760
  %5907 = vmatmul.f32.gmra.mxu0 %v5906
  %v5908 = vpop.f32.mrf.mxu0
  %v5909 = vadd.f32 %v5640, %v5908
  %v5910 = vand.u32 %v5210, 4294901760
  %5911 = vmatmul.f32.gmra.mxu0 %v5910
  %v5912 = vpop.f32.mrf.mxu0
  %v5913 = vadd.f32 %v5648, %v5912
  %v5914 = vand.u32 %v5213, 4294901760
  %5915 = vmatmul.f32.gmra.mxu0 %v5914
  %v5916 = vpop.f32.mrf.mxu0
  %v5917 = vadd.f32 %v5656, %v5916
  %v5918 = vand.u32 %v5216, 4294901760
  %5919 = vmatmul.f32.gmra.mxu0 %v5918
  %v5920 = vpop.f32.mrf.mxu0
  %v5921 = vadd.f32 %v5664, %v5920
  %v5922 = vand.u32 %v5219, 4294901760
  %5923 = vmatmul.f32.gmra.mxu0 %v5922
  %v5924 = vpop.f32.mrf.mxu0
  %v5925 = vadd.f32 %v5672, %v5924
  %5926 = vdwg.mxu0
  %5927 = vmatpush.msra.mxu0 0.0
  %5928 = vmatpush.msra.mxu0 0.0
  %5929 = vmatpush.msra.mxu0 0.0
  %5930 = vmatpush.msra.mxu0 0.0
  %5931 = vmatpush.msra.mxu0 0.0
  %5932 = vmatpush.msra.mxu0 0.0
  %5933 = vmatpush.msra.mxu0 0.0
  %5934 = vmatpush.msra.mxu0 0.0
  %5935 = vmatpush.msra.mxu0 0.0
  %5936 = vmatpush.msra.mxu0 0.0
  %5937 = vmatpush.msra.mxu0 0.0
  %5938 = vmatpush.msra.mxu0 0.0
  %v5939 = vand.u32 %v5054, 4294901760
  %v5940 = vsub.f32 %v5054, %v5939
  %5941 = vmatpush.msra.mxu0 %v5940
  %v5942 = vand.u32 %v5053, 4294901760
  %v5943 = vsub.f32 %v5053, %v5942
  %5944 = vmatpush.msra.mxu0 %v5943
  %v5945 = vand.u32 %v5052, 4294901760
  %v5946 = vsub.f32 %v5052, %v5945
  %5947 = vmatpush.msra.mxu0 %v5946
  %v5948 = vand.u32 %v5051, 4294901760
  %v5949 = vsub.f32 %v5051, %v5948
  %5950 = vmatpush.msra.mxu0 %v5949
  %v5951 = vand.u32 %v5060, 4294901760
  %v5952 = vsub.f32 %v5060, %v5951
  %5953 = vmatmul.f32.gmra.mxu0 %v5952
  %v5954 = vpop.f32.mrf.mxu0
  %v5955 = vadd.f32 %v5713, %v5954
  %v5956 = vand.u32 %v5063, 4294901760
  %v5957 = vsub.f32 %v5063, %v5956
  %5958 = vmatmul.f32.gmra.mxu0 %v5957
  %v5959 = vpop.f32.mrf.mxu0
  %v5960 = vadd.f32 %v5717, %v5959
  %v5961 = vand.u32 %v5066, 4294901760
  %v5962 = vsub.f32 %v5066, %v5961
  %5963 = vmatmul.f32.gmra.mxu0 %v5962
  %v5964 = vpop.f32.mrf.mxu0
  %v5965 = vadd.f32 %v5721, %v5964
  %v5966 = vand.u32 %v5069, 4294901760
  %v5967 = vsub.f32 %v5069, %v5966
  %5968 = vmatmul.f32.gmra.mxu0 %v5967
  %v5969 = vpop.f32.mrf.mxu0
  %v5970 = vadd.f32 %v5725, %v5969
  %v5971 = vand.u32 %v5072, 4294901760
  %v5972 = vsub.f32 %v5072, %v5971
  %5973 = vmatmul.f32.gmra.mxu0 %v5972
  %v5974 = vpop.f32.mrf.mxu0
  %v5975 = vadd.f32 %v5729, %v5974
  %v5976 = vand.u32 %v5075, 4294901760
  %v5977 = vsub.f32 %v5075, %v5976
  %5978 = vmatmul.f32.gmra.mxu0 %v5977
  %v5979 = vpop.f32.mrf.mxu0
  %v5980 = vadd.f32 %v5733, %v5979
  %v5981 = vand.u32 %v5078, 4294901760
  %v5982 = vsub.f32 %v5078, %v5981
  %5983 = vmatmul.f32.gmra.mxu0 %v5982
  %v5984 = vpop.f32.mrf.mxu0
  %v5985 = vadd.f32 %v5737, %v5984
  %v5986 = vand.u32 %v5081, 4294901760
  %v5987 = vsub.f32 %v5081, %v5986
  %5988 = vmatmul.f32.gmra.mxu0 %v5987
  %v5989 = vpop.f32.mrf.mxu0
  %v5990 = vadd.f32 %v5741, %v5989
  %v5991 = vand.u32 %v5084, 4294901760
  %v5992 = vsub.f32 %v5084, %v5991
  %5993 = vmatmul.f32.gmra.mxu0 %v5992
  %v5994 = vpop.f32.mrf.mxu0
  %v5995 = vadd.f32 %v5745, %v5994
  %v5996 = vand.u32 %v5087, 4294901760
  %v5997 = vsub.f32 %v5087, %v5996
  %5998 = vmatmul.f32.gmra.mxu0 %v5997
  %v5999 = vpop.f32.mrf.mxu0
  %v6000 = vadd.f32 %v5749, %v5999
  %v6001 = vand.u32 %v5090, 4294901760
  %v6002 = vsub.f32 %v5090, %v6001
  %6003 = vmatmul.f32.gmra.mxu0 %v6002
  %v6004 = vpop.f32.mrf.mxu0
  %v6005 = vadd.f32 %v5753, %v6004
  %v6006 = vand.u32 %v5093, 4294901760
  %v6007 = vsub.f32 %v5093, %v6006
  %6008 = vmatmul.f32.gmra.mxu0 %v6007
  %v6009 = vpop.f32.mrf.mxu0
  %v6010 = vadd.f32 %v5757, %v6009
  %v6011 = vand.u32 %v5096, 4294901760
  %v6012 = vsub.f32 %v5096, %v6011
  %6013 = vmatmul.f32.gmra.mxu0 %v6012
  %v6014 = vpop.f32.mrf.mxu0
  %v6015 = vadd.f32 %v5761, %v6014
  %v6016 = vand.u32 %v5099, 4294901760
  %v6017 = vsub.f32 %v5099, %v6016
  %6018 = vmatmul.f32.gmra.mxu0 %v6017
  %v6019 = vpop.f32.mrf.mxu0
  %v6020 = vadd.f32 %v5765, %v6019
  %v6021 = vand.u32 %v5102, 4294901760
  %v6022 = vsub.f32 %v5102, %v6021
  %6023 = vmatmul.f32.gmra.mxu0 %v6022
  %v6024 = vpop.f32.mrf.mxu0
  %v6025 = vadd.f32 %v5769, %v6024
  %v6026 = vand.u32 %v5105, 4294901760
  %v6027 = vsub.f32 %v5105, %v6026
  %6028 = vmatmul.f32.gmra.mxu0 %v6027
  %v6029 = vpop.f32.mrf.mxu0
  %v6030 = vadd.f32 %v5773, %v6029
  %v6031 = vand.u32 %v5108, 4294901760
  %v6032 = vsub.f32 %v5108, %v6031
  %6033 = vmatmul.f32.gmra.mxu0 %v6032
  %v6034 = vpop.f32.mrf.mxu0
  %v6035 = vadd.f32 %v5777, %v6034
  %v6036 = vand.u32 %v5111, 4294901760
  %v6037 = vsub.f32 %v5111, %v6036
  %6038 = vmatmul.f32.gmra.mxu0 %v6037
  %v6039 = vpop.f32.mrf.mxu0
  %v6040 = vadd.f32 %v5781, %v6039
  %v6041 = vand.u32 %v5114, 4294901760
  %v6042 = vsub.f32 %v5114, %v6041
  %6043 = vmatmul.f32.gmra.mxu0 %v6042
  %v6044 = vpop.f32.mrf.mxu0
  %v6045 = vadd.f32 %v5785, %v6044
  %v6046 = vand.u32 %v5117, 4294901760
  %v6047 = vsub.f32 %v5117, %v6046
  %6048 = vmatmul.f32.gmra.mxu0 %v6047
  %v6049 = vpop.f32.mrf.mxu0
  %v6050 = vadd.f32 %v5789, %v6049
  %v6051 = vand.u32 %v5120, 4294901760
  %v6052 = vsub.f32 %v5120, %v6051
  %6053 = vmatmul.f32.gmra.mxu0 %v6052
  %v6054 = vpop.f32.mrf.mxu0
  %v6055 = vadd.f32 %v5793, %v6054
  %v6056 = vand.u32 %v5123, 4294901760
  %v6057 = vsub.f32 %v5123, %v6056
  %6058 = vmatmul.f32.gmra.mxu0 %v6057
  %v6059 = vpop.f32.mrf.mxu0
  %v6060 = vadd.f32 %v5797, %v6059
  %v6061 = vand.u32 %v5126, 4294901760
  %v6062 = vsub.f32 %v5126, %v6061
  %6063 = vmatmul.f32.gmra.mxu0 %v6062
  %v6064 = vpop.f32.mrf.mxu0
  %v6065 = vadd.f32 %v5801, %v6064
  %v6066 = vand.u32 %v5129, 4294901760
  %v6067 = vsub.f32 %v5129, %v6066
  %6068 = vmatmul.f32.gmra.mxu0 %v6067
  %v6069 = vpop.f32.mrf.mxu0
  %v6070 = vadd.f32 %v5805, %v6069
  %v6071 = vand.u32 %v5132, 4294901760
  %v6072 = vsub.f32 %v5132, %v6071
  %6073 = vmatmul.f32.gmra.mxu0 %v6072
  %v6074 = vpop.f32.mrf.mxu0
  %v6075 = vadd.f32 %v5809, %v6074
  %v6076 = vand.u32 %v5135, 4294901760
  %v6077 = vsub.f32 %v5135, %v6076
  %6078 = vmatmul.f32.gmra.mxu0 %v6077
  %v6079 = vpop.f32.mrf.mxu0
  %v6080 = vadd.f32 %v5813, %v6079
  %v6081 = vand.u32 %v5138, 4294901760
  %v6082 = vsub.f32 %v5138, %v6081
  %6083 = vmatmul.f32.gmra.mxu0 %v6082
  %v6084 = vpop.f32.mrf.mxu0
  %v6085 = vadd.f32 %v5817, %v6084
  %v6086 = vand.u32 %v5141, 4294901760
  %v6087 = vsub.f32 %v5141, %v6086
  %6088 = vmatmul.f32.gmra.mxu0 %v6087
  %v6089 = vpop.f32.mrf.mxu0
  %v6090 = vadd.f32 %v5821, %v6089
  %v6091 = vand.u32 %v5144, 4294901760
  %v6092 = vsub.f32 %v5144, %v6091
  %6093 = vmatmul.f32.gmra.mxu0 %v6092
  %v6094 = vpop.f32.mrf.mxu0
  %v6095 = vadd.f32 %v5825, %v6094
  %v6096 = vand.u32 %v5147, 4294901760
  %v6097 = vsub.f32 %v5147, %v6096
  %6098 = vmatmul.f32.gmra.mxu0 %v6097
  %v6099 = vpop.f32.mrf.mxu0
  %v6100 = vadd.f32 %v5829, %v6099
  %v6101 = vand.u32 %v5150, 4294901760
  %v6102 = vsub.f32 %v5150, %v6101
  %6103 = vmatmul.f32.gmra.mxu0 %v6102
  %v6104 = vpop.f32.mrf.mxu0
  %v6105 = vadd.f32 %v5833, %v6104
  %v6106 = vand.u32 %v5153, 4294901760
  %v6107 = vsub.f32 %v5153, %v6106
  %6108 = vmatmul.f32.gmra.mxu0 %v6107
  %v6109 = vpop.f32.mrf.mxu0
  %v6110 = vadd.f32 %v5837, %v6109
  %v6111 = vand.u32 %v5156, 4294901760
  %v6112 = vsub.f32 %v5156, %v6111
  %6113 = vmatmul.f32.gmra.mxu0 %v6112
  %v6114 = vpop.f32.mrf.mxu0
  %v6115 = vadd.f32 %v5841, %v6114
  %v6116 = vand.u32 %v5159, 4294901760
  %v6117 = vsub.f32 %v5159, %v6116
  %6118 = vmatmul.f32.gmra.mxu0 %v6117
  %v6119 = vpop.f32.mrf.mxu0
  %v6120 = vadd.f32 %v5845, %v6119
  %v6121 = vand.u32 %v5162, 4294901760
  %v6122 = vsub.f32 %v5162, %v6121
  %6123 = vmatmul.f32.gmra.mxu0 %v6122
  %v6124 = vpop.f32.mrf.mxu0
  %v6125 = vadd.f32 %v5849, %v6124
  %v6126 = vand.u32 %v5165, 4294901760
  %v6127 = vsub.f32 %v5165, %v6126
  %6128 = vmatmul.f32.gmra.mxu0 %v6127
  %v6129 = vpop.f32.mrf.mxu0
  %v6130 = vadd.f32 %v5853, %v6129
  %v6131 = vand.u32 %v5168, 4294901760
  %v6132 = vsub.f32 %v5168, %v6131
  %6133 = vmatmul.f32.gmra.mxu0 %v6132
  %v6134 = vpop.f32.mrf.mxu0
  %v6135 = vadd.f32 %v5857, %v6134
  %v6136 = vand.u32 %v5171, 4294901760
  %v6137 = vsub.f32 %v5171, %v6136
  %6138 = vmatmul.f32.gmra.mxu0 %v6137
  %v6139 = vpop.f32.mrf.mxu0
  %v6140 = vadd.f32 %v5861, %v6139
  %v6141 = vand.u32 %v5174, 4294901760
  %v6142 = vsub.f32 %v5174, %v6141
  %6143 = vmatmul.f32.gmra.mxu0 %v6142
  %v6144 = vpop.f32.mrf.mxu0
  %v6145 = vadd.f32 %v5865, %v6144
  %v6146 = vand.u32 %v5177, 4294901760
  %v6147 = vsub.f32 %v5177, %v6146
  %6148 = vmatmul.f32.gmra.mxu0 %v6147
  %v6149 = vpop.f32.mrf.mxu0
  %v6150 = vadd.f32 %v5869, %v6149
  %v6151 = vand.u32 %v5180, 4294901760
  %v6152 = vsub.f32 %v5180, %v6151
  %6153 = vmatmul.f32.gmra.mxu0 %v6152
  %v6154 = vpop.f32.mrf.mxu0
  %v6155 = vadd.f32 %v5873, %v6154
  %v6156 = vand.u32 %v5183, 4294901760
  %v6157 = vsub.f32 %v5183, %v6156
  %6158 = vmatmul.f32.gmra.mxu0 %v6157
  %v6159 = vpop.f32.mrf.mxu0
  %v6160 = vadd.f32 %v5877, %v6159
  %v6161 = vand.u32 %v5186, 4294901760
  %v6162 = vsub.f32 %v5186, %v6161
  %6163 = vmatmul.f32.gmra.mxu0 %v6162
  %v6164 = vpop.f32.mrf.mxu0
  %v6165 = vadd.f32 %v5881, %v6164
  %v6166 = vand.u32 %v5189, 4294901760
  %v6167 = vsub.f32 %v5189, %v6166
  %6168 = vmatmul.f32.gmra.mxu0 %v6167
  %v6169 = vpop.f32.mrf.mxu0
  %v6170 = vadd.f32 %v5885, %v6169
  %v6171 = vand.u32 %v5192, 4294901760
  %v6172 = vsub.f32 %v5192, %v6171
  %6173 = vmatmul.f32.gmra.mxu0 %v6172
  %v6174 = vpop.f32.mrf.mxu0
  %v6175 = vadd.f32 %v5889, %v6174
  %v6176 = vand.u32 %v5195, 4294901760
  %v6177 = vsub.f32 %v5195, %v6176
  %6178 = vmatmul.f32.gmra.mxu0 %v6177
  %v6179 = vpop.f32.mrf.mxu0
  %v6180 = vadd.f32 %v5893, %v6179
  %v6181 = vand.u32 %v5198, 4294901760
  %v6182 = vsub.f32 %v5198, %v6181
  %6183 = vmatmul.f32.gmra.mxu0 %v6182
  %v6184 = vpop.f32.mrf.mxu0
  %v6185 = vadd.f32 %v5897, %v6184
  %v6186 = vand.u32 %v5201, 4294901760
  %v6187 = vsub.f32 %v5201, %v6186
  %6188 = vmatmul.f32.gmra.mxu0 %v6187
  %v6189 = vpop.f32.mrf.mxu0
  %v6190 = vadd.f32 %v5901, %v6189
  %v6191 = vand.u32 %v5204, 4294901760
  %v6192 = vsub.f32 %v5204, %v6191
  %6193 = vmatmul.f32.gmra.mxu0 %v6192
  %v6194 = vpop.f32.mrf.mxu0
  %v6195 = vadd.f32 %v5905, %v6194
  %v6196 = vand.u32 %v5207, 4294901760
  %v6197 = vsub.f32 %v5207, %v6196
  %6198 = vmatmul.f32.gmra.mxu0 %v6197
  %v6199 = vpop.f32.mrf.mxu0
  %v6200 = vadd.f32 %v5909, %v6199
  %v6201 = vand.u32 %v5210, 4294901760
  %v6202 = vsub.f32 %v5210, %v6201
  %6203 = vmatmul.f32.gmra.mxu0 %v6202
  %v6204 = vpop.f32.mrf.mxu0
  %v6205 = vadd.f32 %v5913, %v6204
  %v6206 = vand.u32 %v5213, 4294901760
  %v6207 = vsub.f32 %v5213, %v6206
  %6208 = vmatmul.f32.gmra.mxu0 %v6207
  %v6209 = vpop.f32.mrf.mxu0
  %v6210 = vadd.f32 %v5917, %v6209
  %v6211 = vand.u32 %v5216, 4294901760
  %v6212 = vsub.f32 %v5216, %v6211
  %6213 = vmatmul.f32.gmra.mxu0 %v6212
  %v6214 = vpop.f32.mrf.mxu0
  %v6215 = vadd.f32 %v5921, %v6214
  %v6216 = vand.u32 %v5219, 4294901760
  %v6217 = vsub.f32 %v5219, %v6216
  %6218 = vmatmul.f32.gmra.mxu0 %v6217
  %v6219 = vpop.f32.mrf.mxu0
  %v6220 = vadd.f32 %v5925, %v6219
  %6221 = vdwg.mxu0
  %6222 = vmatpush.msra.mxu0 0.0
  %6223 = vmatpush.msra.mxu0 0.0
  %6224 = vmatpush.msra.mxu0 0.0
  %6225 = vmatpush.msra.mxu0 0.0
  %6226 = vmatpush.msra.mxu0 0.0
  %6227 = vmatpush.msra.mxu0 0.0
  %6228 = vmatpush.msra.mxu0 0.0
  %6229 = vmatpush.msra.mxu0 0.0
  %6230 = vmatpush.msra.mxu0 0.0
  %6231 = vmatpush.msra.mxu0 0.0
  %6232 = vmatpush.msra.mxu0 0.0
  %6233 = vmatpush.msra.mxu0 0.0
  %v6234 = vand.u32 %v5054, 4294901760
  %6235 = vmatpush.msra.mxu0 %v6234
  %v6236 = vand.u32 %v5053, 4294901760
  %6237 = vmatpush.msra.mxu0 %v6236
  %v6238 = vand.u32 %v5052, 4294901760
  %6239 = vmatpush.msra.mxu0 %v6238
  %v6240 = vand.u32 %v5051, 4294901760
  %6241 = vmatpush.msra.mxu0 %v6240
  %v6242 = vand.u32 %v5060, 4294901760
  %v6243 = vsub.f32 %v5060, %v6242
  %v6244 = vand.u32 %v6243, 4294901760
  %6245 = vmatmul.f32.gmra.mxu0 %v6244
  %v6246 = vpop.f32.mrf.mxu0
  %v6247 = vadd.f32 %v5955, %v6246
  %v6248 = vand.u32 %v5063, 4294901760
  %v6249 = vsub.f32 %v5063, %v6248
  %v6250 = vand.u32 %v6249, 4294901760
  %6251 = vmatmul.f32.gmra.mxu0 %v6250
  %v6252 = vpop.f32.mrf.mxu0
  %v6253 = vadd.f32 %v5960, %v6252
  %v6254 = vand.u32 %v5066, 4294901760
  %v6255 = vsub.f32 %v5066, %v6254
  %v6256 = vand.u32 %v6255, 4294901760
  %6257 = vmatmul.f32.gmra.mxu0 %v6256
  %v6258 = vpop.f32.mrf.mxu0
  %v6259 = vadd.f32 %v5965, %v6258
  %v6260 = vand.u32 %v5069, 4294901760
  %v6261 = vsub.f32 %v5069, %v6260
  %v6262 = vand.u32 %v6261, 4294901760
  %6263 = vmatmul.f32.gmra.mxu0 %v6262
  %v6264 = vpop.f32.mrf.mxu0
  %v6265 = vadd.f32 %v5970, %v6264
  %v6266 = vand.u32 %v5072, 4294901760
  %v6267 = vsub.f32 %v5072, %v6266
  %v6268 = vand.u32 %v6267, 4294901760
  %6269 = vmatmul.f32.gmra.mxu0 %v6268
  %v6270 = vpop.f32.mrf.mxu0
  %v6271 = vadd.f32 %v5975, %v6270
  %v6272 = vand.u32 %v5075, 4294901760
  %v6273 = vsub.f32 %v5075, %v6272
  %v6274 = vand.u32 %v6273, 4294901760
  %6275 = vmatmul.f32.gmra.mxu0 %v6274
  %v6276 = vpop.f32.mrf.mxu0
  %v6277 = vadd.f32 %v5980, %v6276
  %v6278 = vand.u32 %v5078, 4294901760
  %v6279 = vsub.f32 %v5078, %v6278
  %v6280 = vand.u32 %v6279, 4294901760
  %6281 = vmatmul.f32.gmra.mxu0 %v6280
  %v6282 = vpop.f32.mrf.mxu0
  %v6283 = vadd.f32 %v5985, %v6282
  %v6284 = vand.u32 %v5081, 4294901760
  %v6285 = vsub.f32 %v5081, %v6284
  %v6286 = vand.u32 %v6285, 4294901760
  %6287 = vmatmul.f32.gmra.mxu0 %v6286
  %v6288 = vpop.f32.mrf.mxu0
  %v6289 = vadd.f32 %v5990, %v6288
  %v6290 = vand.u32 %v5084, 4294901760
  %v6291 = vsub.f32 %v5084, %v6290
  %v6292 = vand.u32 %v6291, 4294901760
  %6293 = vmatmul.f32.gmra.mxu0 %v6292
  %v6294 = vpop.f32.mrf.mxu0
  %v6295 = vadd.f32 %v5995, %v6294
  %v6296 = vand.u32 %v5087, 4294901760
  %v6297 = vsub.f32 %v5087, %v6296
  %v6298 = vand.u32 %v6297, 4294901760
  %6299 = vmatmul.f32.gmra.mxu0 %v6298
  %v6300 = vpop.f32.mrf.mxu0
  %v6301 = vadd.f32 %v6000, %v6300
  %v6302 = vand.u32 %v5090, 4294901760
  %v6303 = vsub.f32 %v5090, %v6302
  %v6304 = vand.u32 %v6303, 4294901760
  %6305 = vmatmul.f32.gmra.mxu0 %v6304
  %v6306 = vpop.f32.mrf.mxu0
  %v6307 = vadd.f32 %v6005, %v6306
  %v6308 = vand.u32 %v5093, 4294901760
  %v6309 = vsub.f32 %v5093, %v6308
  %v6310 = vand.u32 %v6309, 4294901760
  %6311 = vmatmul.f32.gmra.mxu0 %v6310
  %v6312 = vpop.f32.mrf.mxu0
  %v6313 = vadd.f32 %v6010, %v6312
  %v6314 = vand.u32 %v5096, 4294901760
  %v6315 = vsub.f32 %v5096, %v6314
  %v6316 = vand.u32 %v6315, 4294901760
  %6317 = vmatmul.f32.gmra.mxu0 %v6316
  %v6318 = vpop.f32.mrf.mxu0
  %v6319 = vadd.f32 %v6015, %v6318
  %v6320 = vand.u32 %v5099, 4294901760
  %v6321 = vsub.f32 %v5099, %v6320
  %v6322 = vand.u32 %v6321, 4294901760
  %6323 = vmatmul.f32.gmra.mxu0 %v6322
  %v6324 = vpop.f32.mrf.mxu0
  %v6325 = vadd.f32 %v6020, %v6324
  %v6326 = vand.u32 %v5102, 4294901760
  %v6327 = vsub.f32 %v5102, %v6326
  %v6328 = vand.u32 %v6327, 4294901760
  %6329 = vmatmul.f32.gmra.mxu0 %v6328
  %v6330 = vpop.f32.mrf.mxu0
  %v6331 = vadd.f32 %v6025, %v6330
  %v6332 = vand.u32 %v5105, 4294901760
  %v6333 = vsub.f32 %v5105, %v6332
  %v6334 = vand.u32 %v6333, 4294901760
  %6335 = vmatmul.f32.gmra.mxu0 %v6334
  %v6336 = vpop.f32.mrf.mxu0
  %v6337 = vadd.f32 %v6030, %v6336
  %v6338 = vand.u32 %v5108, 4294901760
  %v6339 = vsub.f32 %v5108, %v6338
  %v6340 = vand.u32 %v6339, 4294901760
  %6341 = vmatmul.f32.gmra.mxu0 %v6340
  %v6342 = vpop.f32.mrf.mxu0
  %v6343 = vadd.f32 %v6035, %v6342
  %v6344 = vand.u32 %v5111, 4294901760
  %v6345 = vsub.f32 %v5111, %v6344
  %v6346 = vand.u32 %v6345, 4294901760
  %6347 = vmatmul.f32.gmra.mxu0 %v6346
  %v6348 = vpop.f32.mrf.mxu0
  %v6349 = vadd.f32 %v6040, %v6348
  %v6350 = vand.u32 %v5114, 4294901760
  %v6351 = vsub.f32 %v5114, %v6350
  %v6352 = vand.u32 %v6351, 4294901760
  %6353 = vmatmul.f32.gmra.mxu0 %v6352
  %v6354 = vpop.f32.mrf.mxu0
  %v6355 = vadd.f32 %v6045, %v6354
  %v6356 = vand.u32 %v5117, 4294901760
  %v6357 = vsub.f32 %v5117, %v6356
  %v6358 = vand.u32 %v6357, 4294901760
  %6359 = vmatmul.f32.gmra.mxu0 %v6358
  %v6360 = vpop.f32.mrf.mxu0
  %v6361 = vadd.f32 %v6050, %v6360
  %v6362 = vand.u32 %v5120, 4294901760
  %v6363 = vsub.f32 %v5120, %v6362
  %v6364 = vand.u32 %v6363, 4294901760
  %6365 = vmatmul.f32.gmra.mxu0 %v6364
  %v6366 = vpop.f32.mrf.mxu0
  %v6367 = vadd.f32 %v6055, %v6366
  %v6368 = vand.u32 %v5123, 4294901760
  %v6369 = vsub.f32 %v5123, %v6368
  %v6370 = vand.u32 %v6369, 4294901760
  %6371 = vmatmul.f32.gmra.mxu0 %v6370
  %v6372 = vpop.f32.mrf.mxu0
  %v6373 = vadd.f32 %v6060, %v6372
  %v6374 = vand.u32 %v5126, 4294901760
  %v6375 = vsub.f32 %v5126, %v6374
  %v6376 = vand.u32 %v6375, 4294901760
  %6377 = vmatmul.f32.gmra.mxu0 %v6376
  %v6378 = vpop.f32.mrf.mxu0
  %v6379 = vadd.f32 %v6065, %v6378
  %v6380 = vand.u32 %v5129, 4294901760
  %v6381 = vsub.f32 %v5129, %v6380
  %v6382 = vand.u32 %v6381, 4294901760
  %6383 = vmatmul.f32.gmra.mxu0 %v6382
  %v6384 = vpop.f32.mrf.mxu0
  %v6385 = vadd.f32 %v6070, %v6384
  %v6386 = vand.u32 %v5132, 4294901760
  %v6387 = vsub.f32 %v5132, %v6386
  %v6388 = vand.u32 %v6387, 4294901760
  %6389 = vmatmul.f32.gmra.mxu0 %v6388
  %v6390 = vpop.f32.mrf.mxu0
  %v6391 = vadd.f32 %v6075, %v6390
  %v6392 = vand.u32 %v5135, 4294901760
  %v6393 = vsub.f32 %v5135, %v6392
  %v6394 = vand.u32 %v6393, 4294901760
  %6395 = vmatmul.f32.gmra.mxu0 %v6394
  %v6396 = vpop.f32.mrf.mxu0
  %v6397 = vadd.f32 %v6080, %v6396
  %v6398 = vand.u32 %v5138, 4294901760
  %v6399 = vsub.f32 %v5138, %v6398
  %v6400 = vand.u32 %v6399, 4294901760
  %6401 = vmatmul.f32.gmra.mxu0 %v6400
  %v6402 = vpop.f32.mrf.mxu0
  %v6403 = vadd.f32 %v6085, %v6402
  %v6404 = vand.u32 %v5141, 4294901760
  %v6405 = vsub.f32 %v5141, %v6404
  %v6406 = vand.u32 %v6405, 4294901760
  %6407 = vmatmul.f32.gmra.mxu0 %v6406
  %v6408 = vpop.f32.mrf.mxu0
  %v6409 = vadd.f32 %v6090, %v6408
  %v6410 = vand.u32 %v5144, 4294901760
  %v6411 = vsub.f32 %v5144, %v6410
  %v6412 = vand.u32 %v6411, 4294901760
  %6413 = vmatmul.f32.gmra.mxu0 %v6412
  %v6414 = vpop.f32.mrf.mxu0
  %v6415 = vadd.f32 %v6095, %v6414
  %v6416 = vand.u32 %v5147, 4294901760
  %v6417 = vsub.f32 %v5147, %v6416
  %v6418 = vand.u32 %v6417, 4294901760
  %6419 = vmatmul.f32.gmra.mxu0 %v6418
  %v6420 = vpop.f32.mrf.mxu0
  %v6421 = vadd.f32 %v6100, %v6420
  %v6422 = vand.u32 %v5150, 4294901760
  %v6423 = vsub.f32 %v5150, %v6422
  %v6424 = vand.u32 %v6423, 4294901760
  %6425 = vmatmul.f32.gmra.mxu0 %v6424
  %v6426 = vpop.f32.mrf.mxu0
  %v6427 = vadd.f32 %v6105, %v6426
  %v6428 = vand.u32 %v5153, 4294901760
  %v6429 = vsub.f32 %v5153, %v6428
  %v6430 = vand.u32 %v6429, 4294901760
  %6431 = vmatmul.f32.gmra.mxu0 %v6430
  %v6432 = vpop.f32.mrf.mxu0
  %v6433 = vadd.f32 %v6110, %v6432
  %v6434 = vand.u32 %v5156, 4294901760
  %v6435 = vsub.f32 %v5156, %v6434
  %v6436 = vand.u32 %v6435, 4294901760
  %6437 = vmatmul.f32.gmra.mxu0 %v6436
  %v6438 = vpop.f32.mrf.mxu0
  %v6439 = vadd.f32 %v6115, %v6438
  %v6440 = vand.u32 %v5159, 4294901760
  %v6441 = vsub.f32 %v5159, %v6440
  %v6442 = vand.u32 %v6441, 4294901760
  %6443 = vmatmul.f32.gmra.mxu0 %v6442
  %v6444 = vpop.f32.mrf.mxu0
  %v6445 = vadd.f32 %v6120, %v6444
  %v6446 = vand.u32 %v5162, 4294901760
  %v6447 = vsub.f32 %v5162, %v6446
  %v6448 = vand.u32 %v6447, 4294901760
  %6449 = vmatmul.f32.gmra.mxu0 %v6448
  %v6450 = vpop.f32.mrf.mxu0
  %v6451 = vadd.f32 %v6125, %v6450
  %v6452 = vand.u32 %v5165, 4294901760
  %v6453 = vsub.f32 %v5165, %v6452
  %v6454 = vand.u32 %v6453, 4294901760
  %6455 = vmatmul.f32.gmra.mxu0 %v6454
  %v6456 = vpop.f32.mrf.mxu0
  %v6457 = vadd.f32 %v6130, %v6456
  %v6458 = vand.u32 %v5168, 4294901760
  %v6459 = vsub.f32 %v5168, %v6458
  %v6460 = vand.u32 %v6459, 4294901760
  %6461 = vmatmul.f32.gmra.mxu0 %v6460
  %v6462 = vpop.f32.mrf.mxu0
  %v6463 = vadd.f32 %v6135, %v6462
  %v6464 = vand.u32 %v5171, 4294901760
  %v6465 = vsub.f32 %v5171, %v6464
  %v6466 = vand.u32 %v6465, 4294901760
  %6467 = vmatmul.f32.gmra.mxu0 %v6466
  %v6468 = vpop.f32.mrf.mxu0
  %v6469 = vadd.f32 %v6140, %v6468
  %v6470 = vand.u32 %v5174, 4294901760
  %v6471 = vsub.f32 %v5174, %v6470
  %v6472 = vand.u32 %v6471, 4294901760
  %6473 = vmatmul.f32.gmra.mxu0 %v6472
  %v6474 = vpop.f32.mrf.mxu0
  %v6475 = vadd.f32 %v6145, %v6474
  %v6476 = vand.u32 %v5177, 4294901760
  %v6477 = vsub.f32 %v5177, %v6476
  %v6478 = vand.u32 %v6477, 4294901760
  %6479 = vmatmul.f32.gmra.mxu0 %v6478
  %v6480 = vpop.f32.mrf.mxu0
  %v6481 = vadd.f32 %v6150, %v6480
  %v6482 = vand.u32 %v5180, 4294901760
  %v6483 = vsub.f32 %v5180, %v6482
  %v6484 = vand.u32 %v6483, 4294901760
  %6485 = vmatmul.f32.gmra.mxu0 %v6484
  %v6486 = vpop.f32.mrf.mxu0
  %v6487 = vadd.f32 %v6155, %v6486
  %v6488 = vand.u32 %v5183, 4294901760
  %v6489 = vsub.f32 %v5183, %v6488
  %v6490 = vand.u32 %v6489, 4294901760
  %6491 = vmatmul.f32.gmra.mxu0 %v6490
  %v6492 = vpop.f32.mrf.mxu0
  %v6493 = vadd.f32 %v6160, %v6492
  %v6494 = vand.u32 %v5186, 4294901760
  %v6495 = vsub.f32 %v5186, %v6494
  %v6496 = vand.u32 %v6495, 4294901760
  %6497 = vmatmul.f32.gmra.mxu0 %v6496
  %v6498 = vpop.f32.mrf.mxu0
  %v6499 = vadd.f32 %v6165, %v6498
  %v6500 = vand.u32 %v5189, 4294901760
  %v6501 = vsub.f32 %v5189, %v6500
  %v6502 = vand.u32 %v6501, 4294901760
  %6503 = vmatmul.f32.gmra.mxu0 %v6502
  %v6504 = vpop.f32.mrf.mxu0
  %v6505 = vadd.f32 %v6170, %v6504
  %v6506 = vand.u32 %v5192, 4294901760
  %v6507 = vsub.f32 %v5192, %v6506
  %v6508 = vand.u32 %v6507, 4294901760
  %6509 = vmatmul.f32.gmra.mxu0 %v6508
  %v6510 = vpop.f32.mrf.mxu0
  %v6511 = vadd.f32 %v6175, %v6510
  %v6512 = vand.u32 %v5195, 4294901760
  %v6513 = vsub.f32 %v5195, %v6512
  %v6514 = vand.u32 %v6513, 4294901760
  %6515 = vmatmul.f32.gmra.mxu0 %v6514
  %v6516 = vpop.f32.mrf.mxu0
  %v6517 = vadd.f32 %v6180, %v6516
  %v6518 = vand.u32 %v5198, 4294901760
  %v6519 = vsub.f32 %v5198, %v6518
  %v6520 = vand.u32 %v6519, 4294901760
  %6521 = vmatmul.f32.gmra.mxu0 %v6520
  %v6522 = vpop.f32.mrf.mxu0
  %v6523 = vadd.f32 %v6185, %v6522
  %v6524 = vand.u32 %v5201, 4294901760
  %v6525 = vsub.f32 %v5201, %v6524
  %v6526 = vand.u32 %v6525, 4294901760
  %6527 = vmatmul.f32.gmra.mxu0 %v6526
  %v6528 = vpop.f32.mrf.mxu0
  %v6529 = vadd.f32 %v6190, %v6528
  %v6530 = vand.u32 %v5204, 4294901760
  %v6531 = vsub.f32 %v5204, %v6530
  %v6532 = vand.u32 %v6531, 4294901760
  %6533 = vmatmul.f32.gmra.mxu0 %v6532
  %v6534 = vpop.f32.mrf.mxu0
  %v6535 = vadd.f32 %v6195, %v6534
  %v6536 = vand.u32 %v5207, 4294901760
  %v6537 = vsub.f32 %v5207, %v6536
  %v6538 = vand.u32 %v6537, 4294901760
  %6539 = vmatmul.f32.gmra.mxu0 %v6538
  %v6540 = vpop.f32.mrf.mxu0
  %v6541 = vadd.f32 %v6200, %v6540
  %v6542 = vand.u32 %v5210, 4294901760
  %v6543 = vsub.f32 %v5210, %v6542
  %v6544 = vand.u32 %v6543, 4294901760
  %6545 = vmatmul.f32.gmra.mxu0 %v6544
  %v6546 = vpop.f32.mrf.mxu0
  %v6547 = vadd.f32 %v6205, %v6546
  %v6548 = vand.u32 %v5213, 4294901760
  %v6549 = vsub.f32 %v5213, %v6548
  %v6550 = vand.u32 %v6549, 4294901760
  %6551 = vmatmul.f32.gmra.mxu0 %v6550
  %v6552 = vpop.f32.mrf.mxu0
  %v6553 = vadd.f32 %v6210, %v6552
  %v6554 = vand.u32 %v5216, 4294901760
  %v6555 = vsub.f32 %v5216, %v6554
  %v6556 = vand.u32 %v6555, 4294901760
  %6557 = vmatmul.f32.gmra.mxu0 %v6556
  %v6558 = vpop.f32.mrf.mxu0
  %v6559 = vadd.f32 %v6215, %v6558
  %v6560 = vand.u32 %v5219, 4294901760
  %v6561 = vsub.f32 %v5219, %v6560
  %v6562 = vand.u32 %v6561, 4294901760
  %6563 = vmatmul.f32.gmra.mxu0 %v6562
  %v6564 = vpop.f32.mrf.mxu0
  %v6565 = vadd.f32 %v6220, %v6564
  %6566 = vdwg.mxu0
  %6567 = vmatpush.msra.mxu0 0.0
  %6568 = vmatpush.msra.mxu0 0.0
  %6569 = vmatpush.msra.mxu0 0.0
  %6570 = vmatpush.msra.mxu0 0.0
  %6571 = vmatpush.msra.mxu0 0.0
  %6572 = vmatpush.msra.mxu0 0.0
  %6573 = vmatpush.msra.mxu0 0.0
  %6574 = vmatpush.msra.mxu0 0.0
  %6575 = vmatpush.msra.mxu0 0.0
  %6576 = vmatpush.msra.mxu0 0.0
  %6577 = vmatpush.msra.mxu0 0.0
  %6578 = vmatpush.msra.mxu0 0.0
  %v6579 = vand.u32 %v5054, 4294901760
  %v6580 = vsub.f32 %v5054, %v6579
  %v6581 = vand.u32 %v6580, 4294901760
  %6582 = vmatpush.msra.mxu0 %v6581
  %v6583 = vand.u32 %v5053, 4294901760
  %v6584 = vsub.f32 %v5053, %v6583
  %v6585 = vand.u32 %v6584, 4294901760
  %6586 = vmatpush.msra.mxu0 %v6585
  %v6587 = vand.u32 %v5052, 4294901760
  %v6588 = vsub.f32 %v5052, %v6587
  %v6589 = vand.u32 %v6588, 4294901760
  %6590 = vmatpush.msra.mxu0 %v6589
  %v6591 = vand.u32 %v5051, 4294901760
  %v6592 = vsub.f32 %v5051, %v6591
  %v6593 = vand.u32 %v6592, 4294901760
  %6594 = vmatpush.msra.mxu0 %v6593
  %v6595 = vand.u32 %v5060, 4294901760
  %6596 = vmatmul.f32.gmra.mxu0 %v6595
  %v6597 = vpop.f32.mrf.mxu0
  %v6598 = vadd.f32 %v6247, %v6597
  %v6599 = vand.u32 %v5063, 4294901760
  %6600 = vmatmul.f32.gmra.mxu0 %v6599
  %v6601 = vpop.f32.mrf.mxu0
  %v6602 = vadd.f32 %v6253, %v6601
  %v6603 = vand.u32 %v5066, 4294901760
  %6604 = vmatmul.f32.gmra.mxu0 %v6603
  %v6605 = vpop.f32.mrf.mxu0
  %v6606 = vadd.f32 %v6259, %v6605
  %v6607 = vand.u32 %v5069, 4294901760
  %6608 = vmatmul.f32.gmra.mxu0 %v6607
  %v6609 = vpop.f32.mrf.mxu0
  %v6610 = vadd.f32 %v6265, %v6609
  %v6611 = vand.u32 %v5072, 4294901760
  %6612 = vmatmul.f32.gmra.mxu0 %v6611
  %v6613 = vpop.f32.mrf.mxu0
  %v6614 = vadd.f32 %v6271, %v6613
  %v6615 = vand.u32 %v5075, 4294901760
  %6616 = vmatmul.f32.gmra.mxu0 %v6615
  %v6617 = vpop.f32.mrf.mxu0
  %v6618 = vadd.f32 %v6277, %v6617
  %v6619 = vand.u32 %v5078, 4294901760
  %6620 = vmatmul.f32.gmra.mxu0 %v6619
  %v6621 = vpop.f32.mrf.mxu0
  %v6622 = vadd.f32 %v6283, %v6621
  %v6623 = vand.u32 %v5081, 4294901760
  %6624 = vmatmul.f32.gmra.mxu0 %v6623
  %v6625 = vpop.f32.mrf.mxu0
  %v6626 = vadd.f32 %v6289, %v6625
  %v6627 = vand.u32 %v5084, 4294901760
  %6628 = vmatmul.f32.gmra.mxu0 %v6627
  %v6629 = vpop.f32.mrf.mxu0
  %v6630 = vadd.f32 %v6295, %v6629
  %v6631 = vand.u32 %v5087, 4294901760
  %6632 = vmatmul.f32.gmra.mxu0 %v6631
  %v6633 = vpop.f32.mrf.mxu0
  %v6634 = vadd.f32 %v6301, %v6633
  %v6635 = vand.u32 %v5090, 4294901760
  %6636 = vmatmul.f32.gmra.mxu0 %v6635
  %v6637 = vpop.f32.mrf.mxu0
  %v6638 = vadd.f32 %v6307, %v6637
  %v6639 = vand.u32 %v5093, 4294901760
  %6640 = vmatmul.f32.gmra.mxu0 %v6639
  %v6641 = vpop.f32.mrf.mxu0
  %v6642 = vadd.f32 %v6313, %v6641
  %v6643 = vand.u32 %v5096, 4294901760
  %6644 = vmatmul.f32.gmra.mxu0 %v6643
  %v6645 = vpop.f32.mrf.mxu0
  %v6646 = vadd.f32 %v6319, %v6645
  %v6647 = vand.u32 %v5099, 4294901760
  %6648 = vmatmul.f32.gmra.mxu0 %v6647
  %v6649 = vpop.f32.mrf.mxu0
  %v6650 = vadd.f32 %v6325, %v6649
  %v6651 = vand.u32 %v5102, 4294901760
  %6652 = vmatmul.f32.gmra.mxu0 %v6651
  %v6653 = vpop.f32.mrf.mxu0
  %v6654 = vadd.f32 %v6331, %v6653
  %v6655 = vand.u32 %v5105, 4294901760
  %6656 = vmatmul.f32.gmra.mxu0 %v6655
  %v6657 = vpop.f32.mrf.mxu0
  %v6658 = vadd.f32 %v6337, %v6657
  %v6659 = vand.u32 %v5108, 4294901760
  %6660 = vmatmul.f32.gmra.mxu0 %v6659
  %v6661 = vpop.f32.mrf.mxu0
  %v6662 = vadd.f32 %v6343, %v6661
  %v6663 = vand.u32 %v5111, 4294901760
  %6664 = vmatmul.f32.gmra.mxu0 %v6663
  %v6665 = vpop.f32.mrf.mxu0
  %v6666 = vadd.f32 %v6349, %v6665
  %v6667 = vand.u32 %v5114, 4294901760
  %6668 = vmatmul.f32.gmra.mxu0 %v6667
  %v6669 = vpop.f32.mrf.mxu0
  %v6670 = vadd.f32 %v6355, %v6669
  %v6671 = vand.u32 %v5117, 4294901760
  %6672 = vmatmul.f32.gmra.mxu0 %v6671
  %v6673 = vpop.f32.mrf.mxu0
  %v6674 = vadd.f32 %v6361, %v6673
  %v6675 = vand.u32 %v5120, 4294901760
  %6676 = vmatmul.f32.gmra.mxu0 %v6675
  %v6677 = vpop.f32.mrf.mxu0
  %v6678 = vadd.f32 %v6367, %v6677
  %v6679 = vand.u32 %v5123, 4294901760
  %6680 = vmatmul.f32.gmra.mxu0 %v6679
  %v6681 = vpop.f32.mrf.mxu0
  %v6682 = vadd.f32 %v6373, %v6681
  %v6683 = vand.u32 %v5126, 4294901760
  %6684 = vmatmul.f32.gmra.mxu0 %v6683
  %v6685 = vpop.f32.mrf.mxu0
  %v6686 = vadd.f32 %v6379, %v6685
  %v6687 = vand.u32 %v5129, 4294901760
  %6688 = vmatmul.f32.gmra.mxu0 %v6687
  %v6689 = vpop.f32.mrf.mxu0
  %v6690 = vadd.f32 %v6385, %v6689
  %v6691 = vand.u32 %v5132, 4294901760
  %6692 = vmatmul.f32.gmra.mxu0 %v6691
  %v6693 = vpop.f32.mrf.mxu0
  %v6694 = vadd.f32 %v6391, %v6693
  %v6695 = vand.u32 %v5135, 4294901760
  %6696 = vmatmul.f32.gmra.mxu0 %v6695
  %v6697 = vpop.f32.mrf.mxu0
  %v6698 = vadd.f32 %v6397, %v6697
  %v6699 = vand.u32 %v5138, 4294901760
  %6700 = vmatmul.f32.gmra.mxu0 %v6699
  %v6701 = vpop.f32.mrf.mxu0
  %v6702 = vadd.f32 %v6403, %v6701
  %v6703 = vand.u32 %v5141, 4294901760
  %6704 = vmatmul.f32.gmra.mxu0 %v6703
  %v6705 = vpop.f32.mrf.mxu0
  %v6706 = vadd.f32 %v6409, %v6705
  %v6707 = vand.u32 %v5144, 4294901760
  %6708 = vmatmul.f32.gmra.mxu0 %v6707
  %v6709 = vpop.f32.mrf.mxu0
  %v6710 = vadd.f32 %v6415, %v6709
  %v6711 = vand.u32 %v5147, 4294901760
  %6712 = vmatmul.f32.gmra.mxu0 %v6711
  %v6713 = vpop.f32.mrf.mxu0
  %v6714 = vadd.f32 %v6421, %v6713
  %v6715 = vand.u32 %v5150, 4294901760
  %6716 = vmatmul.f32.gmra.mxu0 %v6715
  %v6717 = vpop.f32.mrf.mxu0
  %v6718 = vadd.f32 %v6427, %v6717
  %v6719 = vand.u32 %v5153, 4294901760
  %6720 = vmatmul.f32.gmra.mxu0 %v6719
  %v6721 = vpop.f32.mrf.mxu0
  %v6722 = vadd.f32 %v6433, %v6721
  %v6723 = vand.u32 %v5156, 4294901760
  %6724 = vmatmul.f32.gmra.mxu0 %v6723
  %v6725 = vpop.f32.mrf.mxu0
  %v6726 = vadd.f32 %v6439, %v6725
  %v6727 = vand.u32 %v5159, 4294901760
  %6728 = vmatmul.f32.gmra.mxu0 %v6727
  %v6729 = vpop.f32.mrf.mxu0
  %v6730 = vadd.f32 %v6445, %v6729
  %v6731 = vand.u32 %v5162, 4294901760
  %6732 = vmatmul.f32.gmra.mxu0 %v6731
  %v6733 = vpop.f32.mrf.mxu0
  %v6734 = vadd.f32 %v6451, %v6733
  %v6735 = vand.u32 %v5165, 4294901760
  %6736 = vmatmul.f32.gmra.mxu0 %v6735
  %v6737 = vpop.f32.mrf.mxu0
  %v6738 = vadd.f32 %v6457, %v6737
  %v6739 = vand.u32 %v5168, 4294901760
  %6740 = vmatmul.f32.gmra.mxu0 %v6739
  %v6741 = vpop.f32.mrf.mxu0
  %v6742 = vadd.f32 %v6463, %v6741
  %v6743 = vand.u32 %v5171, 4294901760
  %6744 = vmatmul.f32.gmra.mxu0 %v6743
  %v6745 = vpop.f32.mrf.mxu0
  %v6746 = vadd.f32 %v6469, %v6745
  %v6747 = vand.u32 %v5174, 4294901760
  %6748 = vmatmul.f32.gmra.mxu0 %v6747
  %v6749 = vpop.f32.mrf.mxu0
  %v6750 = vadd.f32 %v6475, %v6749
  %v6751 = vand.u32 %v5177, 4294901760
  %6752 = vmatmul.f32.gmra.mxu0 %v6751
  %v6753 = vpop.f32.mrf.mxu0
  %v6754 = vadd.f32 %v6481, %v6753
  %v6755 = vand.u32 %v5180, 4294901760
  %6756 = vmatmul.f32.gmra.mxu0 %v6755
  %v6757 = vpop.f32.mrf.mxu0
  %v6758 = vadd.f32 %v6487, %v6757
  %v6759 = vand.u32 %v5183, 4294901760
  %6760 = vmatmul.f32.gmra.mxu0 %v6759
  %v6761 = vpop.f32.mrf.mxu0
  %v6762 = vadd.f32 %v6493, %v6761
  %v6763 = vand.u32 %v5186, 4294901760
  %6764 = vmatmul.f32.gmra.mxu0 %v6763
  %v6765 = vpop.f32.mrf.mxu0
  %v6766 = vadd.f32 %v6499, %v6765
  %v6767 = vand.u32 %v5189, 4294901760
  %6768 = vmatmul.f32.gmra.mxu0 %v6767
  %v6769 = vpop.f32.mrf.mxu0
  %v6770 = vadd.f32 %v6505, %v6769
  %v6771 = vand.u32 %v5192, 4294901760
  %6772 = vmatmul.f32.gmra.mxu0 %v6771
  %v6773 = vpop.f32.mrf.mxu0
  %v6774 = vadd.f32 %v6511, %v6773
  %v6775 = vand.u32 %v5195, 4294901760
  %6776 = vmatmul.f32.gmra.mxu0 %v6775
  %v6777 = vpop.f32.mrf.mxu0
  %v6778 = vadd.f32 %v6517, %v6777
  %v6779 = vand.u32 %v5198, 4294901760
  %6780 = vmatmul.f32.gmra.mxu0 %v6779
  %v6781 = vpop.f32.mrf.mxu0
  %v6782 = vadd.f32 %v6523, %v6781
  %v6783 = vand.u32 %v5201, 4294901760
  %6784 = vmatmul.f32.gmra.mxu0 %v6783
  %v6785 = vpop.f32.mrf.mxu0
  %v6786 = vadd.f32 %v6529, %v6785
  %v6787 = vand.u32 %v5204, 4294901760
  %6788 = vmatmul.f32.gmra.mxu0 %v6787
  %v6789 = vpop.f32.mrf.mxu0
  %v6790 = vadd.f32 %v6535, %v6789
  %v6791 = vand.u32 %v5207, 4294901760
  %6792 = vmatmul.f32.gmra.mxu0 %v6791
  %v6793 = vpop.f32.mrf.mxu0
  %v6794 = vadd.f32 %v6541, %v6793
  %v6795 = vand.u32 %v5210, 4294901760
  %6796 = vmatmul.f32.gmra.mxu0 %v6795
  %v6797 = vpop.f32.mrf.mxu0
  %v6798 = vadd.f32 %v6547, %v6797
  %v6799 = vand.u32 %v5213, 4294901760
  %6800 = vmatmul.f32.gmra.mxu0 %v6799
  %v6801 = vpop.f32.mrf.mxu0
  %v6802 = vadd.f32 %v6553, %v6801
  %v6803 = vand.u32 %v5216, 4294901760
  %6804 = vmatmul.f32.gmra.mxu0 %v6803
  %v6805 = vpop.f32.mrf.mxu0
  %v6806 = vadd.f32 %v6559, %v6805
  %v6807 = vand.u32 %v5219, 4294901760
  %6808 = vmatmul.f32.gmra.mxu0 %v6807
  %v6809 = vpop.f32.mrf.mxu0
  %v6810 = vadd.f32 %v6565, %v6809
  %6811 = vdwg.mxu0
  %6812 = vmatpush.msra.mxu0 0.0
  %6813 = vmatpush.msra.mxu0 0.0
  %6814 = vmatpush.msra.mxu0 0.0
  %6815 = vmatpush.msra.mxu0 0.0
  %6816 = vmatpush.msra.mxu0 0.0
  %6817 = vmatpush.msra.mxu0 0.0
  %6818 = vmatpush.msra.mxu0 0.0
  %6819 = vmatpush.msra.mxu0 0.0
  %6820 = vmatpush.msra.mxu0 0.0
  %6821 = vmatpush.msra.mxu0 0.0
  %6822 = vmatpush.msra.mxu0 0.0
  %6823 = vmatpush.msra.mxu0 0.0
  %v6824 = vand.u32 %v5054, 4294901760
  %6825 = vmatpush.msra.mxu0 %v6824
  %v6826 = vand.u32 %v5053, 4294901760
  %6827 = vmatpush.msra.mxu0 %v6826
  %v6828 = vand.u32 %v5052, 4294901760
  %6829 = vmatpush.msra.mxu0 %v6828
  %v6830 = vand.u32 %v5051, 4294901760
  %6831 = vmatpush.msra.mxu0 %v6830
  %v6832 = vand.u32 %v5060, 4294901760
  %6833 = vmatmul.f32.gmra.mxu0 %v6832
  %v6834 = vpop.f32.mrf.mxu0
  %v6835 = vadd.f32 %v6598, %v6834
  %v6836 = vand.u32 %v5063, 4294901760
  %6837 = vmatmul.f32.gmra.mxu0 %v6836
  %v6838 = vpop.f32.mrf.mxu0
  %v6839 = vadd.f32 %v6602, %v6838
  %v6840 = vand.u32 %v5066, 4294901760
  %6841 = vmatmul.f32.gmra.mxu0 %v6840
  %v6842 = vpop.f32.mrf.mxu0
  %v6843 = vadd.f32 %v6606, %v6842
  %v6844 = vand.u32 %v5069, 4294901760
  %6845 = vmatmul.f32.gmra.mxu0 %v6844
  %v6846 = vpop.f32.mrf.mxu0
  %v6847 = vadd.f32 %v6610, %v6846
  %v6848 = vand.u32 %v5072, 4294901760
  %6849 = vmatmul.f32.gmra.mxu0 %v6848
  %v6850 = vpop.f32.mrf.mxu0
  %v6851 = vadd.f32 %v6614, %v6850
  %v6852 = vand.u32 %v5075, 4294901760
  %6853 = vmatmul.f32.gmra.mxu0 %v6852
  %v6854 = vpop.f32.mrf.mxu0
  %v6855 = vadd.f32 %v6618, %v6854
  %v6856 = vand.u32 %v5078, 4294901760
  %6857 = vmatmul.f32.gmra.mxu0 %v6856
  %v6858 = vpop.f32.mrf.mxu0
  %v6859 = vadd.f32 %v6622, %v6858
  %v6860 = vand.u32 %v5081, 4294901760
  %6861 = vmatmul.f32.gmra.mxu0 %v6860
  %v6862 = vpop.f32.mrf.mxu0
  %v6863 = vadd.f32 %v6626, %v6862
  %v6864 = vand.u32 %v5084, 4294901760
  %6865 = vmatmul.f32.gmra.mxu0 %v6864
  %v6866 = vpop.f32.mrf.mxu0
  %v6867 = vadd.f32 %v6630, %v6866
  %v6868 = vand.u32 %v5087, 4294901760
  %6869 = vmatmul.f32.gmra.mxu0 %v6868
  %v6870 = vpop.f32.mrf.mxu0
  %v6871 = vadd.f32 %v6634, %v6870
  %v6872 = vand.u32 %v5090, 4294901760
  %6873 = vmatmul.f32.gmra.mxu0 %v6872
  %v6874 = vpop.f32.mrf.mxu0
  %v6875 = vadd.f32 %v6638, %v6874
  %v6876 = vand.u32 %v5093, 4294901760
  %6877 = vmatmul.f32.gmra.mxu0 %v6876
  %v6878 = vpop.f32.mrf.mxu0
  %v6879 = vadd.f32 %v6642, %v6878
  %v6880 = vand.u32 %v5096, 4294901760
  %6881 = vmatmul.f32.gmra.mxu0 %v6880
  %v6882 = vpop.f32.mrf.mxu0
  %v6883 = vadd.f32 %v6646, %v6882
  %v6884 = vand.u32 %v5099, 4294901760
  %6885 = vmatmul.f32.gmra.mxu0 %v6884
  %v6886 = vpop.f32.mrf.mxu0
  %v6887 = vadd.f32 %v6650, %v6886
  %v6888 = vand.u32 %v5102, 4294901760
  %6889 = vmatmul.f32.gmra.mxu0 %v6888
  %v6890 = vpop.f32.mrf.mxu0
  %v6891 = vadd.f32 %v6654, %v6890
  %v6892 = vand.u32 %v5105, 4294901760
  %6893 = vmatmul.f32.gmra.mxu0 %v6892
  %v6894 = vpop.f32.mrf.mxu0
  %v6895 = vadd.f32 %v6658, %v6894
  %v6896 = vand.u32 %v5108, 4294901760
  %6897 = vmatmul.f32.gmra.mxu0 %v6896
  %v6898 = vpop.f32.mrf.mxu0
  %v6899 = vadd.f32 %v6662, %v6898
  %v6900 = vand.u32 %v5111, 4294901760
  %6901 = vmatmul.f32.gmra.mxu0 %v6900
  %v6902 = vpop.f32.mrf.mxu0
  %v6903 = vadd.f32 %v6666, %v6902
  %v6904 = vand.u32 %v5114, 4294901760
  %6905 = vmatmul.f32.gmra.mxu0 %v6904
  %v6906 = vpop.f32.mrf.mxu0
  %v6907 = vadd.f32 %v6670, %v6906
  %v6908 = vand.u32 %v5117, 4294901760
  %6909 = vmatmul.f32.gmra.mxu0 %v6908
  %v6910 = vpop.f32.mrf.mxu0
  %v6911 = vadd.f32 %v6674, %v6910
  %v6912 = vand.u32 %v5120, 4294901760
  %6913 = vmatmul.f32.gmra.mxu0 %v6912
  %v6914 = vpop.f32.mrf.mxu0
  %v6915 = vadd.f32 %v6678, %v6914
  %v6916 = vand.u32 %v5123, 4294901760
  %6917 = vmatmul.f32.gmra.mxu0 %v6916
  %v6918 = vpop.f32.mrf.mxu0
  %v6919 = vadd.f32 %v6682, %v6918
  %v6920 = vand.u32 %v5126, 4294901760
  %6921 = vmatmul.f32.gmra.mxu0 %v6920
  %v6922 = vpop.f32.mrf.mxu0
  %v6923 = vadd.f32 %v6686, %v6922
  %v6924 = vand.u32 %v5129, 4294901760
  %6925 = vmatmul.f32.gmra.mxu0 %v6924
  %v6926 = vpop.f32.mrf.mxu0
  %v6927 = vadd.f32 %v6690, %v6926
  %v6928 = vand.u32 %v5132, 4294901760
  %6929 = vmatmul.f32.gmra.mxu0 %v6928
  %v6930 = vpop.f32.mrf.mxu0
  %v6931 = vadd.f32 %v6694, %v6930
  %v6932 = vand.u32 %v5135, 4294901760
  %6933 = vmatmul.f32.gmra.mxu0 %v6932
  %v6934 = vpop.f32.mrf.mxu0
  %v6935 = vadd.f32 %v6698, %v6934
  %v6936 = vand.u32 %v5138, 4294901760
  %6937 = vmatmul.f32.gmra.mxu0 %v6936
  %v6938 = vpop.f32.mrf.mxu0
  %v6939 = vadd.f32 %v6702, %v6938
  %v6940 = vand.u32 %v5141, 4294901760
  %6941 = vmatmul.f32.gmra.mxu0 %v6940
  %v6942 = vpop.f32.mrf.mxu0
  %v6943 = vadd.f32 %v6706, %v6942
  %v6944 = vand.u32 %v5144, 4294901760
  %6945 = vmatmul.f32.gmra.mxu0 %v6944
  %v6946 = vpop.f32.mrf.mxu0
  %v6947 = vadd.f32 %v6710, %v6946
  %v6948 = vand.u32 %v5147, 4294901760
  %6949 = vmatmul.f32.gmra.mxu0 %v6948
  %v6950 = vpop.f32.mrf.mxu0
  %v6951 = vadd.f32 %v6714, %v6950
  %v6952 = vand.u32 %v5150, 4294901760
  %6953 = vmatmul.f32.gmra.mxu0 %v6952
  %v6954 = vpop.f32.mrf.mxu0
  %v6955 = vadd.f32 %v6718, %v6954
  %v6956 = vand.u32 %v5153, 4294901760
  %6957 = vmatmul.f32.gmra.mxu0 %v6956
  %v6958 = vpop.f32.mrf.mxu0
  %v6959 = vadd.f32 %v6722, %v6958
  %v6960 = vand.u32 %v5156, 4294901760
  %6961 = vmatmul.f32.gmra.mxu0 %v6960
  %v6962 = vpop.f32.mrf.mxu0
  %v6963 = vadd.f32 %v6726, %v6962
  %v6964 = vand.u32 %v5159, 4294901760
  %6965 = vmatmul.f32.gmra.mxu0 %v6964
  %v6966 = vpop.f32.mrf.mxu0
  %v6967 = vadd.f32 %v6730, %v6966
  %v6968 = vand.u32 %v5162, 4294901760
  %6969 = vmatmul.f32.gmra.mxu0 %v6968
  %v6970 = vpop.f32.mrf.mxu0
  %v6971 = vadd.f32 %v6734, %v6970
  %v6972 = vand.u32 %v5165, 4294901760
  %6973 = vmatmul.f32.gmra.mxu0 %v6972
  %v6974 = vpop.f32.mrf.mxu0
  %v6975 = vadd.f32 %v6738, %v6974
  %v6976 = vand.u32 %v5168, 4294901760
  %6977 = vmatmul.f32.gmra.mxu0 %v6976
  %v6978 = vpop.f32.mrf.mxu0
  %v6979 = vadd.f32 %v6742, %v6978
  %v6980 = vand.u32 %v5171, 4294901760
  %6981 = vmatmul.f32.gmra.mxu0 %v6980
  %v6982 = vpop.f32.mrf.mxu0
  %v6983 = vadd.f32 %v6746, %v6982
  %v6984 = vand.u32 %v5174, 4294901760
  %6985 = vmatmul.f32.gmra.mxu0 %v6984
  %v6986 = vpop.f32.mrf.mxu0
  %v6987 = vadd.f32 %v6750, %v6986
  %v6988 = vand.u32 %v5177, 4294901760
  %6989 = vmatmul.f32.gmra.mxu0 %v6988
  %v6990 = vpop.f32.mrf.mxu0
  %v6991 = vadd.f32 %v6754, %v6990
  %v6992 = vand.u32 %v5180, 4294901760
  %6993 = vmatmul.f32.gmra.mxu0 %v6992
  %v6994 = vpop.f32.mrf.mxu0
  %v6995 = vadd.f32 %v6758, %v6994
  %v6996 = vand.u32 %v5183, 4294901760
  %6997 = vmatmul.f32.gmra.mxu0 %v6996
  %v6998 = vpop.f32.mrf.mxu0
  %v6999 = vadd.f32 %v6762, %v6998
  %v7000 = vand.u32 %v5186, 4294901760
  %7001 = vmatmul.f32.gmra.mxu0 %v7000
  %v7002 = vpop.f32.mrf.mxu0
  %v7003 = vadd.f32 %v6766, %v7002
  %v7004 = vand.u32 %v5189, 4294901760
  %7005 = vmatmul.f32.gmra.mxu0 %v7004
  %v7006 = vpop.f32.mrf.mxu0
  %v7007 = vadd.f32 %v6770, %v7006
  %v7008 = vand.u32 %v5192, 4294901760
  %7009 = vmatmul.f32.gmra.mxu0 %v7008
  %v7010 = vpop.f32.mrf.mxu0
  %v7011 = vadd.f32 %v6774, %v7010
  %v7012 = vand.u32 %v5195, 4294901760
  %7013 = vmatmul.f32.gmra.mxu0 %v7012
  %v7014 = vpop.f32.mrf.mxu0
  %v7015 = vadd.f32 %v6778, %v7014
  %v7016 = vand.u32 %v5198, 4294901760
  %7017 = vmatmul.f32.gmra.mxu0 %v7016
  %v7018 = vpop.f32.mrf.mxu0
  %v7019 = vadd.f32 %v6782, %v7018
  %v7020 = vand.u32 %v5201, 4294901760
  %7021 = vmatmul.f32.gmra.mxu0 %v7020
  %v7022 = vpop.f32.mrf.mxu0
  %v7023 = vadd.f32 %v6786, %v7022
  %v7024 = vand.u32 %v5204, 4294901760
  %7025 = vmatmul.f32.gmra.mxu0 %v7024
  %v7026 = vpop.f32.mrf.mxu0
  %v7027 = vadd.f32 %v6790, %v7026
  %v7028 = vand.u32 %v5207, 4294901760
  %7029 = vmatmul.f32.gmra.mxu0 %v7028
  %v7030 = vpop.f32.mrf.mxu0
  %v7031 = vadd.f32 %v6794, %v7030
  %v7032 = vand.u32 %v5210, 4294901760
  %7033 = vmatmul.f32.gmra.mxu0 %v7032
  %v7034 = vpop.f32.mrf.mxu0
  %v7035 = vadd.f32 %v6798, %v7034
  %v7036 = vand.u32 %v5213, 4294901760
  %7037 = vmatmul.f32.gmra.mxu0 %v7036
  %v7038 = vpop.f32.mrf.mxu0
  %v7039 = vadd.f32 %v6802, %v7038
  %v7040 = vand.u32 %v5216, 4294901760
  %7041 = vmatmul.f32.gmra.mxu0 %v7040
  %v7042 = vpop.f32.mrf.mxu0
  %v7043 = vadd.f32 %v6806, %v7042
  %v7044 = vand.u32 %v5219, 4294901760
  %7045 = vmatmul.f32.gmra.mxu0 %v7044
  %v7046 = vpop.f32.mrf.mxu0
  %v7047 = vadd.f32 %v6810, %v7046
  %7048 = vdwg.mxu0
  %7049 = vst [vmem:[%s12] sm:$0xff] %v6835
  %7050 = vst [vmem:[%s12 + $0x8] sm:$0xff] %v6839
  %7051 = vst [vmem:[%s12 + $0x10] sm:$0xff] %v6843
  %7052 = vst [vmem:[%s12 + $0x18] sm:$0xff] %v6847
  %7053 = vst [vmem:[%s12 + $0x20] sm:$0xff] %v6851
  %7054 = vst [vmem:[%s12 + $0x28] sm:$0xff] %v6855
  %7055 = vst [vmem:[%s12 + $0x30] sm:$0xff] %v6859
  %7056 = vst [vmem:[%s12 + $0x38] sm:$0xff] %v6863
  %7057 = vst [vmem:[%s12 + $0x40] sm:$0xff] %v6867
  %7058 = vst [vmem:[%s12 + $0x48] sm:$0xff] %v6871
  %7059 = vst [vmem:[%s12 + $0x50] sm:$0xff] %v6875
  %7060 = vst [vmem:[%s12 + $0x58] sm:$0xff] %v6879
  %7061 = vst [vmem:[%s12 + $0x60] sm:$0xff] %v6883
  %7062 = vst [vmem:[%s12 + $0x68] sm:$0xff] %v6887
  %7063 = vst [vmem:[%s12 + $0x70] sm:$0xff] %v6891
  %7064 = vst [vmem:[%s12 + $0x78] sm:$0xff] %v6895
  %7065 = vst [vmem:[%s12 + $0x80] sm:$0xff] %v6899
  %7066 = vst [vmem:[%s12 + $0x88] sm:$0xff] %v6903
  %7067 = vst [vmem:[%s12 + $0x90] sm:$0xff] %v6907
  %7068 = vst [vmem:[%s12 + $0x98] sm:$0xff] %v6911
  %7069 = vst [vmem:[%s12 + $0xa0] sm:$0xff] %v6915
  %7070 = vst [vmem:[%s12 + $0xa8] sm:$0xff] %v6919
  %7071 = vst [vmem:[%s12 + $0xb0] sm:$0xff] %v6923
  %7072 = vst [vmem:[%s12 + $0xb8] sm:$0xff] %v6927
  %7073 = vst [vmem:[%s12 + $0xc0] sm:$0xff] %v6931
  %7074 = vst [vmem:[%s12 + $0xc8] sm:$0xff] %v6935
  %7075 = vst [vmem:[%s12 + $0xd0] sm:$0xff] %v6939
  %7076 = vst [vmem:[%s12 + $0xd8] sm:$0xff] %v6943
  %7077 = vst [vmem:[%s12 + $0xe0] sm:$0xff] %v6947
  %7078 = vst [vmem:[%s12 + $0xe8] sm:$0xff] %v6951
  %7079 = vst [vmem:[%s12 + $0xf0] sm:$0xff] %v6955
  %7080 = vst [vmem:[%s12 + $0xf8] sm:$0xff] %v6959
  %7081 = vst [vmem:[%s12 + $0x100] sm:$0xff] %v6963
  %7082 = vst [vmem:[%s12 + $0x108] sm:$0xff] %v6967
  %7083 = vst [vmem:[%s12 + $0x110] sm:$0xff] %v6971
  %7084 = vst [vmem:[%s12 + $0x118] sm:$0xff] %v6975
  %7085 = vst [vmem:[%s12 + $0x120] sm:$0xff] %v6979
  %7086 = vst [vmem:[%s12 + $0x128] sm:$0xff] %v6983
  %7087 = vst [vmem:[%s12 + $0x130] sm:$0xff] %v6987
  %7088 = vst [vmem:[%s12 + $0x138] sm:$0xff] %v6991
  %7089 = vst [vmem:[%s12 + $0x140] sm:$0xff] %v6995
  %7090 = vst [vmem:[%s12 + $0x148] sm:$0xff] %v6999
  %7091 = vst [vmem:[%s12 + $0x150] sm:$0xff] %v7003
  %7092 = vst [vmem:[%s12 + $0x158] sm:$0xff] %v7007
  %7093 = vst [vmem:[%s12 + $0x160] sm:$0xff] %v7011
  %7094 = vst [vmem:[%s12 + $0x168] sm:$0xff] %v7015
  %7095 = vst [vmem:[%s12 + $0x170] sm:$0xff] %v7019
  %7096 = vst [vmem:[%s12 + $0x178] sm:$0xff] %v7023
  %7097 = vst [vmem:[%s12 + $0x180] sm:$0xff] %v7027
  %7098 = vst [vmem:[%s12 + $0x188] sm:$0xff] %v7031
  %7099 = vst [vmem:[%s12 + $0x190] sm:$0xff] %v7035
  %7100 = vst [vmem:[%s12 + $0x198] sm:$0xff] %v7039
  %7101 = vst [vmem:[%s12 + $0x1a0] sm:$0xff] %v7043
  %7102 = vst [vmem:[%s12 + $0x1a8] sm:$0xff] %v7047
  // Predicated region
  $region57: #{decoder_forward.1} parent=0 // pred_check
    _
  $region58: #{decoder_forward.1} parent=0 // pred_check_branch
    %7104 = sbr.rel (0) target = $region60
  $region59: #{decoder_forward.1} parent=0 // pred_region
    _
  $region60: #{decoder_forward.1} parent=0 // pred_fallthru
    _
  // Predicated region
  $region61: #{decoder_forward.1} parent=0 // pred_check
    _
  $region62: #{decoder_forward.1} parent=0 // pred_check_branch
    %7106 = sbr.rel (0) target = $region64
  $region63: #{decoder_forward.1} parent=0 // pred_region
    _
  $region64: #{decoder_forward.1} parent=0 // pred_fallthru
    _

</llo_original>
